<compile_context>
chip_gen: v7x
topology: tpu7x:2x2x1
jax: 0.10.0
libtpu: 0.0.40
codegen_flags: <defaults>
</compile_context>

<pallas_src>
import functools

import jax
import jax.numpy as jnp
from jax.experimental import pallas as pl
from jax.experimental.pallas import tpu as pltpu


# ----------------------------------------------------------------------------
# Tiling helper
# ----------------------------------------------------------------------------
def _pick_m_tile(M, K, N, *, budget_bytes=10 * 1024 * 1024, max_tile=1024):
    """Largest power-of-two M tile that divides M and keeps the double-buffered
    working set (bf16 LHS + f32 out tiles + resident bf16 weight) within a
    conservative VMEM budget (sized for v7x's 64 MiB physical VMEM)."""
    per_row = 2 * (K * 2) + 2 * (N * 4)      # 2x bf16 LHS rows + 2x f32 out rows
    fixed = K * N * 2 + N * 4                # resident weight (bf16) + bias
    avail = max(budget_bytes - fixed, per_row * 8)
    t = min(max_tile, max(8, avail // per_row))
    tile = 8
    while tile * 2 <= t and M % (tile * 2) == 0:
        tile *= 2
    if M % tile != 0 or M <= tile:
        return M                              # small / awkward M: single block
    return tile


# ----------------------------------------------------------------------------
# Pallas kernels
# ----------------------------------------------------------------------------
def _matmul_kernel(*refs, activation, has_bias):
    if has_bias:
        a_ref, b_ref, bias_ref, o_ref = refs
    else:
        a_ref, b_ref, o_ref = refs
    acc = jnp.dot(a_ref[...], b_ref[...], preferred_element_type=jnp.float32)
    if has_bias:
        acc = acc + bias_ref[...]
    if activation == "sigmoid":
        acc = jax.nn.sigmoid(acc)
    o_ref[...] = acc.astype(o_ref.dtype)


def pallas_matmul(a, b, bias=None, activation=None):
    """(M, K) @ (K, N) [+ bias] [sigmoid].  bf16 operands, f32 accumulation,
    1-D parallel grid over M, weight (and bias) resident in VMEM."""
    M, K = a.shape
    K2, N = b.shape
    assert K == K2
    has_bias = bias is not None
    tm = _pick_m_tile(M, K, N)
    grid = (M // tm,)

    in_specs = [
        pl.BlockSpec((tm, K), lambda i: (i, 0)),
        pl.BlockSpec((K, N), lambda i: (0, 0)),
    ]
    args = [a.astype(jnp.bfloat16), b.astype(jnp.bfloat16)]
    if has_bias:
        in_specs.append(pl.BlockSpec((1, N), lambda i: (0, 0)))
        args.append(bias.reshape(1, N).astype(jnp.float32))

    kern = functools.partial(_matmul_kernel, activation=activation,
                             has_bias=has_bias)
    return pl.pallas_call(
        kern,
        out_shape=jax.ShapeDtypeStruct((M, N), jnp.float32),
        grid=grid,
        in_specs=in_specs,
        out_specs=pl.BlockSpec((tm, N), lambda i: (i, 0)),
        compiler_params=pltpu.CompilerParams(
            dimension_semantics=("parallel",),
            vmem_limit_bytes=32 * 1024 * 1024),
    )(*args)


def _bn_stats_kernel(x_ref, sum_ref, ssq_ref):
    @pl.when(pl.program_id(0) == 0)
    def _():
        sum_ref[...] = jnp.zeros_like(sum_ref)
        ssq_ref[...] = jnp.zeros_like(ssq_ref)

    x = x_ref[...]
    sum_ref[...] += jnp.sum(x, axis=0, keepdims=True)
    ssq_ref[...] += jnp.sum(x * x, axis=0, keepdims=True)


def pallas_bn_stats(x2d):
    """Per-channel (sum, sum-of-squares) of an (M, C) f32 slab, tiled over M.
    Outputs stay resident in VMEM across the reduction grid (pl.when init)."""
    M, C = x2d.shape
    tm = _pick_m_tile(M, C, C, max_tile=2048)
    return pl.pallas_call(
        _bn_stats_kernel,
        out_shape=(jax.ShapeDtypeStruct((1, C), jnp.float32),
                   jax.ShapeDtypeStruct((1, C), jnp.float32)),
        grid=(M // tm,),
        in_specs=[pl.BlockSpec((tm, C), lambda i: (i, 0))],
        out_specs=(pl.BlockSpec((1, C), lambda i: (0, 0)),
                   pl.BlockSpec((1, C), lambda i: (0, 0))),
        compiler_params=pltpu.CompilerParams(
            dimension_semantics=("arbitrary",)),
    )(x2d)


def _bn_apply_kernel(x_ref, scale_ref, shift_ref, o_ref, *, slope, apply_lrelu):
    y = x_ref[...] * scale_ref[...] + shift_ref[...]
    if apply_lrelu:
        y = jnp.where(y >= 0, y, slope * y)
    o_ref[...] = y.astype(o_ref.dtype)


def pallas_bn_apply(x2d, scale, shift, *, slope, apply_lrelu,
                    out_dtype=jnp.bfloat16):
    """Tiled y = scale*x + shift (+ LeakyReLU); math in f32, stored as bf16."""
    M, C = x2d.shape
    tm = _pick_m_tile(M, C, C, max_tile=2048)
    kern = functools.partial(_bn_apply_kernel, slope=slope,
                             apply_lrelu=apply_lrelu)
    return pl.pallas_call(
        kern,
        out_shape=jax.ShapeDtypeStruct((M, C), out_dtype),
        grid=(M // tm,),
        in_specs=[pl.BlockSpec((tm, C), lambda i: (i, 0)),
                  pl.BlockSpec((1, C), lambda i: (0, 0)),
                  pl.BlockSpec((1, C), lambda i: (0, 0))],
        out_specs=pl.BlockSpec((tm, C), lambda i: (i, 0)),
        compiler_params=pltpu.CompilerParams(
            dimension_semantics=("parallel",)),
    )(x2d, scale.astype(jnp.float32), shift.astype(jnp.float32))


# ----------------------------------------------------------------------------
# JAX glue: im2col (3x3 window) and weight re-layout
# ----------------------------------------------------------------------------
def _im2col_3x3(x):
    """x: (B, Hp, Wp, C) already padded -> (B*Ho*Wo, 9*C), tap order (dy, dx)."""
    B, Hp, Wp, C = x.shape
    Ho, Wo = Hp - 2, Wp - 2
    cols = []
    for dy in range(3):
        for dx in range(3):
            cols.append(x[:, dy:dy + Ho, dx:dx + Wo, :])
    return jnp.concatenate(cols, axis=-1).reshape(B * Ho * Wo, 9 * C)


def _convT_weight_matrix(w_t):
    """PyTorch ConvTranspose2d(Cin, Cout, 4, 2, 1) weight (Cin, Cout, 4, 4) ->
    merged polyphase matrix (9*Cin, 4*Cout).  Column block (2r+s)*Cout:+Cout is
    the output sub-grid at spatial parity (r, s); out[2y+r, 2x+s] only needs a
    2x2 window of the pad-1 input at offset (r, s) inside a shared 3x3 window,
    so each phase uses 4 of the 9 taps (the rest stay zero)."""
    Cin, Cout = w_t.shape[0], w_t.shape[1]
    Wm = jnp.zeros((3, 3, Cin, 2, 2, Cout), jnp.float32)
    for r in range(2):
        for s in range(2):
            for ty in (r, r + 1):          # taps of the shared 3x3 window
                for tx in (s, s + 1):
                    ky = 3 + r - 2 * ty    # corresponding 4x4 kernel tap
                    kx = 3 + s - 2 * tx
                    Wm = Wm.at[ty, tx, :, r, s, :].set(w_t[:, :, ky, kx])
    return Wm.reshape(9 * Cin, 4 * Cout)


# ----------------------------------------------------------------------------
# DCGAN Generator (Pallas)
# ----------------------------------------------------------------------------
class DCGANGeneratorPallas:
    def __init__(self, nz=32, ngf=8, nc=3, img_size=32, slope=0.2, key=None):
        self.nz, self.ngf, self.nc, self.slope = nz, ngf, nc, slope
        self.init_size = (img_size // 16, img_size // 16)
        ih, iw = self.init_size
        key = jax.random.PRNGKey(0) if key is None else key
        ks = jax.random.split(key, 20)
        s = 0.05

        # ---- raw parameters (same shapes as the PyTorch module) ----
        c0 = ngf * 8
        out_dim = c0 * ih * iw
        lin_w = s * jax.random.normal(ks[0], (out_dim, nz), jnp.float32)  # (out,in)
        lin_b = s * jax.random.normal(ks[1], (out_dim,), jnp.float32)

        bn_ch = [ngf * 8, ngf * 4, ngf * 2, ngf, ngf]
        self.bn_params = []
        for i, c in enumerate(bn_ch):
            g = 1.0 + 0.1 * jax.random.normal(ks[2 + 2 * i], (c,), jnp.float32)
            b = 0.1 * jax.random.normal(ks[3 + 2 * i], (c,), jnp.float32)
            self.bn_params.append((g, b))

        ct_io = [(ngf * 8, ngf * 4), (ngf * 4, ngf * 2), (ngf * 2, ngf), (ngf, ngf)]
        ct_w = [s * jax.random.normal(ks[12 + i], (ci, co, 4, 4), jnp.float32)
                for i, (ci, co) in enumerate(ct_io)]

        conv_w = s * jax.random.normal(ks[16], (nc, ngf, 3, 3), jnp.float32)
        conv_b = s * jax.random.normal(ks[17], (nc,), jnp.float32)

        # ---- one-time weight re-layout (hoisted out of the forward pass) ----
        # Linear: permute output rows (c, y, x) -> (y, x, c) so the projection
        # matmul emits NHWC directly (removes the NCHW->NHWC transpose).
        self.proj_w = (lin_w.reshape(c0, ih, iw, nz)
                       .transpose(1, 2, 0, 3)
                       .reshape(out_dim, nz).T
                       .astype(jnp.bfloat16))                        # (nz, out_dim)
        self.proj_b = (lin_b.reshape(c0, ih, iw)
                       .transpose(1, 2, 0).reshape(out_dim))         # f32

        # ConvTranspose2d layers -> merged polyphase matmul weights.
        self.ct_cout = [co for _, co in ct_io]
        self.ct_wmat = [_convT_weight_matrix(w).astype(jnp.bfloat16) for w in ct_w]

        # Final Conv2d(ngf, nc, 3, 1, 1): (ky, kx, cin) x cout matrix.
        self.conv_wmat = (conv_w.transpose(2, 3, 1, 0)
                          .reshape(9 * ngf, nc).astype(jnp.bfloat16))
        self.conv_b = conv_b

    # BatchNorm2d in training mode (biased batch variance) + optional LeakyReLU.
    def _bn(self, x_nhwc, idx, apply_lrelu):
        B, H, W, C = x_nhwc.shape
        g, b = self.bn_params[idx]
        M = B * H * W
        x2 = x_nhwc.reshape(M, C)
        ssum, ssq = pallas_bn_stats(x2)                 # global stats (two-pass)
        mean = ssum / M
        var = jnp.maximum(ssq / M - mean * mean, 0.0)
        scale = g.reshape(1, C) * jax.lax.rsqrt(var + 1e-5)
        shift = b.reshape(1, C) - mean * scale
        y = pallas_bn_apply(x2, scale, shift,
                            slope=self.slope, apply_lrelu=apply_lrelu)
        return y.reshape(B, H, W, C)

    # ConvTranspose2d(Cin, Cout, 4, 2, 1, bias=False) via merged polyphase.
    def _conv_transpose(self, x_nhwc, idx):
        B, H, W, Cin = x_nhwc.shape
        Cout = self.ct_cout[idx]
        xp = jnp.pad(x_nhwc, ((0, 0), (1, 1), (1, 1), (0, 0)))
        cols = _im2col_3x3(xp)                          # (B*H*W, 9*Cin), bf16
        out = pallas_matmul(cols, self.ct_wmat[idx])    # (B*H*W, 4*Cout), f32
        # depth-to-space: column block (2r+s) -> output pixel (2y+r, 2x+s)
        out = (out.reshape(B, H, W, 2, 2, Cout)
               .transpose(0, 1, 3, 2, 4, 5)
               .reshape(B, 2 * H, 2 * W, Cout))
        return out

    def __call__(self, z):
        """z: (B, nz) -> (B, nc, img_size, img_size) (NCHW, matching PyTorch)."""
        B = z.shape[0]
        ih, iw = self.init_size
        c0 = self.ngf * 8

        # project (Flatten is a no-op on 2-D z; Linear emits NHWC order)
        x = pallas_matmul(z, self.proj_w, bias=self.proj_b)   # (B, ih*iw*c0) f32
        x = x.reshape(B, ih, iw, c0)

        x = self._bn(x, 0, apply_lrelu=False)                 # BatchNorm2d(ngf*8)
        for i in range(4):                                    # ConvT -> BN -> LReLU
            x = self._conv_transpose(x, i)
            x = self._bn(x, i + 1, apply_lrelu=True)

        # Conv2d(ngf, nc, 3, 1, 1) + Sigmoid (fused bias/activation epilogue)
        Bx, H, W, _ = x.shape
        xp = jnp.pad(x, ((0, 0), (1, 1), (1, 1), (0, 0)))
        cols = _im2col_3x3(xp)                                # (B*H*W, 9*ngf)
        y = pallas_matmul(cols, self.conv_wmat, bias=self.conv_b,
                          activation="sigmoid")               # (B*H*W, nc) f32
        y = y.reshape(Bx, H, W, self.nc)
        return y.transpose(0, 3, 1, 2)                        # NHWC -> NCHW


if __name__ == "__main__":
    # small shapes consistent with the module: nz=32, ngf=8, nc=3, img_size=32
    B, NZ, NGF, NC, IMG = 2, 32, 8, 3, 32
    gen = DCGANGeneratorPallas(nz=NZ, ngf=NGF, nc=NC, img_size=IMG, slope=0.2,
                               key=jax.random.PRNGKey(0))
    z = jax.random.normal(jax.random.PRNGKey(1), (B, NZ), jnp.float32)

    fwd = jax.jit(gen.__call__)
    out = jax.block_until_ready(fwd(z))

    assert out.shape == (B, NC, IMG, IMG), out.shape
    assert bool(jnp.all(jnp.isfinite(out)))
    assert bool(jnp.all((out >= 0.0) & (out <= 1.0)))  # sigmoid output range
    print("KERNEL_OK")
</pallas_src>

<mosaic_0001>
module attributes {stable_mosaic.version = 11 : i64} {
  func.func @_matmul_kernel(%arg0: i32, %arg1: memref<2x32xbf16, #tpu.memory_space<vmem>>, %arg2: memref<32x256xbf16, #tpu.memory_space<vmem>>, %arg3: memref<1x256xf32, #tpu.memory_space<vmem>>, %arg4: memref<2x256xf32, #tpu.memory_space<vmem>>) attributes {dimension_semantics = [#tpu.dimension_semantics<parallel>], iteration_bounds = array<i64: 1>, scalar_prefetch = 0 : i64, scratch_operands = 0 : i64, tpu.core_type = #tpu.core_type<tc>, window_params = [{transform_indices = @transform_0, window_bounds = array<i64: 2, 32>}, {pipeline_mode = #tpu.pipeline_mode<synchronous>, transform_indices = @transform_1, window_bounds = array<i64: 32, 256>}, {pipeline_mode = #tpu.pipeline_mode<synchronous>, transform_indices = @transform_2, window_bounds = array<i64: 1, 256>}, {transform_indices = @transform_3, window_bounds = array<i64: 2, 256>}]} {
    %c0 = arith.constant 0 : index
    %c0_0 = arith.constant 0 : index
    %0 = vector.load %arg1[%c0, %c0_0] : memref<2x32xbf16, #tpu.memory_space<vmem>>, vector<2x32xbf16>
    %c0_1 = arith.constant 0 : index
    %c0_2 = arith.constant 0 : index
    %1 = vector.load %arg2[%c0_1, %c0_2] : memref<32x256xbf16, #tpu.memory_space<vmem>>, vector<32x256xbf16>
    %cst = arith.constant dense<0.000000e+00> : vector<2x256xf32>
    %2 = tpu.matmul %0, %1, %cst {dimension_numbers = #tpu.dot_dimension_numbers<[1], [0], [0], [1], [0, 0, 1, 1], [], []>} : vector<2x32xbf16>, vector<32x256xbf16>, vector<2x256xf32> -> vector<2x256xf32>
    %c0_3 = arith.constant 0 : index
    %c0_4 = arith.constant 0 : index
    %3 = vector.load %arg3[%c0_3, %c0_4] : memref<1x256xf32, #tpu.memory_space<vmem>>, vector<1x256xf32>
    %4 = vector.broadcast %3 : vector<1x256xf32> to vector<2x256xf32>
    %5 = arith.addf %2, %4 : vector<2x256xf32>
    %c0_5 = arith.constant 0 : index
    %c0_6 = arith.constant 0 : index
    %6 = vector.load %arg4[%c0_5, %c0_6] : memref<2x256xf32, #tpu.memory_space<vmem>>, vector<2x256xf32>
    tpu.vector_store %arg4[%c0_5, %c0_6], %5 {strides = array<i32>} : memref<2x256xf32, #tpu.memory_space<vmem>>, vector<2x256xf32>,
    return
  }
  func.func @transform_0(%arg0: i32) -> (i32, i32) {
    %c0_i32 = arith.constant 0 : i32
    %c0_i32_0 = arith.constant 0 : i32
    return %arg0, %c0_i32 : i32, i32
  }
  func.func @transform_1(%arg0: i32) -> (i32, i32) {
    %c0_i32 = arith.constant 0 : i32
    %c0_i32_0 = arith.constant 0 : i32
    %c0_i32_1 = arith.constant 0 : i32
    return %c0_i32, %c0_i32_0 : i32, i32
  }
  func.func @transform_2(%arg0: i32) -> (i32, i32) {
    %c0_i32 = arith.constant 0 : i32
    %c0_i32_0 = arith.constant 0 : i32
    %c0_i32_1 = arith.constant 0 : i32
    return %c0_i32, %c0_i32_0 : i32, i32
  }
  func.func @transform_3(%arg0: i32) -> (i32, i32) {
    %c0_i32 = arith.constant 0 : i32
    %c0_i32_0 = arith.constant 0 : i32
    return %arg0, %c0_i32 : i32, i32
  }
}

module attributes {stable_mosaic.version = 11 : i64} {
  func.func @_bn_stats_kernel(%arg0: i32, %arg1: memref<8x64xf32, #tpu.memory_space<vmem>>, %arg2: memref<1x64xf32, #tpu.memory_space<vmem>>, %arg3: memref<1x64xf32, #tpu.memory_space<vmem>>) attributes {dimension_semantics = [#tpu.dimension_semantics<arbitrary>], iteration_bounds = array<i64: 1>, scalar_prefetch = 0 : i64, scratch_operands = 0 : i64, tpu.core_type = #tpu.core_type<tc>, window_params = [{transform_indices = @transform_0, window_bounds = array<i64: 8, 64>}, {pipeline_mode = #tpu.pipeline_mode<synchronous>, transform_indices = @transform_1, window_bounds = array<i64: 1, 64>}, {pipeline_mode = #tpu.pipeline_mode<synchronous>, transform_indices = @transform_2, window_bounds = array<i64: 1, 64>}]} {
    %c0_i32 = arith.constant 0 : i32
    %0 = arith.cmpi eq, %arg0, %c0_i32 : i32
    %1 = arith.extui %0 : i1 to i32
    %c0_i32_0 = arith.constant 0 : i32
    %2 = arith.cmpi ne, %1, %c0_i32_0 : i32
    scf.if %2 {
      %cst_11 = arith.constant 0.000000e+00 : f32
      %15 = vector.broadcast %cst_11 : f32 to vector<1x64xf32>
      %c0_12 = arith.constant 0 : index
      %c0_13 = arith.constant 0 : index
      %16 = vector.load %arg2[%c0_12, %c0_13] : memref<1x64xf32, #tpu.memory_space<vmem>>, vector<1x64xf32>
      tpu.vector_store %arg2[%c0_12, %c0_13], %15 {strides = array<i32>} : memref<1x64xf32, #tpu.memory_space<vmem>>, vector<1x64xf32>,
      %cst_14 = arith.constant 0.000000e+00 : f32
      %17 = vector.broadcast %cst_14 : f32 to vector<1x64xf32>
      %c0_15 = arith.constant 0 : index
      %c0_16 = arith.constant 0 : index
      %18 = vector.load %arg3[%c0_15, %c0_16] : memref<1x64xf32, #tpu.memory_space<vmem>>, vector<1x64xf32>
      tpu.vector_store %arg3[%c0_15, %c0_16], %17 {strides = array<i32>} : memref<1x64xf32, #tpu.memory_space<vmem>>, vector<1x64xf32>,
    } else {
    }
    %c0 = arith.constant 0 : index
    %c0_1 = arith.constant 0 : index
    %3 = vector.load %arg1[%c0, %c0_1] : memref<8x64xf32, #tpu.memory_space<vmem>>, vector<8x64xf32>
    %c0_2 = arith.constant 0 : index
    %c0_3 = arith.constant 0 : index
    %4 = vector.load %arg2[%c0_2, %c0_3] : memref<1x64xf32, #tpu.memory_space<vmem>>, vector<1x64xf32>
    %cst = arith.constant dense<0.000000e+00> : vector<64xf32>
    %5 = vector.multi_reduction <add>, %3, %cst [0] : vector<8x64xf32> to vector<64xf32>
    %6 = vector.shape_cast %5 : vector<64xf32> to vector<1x64xf32>
    %7 = arith.addf %4, %6 : vector<1x64xf32>
    %c0_4 = arith.constant 0 : index
    %c0_5 = arith.constant 0 : index
    %8 = vector.load %arg2[%c0_4, %c0_5] : memref<1x64xf32, #tpu.memory_space<vmem>>, vector<1x64xf32>
    tpu.vector_store %arg2[%c0_4, %c0_5], %7 {strides = array<i32>} : memref<1x64xf32, #tpu.memory_space<vmem>>, vector<1x64xf32>,
    %c0_6 = arith.constant 0 : index
    %c0_7 = arith.constant 0 : index
    %9 = vector.load %arg3[%c0_6, %c0_7] : memref<1x64xf32, #tpu.memory_space<vmem>>, vector<1x64xf32>
    %10 = arith.mulf %3, %3 : vector<8x64xf32>
    %cst_8 = arith.constant dense<0.000000e+00> : vector<64xf32>
    %11 = vector.multi_reduction <add>, %10, %cst_8 [0] : vector<8x64xf32> to vector<64xf32>
    %12 = vector.shape_cast %11 : vector<64xf32> to vector<1x64xf32>
    %13 = arith.addf %9, %12 : vector<1x64xf32>
    %c0_9 = arith.constant 0 : index
    %c0_10 = arith.constant 0 : index
    %14 = vector.load %arg3[%c0_9, %c0_10] : memref<1x64xf32, #tpu.memory_space<vmem>>, vector<1x64xf32>
    tpu.vector_store %arg3[%c0_9, %c0_10], %13 {strides = array<i32>} : memref<1x64xf32, #tpu.memory_space<vmem>>, vector<1x64xf32>,
    return
  }
  func.func @transform_0(%arg0: i32) -> (i32, i32) {
    %c0_i32 = arith.constant 0 : i32
    %c0_i32_0 = arith.constant 0 : i32
    return %arg0, %c0_i32 : i32, i32
  }
  func.func @transform_1(%arg0: i32) -> (i32, i32) {
    %c0_i32 = arith.constant 0 : i32
    %c0_i32_0 = arith.constant 0 : i32
    %c0_i32_1 = arith.constant 0 : i32
    return %c0_i32, %c0_i32_0 : i32, i32
  }
  func.func @transform_2(%arg0: i32) -> (i32, i32) {
    %c0_i32 = arith.constant 0 : i32
    %c0_i32_0 = arith.constant 0 : i32
    %c0_i32_1 = arith.constant 0 : i32
    return %c0_i32, %c0_i32_0 : i32, i32
  }
}

module attributes {stable_mosaic.version = 11 : i64} {
  func.func @_bn_apply_kernel(%arg0: i32, %arg1: memref<8x64xf32, #tpu.memory_space<vmem>>, %arg2: memref<1x64xf32, #tpu.memory_space<vmem>>, %arg3: memref<1x64xf32, #tpu.memory_space<vmem>>, %arg4: memref<8x64xbf16, #tpu.memory_space<vmem>>) attributes {dimension_semantics = [#tpu.dimension_semantics<parallel>], iteration_bounds = array<i64: 1>, scalar_prefetch = 0 : i64, scratch_operands = 0 : i64, tpu.core_type = #tpu.core_type<tc>, window_params = [{transform_indices = @transform_0, window_bounds = array<i64: 8, 64>}, {pipeline_mode = #tpu.pipeline_mode<synchronous>, transform_indices = @transform_1, window_bounds = array<i64: 1, 64>}, {pipeline_mode = #tpu.pipeline_mode<synchronous>, transform_indices = @transform_2, window_bounds = array<i64: 1, 64>}, {transform_indices = @transform_3, window_bounds = array<i64: 8, 64>}]} {
    %c0 = arith.constant 0 : index
    %c0_0 = arith.constant 0 : index
    %0 = vector.load %arg1[%c0, %c0_0] : memref<8x64xf32, #tpu.memory_space<vmem>>, vector<8x64xf32>
    %c0_1 = arith.constant 0 : index
    %c0_2 = arith.constant 0 : index
    %1 = vector.load %arg2[%c0_1, %c0_2] : memref<1x64xf32, #tpu.memory_space<vmem>>, vector<1x64xf32>
    %2 = vector.broadcast %1 : vector<1x64xf32> to vector<8x64xf32>
    %3 = arith.mulf %0, %2 : vector<8x64xf32>
    %c0_3 = arith.constant 0 : index
    %c0_4 = arith.constant 0 : index
    %4 = vector.load %arg3[%c0_3, %c0_4] : memref<1x64xf32, #tpu.memory_space<vmem>>, vector<1x64xf32>
    %5 = vector.broadcast %4 : vector<1x64xf32> to vector<8x64xf32>
    %6 = arith.addf %3, %5 : vector<8x64xf32>
    %7 = arith.truncf %6 : vector<8x64xf32> to vector<8x64xbf16>
    %c0_5 = arith.constant 0 : index
    %c0_6 = arith.constant 0 : index
    %8 = vector.load %arg4[%c0_5, %c0_6] : memref<8x64xbf16, #tpu.memory_space<vmem>>, vector<8x64xbf16>
    tpu.vector_store %arg4[%c0_5, %c0_6], %7 {strides = array<i32>} : memref<8x64xbf16, #tpu.memory_space<vmem>>, vector<8x64xbf16>,
    return
  }
  func.func @transform_0(%arg0: i32) -> (i32, i32) {
    %c0_i32 = arith.constant 0 : i32
    %c0_i32_0 = arith.constant 0 : i32
    return %arg0, %c0_i32 : i32, i32
  }
  func.func @transform_1(%arg0: i32) -> (i32, i32) {
    %c0_i32 = arith.constant 0 : i32
    %c0_i32_0 = arith.constant 0 : i32
    %c0_i32_1 = arith.constant 0 : i32
    return %c0_i32, %c0_i32_0 : i32, i32
  }
  func.func @transform_2(%arg0: i32) -> (i32, i32) {
    %c0_i32 = arith.constant 0 : i32
    %c0_i32_0 = arith.constant 0 : i32
    %c0_i32_1 = arith.constant 0 : i32
    return %c0_i32, %c0_i32_0 : i32, i32
  }
  func.func @transform_3(%arg0: i32) -> (i32, i32) {
    %c0_i32 = arith.constant 0 : i32
    %c0_i32_0 = arith.constant 0 : i32
    return %arg0, %c0_i32 : i32, i32
  }
}

module attributes {stable_mosaic.version = 11 : i64} {
  func.func @_matmul_kernel(%arg0: i32, %arg1: memref<8x576xbf16, #tpu.memory_space<vmem>>, %arg2: memref<576x128xbf16, #tpu.memory_space<vmem>>, %arg3: memref<8x128xf32, #tpu.memory_space<vmem>>) attributes {dimension_semantics = [#tpu.dimension_semantics<parallel>], iteration_bounds = array<i64: 1>, scalar_prefetch = 0 : i64, scratch_operands = 0 : i64, tpu.core_type = #tpu.core_type<tc>, window_params = [{transform_indices = @transform_0, window_bounds = array<i64: 8, 576>}, {pipeline_mode = #tpu.pipeline_mode<synchronous>, transform_indices = @transform_1, window_bounds = array<i64: 576, 128>}, {transform_indices = @transform_2, window_bounds = array<i64: 8, 128>}]} {
    %c0 = arith.constant 0 : index
    %c0_0 = arith.constant 0 : index
    %0 = vector.load %arg1[%c0, %c0_0] : memref<8x576xbf16, #tpu.memory_space<vmem>>, vector<8x576xbf16>
    %c0_1 = arith.constant 0 : index
    %c0_2 = arith.constant 0 : index
    %1 = vector.load %arg2[%c0_1, %c0_2] : memref<576x128xbf16, #tpu.memory_space<vmem>>, vector<576x128xbf16>
    %cst = arith.constant dense<0.000000e+00> : vector<8x128xf32>
    %2 = tpu.matmul %0, %1, %cst {dimension_numbers = #tpu.dot_dimension_numbers<[1], [0], [0], [1], [0, 0, 1, 1], [], []>} : vector<8x576xbf16>, vector<576x128xbf16>, vector<8x128xf32> -> vector<8x128xf32>
    %c0_3 = arith.constant 0 : index
    %c0_4 = arith.constant 0 : index
    %3 = vector.load %arg3[%c0_3, %c0_4] : memref<8x128xf32, #tpu.memory_space<vmem>>, vector<8x128xf32>
    tpu.vector_store %arg3[%c0_3, %c0_4], %2 {strides = array<i32>} : memref<8x128xf32, #tpu.memory_space<vmem>>, vector<8x128xf32>,
    return
  }
  func.func @transform_0(%arg0: i32) -> (i32, i32) {
    %c0_i32 = arith.constant 0 : i32
    %c0_i32_0 = arith.constant 0 : i32
    return %arg0, %c0_i32 : i32, i32
  }
  func.func @transform_1(%arg0: i32) -> (i32, i32) {
    %c0_i32 = arith.constant 0 : i32
    %c0_i32_0 = arith.constant 0 : i32
    %c0_i32_1 = arith.constant 0 : i32
    return %c0_i32, %c0_i32_0 : i32, i32
  }
  func.func @transform_2(%arg0: i32) -> (i32, i32) {
    %c0_i32 = arith.constant 0 : i32
    %c0_i32_0 = arith.constant 0 : i32
    return %arg0, %c0_i32 : i32, i32
  }
}

module attributes {stable_mosaic.version = 11 : i64} {
  func.func @_bn_apply_kernel(%arg0: i32, %arg1: memref<32x32xf32, #tpu.memory_space<vmem>>, %arg2: memref<1x32xf32, #tpu.memory_space<vmem>>, %arg3: memref<1x32xf32, #tpu.memory_space<vmem>>, %arg4: memref<32x32xbf16, #tpu.memory_space<vmem>>) attributes {dimension_semantics = [#tpu.dimension_semantics<parallel>], iteration_bounds = array<i64: 1>, scalar_prefetch = 0 : i64, scratch_operands = 0 : i64, tpu.core_type = #tpu.core_type<tc>, window_params = [{transform_indices = @transform_0, window_bounds = array<i64: 32, 32>}, {pipeline_mode = #tpu.pipeline_mode<synchronous>, transform_indices = @transform_1, window_bounds = array<i64: 1, 32>}, {pipeline_mode = #tpu.pipeline_mode<synchronous>, transform_indices = @transform_2, window_bounds = array<i64: 1, 32>}, {transform_indices = @transform_3, window_bounds = array<i64: 32, 32>}]} {
    %c0 = arith.constant 0 : index
    %c0_0 = arith.constant 0 : index
    %0 = vector.load %arg1[%c0, %c0_0] : memref<32x32xf32, #tpu.memory_space<vmem>>, vector<32x32xf32>
    %c0_1 = arith.constant 0 : index
    %c0_2 = arith.constant 0 : index
    %1 = vector.load %arg2[%c0_1, %c0_2] : memref<1x32xf32, #tpu.memory_space<vmem>>, vector<1x32xf32>
    %2 = vector.broadcast %1 : vector<1x32xf32> to vector<32x32xf32>
    %3 = arith.mulf %0, %2 : vector<32x32xf32>
    %c0_3 = arith.constant 0 : index
    %c0_4 = arith.constant 0 : index
    %4 = vector.load %arg3[%c0_3, %c0_4] : memref<1x32xf32, #tpu.memory_space<vmem>>, vector<1x32xf32>
    %5 = vector.broadcast %4 : vector<1x32xf32> to vector<32x32xf32>
    %6 = arith.addf %3, %5 : vector<32x32xf32>
    %cst = arith.constant 0.000000e+00 : f32
    %7 = vector.broadcast %cst : f32 to vector<32x32xf32>
    %8 = arith.cmpf oge, %6, %7 : vector<32x32xf32>
    %cst_5 = arith.constant 2.000000e-01 : f32
    %9 = vector.broadcast %cst_5 : f32 to vector<32x32xf32>
    %10 = arith.mulf %9, %6 : vector<32x32xf32>
    %11 = arith.select %8, %6, %10 : vector<32x32xi1>, vector<32x32xf32>
    %12 = arith.truncf %11 : vector<32x32xf32> to vector<32x32xbf16>
    %c0_6 = arith.constant 0 : index
    %c0_7 = arith.constant 0 : index
    %13 = vector.load %arg4[%c0_6, %c0_7] : memref<32x32xbf16, #tpu.memory_space<vmem>>, vector<32x32xbf16>
    tpu.vector_store %arg4[%c0_6, %c0_7], %12 {strides = array<i32>} : memref<32x32xbf16, #tpu.memory_space<vmem>>, vector<32x32xbf16>,
    return
  }
  func.func @transform_0(%arg0: i32) -> (i32, i32) {
    %c0_i32 = arith.constant 0 : i32
    %c0_i32_0 = arith.constant 0 : i32
    return %arg0, %c0_i32 : i32, i32
  }
  func.func @transform_1(%arg0: i32) -> (i32, i32) {
    %c0_i32 = arith.constant 0 : i32
    %c0_i32_0 = arith.constant 0 : i32
    %c0_i32_1 = arith.constant 0 : i32
    return %c0_i32, %c0_i32_0 : i32, i32
  }
  func.func @transform_2(%arg0: i32) -> (i32, i32) {
    %c0_i32 = arith.constant 0 : i32
    %c0_i32_0 = arith.constant 0 : i32
    %c0_i32_1 = arith.constant 0 : i32
    return %c0_i32, %c0_i32_0 : i32, i32
  }
  func.func @transform_3(%arg0: i32) -> (i32, i32) {
    %c0_i32 = arith.constant 0 : i32
    %c0_i32_0 = arith.constant 0 : i32
    return %arg0, %c0_i32 : i32, i32
  }
}

module attributes {stable_mosaic.version = 11 : i64} {
  func.func @_bn_stats_kernel(%arg0: i32, %arg1: memref<32x32xf32, #tpu.memory_space<vmem>>, %arg2: memref<1x32xf32, #tpu.memory_space<vmem>>, %arg3: memref<1x32xf32, #tpu.memory_space<vmem>>) attributes {dimension_semantics = [#tpu.dimension_semantics<arbitrary>], iteration_bounds = array<i64: 1>, scalar_prefetch = 0 : i64, scratch_operands = 0 : i64, tpu.core_type = #tpu.core_type<tc>, window_params = [{transform_indices = @transform_0, window_bounds = array<i64: 32, 32>}, {pipeline_mode = #tpu.pipeline_mode<synchronous>, transform_indices = @transform_1, window_bounds = array<i64: 1, 32>}, {pipeline_mode = #tpu.pipeline_mode<synchronous>, transform_indices = @transform_2, window_bounds = array<i64: 1, 32>}]} {
    %c0_i32 = arith.constant 0 : i32
    %0 = arith.cmpi eq, %arg0, %c0_i32 : i32
    %1 = arith.extui %0 : i1 to i32
    %c0_i32_0 = arith.constant 0 : i32
    %2 = arith.cmpi ne, %1, %c0_i32_0 : i32
    scf.if %2 {
      %cst_11 = arith.constant 0.000000e+00 : f32
      %15 = vector.broadcast %cst_11 : f32 to vector<1x32xf32>
      %c0_12 = arith.constant 0 : index
      %c0_13 = arith.constant 0 : index
      %16 = vector.load %arg2[%c0_12, %c0_13] : memref<1x32xf32, #tpu.memory_space<vmem>>, vector<1x32xf32>
      tpu.vector_store %arg2[%c0_12, %c0_13], %15 {strides = array<i32>} : memref<1x32xf32, #tpu.memory_space<vmem>>, vector<1x32xf32>,
      %cst_14 = arith.constant 0.000000e+00 : f32
      %17 = vector.broadcast %cst_14 : f32 to vector<1x32xf32>
      %c0_15 = arith.constant 0 : index
      %c0_16 = arith.constant 0 : index
      %18 = vector.load %arg3[%c0_15, %c0_16] : memref<1x32xf32, #tpu.memory_space<vmem>>, vector<1x32xf32>
      tpu.vector_store %arg3[%c0_15, %c0_16], %17 {strides = array<i32>} : memref<1x32xf32, #tpu.memory_space<vmem>>, vector<1x32xf32>,
    } else {
    }
    %c0 = arith.constant 0 : index
    %c0_1 = arith.constant 0 : index
    %3 = vector.load %arg1[%c0, %c0_1] : memref<32x32xf32, #tpu.memory_space<vmem>>, vector<32x32xf32>
    %c0_2 = arith.constant 0 : index
    %c0_3 = arith.constant 0 : index
    %4 = vector.load %arg2[%c0_2, %c0_3] : memref<1x32xf32, #tpu.memory_space<vmem>>, vector<1x32xf32>
    %cst = arith.constant dense<0.000000e+00> : vector<32xf32>
    %5 = vector.multi_reduction <add>, %3, %cst [0] : vector<32x32xf32> to vector<32xf32>
    %6 = vector.shape_cast %5 : vector<32xf32> to vector<1x32xf32>
    %7 = arith.addf %4, %6 : vector<1x32xf32>
    %c0_4 = arith.constant 0 : index
    %c0_5 = arith.constant 0 : index
    %8 = vector.load %arg2[%c0_4, %c0_5] : memref<1x32xf32, #tpu.memory_space<vmem>>, vector<1x32xf32>
    tpu.vector_store %arg2[%c0_4, %c0_5], %7 {strides = array<i32>} : memref<1x32xf32, #tpu.memory_space<vmem>>, vector<1x32xf32>,
    %c0_6 = arith.constant 0 : index
    %c0_7 = arith.constant 0 : index
    %9 = vector.load %arg3[%c0_6, %c0_7] : memref<1x32xf32, #tpu.memory_space<vmem>>, vector<1x32xf32>
    %10 = arith.mulf %3, %3 : vector<32x32xf32>
    %cst_8 = arith.constant dense<0.000000e+00> : vector<32xf32>
    %11 = vector.multi_reduction <add>, %10, %cst_8 [0] : vector<32x32xf32> to vector<32xf32>
    %12 = vector.shape_cast %11 : vector<32xf32> to vector<1x32xf32>
    %13 = arith.addf %9, %12 : vector<1x32xf32>
    %c0_9 = arith.constant 0 : index
    %c0_10 = arith.constant 0 : index
    %14 = vector.load %arg3[%c0_9, %c0_10] : memref<1x32xf32, #tpu.memory_space<vmem>>, vector<1x32xf32>
    tpu.vector_store %arg3[%c0_9, %c0_10], %13 {strides = array<i32>} : memref<1x32xf32, #tpu.memory_space<vmem>>, vector<1x32xf32>,
    return
  }
  func.func @transform_0(%arg0: i32) -> (i32, i32) {
    %c0_i32 = arith.constant 0 : i32
    %c0_i32_0 = arith.constant 0 : i32
    return %arg0, %c0_i32 : i32, i32
  }
  func.func @transform_1(%arg0: i32) -> (i32, i32) {
    %c0_i32 = arith.constant 0 : i32
    %c0_i32_0 = arith.constant 0 : i32
    %c0_i32_1 = arith.constant 0 : i32
    return %c0_i32, %c0_i32_0 : i32, i32
  }
  func.func @transform_2(%arg0: i32) -> (i32, i32) {
    %c0_i32 = arith.constant 0 : i32
    %c0_i32_0 = arith.constant 0 : i32
    %c0_i32_1 = arith.constant 0 : i32
    return %c0_i32, %c0_i32_0 : i32, i32
  }
}

module attributes {stable_mosaic.version = 11 : i64} {
  func.func @_matmul_kernel(%arg0: i32, %arg1: memref<32x288xbf16, #tpu.memory_space<vmem>>, %arg2: memref<288x64xbf16, #tpu.memory_space<vmem>>, %arg3: memref<32x64xf32, #tpu.memory_space<vmem>>) attributes {dimension_semantics = [#tpu.dimension_semantics<parallel>], iteration_bounds = array<i64: 1>, scalar_prefetch = 0 : i64, scratch_operands = 0 : i64, tpu.core_type = #tpu.core_type<tc>, window_params = [{transform_indices = @transform_0, window_bounds = array<i64: 32, 288>}, {pipeline_mode = #tpu.pipeline_mode<synchronous>, transform_indices = @transform_1, window_bounds = array<i64: 288, 64>}, {transform_indices = @transform_2, window_bounds = array<i64: 32, 64>}]} {
    %c0 = arith.constant 0 : index
    %c0_0 = arith.constant 0 : index
    %0 = vector.load %arg1[%c0, %c0_0] : memref<32x288xbf16, #tpu.memory_space<vmem>>, vector<32x288xbf16>
    %c0_1 = arith.constant 0 : index
    %c0_2 = arith.constant 0 : index
    %1 = vector.load %arg2[%c0_1, %c0_2] : memref<288x64xbf16, #tpu.memory_space<vmem>>, vector<288x64xbf16>
    %cst = arith.constant dense<0.000000e+00> : vector<32x64xf32>
    %2 = tpu.matmul %0, %1, %cst {dimension_numbers = #tpu.dot_dimension_numbers<[1], [0], [0], [1], [0, 0, 1, 1], [], []>} : vector<32x288xbf16>, vector<288x64xbf16>, vector<32x64xf32> -> vector<32x64xf32>
    %c0_3 = arith.constant 0 : index
    %c0_4 = arith.constant 0 : index
    %3 = vector.load %arg3[%c0_3, %c0_4] : memref<32x64xf32, #tpu.memory_space<vmem>>, vector<32x64xf32>
    tpu.vector_store %arg3[%c0_3, %c0_4], %2 {strides = array<i32>} : memref<32x64xf32, #tpu.memory_space<vmem>>, vector<32x64xf32>,
    return
  }
  func.func @transform_0(%arg0: i32) -> (i32, i32) {
    %c0_i32 = arith.constant 0 : i32
    %c0_i32_0 = arith.constant 0 : i32
    return %arg0, %c0_i32 : i32, i32
  }
  func.func @transform_1(%arg0: i32) -> (i32, i32) {
    %c0_i32 = arith.constant 0 : i32
    %c0_i32_0 = arith.constant 0 : i32
    %c0_i32_1 = arith.constant 0 : i32
    return %c0_i32, %c0_i32_0 : i32, i32
  }
  func.func @transform_2(%arg0: i32) -> (i32, i32) {
    %c0_i32 = arith.constant 0 : i32
    %c0_i32_0 = arith.constant 0 : i32
    return %arg0, %c0_i32 : i32, i32
  }
}

module attributes {stable_mosaic.version = 11 : i64} {
  func.func @_bn_apply_kernel(%arg0: i32, %arg1: memref<128x16xf32, #tpu.memory_space<vmem>>, %arg2: memref<1x16xf32, #tpu.memory_space<vmem>>, %arg3: memref<1x16xf32, #tpu.memory_space<vmem>>, %arg4: memref<128x16xbf16, #tpu.memory_space<vmem>>) attributes {dimension_semantics = [#tpu.dimension_semantics<parallel>], iteration_bounds = array<i64: 1>, scalar_prefetch = 0 : i64, scratch_operands = 0 : i64, tpu.core_type = #tpu.core_type<tc>, window_params = [{transform_indices = @transform_0, window_bounds = array<i64: 128, 16>}, {pipeline_mode = #tpu.pipeline_mode<synchronous>, transform_indices = @transform_1, window_bounds = array<i64: 1, 16>}, {pipeline_mode = #tpu.pipeline_mode<synchronous>, transform_indices = @transform_2, window_bounds = array<i64: 1, 16>}, {transform_indices = @transform_3, window_bounds = array<i64: 128, 16>}]} {
    %c0 = arith.constant 0 : index
    %c0_0 = arith.constant 0 : index
    %0 = vector.load %arg1[%c0, %c0_0] : memref<128x16xf32, #tpu.memory_space<vmem>>, vector<128x16xf32>
    %c0_1 = arith.constant 0 : index
    %c0_2 = arith.constant 0 : index
    %1 = vector.load %arg2[%c0_1, %c0_2] : memref<1x16xf32, #tpu.memory_space<vmem>>, vector<1x16xf32>
    %2 = vector.broadcast %1 : vector<1x16xf32> to vector<128x16xf32>
    %3 = arith.mulf %0, %2 : vector<128x16xf32>
    %c0_3 = arith.constant 0 : index
    %c0_4 = arith.constant 0 : index
    %4 = vector.load %arg3[%c0_3, %c0_4] : memref<1x16xf32, #tpu.memory_space<vmem>>, vector<1x16xf32>
    %5 = vector.broadcast %4 : vector<1x16xf32> to vector<128x16xf32>
    %6 = arith.addf %3, %5 : vector<128x16xf32>
    %cst = arith.constant 0.000000e+00 : f32
    %7 = vector.broadcast %cst : f32 to vector<128x16xf32>
    %8 = arith.cmpf oge, %6, %7 : vector<128x16xf32>
    %cst_5 = arith.constant 2.000000e-01 : f32
    %9 = vector.broadcast %cst_5 : f32 to vector<128x16xf32>
    %10 = arith.mulf %9, %6 : vector<128x16xf32>
    %11 = arith.select %8, %6, %10 : vector<128x16xi1>, vector<128x16xf32>
    %12 = arith.truncf %11 : vector<128x16xf32> to vector<128x16xbf16>
    %c0_6 = arith.constant 0 : index
    %c0_7 = arith.constant 0 : index
    %13 = vector.load %arg4[%c0_6, %c0_7] : memref<128x16xbf16, #tpu.memory_space<vmem>>, vector<128x16xbf16>
    tpu.vector_store %arg4[%c0_6, %c0_7], %12 {strides = array<i32>} : memref<128x16xbf16, #tpu.memory_space<vmem>>, vector<128x16xbf16>,
    return
  }
  func.func @transform_0(%arg0: i32) -> (i32, i32) {
    %c0_i32 = arith.constant 0 : i32
    %c0_i32_0 = arith.constant 0 : i32
    return %arg0, %c0_i32 : i32, i32
  }
  func.func @transform_1(%arg0: i32) -> (i32, i32) {
    %c0_i32 = arith.constant 0 : i32
    %c0_i32_0 = arith.constant 0 : i32
    %c0_i32_1 = arith.constant 0 : i32
    return %c0_i32, %c0_i32_0 : i32, i32
  }
  func.func @transform_2(%arg0: i32) -> (i32, i32) {
    %c0_i32 = arith.constant 0 : i32
    %c0_i32_0 = arith.constant 0 : i32
    %c0_i32_1 = arith.constant 0 : i32
    return %c0_i32, %c0_i32_0 : i32, i32
  }
  func.func @transform_3(%arg0: i32) -> (i32, i32) {
    %c0_i32 = arith.constant 0 : i32
    %c0_i32_0 = arith.constant 0 : i32
    return %arg0, %c0_i32 : i32, i32
  }
}

module attributes {stable_mosaic.version = 11 : i64} {
  func.func @_bn_stats_kernel(%arg0: i32, %arg1: memref<128x16xf32, #tpu.memory_space<vmem>>, %arg2: memref<1x16xf32, #tpu.memory_space<vmem>>, %arg3: memref<1x16xf32, #tpu.memory_space<vmem>>) attributes {dimension_semantics = [#tpu.dimension_semantics<arbitrary>], iteration_bounds = array<i64: 1>, scalar_prefetch = 0 : i64, scratch_operands = 0 : i64, tpu.core_type = #tpu.core_type<tc>, window_params = [{transform_indices = @transform_0, window_bounds = array<i64: 128, 16>}, {pipeline_mode = #tpu.pipeline_mode<synchronous>, transform_indices = @transform_1, window_bounds = array<i64: 1, 16>}, {pipeline_mode = #tpu.pipeline_mode<synchronous>, transform_indices = @transform_2, window_bounds = array<i64: 1, 16>}]} {
    %c0_i32 = arith.constant 0 : i32
    %0 = arith.cmpi eq, %arg0, %c0_i32 : i32
    %1 = arith.extui %0 : i1 to i32
    %c0_i32_0 = arith.constant 0 : i32
    %2 = arith.cmpi ne, %1, %c0_i32_0 : i32
    scf.if %2 {
      %cst_11 = arith.constant 0.000000e+00 : f32
      %15 = vector.broadcast %cst_11 : f32 to vector<1x16xf32>
      %c0_12 = arith.constant 0 : index
      %c0_13 = arith.constant 0 : index
      %16 = vector.load %arg2[%c0_12, %c0_13] : memref<1x16xf32, #tpu.memory_space<vmem>>, vector<1x16xf32>
      tpu.vector_store %arg2[%c0_12, %c0_13], %15 {strides = array<i32>} : memref<1x16xf32, #tpu.memory_space<vmem>>, vector<1x16xf32>,
      %cst_14 = arith.constant 0.000000e+00 : f32
      %17 = vector.broadcast %cst_14 : f32 to vector<1x16xf32>
      %c0_15 = arith.constant 0 : index
      %c0_16 = arith.constant 0 : index
      %18 = vector.load %arg3[%c0_15, %c0_16] : memref<1x16xf32, #tpu.memory_space<vmem>>, vector<1x16xf32>
      tpu.vector_store %arg3[%c0_15, %c0_16], %17 {strides = array<i32>} : memref<1x16xf32, #tpu.memory_space<vmem>>, vector<1x16xf32>,
    } else {
    }
    %c0 = arith.constant 0 : index
    %c0_1 = arith.constant 0 : index
    %3 = vector.load %arg1[%c0, %c0_1] : memref<128x16xf32, #tpu.memory_space<vmem>>, vector<128x16xf32>
    %c0_2 = arith.constant 0 : index
    %c0_3 = arith.constant 0 : index
    %4 = vector.load %arg2[%c0_2, %c0_3] : memref<1x16xf32, #tpu.memory_space<vmem>>, vector<1x16xf32>
    %cst = arith.constant dense<0.000000e+00> : vector<16xf32>
    %5 = vector.multi_reduction <add>, %3, %cst [0] : vector<128x16xf32> to vector<16xf32>
    %6 = vector.shape_cast %5 : vector<16xf32> to vector<1x16xf32>
    %7 = arith.addf %4, %6 : vector<1x16xf32>
    %c0_4 = arith.constant 0 : index
    %c0_5 = arith.constant 0 : index
    %8 = vector.load %arg2[%c0_4, %c0_5] : memref<1x16xf32, #tpu.memory_space<vmem>>, vector<1x16xf32>
    tpu.vector_store %arg2[%c0_4, %c0_5], %7 {strides = array<i32>} : memref<1x16xf32, #tpu.memory_space<vmem>>, vector<1x16xf32>,
    %c0_6 = arith.constant 0 : index
    %c0_7 = arith.constant 0 : index
    %9 = vector.load %arg3[%c0_6, %c0_7] : memref<1x16xf32, #tpu.memory_space<vmem>>, vector<1x16xf32>
    %10 = arith.mulf %3, %3 : vector<128x16xf32>
    %cst_8 = arith.constant dense<0.000000e+00> : vector<16xf32>
    %11 = vector.multi_reduction <add>, %10, %cst_8 [0] : vector<128x16xf32> to vector<16xf32>
    %12 = vector.shape_cast %11 : vector<16xf32> to vector<1x16xf32>
    %13 = arith.addf %9, %12 : vector<1x16xf32>
    %c0_9 = arith.constant 0 : index
    %c0_10 = arith.constant 0 : index
    %14 = vector.load %arg3[%c0_9, %c0_10] : memref<1x16xf32, #tpu.memory_space<vmem>>, vector<1x16xf32>
    tpu.vector_store %arg3[%c0_9, %c0_10], %13 {strides = array<i32>} : memref<1x16xf32, #tpu.memory_space<vmem>>, vector<1x16xf32>,
    return
  }
  func.func @transform_0(%arg0: i32) -> (i32, i32) {
    %c0_i32 = arith.constant 0 : i32
    %c0_i32_0 = arith.constant 0 : i32
    return %arg0, %c0_i32 : i32, i32
  }
  func.func @transform_1(%arg0: i32) -> (i32, i32) {
    %c0_i32 = arith.constant 0 : i32
    %c0_i32_0 = arith.constant 0 : i32
    %c0_i32_1 = arith.constant 0 : i32
    return %c0_i32, %c0_i32_0 : i32, i32
  }
  func.func @transform_2(%arg0: i32) -> (i32, i32) {
    %c0_i32 = arith.constant 0 : i32
    %c0_i32_0 = arith.constant 0 : i32
    %c0_i32_1 = arith.constant 0 : i32
    return %c0_i32, %c0_i32_0 : i32, i32
  }
}

module attributes {stable_mosaic.version = 11 : i64} {
  func.func @_matmul_kernel(%arg0: i32, %arg1: memref<128x144xbf16, #tpu.memory_space<vmem>>, %arg2: memref<144x32xbf16, #tpu.memory_space<vmem>>, %arg3: memref<128x32xf32, #tpu.memory_space<vmem>>) attributes {dimension_semantics = [#tpu.dimension_semantics<parallel>], iteration_bounds = array<i64: 1>, scalar_prefetch = 0 : i64, scratch_operands = 0 : i64, tpu.core_type = #tpu.core_type<tc>, window_params = [{transform_indices = @transform_0, window_bounds = array<i64: 128, 144>}, {pipeline_mode = #tpu.pipeline_mode<synchronous>, transform_indices = @transform_1, window_bounds = array<i64: 144, 32>}, {transform_indices = @transform_2, window_bounds = array<i64: 128, 32>}]} {
    %c0 = arith.constant 0 : index
    %c0_0 = arith.constant 0 : index
    %0 = vector.load %arg1[%c0, %c0_0] : memref<128x144xbf16, #tpu.memory_space<vmem>>, vector<128x144xbf16>
    %c0_1 = arith.constant 0 : index
    %c0_2 = arith.constant 0 : index
    %1 = vector.load %arg2[%c0_1, %c0_2] : memref<144x32xbf16, #tpu.memory_space<vmem>>, vector<144x32xbf16>
    %cst = arith.constant dense<0.000000e+00> : vector<128x32xf32>
    %2 = tpu.matmul %0, %1, %cst {dimension_numbers = #tpu.dot_dimension_numbers<[1], [0], [0], [1], [0, 0, 1, 1], [], []>} : vector<128x144xbf16>, vector<144x32xbf16>, vector<128x32xf32> -> vector<128x32xf32>
    %c0_3 = arith.constant 0 : index
    %c0_4 = arith.constant 0 : index
    %3 = vector.load %arg3[%c0_3, %c0_4] : memref<128x32xf32, #tpu.memory_space<vmem>>, vector<128x32xf32>
    tpu.vector_store %arg3[%c0_3, %c0_4], %2 {strides = array<i32>} : memref<128x32xf32, #tpu.memory_space<vmem>>, vector<128x32xf32>,
    return
  }
  func.func @transform_0(%arg0: i32) -> (i32, i32) {
    %c0_i32 = arith.constant 0 : i32
    %c0_i32_0 = arith.constant 0 : i32
    return %arg0, %c0_i32 : i32, i32
  }
  func.func @transform_1(%arg0: i32) -> (i32, i32) {
    %c0_i32 = arith.constant 0 : i32
    %c0_i32_0 = arith.constant 0 : i32
    %c0_i32_1 = arith.constant 0 : i32
    return %c0_i32, %c0_i32_0 : i32, i32
  }
  func.func @transform_2(%arg0: i32) -> (i32, i32) {
    %c0_i32 = arith.constant 0 : i32
    %c0_i32_0 = arith.constant 0 : i32
    return %arg0, %c0_i32 : i32, i32
  }
}

module attributes {stable_mosaic.version = 11 : i64} {
  func.func @_bn_stats_kernel(%arg0: i32, %arg1: memref<512x8xf32, #tpu.memory_space<vmem>>, %arg2: memref<1x8xf32, #tpu.memory_space<vmem>>, %arg3: memref<1x8xf32, #tpu.memory_space<vmem>>) attributes {dimension_semantics = [#tpu.dimension_semantics<arbitrary>], iteration_bounds = array<i64: 1>, scalar_prefetch = 0 : i64, scratch_operands = 0 : i64, tpu.core_type = #tpu.core_type<tc>, window_params = [{transform_indices = @transform_0, window_bounds = array<i64: 512, 8>}, {pipeline_mode = #tpu.pipeline_mode<synchronous>, transform_indices = @transform_1, window_bounds = array<i64: 1, 8>}, {pipeline_mode = #tpu.pipeline_mode<synchronous>, transform_indices = @transform_2, window_bounds = array<i64: 1, 8>}]} {
    %c0_i32 = arith.constant 0 : i32
    %0 = arith.cmpi eq, %arg0, %c0_i32 : i32
    %1 = arith.extui %0 : i1 to i32
    %c0_i32_0 = arith.constant 0 : i32
    %2 = arith.cmpi ne, %1, %c0_i32_0 : i32
    scf.if %2 {
      %cst_11 = arith.constant 0.000000e+00 : f32
      %15 = vector.broadcast %cst_11 : f32 to vector<1x8xf32>
      %c0_12 = arith.constant 0 : index
      %c0_13 = arith.constant 0 : index
      %16 = vector.load %arg2[%c0_12, %c0_13] : memref<1x8xf32, #tpu.memory_space<vmem>>, vector<1x8xf32>
      tpu.vector_store %arg2[%c0_12, %c0_13], %15 {strides = array<i32>} : memref<1x8xf32, #tpu.memory_space<vmem>>, vector<1x8xf32>,
      %cst_14 = arith.constant 0.000000e+00 : f32
      %17 = vector.broadcast %cst_14 : f32 to vector<1x8xf32>
      %c0_15 = arith.constant 0 : index
      %c0_16 = arith.constant 0 : index
      %18 = vector.load %arg3[%c0_15, %c0_16] : memref<1x8xf32, #tpu.memory_space<vmem>>, vector<1x8xf32>
      tpu.vector_store %arg3[%c0_15, %c0_16], %17 {strides = array<i32>} : memref<1x8xf32, #tpu.memory_space<vmem>>, vector<1x8xf32>,
    } else {
    }
    %c0 = arith.constant 0 : index
    %c0_1 = arith.constant 0 : index
    %3 = vector.load %arg1[%c0, %c0_1] : memref<512x8xf32, #tpu.memory_space<vmem>>, vector<512x8xf32>
    %c0_2 = arith.constant 0 : index
    %c0_3 = arith.constant 0 : index
    %4 = vector.load %arg2[%c0_2, %c0_3] : memref<1x8xf32, #tpu.memory_space<vmem>>, vector<1x8xf32>
    %cst = arith.constant dense<0.000000e+00> : vector<8xf32>
    %5 = vector.multi_reduction <add>, %3, %cst [0] : vector<512x8xf32> to vector<8xf32>
    %6 = vector.shape_cast %5 : vector<8xf32> to vector<1x8xf32>
    %7 = arith.addf %4, %6 : vector<1x8xf32>
    %c0_4 = arith.constant 0 : index
    %c0_5 = arith.constant 0 : index
    %8 = vector.load %arg2[%c0_4, %c0_5] : memref<1x8xf32, #tpu.memory_space<vmem>>, vector<1x8xf32>
    tpu.vector_store %arg2[%c0_4, %c0_5], %7 {strides = array<i32>} : memref<1x8xf32, #tpu.memory_space<vmem>>, vector<1x8xf32>,
    %c0_6 = arith.constant 0 : index
    %c0_7 = arith.constant 0 : index
    %9 = vector.load %arg3[%c0_6, %c0_7] : memref<1x8xf32, #tpu.memory_space<vmem>>, vector<1x8xf32>
    %10 = arith.mulf %3, %3 : vector<512x8xf32>
    %cst_8 = arith.constant dense<0.000000e+00> : vector<8xf32>
    %11 = vector.multi_reduction <add>, %10, %cst_8 [0] : vector<512x8xf32> to vector<8xf32>
    %12 = vector.shape_cast %11 : vector<8xf32> to vector<1x8xf32>
    %13 = arith.addf %9, %12 : vector<1x8xf32>
    %c0_9 = arith.constant 0 : index
    %c0_10 = arith.constant 0 : index
    %14 = vector.load %arg3[%c0_9, %c0_10] : memref<1x8xf32, #tpu.memory_space<vmem>>, vector<1x8xf32>
    tpu.vector_store %arg3[%c0_9, %c0_10], %13 {strides = array<i32>} : memref<1x8xf32, #tpu.memory_space<vmem>>, vector<1x8xf32>,
    return
  }
  func.func @transform_0(%arg0: i32) -> (i32, i32) {
    %c0_i32 = arith.constant 0 : i32
    %c0_i32_0 = arith.constant 0 : i32
    return %arg0, %c0_i32 : i32, i32
  }
  func.func @transform_1(%arg0: i32) -> (i32, i32) {
    %c0_i32 = arith.constant 0 : i32
    %c0_i32_0 = arith.constant 0 : i32
    %c0_i32_1 = arith.constant 0 : i32
    return %c0_i32, %c0_i32_0 : i32, i32
  }
  func.func @transform_2(%arg0: i32) -> (i32, i32) {
    %c0_i32 = arith.constant 0 : i32
    %c0_i32_0 = arith.constant 0 : i32
    %c0_i32_1 = arith.constant 0 : i32
    return %c0_i32, %c0_i32_0 : i32, i32
  }
}

module attributes {stable_mosaic.version = 11 : i64} {
  func.func @_bn_apply_kernel(%arg0: i32, %arg1: memref<512x8xf32, #tpu.memory_space<vmem>>, %arg2: memref<1x8xf32, #tpu.memory_space<vmem>>, %arg3: memref<1x8xf32, #tpu.memory_space<vmem>>, %arg4: memref<512x8xbf16, #tpu.memory_space<vmem>>) attributes {dimension_semantics = [#tpu.dimension_semantics<parallel>], iteration_bounds = array<i64: 1>, scalar_prefetch = 0 : i64, scratch_operands = 0 : i64, tpu.core_type = #tpu.core_type<tc>, window_params = [{transform_indices = @transform_0, window_bounds = array<i64: 512, 8>}, {pipeline_mode = #tpu.pipeline_mode<synchronous>, transform_indices = @transform_1, window_bounds = array<i64: 1, 8>}, {pipeline_mode = #tpu.pipeline_mode<synchronous>, transform_indices = @transform_2, window_bounds = array<i64: 1, 8>}, {transform_indices = @transform_3, window_bounds = array<i64: 512, 8>}]} {
    %c0 = arith.constant 0 : index
    %c0_0 = arith.constant 0 : index
    %0 = vector.load %arg1[%c0, %c0_0] : memref<512x8xf32, #tpu.memory_space<vmem>>, vector<512x8xf32>
    %c0_1 = arith.constant 0 : index
    %c0_2 = arith.constant 0 : index
    %1 = vector.load %arg2[%c0_1, %c0_2] : memref<1x8xf32, #tpu.memory_space<vmem>>, vector<1x8xf32>
    %2 = vector.broadcast %1 : vector<1x8xf32> to vector<512x8xf32>
    %3 = arith.mulf %0, %2 : vector<512x8xf32>
    %c0_3 = arith.constant 0 : index
    %c0_4 = arith.constant 0 : index
    %4 = vector.load %arg3[%c0_3, %c0_4] : memref<1x8xf32, #tpu.memory_space<vmem>>, vector<1x8xf32>
    %5 = vector.broadcast %4 : vector<1x8xf32> to vector<512x8xf32>
    %6 = arith.addf %3, %5 : vector<512x8xf32>
    %cst = arith.constant 0.000000e+00 : f32
    %7 = vector.broadcast %cst : f32 to vector<512x8xf32>
    %8 = arith.cmpf oge, %6, %7 : vector<512x8xf32>
    %cst_5 = arith.constant 2.000000e-01 : f32
    %9 = vector.broadcast %cst_5 : f32 to vector<512x8xf32>
    %10 = arith.mulf %9, %6 : vector<512x8xf32>
    %11 = arith.select %8, %6, %10 : vector<512x8xi1>, vector<512x8xf32>
    %12 = arith.truncf %11 : vector<512x8xf32> to vector<512x8xbf16>
    %c0_6 = arith.constant 0 : index
    %c0_7 = arith.constant 0 : index
    %13 = vector.load %arg4[%c0_6, %c0_7] : memref<512x8xbf16, #tpu.memory_space<vmem>>, vector<512x8xbf16>
    tpu.vector_store %arg4[%c0_6, %c0_7], %12 {strides = array<i32>} : memref<512x8xbf16, #tpu.memory_space<vmem>>, vector<512x8xbf16>,
    return
  }
  func.func @transform_0(%arg0: i32) -> (i32, i32) {
    %c0_i32 = arith.constant 0 : i32
    %c0_i32_0 = arith.constant 0 : i32
    return %arg0, %c0_i32 : i32, i32
  }
  func.func @transform_1(%arg0: i32) -> (i32, i32) {
    %c0_i32 = arith.constant 0 : i32
    %c0_i32_0 = arith.constant 0 : i32
    %c0_i32_1 = arith.constant 0 : i32
    return %c0_i32, %c0_i32_0 : i32, i32
  }
  func.func @transform_2(%arg0: i32) -> (i32, i32) {
    %c0_i32 = arith.constant 0 : i32
    %c0_i32_0 = arith.constant 0 : i32
    %c0_i32_1 = arith.constant 0 : i32
    return %c0_i32, %c0_i32_0 : i32, i32
  }
  func.func @transform_3(%arg0: i32) -> (i32, i32) {
    %c0_i32 = arith.constant 0 : i32
    %c0_i32_0 = arith.constant 0 : i32
    return %arg0, %c0_i32 : i32, i32
  }
}

module attributes {stable_mosaic.version = 11 : i64} {
  func.func @_matmul_kernel(%arg0: i32, %arg1: memref<512x72xbf16, #tpu.memory_space<vmem>>, %arg2: memref<72x32xbf16, #tpu.memory_space<vmem>>, %arg3: memref<512x32xf32, #tpu.memory_space<vmem>>) attributes {dimension_semantics = [#tpu.dimension_semantics<parallel>], iteration_bounds = array<i64: 1>, scalar_prefetch = 0 : i64, scratch_operands = 0 : i64, tpu.core_type = #tpu.core_type<tc>, window_params = [{transform_indices = @transform_0, window_bounds = array<i64: 512, 72>}, {pipeline_mode = #tpu.pipeline_mode<synchronous>, transform_indices = @transform_1, window_bounds = array<i64: 72, 32>}, {transform_indices = @transform_2, window_bounds = array<i64: 512, 32>}]} {
    %c0 = arith.constant 0 : index
    %c0_0 = arith.constant 0 : index
    %0 = vector.load %arg1[%c0, %c0_0] : memref<512x72xbf16, #tpu.memory_space<vmem>>, vector<512x72xbf16>
    %c0_1 = arith.constant 0 : index
    %c0_2 = arith.constant 0 : index
    %1 = vector.load %arg2[%c0_1, %c0_2] : memref<72x32xbf16, #tpu.memory_space<vmem>>, vector<72x32xbf16>
    %cst = arith.constant dense<0.000000e+00> : vector<512x32xf32>
    %2 = tpu.matmul %0, %1, %cst {dimension_numbers = #tpu.dot_dimension_numbers<[1], [0], [0], [1], [0, 0, 1, 1], [], []>} : vector<512x72xbf16>, vector<72x32xbf16>, vector<512x32xf32> -> vector<512x32xf32>
    %c0_3 = arith.constant 0 : index
    %c0_4 = arith.constant 0 : index
    %3 = vector.load %arg3[%c0_3, %c0_4] : memref<512x32xf32, #tpu.memory_space<vmem>>, vector<512x32xf32>
    tpu.vector_store %arg3[%c0_3, %c0_4], %2 {strides = array<i32>} : memref<512x32xf32, #tpu.memory_space<vmem>>, vector<512x32xf32>,
    return
  }
  func.func @transform_0(%arg0: i32) -> (i32, i32) {
    %c0_i32 = arith.constant 0 : i32
    %c0_i32_0 = arith.constant 0 : i32
    return %arg0, %c0_i32 : i32, i32
  }
  func.func @transform_1(%arg0: i32) -> (i32, i32) {
    %c0_i32 = arith.constant 0 : i32
    %c0_i32_0 = arith.constant 0 : i32
    %c0_i32_1 = arith.constant 0 : i32
    return %c0_i32, %c0_i32_0 : i32, i32
  }
  func.func @transform_2(%arg0: i32) -> (i32, i32) {
    %c0_i32 = arith.constant 0 : i32
    %c0_i32_0 = arith.constant 0 : i32
    return %arg0, %c0_i32 : i32, i32
  }
}

module attributes {stable_mosaic.version = 11 : i64} {
  func.func @_bn_stats_kernel(%arg0: i32, %arg1: memref<2048x8xf32, #tpu.memory_space<vmem>>, %arg2: memref<1x8xf32, #tpu.memory_space<vmem>>, %arg3: memref<1x8xf32, #tpu.memory_space<vmem>>) attributes {dimension_semantics = [#tpu.dimension_semantics<arbitrary>], iteration_bounds = array<i64: 1>, scalar_prefetch = 0 : i64, scratch_operands = 0 : i64, tpu.core_type = #tpu.core_type<tc>, window_params = [{transform_indices = @transform_0, window_bounds = array<i64: 2048, 8>}, {pipeline_mode = #tpu.pipeline_mode<synchronous>, transform_indices = @transform_1, window_bounds = array<i64: 1, 8>}, {pipeline_mode = #tpu.pipeline_mode<synchronous>, transform_indices = @transform_2, window_bounds = array<i64: 1, 8>}]} {
    %c0_i32 = arith.constant 0 : i32
    %0 = arith.cmpi eq, %arg0, %c0_i32 : i32
    %1 = arith.extui %0 : i1 to i32
    %c0_i32_0 = arith.constant 0 : i32
    %2 = arith.cmpi ne, %1, %c0_i32_0 : i32
    scf.if %2 {
      %cst_11 = arith.constant 0.000000e+00 : f32
      %15 = vector.broadcast %cst_11 : f32 to vector<1x8xf32>
      %c0_12 = arith.constant 0 : index
      %c0_13 = arith.constant 0 : index
      %16 = vector.load %arg2[%c0_12, %c0_13] : memref<1x8xf32, #tpu.memory_space<vmem>>, vector<1x8xf32>
      tpu.vector_store %arg2[%c0_12, %c0_13], %15 {strides = array<i32>} : memref<1x8xf32, #tpu.memory_space<vmem>>, vector<1x8xf32>,
      %cst_14 = arith.constant 0.000000e+00 : f32
      %17 = vector.broadcast %cst_14 : f32 to vector<1x8xf32>
      %c0_15 = arith.constant 0 : index
      %c0_16 = arith.constant 0 : index
      %18 = vector.load %arg3[%c0_15, %c0_16] : memref<1x8xf32, #tpu.memory_space<vmem>>, vector<1x8xf32>
      tpu.vector_store %arg3[%c0_15, %c0_16], %17 {strides = array<i32>} : memref<1x8xf32, #tpu.memory_space<vmem>>, vector<1x8xf32>,
    } else {
    }
    %c0 = arith.constant 0 : index
    %c0_1 = arith.constant 0 : index
    %3 = vector.load %arg1[%c0, %c0_1] : memref<2048x8xf32, #tpu.memory_space<vmem>>, vector<2048x8xf32>
    %c0_2 = arith.constant 0 : index
    %c0_3 = arith.constant 0 : index
    %4 = vector.load %arg2[%c0_2, %c0_3] : memref<1x8xf32, #tpu.memory_space<vmem>>, vector<1x8xf32>
    %cst = arith.constant dense<0.000000e+00> : vector<8xf32>
    %5 = vector.multi_reduction <add>, %3, %cst [0] : vector<2048x8xf32> to vector<8xf32>
    %6 = vector.shape_cast %5 : vector<8xf32> to vector<1x8xf32>
    %7 = arith.addf %4, %6 : vector<1x8xf32>
    %c0_4 = arith.constant 0 : index
    %c0_5 = arith.constant 0 : index
    %8 = vector.load %arg2[%c0_4, %c0_5] : memref<1x8xf32, #tpu.memory_space<vmem>>, vector<1x8xf32>
    tpu.vector_store %arg2[%c0_4, %c0_5], %7 {strides = array<i32>} : memref<1x8xf32, #tpu.memory_space<vmem>>, vector<1x8xf32>,
    %c0_6 = arith.constant 0 : index
    %c0_7 = arith.constant 0 : index
    %9 = vector.load %arg3[%c0_6, %c0_7] : memref<1x8xf32, #tpu.memory_space<vmem>>, vector<1x8xf32>
    %10 = arith.mulf %3, %3 : vector<2048x8xf32>
    %cst_8 = arith.constant dense<0.000000e+00> : vector<8xf32>
    %11 = vector.multi_reduction <add>, %10, %cst_8 [0] : vector<2048x8xf32> to vector<8xf32>
    %12 = vector.shape_cast %11 : vector<8xf32> to vector<1x8xf32>
    %13 = arith.addf %9, %12 : vector<1x8xf32>
    %c0_9 = arith.constant 0 : index
    %c0_10 = arith.constant 0 : index
    %14 = vector.load %arg3[%c0_9, %c0_10] : memref<1x8xf32, #tpu.memory_space<vmem>>, vector<1x8xf32>
    tpu.vector_store %arg3[%c0_9, %c0_10], %13 {strides = array<i32>} : memref<1x8xf32, #tpu.memory_space<vmem>>, vector<1x8xf32>,
    return
  }
  func.func @transform_0(%arg0: i32) -> (i32, i32) {
    %c0_i32 = arith.constant 0 : i32
    %c0_i32_0 = arith.constant 0 : i32
    return %arg0, %c0_i32 : i32, i32
  }
  func.func @transform_1(%arg0: i32) -> (i32, i32) {
    %c0_i32 = arith.constant 0 : i32
    %c0_i32_0 = arith.constant 0 : i32
    %c0_i32_1 = arith.constant 0 : i32
    return %c0_i32, %c0_i32_0 : i32, i32
  }
  func.func @transform_2(%arg0: i32) -> (i32, i32) {
    %c0_i32 = arith.constant 0 : i32
    %c0_i32_0 = arith.constant 0 : i32
    %c0_i32_1 = arith.constant 0 : i32
    return %c0_i32, %c0_i32_0 : i32, i32
  }
}

module attributes {stable_mosaic.version = 11 : i64} {
  func.func @_bn_apply_kernel(%arg0: i32, %arg1: memref<2048x8xf32, #tpu.memory_space<vmem>>, %arg2: memref<1x8xf32, #tpu.memory_space<vmem>>, %arg3: memref<1x8xf32, #tpu.memory_space<vmem>>, %arg4: memref<2048x8xbf16, #tpu.memory_space<vmem>>) attributes {dimension_semantics = [#tpu.dimension_semantics<parallel>], iteration_bounds = array<i64: 1>, scalar_prefetch = 0 : i64, scratch_operands = 0 : i64, tpu.core_type = #tpu.core_type<tc>, window_params = [{transform_indices = @transform_0, window_bounds = array<i64: 2048, 8>}, {pipeline_mode = #tpu.pipeline_mode<synchronous>, transform_indices = @transform_1, window_bounds = array<i64: 1, 8>}, {pipeline_mode = #tpu.pipeline_mode<synchronous>, transform_indices = @transform_2, window_bounds = array<i64: 1, 8>}, {transform_indices = @transform_3, window_bounds = array<i64: 2048, 8>}]} {
    %c0 = arith.constant 0 : index
    %c0_0 = arith.constant 0 : index
    %0 = vector.load %arg1[%c0, %c0_0] : memref<2048x8xf32, #tpu.memory_space<vmem>>, vector<2048x8xf32>
    %c0_1 = arith.constant 0 : index
    %c0_2 = arith.constant 0 : index
    %1 = vector.load %arg2[%c0_1, %c0_2] : memref<1x8xf32, #tpu.memory_space<vmem>>, vector<1x8xf32>
    %2 = vector.broadcast %1 : vector<1x8xf32> to vector<2048x8xf32>
    %3 = arith.mulf %0, %2 : vector<2048x8xf32>
    %c0_3 = arith.constant 0 : index
    %c0_4 = arith.constant 0 : index
    %4 = vector.load %arg3[%c0_3, %c0_4] : memref<1x8xf32, #tpu.memory_space<vmem>>, vector<1x8xf32>
    %5 = vector.broadcast %4 : vector<1x8xf32> to vector<2048x8xf32>
    %6 = arith.addf %3, %5 : vector<2048x8xf32>
    %cst = arith.constant 0.000000e+00 : f32
    %7 = vector.broadcast %cst : f32 to vector<2048x8xf32>
    %8 = arith.cmpf oge, %6, %7 : vector<2048x8xf32>
    %cst_5 = arith.constant 2.000000e-01 : f32
    %9 = vector.broadcast %cst_5 : f32 to vector<2048x8xf32>
    %10 = arith.mulf %9, %6 : vector<2048x8xf32>
    %11 = arith.select %8, %6, %10 : vector<2048x8xi1>, vector<2048x8xf32>
    %12 = arith.truncf %11 : vector<2048x8xf32> to vector<2048x8xbf16>
    %c0_6 = arith.constant 0 : index
    %c0_7 = arith.constant 0 : index
    %13 = vector.load %arg4[%c0_6, %c0_7] : memref<2048x8xbf16, #tpu.memory_space<vmem>>, vector<2048x8xbf16>
    tpu.vector_store %arg4[%c0_6, %c0_7], %12 {strides = array<i32>} : memref<2048x8xbf16, #tpu.memory_space<vmem>>, vector<2048x8xbf16>,
    return
  }
  func.func @transform_0(%arg0: i32) -> (i32, i32) {
    %c0_i32 = arith.constant 0 : i32
    %c0_i32_0 = arith.constant 0 : i32
    return %arg0, %c0_i32 : i32, i32
  }
  func.func @transform_1(%arg0: i32) -> (i32, i32) {
    %c0_i32 = arith.constant 0 : i32
    %c0_i32_0 = arith.constant 0 : i32
    %c0_i32_1 = arith.constant 0 : i32
    return %c0_i32, %c0_i32_0 : i32, i32
  }
  func.func @transform_2(%arg0: i32) -> (i32, i32) {
    %c0_i32 = arith.constant 0 : i32
    %c0_i32_0 = arith.constant 0 : i32
    %c0_i32_1 = arith.constant 0 : i32
    return %c0_i32, %c0_i32_0 : i32, i32
  }
  func.func @transform_3(%arg0: i32) -> (i32, i32) {
    %c0_i32 = arith.constant 0 : i32
    %c0_i32_0 = arith.constant 0 : i32
    return %arg0, %c0_i32 : i32, i32
  }
}

module attributes {stable_mosaic.version = 11 : i64} {
  func.func @_matmul_kernel(%arg0: i32, %arg1: memref<1024x72xbf16, #tpu.memory_space<vmem>>, %arg2: memref<72x3xbf16, #tpu.memory_space<vmem>>, %arg3: memref<1x3xf32, #tpu.memory_space<vmem>>, %arg4: memref<1024x3xf32, #tpu.memory_space<vmem>>) attributes {dimension_semantics = [#tpu.dimension_semantics<parallel>], iteration_bounds = array<i64: 2>, scalar_prefetch = 0 : i64, scratch_operands = 0 : i64, tpu.core_type = #tpu.core_type<tc>, window_params = [{transform_indices = @transform_0, window_bounds = array<i64: 1024, 72>}, {pipeline_mode = #tpu.pipeline_mode<synchronous>, transform_indices = @transform_1, window_bounds = array<i64: 72, 3>}, {pipeline_mode = #tpu.pipeline_mode<synchronous>, transform_indices = @transform_2, window_bounds = array<i64: 1, 3>}, {transform_indices = @transform_3, window_bounds = array<i64: 1024, 3>}]} {
    %c0 = arith.constant 0 : index
    %c0_0 = arith.constant 0 : index
    %0 = vector.load %arg1[%c0, %c0_0] : memref<1024x72xbf16, #tpu.memory_space<vmem>>, vector<1024x72xbf16>
    %c0_1 = arith.constant 0 : index
    %c0_2 = arith.constant 0 : index
    %1 = vector.load %arg2[%c0_1, %c0_2] : memref<72x3xbf16, #tpu.memory_space<vmem>>, vector<72x3xbf16>
    %cst = arith.constant dense<0.000000e+00> : vector<1024x3xf32>
    %2 = tpu.matmul %0, %1, %cst {dimension_numbers = #tpu.dot_dimension_numbers<[1], [0], [0], [1], [0, 0, 1, 1], [], []>} : vector<1024x72xbf16>, vector<72x3xbf16>, vector<1024x3xf32> -> vector<1024x3xf32>
    %c0_3 = arith.constant 0 : index
    %c0_4 = arith.constant 0 : index
    %3 = vector.load %arg3[%c0_3, %c0_4] : memref<1x3xf32, #tpu.memory_space<vmem>>, vector<1x3xf32>
    %4 = vector.broadcast %3 : vector<1x3xf32> to vector<1024x3xf32>
    %5 = arith.addf %2, %4 : vector<1024x3xf32>
    %6 = arith.negf %5 : vector<1024x3xf32>
    %7 = math.exp %6 : vector<1024x3xf32>
    %cst_5 = arith.constant 1.000000e+00 : f32
    %8 = vector.broadcast %cst_5 : f32 to vector<1024x3xf32>
    %9 = arith.addf %8, %7 : vector<1024x3xf32>
    %10 = arith.divf %8, %9 : vector<1024x3xf32>
    %c0_6 = arith.constant 0 : index
    %c0_7 = arith.constant 0 : index
    %11 = vector.load %arg4[%c0_6, %c0_7] : memref<1024x3xf32, #tpu.memory_space<vmem>>, vector<1024x3xf32>
    tpu.vector_store %arg4[%c0_6, %c0_7], %10 {strides = array<i32>} : memref<1024x3xf32, #tpu.memory_space<vmem>>, vector<1024x3xf32>,
    return
  }
  func.func @transform_0(%arg0: i32) -> (i32, i32) {
    %c0_i32 = arith.constant 0 : i32
    %c0_i32_0 = arith.constant 0 : i32
    return %arg0, %c0_i32 : i32, i32
  }
  func.func @transform_1(%arg0: i32) -> (i32, i32) {
    %c0_i32 = arith.constant 0 : i32
    %c0_i32_0 = arith.constant 0 : i32
    %c0_i32_1 = arith.constant 0 : i32
    return %c0_i32, %c0_i32_0 : i32, i32
  }
  func.func @transform_2(%arg0: i32) -> (i32, i32) {
    %c0_i32 = arith.constant 0 : i32
    %c0_i32_0 = arith.constant 0 : i32
    %c0_i32_1 = arith.constant 0 : i32
    return %c0_i32, %c0_i32_0 : i32, i32
  }
  func.func @transform_3(%arg0: i32) -> (i32, i32) {
    %c0_i32 = arith.constant 0 : i32
    %c0_i32_0 = arith.constant 0 : i32
    return %arg0, %c0_i32 : i32, i32
  }
}

</mosaic_0001>

<llo_original>
// kernel: a_call__.16
$region0: #{a_call__.16}
  #allocation0 [shape = 'u32[]', space=smem, size = 0x4, offset = 0x4, fixed_abs, tag = 'smem constant byte address 0x4 - core index']
  #allocation1 [shape = 'u32[144,128]{1,0:T(1,128)}', space=vmem, size = 0x12000, scoped, tag = 'internal scratch']
  %s0 = inlined_call_operand.vmem [shape: bf16[2,32], index: 0, kind: input, shape index: {}]
  %s1 = inlined_call_operand.vmem [shape: bf16[32,256], index: 1, kind: input, shape index: {}]
  %s2 = inlined_call_operand.hbm [shape: f32[1,256], index: 2, kind: input, shape index: {}]
  %s3 = inlined_call_operand.vmem [shape: f32[2,256], index: 3, kind: output, shape index: {}]
  %s4 = sld [smem:[#allocation0]]
  $region26: #{a_call__.16} parent=0
    _
  %s6 = ssub.s32 1, %s4
  %s7 = scalar_select 0, %s6, %s4
  $region1: #{a_call__.16} parent=0
    #allocation2 [shape = 'u8[1024]{0}', space=vmem, size = 0x400, scoped, tag = 'input window, operand 2, single buffered']
    #allocation3 [shape = 's32[1]{0}', space=sflag, size = 0x4, scoped, tag = 'scoped memory for a_call__.16']
    %8 = vsyncpa [#allocation3], 0
    // Predicated region
    $region2: #{a_call__.16} parent=1 // pred_check
      _
    $region3: #{a_call__.16} parent=1 // pred_check_branch
      %10 = sbr.rel (0) target = $region5
    $region4: #{a_call__.16} parent=1 // pred_region
      _
    $region5: #{a_call__.16} parent=1 // pred_fallthru
      _
    // Predicated region
    $region6: #{a_call__.16} parent=1 // pred_check
      _
    $region7: #{a_call__.16} parent=1 // pred_check_branch
      %12 = sbr.rel (0) target = $region9
    $region8: #{a_call__.16} parent=1 // pred_region
      _
    $region9: #{a_call__.16} parent=1 // pred_fallthru
      _
    // Predicated region
    $region10: #{a_call__.16} parent=1 // pred_check
      _
    $region11: #{a_call__.16} parent=1 // pred_check_branch
      %14 = sbr.rel (0) target = $region13
    $region12: #{a_call__.16} parent=1 // pred_region
      %s16 = ssub.s32 32, 32
      %17 = vsyncadd [#allocation3], %s16
      %s19 = sshll.u32 [#allocation2], 4
      %s20 = int_to_ptr.vmem [resolvable:$true] %s19
      %22 = dma.hbm_to_vmem [thread:$0]  %s2, 32, %s20, [#allocation3]
    $region13: #{a_call__.16} parent=1 // pred_fallthru
      _
    // Predicated region
    $region14: #{a_call__.16} parent=1 // pred_check
      _
    $region15: #{a_call__.16} parent=1 // pred_check_branch
      %24 = sbr.rel (0) target = $region17
    $region16: #{a_call__.16} parent=1 // pred_region
      %25 = dma.done [#allocation3], 32
    $region17: #{a_call__.16} parent=1 // pred_fallthru
      _
    %v27 = vld [vmem:[%s0] sm:$0x1]
    %v28 = vld [vmem:[%s1] sm:$0xff]
    %v29 = vld [vmem:[%s1 + $0x8] sm:$0xff]
    %v30 = vld [vmem:[%s1 + $0x10] sm:$0xff]
    %v31 = vld [vmem:[%s1 + $0x18] sm:$0xff]
    %v32 = vld [vmem:[#allocation2] sm:$0x3]
    %v34 = vlaneseq
    %v35 = vshrl.u32 %v34, 7
    %v36 = vsub.s32 0, %v35
    %v37 = vrot.slane %v32, %v36
    %v38 = vlaneseq
    %v39 = vshrl.u32 %v38, 7
    %v40 = vsub.s32 1, %v39
    %v41 = vrot.slane %v32, %v40
    %v48 = vunpack.c.l.b16 %v28
    %v49 = vunpack.c.h.b16 %v28
    %v50 = vunpack.c.l.b16 %v29
    %v51 = vunpack.c.h.b16 %v29
    %v52 = vunpack.c.l.b16 %v30
    %v53 = vunpack.c.h.b16 %v30
    %v54 = vunpack.c.l.b16 %v31
    %v55 = vunpack.c.h.b16 %v31
    %v56 = vpack.c.b16 %v50, %v48
    %v57 = vpack.c.b16 %v51, %v49
    %v58 = vpack.c.b16 %v54, %v52
    %v59 = vpack.c.b16 %v55, %v53
    %vm64 = vcmask 261120
    %v66 = vsel %vm64, %v27, 0
    %68 = vmatprep.subr.bf16.mxu0 %v57
    %69 = vmatpush1.bf16.msra.mxu0 %v56
    %70 = vmatprep.subr.bf16.mxu0 %v59
    %71 = vmatpush1.bf16.msra.mxu0 %v58
    %72 = vmatprep.subr.bf16.mxu0 0
    %73 = vmatpush1.bf16.msra.mxu0 0
    %74 = vmatprep.subr.bf16.mxu0 0
    %75 = vmatpush1.bf16.msra.mxu0 0
    %76 = vmatprep.subr.bf16.mxu0 0
    %77 = vmatpush1.bf16.msra.mxu0 0
    %78 = vmatprep.subr.bf16.mxu0 0
    %79 = vmatpush1.bf16.msra.mxu0 0
    %80 = vmatprep.subr.bf16.mxu0 0
    %81 = vmatpush1.bf16.msra.mxu0 0
    %82 = vmatprep.subr.bf16.mxu0 0
    %83 = vmatpush1.bf16.msra.mxu0 0
    %84 = vmatprep.subr.bf16.mxu0 0
    %85 = vmatpush1.bf16.msra.mxu0 0
    %86 = vmatprep.subr.bf16.mxu0 0
    %87 = vmatpush1.bf16.msra.mxu0 0
    %88 = vmatprep.subr.bf16.mxu0 0
    %89 = vmatpush1.bf16.msra.mxu0 0
    %90 = vmatprep.subr.bf16.mxu0 0
    %91 = vmatpush1.bf16.msra.mxu0 0
    %92 = vmatprep.subr.bf16.mxu0 0
    %93 = vmatpush1.bf16.msra.mxu0 0
    %94 = vmatprep.subr.bf16.mxu0 0
    %95 = vmatpush1.bf16.msra.mxu0 0
    %96 = vmatprep.subr.bf16.mxu0 0
    %97 = vmatpush1.bf16.msra.mxu0 0
    %98 = vmatprep.subr.bf16.mxu0 0
    %99 = vmatpush1.bf16.msra.mxu0 0
    %100 = vmatprep.mubr.bf16.mxu0 0
    %101 = vmatmul.mubr.bf16.gmra.mrb[0].mxu0 %v66
    %v102 = vpop.f32.mrb[0].mxu0
    %v103 = vadd.f32 %v37, %v102
    %v104 = vpop.f32.mrb[0].mxu0
    %v105 = vadd.f32 %v41, %v104
    %v106 = vpop.f32.mrb[0].mxu0
    %v107 = vpop.f32.mrb[0].mxu0
    %108 = vdwg.mxu0
    %v111 = vcombine.low %v103, %v105
    %v113 = vunpack.c.l.s4 1983009808
    %v114 = vunpack.c.0.s8 %v113
    %v115 = vlaneseq
    %v116 = vshrl.u32 %v115, 7
    %v117 = vsub.s32 %v114, %v116
    %v118 = vrot.slane %v111, %v117
    %120 = vst [vmem:[%s3] sm:$0xf] %v118
    // Predicated region
    $region18: #{a_call__.16} parent=1 // pred_check
      _
    $region19: #{a_call__.16} parent=1 // pred_check_branch
      %122 = sbr.rel (0) target = $region21
    $region20: #{a_call__.16} parent=1 // pred_region
      _
    $region21: #{a_call__.16} parent=1 // pred_fallthru
      _
    // Predicated region
    $region22: #{a_call__.16} parent=1 // pred_check
      _
    $region23: #{a_call__.16} parent=1 // pred_check_branch
      %124 = sbr.rel (0) target = $region25
    $region24: #{a_call__.16} parent=1 // pred_region
      _
    $region25: #{a_call__.16} parent=1 // pred_fallthru
      _
    %125 = vsyncpa [#allocation3], 1

// kernel: a_call__.17
$region0: #{a_call__.17}
  #allocation0 [shape = 'u32[]', space=smem, size = 0x4, offset = 0x4, fixed_abs, tag = 'smem constant byte address 0x4 - core index']
  #allocation1 [shape = 'u32[144,128]{1,0:T(1,128)}', space=vmem, size = 0x12000, scoped, tag = 'internal scratch']
  %s0 = inlined_call_operand.vmem [shape: f32[8,64], index: 0, kind: input, shape index: {}]
  %s1 = inlined_call_operand.vmem [shape: f32[1,64], index: 1, kind: output, shape index: {0}]
  %s2 = inlined_call_operand.vmem [shape: f32[1,64], index: 2, kind: output, shape index: {1}]
  %3 = xla_tuple %s1, %s2
  %s4 = sld [smem:[#allocation0]]
  $region26: #{a_call__.17} parent=0
    _
  %s6 = ssub.s32 1, %s4
  %s7 = scalar_select 0, %s6, %s4
  // Predicated region
  $region2: #{a_call__.17} parent=0 // pred_check
    _
  $region3: #{a_call__.17} parent=0 // pred_check_branch
    %9 = sbr.rel (0) target = $region5
  $region4: #{a_call__.17} parent=0 // pred_region
    _
  $region5: #{a_call__.17} parent=0 // pred_fallthru
    _
  %p10 = scmp.eq.s32.totalorder 0, 0
  // Predicated region
  $region6: #{a_call__.17} parent=0 // pred_check
    %p11 = pneg %p10
  $region7: #{a_call__.17} parent=0 // pred_check_branch
    %13 = sbr.rel (%p11) target = $region9
  $region8: #{a_call__.17} parent=0 // pred_region
    %vm14 = vcmask 516096
    %15 = vst.msk [vmem:[%s1] sm:$0x1] %vm14, 0.0
    %16 = vst.msk [vmem:[%s2] sm:$0x1] %vm14, 0.0
  $region9: #{a_call__.17} parent=0 // pred_fallthru
    _
  %v17 = vld [vmem:[%s0] sm:$0xff]
  %v18 = vld [vmem:[%s1] sm:$0x1]
  %vm19 = vcmask 523264
  %v20 = vsel %vm19, %v17, 0.0
  %v21 = vrot.slane %v20, 4
  %v22 = vadd.f32 %v20, %v21
  %v23 = vrot.slane %v22, 2
  %v24 = vadd.f32 %v22, %v23
  %v25 = vrot.slane %v24, 1
  %v26 = vadd.f32 %v24, %v25
  %v27 = vadd.f32 %v18, %v26
  %vm28 = vcmask 516096
  %29 = vst.msk [vmem:[%s1] sm:$0x1] %vm28, %v27
  %v30 = vld [vmem:[%s2] sm:$0x1]
  %v31 = vmul.f32 %v17, %v17
  %v32 = vsel %vm19, %v31, 0.0
  %v33 = vrot.slane %v32, 4
  %v34 = vadd.f32 %v32, %v33
  %v35 = vrot.slane %v34, 2
  %v36 = vadd.f32 %v34, %v35
  %v37 = vrot.slane %v36, 1
  %v38 = vadd.f32 %v36, %v37
  %v39 = vadd.f32 %v30, %v38
  %40 = vst.msk [vmem:[%s2] sm:$0x1] %vm28, %v39
  // Predicated region
  $region10: #{a_call__.17} parent=0 // pred_check
    _
  $region11: #{a_call__.17} parent=0 // pred_check_branch
    %42 = sbr.rel (0) target = $region13
  $region12: #{a_call__.17} parent=0 // pred_region
    _
  $region13: #{a_call__.17} parent=0 // pred_fallthru
    _
  // Predicated region
  $region14: #{a_call__.17} parent=0 // pred_check
    _
  $region15: #{a_call__.17} parent=0 // pred_check_branch
    %44 = sbr.rel (0) target = $region17
  $region16: #{a_call__.17} parent=0 // pred_region
    _
  $region17: #{a_call__.17} parent=0 // pred_fallthru
    _
  // Predicated region
  $region18: #{a_call__.17} parent=0 // pred_check
    _
  $region19: #{a_call__.17} parent=0 // pred_check_branch
    %46 = sbr.rel (0) target = $region21
  $region20: #{a_call__.17} parent=0 // pred_region
    _
  $region21: #{a_call__.17} parent=0 // pred_fallthru
    _
  // Predicated region
  $region22: #{a_call__.17} parent=0 // pred_check
    _
  $region23: #{a_call__.17} parent=0 // pred_check_branch
    %48 = sbr.rel (0) target = $region25
  $region24: #{a_call__.17} parent=0 // pred_region
    _
  $region25: #{a_call__.17} parent=0 // pred_fallthru
    _

// kernel: a_call__.18
$region0: #{a_call__.18}
  #allocation0 [shape = 'u32[]', space=smem, size = 0x4, offset = 0x4, fixed_abs, tag = 'smem constant byte address 0x4 - core index']
  #allocation1 [shape = 'u32[144,128]{1,0:T(1,128)}', space=vmem, size = 0x12000, scoped, tag = 'internal scratch']
  %s0 = inlined_call_operand.vmem [shape: f32[8,64], index: 0, kind: input, shape index: {}]
  %s1 = inlined_call_operand.vmem [shape: f32[1,64], index: 1, kind: input, shape index: {}]
  %s2 = inlined_call_operand.vmem [shape: f32[1,64], index: 2, kind: input, shape index: {}]
  %s3 = inlined_call_operand.vmem [shape: bf16[8,64], index: 3, kind: output, shape index: {}]
  %s4 = sld [smem:[#allocation0]]
  $region22: #{a_call__.18} parent=0
    _
  %s6 = ssub.s32 1, %s4
  %s7 = scalar_select 0, %s6, %s4
  // Predicated region
  $region2: #{a_call__.18} parent=0 // pred_check
    _
  $region3: #{a_call__.18} parent=0 // pred_check_branch
    %9 = sbr.rel (0) target = $region5
  $region4: #{a_call__.18} parent=0 // pred_region
    _
  $region5: #{a_call__.18} parent=0 // pred_fallthru
    _
  // Predicated region
  $region6: #{a_call__.18} parent=0 // pred_check
    _
  $region7: #{a_call__.18} parent=0 // pred_check_branch
    %11 = sbr.rel (0) target = $region9
  $region8: #{a_call__.18} parent=0 // pred_region
    _
  $region9: #{a_call__.18} parent=0 // pred_fallthru
    _
  // Predicated region
  $region10: #{a_call__.18} parent=0 // pred_check
    _
  $region11: #{a_call__.18} parent=0 // pred_check_branch
    %13 = sbr.rel (0) target = $region13
  $region12: #{a_call__.18} parent=0 // pred_region
    _
  $region13: #{a_call__.18} parent=0 // pred_fallthru
    _
  %v14 = vld [vmem:[%s0] sm:$0xff]
  %v15 = vld [vmem:[%s1] sm:$0x1]
  %v17 = vlaneseq
  %v18 = vshrl.u32 %v17, 7
  %v19 = vsub.s32 0, %v18
  %v20 = vrot.slane %v15, %v19
  %v22 = vmul.f32 %v14, %v20
  %v23 = vld [vmem:[%s2] sm:$0x1]
  %v25 = vlaneseq
  %v26 = vshrl.u32 %v25, 7
  %v27 = vsub.s32 0, %v26
  %v28 = vrot.slane %v23, %v27
  %v30 = vadd.f32 %v22, %v28
  %v31 = vpack.c.bf16 %v30, %v30
  %vm32 = vcmask 519168
  %33 = vst.msk [vmem:[%s3] sm:$0xf] %vm32, %v31
  // Predicated region
  $region14: #{a_call__.18} parent=0 // pred_check
    _
  $region15: #{a_call__.18} parent=0 // pred_check_branch
    %35 = sbr.rel (0) target = $region17
  $region16: #{a_call__.18} parent=0 // pred_region
    _
  $region17: #{a_call__.18} parent=0 // pred_fallthru
    _
  // Predicated region
  $region18: #{a_call__.18} parent=0 // pred_check
    _
  $region19: #{a_call__.18} parent=0 // pred_check_branch
    %37 = sbr.rel (0) target = $region21
  $region20: #{a_call__.18} parent=0 // pred_region
    _
  $region21: #{a_call__.18} parent=0 // pred_fallthru
    _

// kernel: a_call__.19
$region0: #{a_call__.19}
  #allocation0 [shape = 'u32[]', space=smem, size = 0x4, offset = 0x4, fixed_abs, tag = 'smem constant byte address 0x4 - core index']
  #allocation1 [shape = 'u32[144,128]{1,0:T(1,128)}', space=vmem, size = 0x12000, scoped, tag = 'internal scratch']
  %s0 = inlined_call_operand.vmem [shape: bf16[8,576], index: 0, kind: input, shape index: {}]
  %s1 = inlined_call_operand.vmem [shape: bf16[576,128], index: 1, kind: input, shape index: {}]
  %s2 = inlined_call_operand.vmem [shape: f32[8,128], index: 2, kind: output, shape index: {}]
  %s3 = sld [smem:[#allocation0]]
  $region18: #{a_call__.19} parent=0
    _
  %s5 = ssub.s32 1, %s3
  %s6 = scalar_select 0, %s5, %s3
  // Predicated region
  $region2: #{a_call__.19} parent=0 // pred_check
    _
  $region3: #{a_call__.19} parent=0 // pred_check_branch
    %8 = sbr.rel (0) target = $region5
  $region4: #{a_call__.19} parent=0 // pred_region
    _
  $region5: #{a_call__.19} parent=0 // pred_fallthru
    _
  // Predicated region
  $region6: #{a_call__.19} parent=0 // pred_check
    _
  $region7: #{a_call__.19} parent=0 // pred_check_branch
    %10 = sbr.rel (0) target = $region9
  $region8: #{a_call__.19} parent=0 // pred_region
    _
  $region9: #{a_call__.19} parent=0 // pred_fallthru
    _
  %v12 = vld [vmem:[%s0] sm:$0xff]
  %v13 = vld [vmem:[%s0 + $0x8] sm:$0xff]
  %v14 = vld [vmem:[%s0 + $0x10] sm:$0xf]
  %v15 = vld [vmem:[%s1] sm:$0xf]
  %v16 = vld [vmem:[%s1 + $0x4] sm:$0xf]
  %v17 = vld [vmem:[%s1 + $0x8] sm:$0xf]
  %v18 = vld [vmem:[%s1 + $0xc] sm:$0xf]
  %v19 = vld [vmem:[%s1 + $0x10] sm:$0xf]
  %v20 = vld [vmem:[%s1 + $0x14] sm:$0xf]
  %v21 = vld [vmem:[%s1 + $0x18] sm:$0xf]
  %v22 = vld [vmem:[%s1 + $0x1c] sm:$0xf]
  %v23 = vld [vmem:[%s1 + $0x20] sm:$0xf]
  %v24 = vld [vmem:[%s1 + $0x24] sm:$0xf]
  %v25 = vld [vmem:[%s1 + $0x28] sm:$0xf]
  %v26 = vld [vmem:[%s1 + $0x2c] sm:$0xf]
  %v27 = vld [vmem:[%s1 + $0x30] sm:$0xf]
  %v28 = vld [vmem:[%s1 + $0x34] sm:$0xf]
  %v29 = vld [vmem:[%s1 + $0x38] sm:$0xf]
  %v30 = vld [vmem:[%s1 + $0x3c] sm:$0xf]
  %v31 = vld [vmem:[%s1 + $0x40] sm:$0xf]
  %v32 = vld [vmem:[%s1 + $0x44] sm:$0xf]
  %v33 = vld [vmem:[%s1 + $0x48] sm:$0xf]
  %v34 = vld [vmem:[%s1 + $0x4c] sm:$0xf]
  %v35 = vld [vmem:[%s1 + $0x50] sm:$0xf]
  %v36 = vld [vmem:[%s1 + $0x54] sm:$0xf]
  %v37 = vld [vmem:[%s1 + $0x58] sm:$0xf]
  %v38 = vld [vmem:[%s1 + $0x5c] sm:$0xf]
  %v39 = vld [vmem:[%s1 + $0x60] sm:$0xf]
  %v40 = vld [vmem:[%s1 + $0x64] sm:$0xf]
  %v41 = vld [vmem:[%s1 + $0x68] sm:$0xf]
  %v42 = vld [vmem:[%s1 + $0x6c] sm:$0xf]
  %v43 = vld [vmem:[%s1 + $0x70] sm:$0xf]
  %v44 = vld [vmem:[%s1 + $0x74] sm:$0xf]
  %v45 = vld [vmem:[%s1 + $0x78] sm:$0xf]
  %v46 = vld [vmem:[%s1 + $0x7c] sm:$0xf]
  %v47 = vld [vmem:[%s1 + $0x80] sm:$0xf]
  %v48 = vld [vmem:[%s1 + $0x84] sm:$0xf]
  %v49 = vld [vmem:[%s1 + $0x88] sm:$0xf]
  %v50 = vld [vmem:[%s1 + $0x8c] sm:$0xf]
  %v51 = vld [vmem:[%s1 + $0x90] sm:$0xf]
  %v52 = vld [vmem:[%s1 + $0x94] sm:$0xf]
  %v53 = vld [vmem:[%s1 + $0x98] sm:$0xf]
  %v54 = vld [vmem:[%s1 + $0x9c] sm:$0xf]
  %v55 = vld [vmem:[%s1 + $0xa0] sm:$0xf]
  %v56 = vld [vmem:[%s1 + $0xa4] sm:$0xf]
  %v57 = vld [vmem:[%s1 + $0xa8] sm:$0xf]
  %v58 = vld [vmem:[%s1 + $0xac] sm:$0xf]
  %v59 = vld [vmem:[%s1 + $0xb0] sm:$0xf]
  %v60 = vld [vmem:[%s1 + $0xb4] sm:$0xf]
  %v61 = vld [vmem:[%s1 + $0xb8] sm:$0xf]
  %v62 = vld [vmem:[%s1 + $0xbc] sm:$0xf]
  %v63 = vld [vmem:[%s1 + $0xc0] sm:$0xf]
  %v64 = vld [vmem:[%s1 + $0xc4] sm:$0xf]
  %v65 = vld [vmem:[%s1 + $0xc8] sm:$0xf]
  %v66 = vld [vmem:[%s1 + $0xcc] sm:$0xf]
  %v67 = vld [vmem:[%s1 + $0xd0] sm:$0xf]
  %v68 = vld [vmem:[%s1 + $0xd4] sm:$0xf]
  %v69 = vld [vmem:[%s1 + $0xd8] sm:$0xf]
  %v70 = vld [vmem:[%s1 + $0xdc] sm:$0xf]
  %v71 = vld [vmem:[%s1 + $0xe0] sm:$0xf]
  %v72 = vld [vmem:[%s1 + $0xe4] sm:$0xf]
  %v73 = vld [vmem:[%s1 + $0xe8] sm:$0xf]
  %v74 = vld [vmem:[%s1 + $0xec] sm:$0xf]
  %v75 = vld [vmem:[%s1 + $0xf0] sm:$0xf]
  %v76 = vld [vmem:[%s1 + $0xf4] sm:$0xf]
  %v77 = vld [vmem:[%s1 + $0xf8] sm:$0xf]
  %v78 = vld [vmem:[%s1 + $0xfc] sm:$0xf]
  %v79 = vld [vmem:[%s1 + $0x100] sm:$0xf]
  %v80 = vld [vmem:[%s1 + $0x104] sm:$0xf]
  %v81 = vld [vmem:[%s1 + $0x108] sm:$0xf]
  %v82 = vld [vmem:[%s1 + $0x10c] sm:$0xf]
  %v83 = vld [vmem:[%s1 + $0x110] sm:$0xf]
  %v84 = vld [vmem:[%s1 + $0x114] sm:$0xf]
  %v85 = vld [vmem:[%s1 + $0x118] sm:$0xf]
  %v86 = vld [vmem:[%s1 + $0x11c] sm:$0xf]
  %v90 = vunpack.c.l.b16 %v12
  %v91 = vunpack.c.h.b16 %v12
  %v92 = vunpack.c.l.b16 %v13
  %v93 = vunpack.c.h.b16 %v13
  %v94 = vunpack.c.l.b16 %v14
  %v95 = vpack.c.b16 %v90, %v90
  %v96 = vpack.c.b16 %v91, %v91
  %v97 = vpack.c.b16 %v92, %v92
  %v98 = vpack.c.b16 %v93, %v93
  %v99 = vpack.c.b16 %v94, %v94
  %v176 = vunpack.c.l.b16 %v15
  %v177 = vunpack.c.l.b16 %v16
  %v178 = vunpack.c.l.b16 %v17
  %v179 = vunpack.c.l.b16 %v18
  %v180 = vunpack.c.l.b16 %v19
  %v181 = vunpack.c.l.b16 %v20
  %v182 = vunpack.c.l.b16 %v21
  %v183 = vunpack.c.l.b16 %v22
  %v184 = vunpack.c.l.b16 %v23
  %v185 = vunpack.c.l.b16 %v24
  %v186 = vunpack.c.l.b16 %v25
  %v187 = vunpack.c.l.b16 %v26
  %v188 = vunpack.c.l.b16 %v27
  %v189 = vunpack.c.l.b16 %v28
  %v190 = vunpack.c.l.b16 %v29
  %v191 = vunpack.c.l.b16 %v30
  %v192 = vunpack.c.l.b16 %v31
  %v193 = vunpack.c.l.b16 %v32
  %v194 = vunpack.c.l.b16 %v33
  %v195 = vunpack.c.l.b16 %v34
  %v196 = vunpack.c.l.b16 %v35
  %v197 = vunpack.c.l.b16 %v36
  %v198 = vunpack.c.l.b16 %v37
  %v199 = vunpack.c.l.b16 %v38
  %v200 = vunpack.c.l.b16 %v39
  %v201 = vunpack.c.l.b16 %v40
  %v202 = vunpack.c.l.b16 %v41
  %v203 = vunpack.c.l.b16 %v42
  %v204 = vunpack.c.l.b16 %v43
  %v205 = vunpack.c.l.b16 %v44
  %v206 = vunpack.c.l.b16 %v45
  %v207 = vunpack.c.l.b16 %v46
  %v208 = vunpack.c.l.b16 %v47
  %v209 = vunpack.c.l.b16 %v48
  %v210 = vunpack.c.l.b16 %v49
  %v211 = vunpack.c.l.b16 %v50
  %v212 = vunpack.c.l.b16 %v51
  %v213 = vunpack.c.l.b16 %v52
  %v214 = vunpack.c.l.b16 %v53
  %v215 = vunpack.c.l.b16 %v54
  %v216 = vunpack.c.l.b16 %v55
  %v217 = vunpack.c.l.b16 %v56
  %v218 = vunpack.c.l.b16 %v57
  %v219 = vunpack.c.l.b16 %v58
  %v220 = vunpack.c.l.b16 %v59
  %v221 = vunpack.c.l.b16 %v60
  %v222 = vunpack.c.l.b16 %v61
  %v223 = vunpack.c.l.b16 %v62
  %v224 = vunpack.c.l.b16 %v63
  %v225 = vunpack.c.l.b16 %v64
  %v226 = vunpack.c.l.b16 %v65
  %v227 = vunpack.c.l.b16 %v66
  %v228 = vunpack.c.l.b16 %v67
  %v229 = vunpack.c.l.b16 %v68
  %v230 = vunpack.c.l.b16 %v69
  %v231 = vunpack.c.l.b16 %v70
  %v232 = vunpack.c.l.b16 %v71
  %v233 = vunpack.c.l.b16 %v72
  %v234 = vunpack.c.l.b16 %v73
  %v235 = vunpack.c.l.b16 %v74
  %v236 = vunpack.c.l.b16 %v75
  %v237 = vunpack.c.l.b16 %v76
  %v238 = vunpack.c.l.b16 %v77
  %v239 = vunpack.c.l.b16 %v78
  %v240 = vunpack.c.l.b16 %v79
  %v241 = vunpack.c.l.b16 %v80
  %v242 = vunpack.c.l.b16 %v81
  %v243 = vunpack.c.l.b16 %v82
  %v244 = vunpack.c.l.b16 %v83
  %v245 = vunpack.c.l.b16 %v84
  %v246 = vunpack.c.l.b16 %v85
  %v247 = vunpack.c.l.b16 %v86
  %v248 = vpack.c.b16 %v177, %v176
  %v249 = vpack.c.b16 %v179, %v178
  %v250 = vpack.c.b16 %v181, %v180
  %v251 = vpack.c.b16 %v183, %v182
  %v252 = vpack.c.b16 %v185, %v184
  %v253 = vpack.c.b16 %v187, %v186
  %v254 = vpack.c.b16 %v189, %v188
  %v255 = vpack.c.b16 %v191, %v190
  %v256 = vpack.c.b16 %v193, %v192
  %v257 = vpack.c.b16 %v195, %v194
  %v258 = vpack.c.b16 %v197, %v196
  %v259 = vpack.c.b16 %v199, %v198
  %v260 = vpack.c.b16 %v201, %v200
  %v261 = vpack.c.b16 %v203, %v202
  %v262 = vpack.c.b16 %v205, %v204
  %v263 = vpack.c.b16 %v207, %v206
  %v264 = vpack.c.b16 %v209, %v208
  %v265 = vpack.c.b16 %v211, %v210
  %v266 = vpack.c.b16 %v213, %v212
  %v267 = vpack.c.b16 %v215, %v214
  %v268 = vpack.c.b16 %v217, %v216
  %v269 = vpack.c.b16 %v219, %v218
  %v270 = vpack.c.b16 %v221, %v220
  %v271 = vpack.c.b16 %v223, %v222
  %v272 = vpack.c.b16 %v225, %v224
  %v273 = vpack.c.b16 %v227, %v226
  %v274 = vpack.c.b16 %v229, %v228
  %v275 = vpack.c.b16 %v231, %v230
  %v276 = vpack.c.b16 %v233, %v232
  %v277 = vpack.c.b16 %v235, %v234
  %v278 = vpack.c.b16 %v237, %v236
  %v279 = vpack.c.b16 %v239, %v238
  %v280 = vpack.c.b16 %v241, %v240
  %v281 = vpack.c.b16 %v243, %v242
  %v282 = vpack.c.b16 %v245, %v244
  %v283 = vpack.c.b16 %v247, %v246
  %vm320 = vcmask 523264
  %v322 = vsel %vm320, %v99, 0
  %324 = vmatprep.subr.bf16.mxu0 0
  %325 = vmatpush1.bf16.msra.mxu0 %v248
  %326 = vmatprep.subr.bf16.mxu0 0
  %327 = vmatpush1.bf16.msra.mxu0 %v249
  %328 = vmatprep.subr.bf16.mxu0 0
  %329 = vmatpush1.bf16.msra.mxu0 %v250
  %330 = vmatprep.subr.bf16.mxu0 0
  %331 = vmatpush1.bf16.msra.mxu0 %v251
  %332 = vmatprep.subr.bf16.mxu0 0
  %333 = vmatpush1.bf16.msra.mxu0 %v252
  %334 = vmatprep.subr.bf16.mxu0 0
  %335 = vmatpush1.bf16.msra.mxu0 %v253
  %336 = vmatprep.subr.bf16.mxu0 0
  %337 = vmatpush1.bf16.msra.mxu0 %v254
  %338 = vmatprep.subr.bf16.mxu0 0
  %339 = vmatpush1.bf16.msra.mxu0 %v255
  %340 = vmatprep.subr.bf16.mxu0 0
  %341 = vmatpush1.bf16.msra.mxu0 %v256
  %342 = vmatprep.subr.bf16.mxu0 0
  %343 = vmatpush1.bf16.msra.mxu0 %v257
  %344 = vmatprep.subr.bf16.mxu0 0
  %345 = vmatpush1.bf16.msra.mxu0 %v258
  %346 = vmatprep.subr.bf16.mxu0 0
  %347 = vmatpush1.bf16.msra.mxu0 %v259
  %348 = vmatprep.subr.bf16.mxu0 0
  %349 = vmatpush1.bf16.msra.mxu0 %v260
  %350 = vmatprep.subr.bf16.mxu0 0
  %351 = vmatpush1.bf16.msra.mxu0 %v261
  %352 = vmatprep.subr.bf16.mxu0 0
  %353 = vmatpush1.bf16.msra.mxu0 %v262
  %354 = vmatprep.subr.bf16.mxu0 0
  %355 = vmatpush1.bf16.msra.mxu0 %v263
  %356 = vmatprep.mubr.bf16.mxu0 %v96
  %357 = vmatmul.mubr.bf16.gmra.mrb[0].mxu0 %v95
  %v358 = vpop.f32.mrb[0].mxu0
  %v359 = vadd.f32 0.0, %v358
  %v360 = vpop.f32.mrb[0].mxu0
  %v361 = vpop.f32.mrb[0].mxu0
  %v362 = vpop.f32.mrb[0].mxu0
  %363 = vdwg.mxu0
  %364 = vmatprep.subr.bf16.mxu0 0
  %365 = vmatpush1.bf16.msra.mxu0 %v264
  %366 = vmatprep.subr.bf16.mxu0 0
  %367 = vmatpush1.bf16.msra.mxu0 %v265
  %368 = vmatprep.subr.bf16.mxu0 0
  %369 = vmatpush1.bf16.msra.mxu0 %v266
  %370 = vmatprep.subr.bf16.mxu0 0
  %371 = vmatpush1.bf16.msra.mxu0 %v267
  %372 = vmatprep.subr.bf16.mxu0 0
  %373 = vmatpush1.bf16.msra.mxu0 %v268
  %374 = vmatprep.subr.bf16.mxu0 0
  %375 = vmatpush1.bf16.msra.mxu0 %v269
  %376 = vmatprep.subr.bf16.mxu0 0
  %377 = vmatpush1.bf16.msra.mxu0 %v270
  %378 = vmatprep.subr.bf16.mxu0 0
  %379 = vmatpush1.bf16.msra.mxu0 %v271
  %380 = vmatprep.subr.bf16.mxu0 0
  %381 = vmatpush1.bf16.msra.mxu0 %v272
  %382 = vmatprep.subr.bf16.mxu0 0
  %383 = vmatpush1.bf16.msra.mxu0 %v273
  %384 = vmatprep.subr.bf16.mxu0 0
  %385 = vmatpush1.bf16.msra.mxu0 %v274
  %386 = vmatprep.subr.bf16.mxu0 0
  %387 = vmatpush1.bf16.msra.mxu0 %v275
  %388 = vmatprep.subr.bf16.mxu0 0
  %389 = vmatpush1.bf16.msra.mxu0 %v276
  %390 = vmatprep.subr.bf16.mxu0 0
  %391 = vmatpush1.bf16.msra.mxu0 %v277
  %392 = vmatprep.subr.bf16.mxu0 0
  %393 = vmatpush1.bf16.msra.mxu0 %v278
  %394 = vmatprep.subr.bf16.mxu0 0
  %395 = vmatpush1.bf16.msra.mxu0 %v279
  %396 = vmatprep.mubr.bf16.mxu0 %v98
  %397 = vmatmul.mubr.bf16.gmra.mrb[0].mxu0 %v97
  %v398 = vpop.f32.mrb[0].mxu0
  %v399 = vadd.f32 %v359, %v398
  %v400 = vpop.f32.mrb[0].mxu0
  %v401 = vpop.f32.mrb[0].mxu0
  %v402 = vpop.f32.mrb[0].mxu0
  %403 = vdwg.mxu0
  %404 = vmatprep.subr.bf16.mxu0 0
  %405 = vmatpush1.bf16.msra.mxu0 %v280
  %406 = vmatprep.subr.bf16.mxu0 0
  %407 = vmatpush1.bf16.msra.mxu0 %v281
  %408 = vmatprep.subr.bf16.mxu0 0
  %409 = vmatpush1.bf16.msra.mxu0 %v282
  %410 = vmatprep.subr.bf16.mxu0 0
  %411 = vmatpush1.bf16.msra.mxu0 %v283
  %412 = vmatprep.subr.bf16.mxu0 0
  %413 = vmatpush1.bf16.msra.mxu0 0
  %414 = vmatprep.subr.bf16.mxu0 0
  %415 = vmatpush1.bf16.msra.mxu0 0
  %416 = vmatprep.subr.bf16.mxu0 0
  %417 = vmatpush1.bf16.msra.mxu0 0
  %418 = vmatprep.subr.bf16.mxu0 0
  %419 = vmatpush1.bf16.msra.mxu0 0
  %420 = vmatprep.subr.bf16.mxu0 0
  %421 = vmatpush1.bf16.msra.mxu0 0
  %422 = vmatprep.subr.bf16.mxu0 0
  %423 = vmatpush1.bf16.msra.mxu0 0
  %424 = vmatprep.subr.bf16.mxu0 0
  %425 = vmatpush1.bf16.msra.mxu0 0
  %426 = vmatprep.subr.bf16.mxu0 0
  %427 = vmatpush1.bf16.msra.mxu0 0
  %428 = vmatprep.subr.bf16.mxu0 0
  %429 = vmatpush1.bf16.msra.mxu0 0
  %430 = vmatprep.subr.bf16.mxu0 0
  %431 = vmatpush1.bf16.msra.mxu0 0
  %432 = vmatprep.subr.bf16.mxu0 0
  %433 = vmatpush1.bf16.msra.mxu0 0
  %434 = vmatprep.subr.bf16.mxu0 0
  %435 = vmatpush1.bf16.msra.mxu0 0
  %436 = vmatprep.mubr.bf16.mxu0 0
  %437 = vmatmul.mubr.bf16.gmra.mrb[0].mxu0 %v322
  %v438 = vpop.f32.mrb[0].mxu0
  %v439 = vadd.f32 %v399, %v438
  %v440 = vpop.f32.mrb[0].mxu0
  %v441 = vpop.f32.mrb[0].mxu0
  %v442 = vpop.f32.mrb[0].mxu0
  %443 = vdwg.mxu0
  %444 = vst [vmem:[%s2] sm:$0xff] %v439
  // Predicated region
  $region10: #{a_call__.19} parent=0 // pred_check
    _
  $region11: #{a_call__.19} parent=0 // pred_check_branch
    %446 = sbr.rel (0) target = $region13
  $region12: #{a_call__.19} parent=0 // pred_region
    _
  $region13: #{a_call__.19} parent=0 // pred_fallthru
    _
  // Predicated region
  $region14: #{a_call__.19} parent=0 // pred_check
    _
  $region15: #{a_call__.19} parent=0 // pred_check_branch
    %448 = sbr.rel (0) target = $region17
  $region16: #{a_call__.19} parent=0 // pred_region
    _
  $region17: #{a_call__.19} parent=0 // pred_fallthru
    _

// kernel: a_call__.21
$region0: #{a_call__.21}
  #allocation0 [shape = 'u32[]', space=smem, size = 0x4, offset = 0x4, fixed_abs, tag = 'smem constant byte address 0x4 - core index']
  #allocation1 [shape = 'u32[144,128]{1,0:T(1,128)}', space=vmem, size = 0x12000, scoped, tag = 'internal scratch']
  %s0 = inlined_call_operand.vmem [shape: f32[32,32], index: 0, kind: input, shape index: {}]
  %s1 = inlined_call_operand.vmem [shape: f32[1,32], index: 1, kind: input, shape index: {}]
  %s2 = inlined_call_operand.vmem [shape: f32[1,32], index: 2, kind: input, shape index: {}]
  %s3 = inlined_call_operand.vmem [shape: bf16[32,32], index: 3, kind: output, shape index: {}]
  %s4 = sld [smem:[#allocation0]]
  $region22: #{a_call__.21} parent=0
    _
  %s6 = ssub.s32 1, %s4
  %s7 = scalar_select 0, %s6, %s4
  // Predicated region
  $region2: #{a_call__.21} parent=0 // pred_check
    _
  $region3: #{a_call__.21} parent=0 // pred_check_branch
    %9 = sbr.rel (0) target = $region5
  $region4: #{a_call__.21} parent=0 // pred_region
    _
  $region5: #{a_call__.21} parent=0 // pred_fallthru
    _
  // Predicated region
  $region6: #{a_call__.21} parent=0 // pred_check
    _
  $region7: #{a_call__.21} parent=0 // pred_check_branch
    %11 = sbr.rel (0) target = $region9
  $region8: #{a_call__.21} parent=0 // pred_region
    _
  $region9: #{a_call__.21} parent=0 // pred_fallthru
    _
  // Predicated region
  $region10: #{a_call__.21} parent=0 // pred_check
    _
  $region11: #{a_call__.21} parent=0 // pred_check_branch
    %13 = sbr.rel (0) target = $region13
  $region12: #{a_call__.21} parent=0 // pred_region
    _
  $region13: #{a_call__.21} parent=0 // pred_fallthru
    _
  %v14 = vld [vmem:[%s0] sm:$0xff]
  %v15 = vld [vmem:[%s0 + $0x8] sm:$0xff]
  %v16 = vld [vmem:[%s0 + $0x10] sm:$0xff]
  %v17 = vld [vmem:[%s0 + $0x18] sm:$0xff]
  %v18 = vld [vmem:[%s1] sm:$0x1]
  %v20 = vlaneseq
  %v21 = vshrl.u32 %v20, 7
  %v22 = vsub.s32 0, %v21
  %v23 = vrot.slane %v18, %v22
  %v25 = vmul.f32 %v14, %v23
  %v26 = vmul.f32 %v15, %v23
  %v27 = vmul.f32 %v16, %v23
  %v28 = vmul.f32 %v17, %v23
  %v29 = vld [vmem:[%s2] sm:$0x1]
  %v31 = vlaneseq
  %v32 = vshrl.u32 %v31, 7
  %v33 = vsub.s32 0, %v32
  %v34 = vrot.slane %v29, %v33
  %v36 = vadd.f32 %v25, %v34
  %v37 = vadd.f32 %v26, %v34
  %v38 = vadd.f32 %v27, %v34
  %v39 = vadd.f32 %v28, %v34
  %vm40 = vcmp.ge.f32.partialorder %v36, 0.0
  %vm41 = vcmp.ge.f32.partialorder %v37, 0.0
  %vm42 = vcmp.ge.f32.partialorder %v38, 0.0
  %vm43 = vcmp.ge.f32.partialorder %v39, 0.0
  %v44 = vmul.f32 %v36, 0.2
  %v45 = vmul.f32 %v37, 0.2
  %v46 = vmul.f32 %v38, 0.2
  %v47 = vmul.f32 %v39, 0.2
  %v48 = vsel %vm40, %v36, %v44
  %v49 = vsel %vm41, %v37, %v45
  %v50 = vsel %vm42, %v38, %v46
  %v51 = vsel %vm43, %v39, %v47
  %v52 = vpack.c.bf16 %v49, %v48
  %v53 = vpack.c.bf16 %v51, %v50
  %v56 = vunpack.c.l.b16 %v52
  %v57 = vunpack.c.h.b16 %v52
  %v58 = vunpack.c.l.b16 %v53
  %v59 = vunpack.c.h.b16 %v53
  %v60 = vpack.c.b16 %v56, %v56
  %v61 = vpack.c.b16 %v57, %v57
  %v62 = vpack.c.b16 %v58, %v58
  %v63 = vpack.c.b16 %v59, %v59
  %vm68 = vcmask 257024
  %69 = vst.msk [vmem:[%s3] sm:$0xf] %vm68, %v60
  %70 = vst.msk [vmem:[%s3 + $0x4] sm:$0xf] %vm68, %v61
  %71 = vst.msk [vmem:[%s3 + $0x8] sm:$0xf] %vm68, %v62
  %72 = vst.msk [vmem:[%s3 + $0xc] sm:$0xf] %vm68, %v63
  // Predicated region
  $region14: #{a_call__.21} parent=0 // pred_check
    _
  $region15: #{a_call__.21} parent=0 // pred_check_branch
    %74 = sbr.rel (0) target = $region17
  $region16: #{a_call__.21} parent=0 // pred_region
    _
  $region17: #{a_call__.21} parent=0 // pred_fallthru
    _
  // Predicated region
  $region18: #{a_call__.21} parent=0 // pred_check
    _
  $region19: #{a_call__.21} parent=0 // pred_check_branch
    %76 = sbr.rel (0) target = $region21
  $region20: #{a_call__.21} parent=0 // pred_region
    _
  $region21: #{a_call__.21} parent=0 // pred_fallthru
    _

// kernel: a_call__.20
$region0: #{a_call__.20}
  #allocation0 [shape = 'u32[]', space=smem, size = 0x4, offset = 0x4, fixed_abs, tag = 'smem constant byte address 0x4 - core index']
  #allocation1 [shape = 'u32[144,128]{1,0:T(1,128)}', space=vmem, size = 0x12000, scoped, tag = 'internal scratch']
  %s0 = inlined_call_operand.vmem [shape: f32[32,32], index: 0, kind: input, shape index: {}]
  %s1 = inlined_call_operand.vmem [shape: f32[1,32], index: 1, kind: output, shape index: {0}]
  %s2 = inlined_call_operand.vmem [shape: f32[1,32], index: 2, kind: output, shape index: {1}]
  %3 = xla_tuple %s1, %s2
  %s4 = sld [smem:[#allocation0]]
  $region26: #{a_call__.20} parent=0
    _
  %s6 = ssub.s32 1, %s4
  %s7 = scalar_select 0, %s6, %s4
  // Predicated region
  $region2: #{a_call__.20} parent=0 // pred_check
    _
  $region3: #{a_call__.20} parent=0 // pred_check_branch
    %9 = sbr.rel (0) target = $region5
  $region4: #{a_call__.20} parent=0 // pred_region
    _
  $region5: #{a_call__.20} parent=0 // pred_fallthru
    _
  %p10 = scmp.eq.s32.totalorder 0, 0
  // Predicated region
  $region6: #{a_call__.20} parent=0 // pred_check
    %p11 = pneg %p10
  $region7: #{a_call__.20} parent=0 // pred_check_branch
    %13 = sbr.rel (%p11) target = $region9
  $region8: #{a_call__.20} parent=0 // pred_region
    %vm14 = vcmask 253952
    %15 = vst.msk [vmem:[%s1] sm:$0x1] %vm14, 0.0
    %16 = vst.msk [vmem:[%s2] sm:$0x1] %vm14, 0.0
  $region9: #{a_call__.20} parent=0 // pred_fallthru
    _
  %v17 = vld [vmem:[%s0] sm:$0xff]
  %v18 = vld [vmem:[%s0 + $0x8] sm:$0xff]
  %v19 = vld [vmem:[%s0 + $0x10] sm:$0xff]
  %v20 = vld [vmem:[%s0 + $0x18] sm:$0xff]
  %v21 = vld [vmem:[%s1] sm:$0x1]
  %vm22 = vcmask 261120
  %v23 = vsel %vm22, %v17, 0.0
  %v24 = vsel %vm22, %v18, 0.0
  %v25 = vadd.f32 %v23, %v24
  %v26 = vsel %vm22, %v19, 0.0
  %v27 = vadd.f32 %v25, %v26
  %v28 = vsel %vm22, %v20, 0.0
  %v29 = vadd.f32 %v27, %v28
  %v30 = vrot.slane %v29, 4
  %v31 = vadd.f32 %v29, %v30
  %v32 = vrot.slane %v31, 2
  %v33 = vadd.f32 %v31, %v32
  %v34 = vrot.slane %v33, 1
  %v35 = vadd.f32 %v33, %v34
  %v36 = vadd.f32 %v21, %v35
  %vm37 = vcmask 253952
  %38 = vst.msk [vmem:[%s1] sm:$0x1] %vm37, %v36
  %v39 = vld [vmem:[%s2] sm:$0x1]
  %v40 = vmul.f32 %v17, %v17
  %v41 = vmul.f32 %v18, %v18
  %v42 = vmul.f32 %v19, %v19
  %v43 = vmul.f32 %v20, %v20
  %v44 = vsel %vm22, %v40, 0.0
  %v45 = vsel %vm22, %v41, 0.0
  %v46 = vadd.f32 %v44, %v45
  %v47 = vsel %vm22, %v42, 0.0
  %v48 = vadd.f32 %v46, %v47
  %v49 = vsel %vm22, %v43, 0.0
  %v50 = vadd.f32 %v48, %v49
  %v51 = vrot.slane %v50, 4
  %v52 = vadd.f32 %v50, %v51
  %v53 = vrot.slane %v52, 2
  %v54 = vadd.f32 %v52, %v53
  %v55 = vrot.slane %v54, 1
  %v56 = vadd.f32 %v54, %v55
  %v57 = vadd.f32 %v39, %v56
  %58 = vst.msk [vmem:[%s2] sm:$0x1] %vm37, %v57
  // Predicated region
  $region10: #{a_call__.20} parent=0 // pred_check
    _
  $region11: #{a_call__.20} parent=0 // pred_check_branch
    %60 = sbr.rel (0) target = $region13
  $region12: #{a_call__.20} parent=0 // pred_region
    _
  $region13: #{a_call__.20} parent=0 // pred_fallthru
    _
  // Predicated region
  $region14: #{a_call__.20} parent=0 // pred_check
    _
  $region15: #{a_call__.20} parent=0 // pred_check_branch
    %62 = sbr.rel (0) target = $region17
  $region16: #{a_call__.20} parent=0 // pred_region
    _
  $region17: #{a_call__.20} parent=0 // pred_fallthru
    _
  // Predicated region
  $region18: #{a_call__.20} parent=0 // pred_check
    _
  $region19: #{a_call__.20} parent=0 // pred_check_branch
    %64 = sbr.rel (0) target = $region21
  $region20: #{a_call__.20} parent=0 // pred_region
    _
  $region21: #{a_call__.20} parent=0 // pred_fallthru
    _
  // Predicated region
  $region22: #{a_call__.20} parent=0 // pred_check
    _
  $region23: #{a_call__.20} parent=0 // pred_check_branch
    %66 = sbr.rel (0) target = $region25
  $region24: #{a_call__.20} parent=0 // pred_region
    _
  $region25: #{a_call__.20} parent=0 // pred_fallthru
    _

// kernel: a_call__.22
$region0: #{a_call__.22}
  #allocation0 [shape = 'u32[]', space=smem, size = 0x4, offset = 0x4, fixed_abs, tag = 'smem constant byte address 0x4 - core index']
  #allocation1 [shape = 'u32[144,128]{1,0:T(1,128)}', space=vmem, size = 0x12000, scoped, tag = 'internal scratch']
  %s0 = inlined_call_operand.vmem [shape: bf16[32,288], index: 0, kind: input, shape index: {}]
  %s1 = inlined_call_operand.vmem [shape: bf16[288,64], index: 1, kind: input, shape index: {}]
  %s2 = inlined_call_operand.vmem [shape: f32[32,64], index: 2, kind: output, shape index: {}]
  %s3 = sld [smem:[#allocation0]]
  $region18: #{a_call__.22} parent=0
    _
  %s5 = ssub.s32 1, %s3
  %s6 = scalar_select 0, %s5, %s3
  // Predicated region
  $region2: #{a_call__.22} parent=0 // pred_check
    _
  $region3: #{a_call__.22} parent=0 // pred_check_branch
    %8 = sbr.rel (0) target = $region5
  $region4: #{a_call__.22} parent=0 // pred_region
    _
  $region5: #{a_call__.22} parent=0 // pred_fallthru
    _
  // Predicated region
  $region6: #{a_call__.22} parent=0 // pred_check
    _
  $region7: #{a_call__.22} parent=0 // pred_check_branch
    %10 = sbr.rel (0) target = $region9
  $region8: #{a_call__.22} parent=0 // pred_region
    _
  $region9: #{a_call__.22} parent=0 // pred_fallthru
    _
  %v12 = vld [vmem:[%s0] sm:$0xff]
  %v13 = vld [vmem:[%s0 + $0x8] sm:$0xf]
  %v14 = vld [vmem:[%s0 + $0xc] sm:$0xff]
  %v15 = vld [vmem:[%s0 + $0x14] sm:$0xf]
  %v16 = vld [vmem:[%s0 + $0x18] sm:$0xff]
  %v17 = vld [vmem:[%s0 + $0x20] sm:$0xf]
  %v18 = vld [vmem:[%s0 + $0x24] sm:$0xff]
  %v19 = vld [vmem:[%s0 + $0x2c] sm:$0xf]
  %v20 = vld [vmem:[%s1] sm:$0xf]
  %v21 = vld [vmem:[%s1 + $0x4] sm:$0xf]
  %v22 = vld [vmem:[%s1 + $0x8] sm:$0xf]
  %v23 = vld [vmem:[%s1 + $0xc] sm:$0xf]
  %v24 = vld [vmem:[%s1 + $0x10] sm:$0xf]
  %v25 = vld [vmem:[%s1 + $0x14] sm:$0xf]
  %v26 = vld [vmem:[%s1 + $0x18] sm:$0xf]
  %v27 = vld [vmem:[%s1 + $0x1c] sm:$0xf]
  %v28 = vld [vmem:[%s1 + $0x20] sm:$0xf]
  %v29 = vld [vmem:[%s1 + $0x24] sm:$0xf]
  %v30 = vld [vmem:[%s1 + $0x28] sm:$0xf]
  %v31 = vld [vmem:[%s1 + $0x2c] sm:$0xf]
  %v32 = vld [vmem:[%s1 + $0x30] sm:$0xf]
  %v33 = vld [vmem:[%s1 + $0x34] sm:$0xf]
  %v34 = vld [vmem:[%s1 + $0x38] sm:$0xf]
  %v35 = vld [vmem:[%s1 + $0x3c] sm:$0xf]
  %v36 = vld [vmem:[%s1 + $0x40] sm:$0xf]
  %v37 = vld [vmem:[%s1 + $0x44] sm:$0xf]
  %v38 = vld [vmem:[%s1 + $0x48] sm:$0xf]
  %v39 = vld [vmem:[%s1 + $0x4c] sm:$0xf]
  %v40 = vld [vmem:[%s1 + $0x50] sm:$0xf]
  %v41 = vld [vmem:[%s1 + $0x54] sm:$0xf]
  %v42 = vld [vmem:[%s1 + $0x58] sm:$0xf]
  %v43 = vld [vmem:[%s1 + $0x5c] sm:$0xf]
  %v44 = vld [vmem:[%s1 + $0x60] sm:$0xf]
  %v45 = vld [vmem:[%s1 + $0x64] sm:$0xf]
  %v46 = vld [vmem:[%s1 + $0x68] sm:$0xf]
  %v47 = vld [vmem:[%s1 + $0x6c] sm:$0xf]
  %v48 = vld [vmem:[%s1 + $0x70] sm:$0xf]
  %v49 = vld [vmem:[%s1 + $0x74] sm:$0xf]
  %v50 = vld [vmem:[%s1 + $0x78] sm:$0xf]
  %v51 = vld [vmem:[%s1 + $0x7c] sm:$0xf]
  %v52 = vld [vmem:[%s1 + $0x80] sm:$0xf]
  %v53 = vld [vmem:[%s1 + $0x84] sm:$0xf]
  %v54 = vld [vmem:[%s1 + $0x88] sm:$0xf]
  %v55 = vld [vmem:[%s1 + $0x8c] sm:$0xf]
  %v64 = vunpack.c.l.b16 %v12
  %v65 = vunpack.c.h.b16 %v12
  %v66 = vunpack.c.l.b16 %v13
  %v67 = vunpack.c.l.b16 %v14
  %v68 = vunpack.c.h.b16 %v14
  %v69 = vunpack.c.l.b16 %v15
  %v70 = vunpack.c.l.b16 %v16
  %v71 = vunpack.c.h.b16 %v16
  %v72 = vunpack.c.l.b16 %v17
  %v73 = vunpack.c.l.b16 %v18
  %v74 = vunpack.c.h.b16 %v18
  %v75 = vunpack.c.l.b16 %v19
  %v76 = vpack.c.b16 %v67, %v64
  %v77 = vpack.c.b16 %v68, %v65
  %v78 = vpack.c.b16 %v69, %v66
  %v79 = vpack.c.b16 %v73, %v70
  %v80 = vpack.c.b16 %v74, %v71
  %v81 = vpack.c.b16 %v75, %v72
  %v122 = vunpack.c.l.b16 %v20
  %v123 = vunpack.c.l.b16 %v21
  %v124 = vunpack.c.l.b16 %v22
  %v125 = vunpack.c.l.b16 %v23
  %v126 = vunpack.c.l.b16 %v24
  %v127 = vunpack.c.l.b16 %v25
  %v128 = vunpack.c.l.b16 %v26
  %v129 = vunpack.c.l.b16 %v27
  %v130 = vunpack.c.l.b16 %v28
  %v131 = vunpack.c.l.b16 %v29
  %v132 = vunpack.c.l.b16 %v30
  %v133 = vunpack.c.l.b16 %v31
  %v134 = vunpack.c.l.b16 %v32
  %v135 = vunpack.c.l.b16 %v33
  %v136 = vunpack.c.l.b16 %v34
  %v137 = vunpack.c.l.b16 %v35
  %v138 = vunpack.c.l.b16 %v36
  %v139 = vunpack.c.l.b16 %v37
  %v140 = vunpack.c.l.b16 %v38
  %v141 = vunpack.c.l.b16 %v39
  %v142 = vunpack.c.l.b16 %v40
  %v143 = vunpack.c.l.b16 %v41
  %v144 = vunpack.c.l.b16 %v42
  %v145 = vunpack.c.l.b16 %v43
  %v146 = vunpack.c.l.b16 %v44
  %v147 = vunpack.c.l.b16 %v45
  %v148 = vunpack.c.l.b16 %v46
  %v149 = vunpack.c.l.b16 %v47
  %v150 = vunpack.c.l.b16 %v48
  %v151 = vunpack.c.l.b16 %v49
  %v152 = vunpack.c.l.b16 %v50
  %v153 = vunpack.c.l.b16 %v51
  %v154 = vunpack.c.l.b16 %v52
  %v155 = vunpack.c.l.b16 %v53
  %v156 = vunpack.c.l.b16 %v54
  %v157 = vunpack.c.l.b16 %v55
  %v158 = vpack.c.b16 %v123, %v122
  %v159 = vpack.c.b16 %v125, %v124
  %v160 = vpack.c.b16 %v127, %v126
  %v161 = vpack.c.b16 %v129, %v128
  %v162 = vpack.c.b16 %v131, %v130
  %v163 = vpack.c.b16 %v133, %v132
  %v164 = vpack.c.b16 %v135, %v134
  %v165 = vpack.c.b16 %v137, %v136
  %v166 = vpack.c.b16 %v139, %v138
  %v167 = vpack.c.b16 %v141, %v140
  %v168 = vpack.c.b16 %v143, %v142
  %v169 = vpack.c.b16 %v145, %v144
  %v170 = vpack.c.b16 %v147, %v146
  %v171 = vpack.c.b16 %v149, %v148
  %v172 = vpack.c.b16 %v151, %v150
  %v173 = vpack.c.b16 %v153, %v152
  %v174 = vpack.c.b16 %v155, %v154
  %v175 = vpack.c.b16 %v157, %v156
  %vm194 = vcmask 261120
  %v196 = vsel %vm194, %v78, 0
  %v199 = vsel %vm194, %v81, 0
  %201 = vmatprep.subr.bf16.mxu0 0
  %202 = vmatpush1.bf16.msra.mxu0 %v158
  %203 = vmatprep.subr.bf16.mxu0 0
  %204 = vmatpush1.bf16.msra.mxu0 %v159
  %205 = vmatprep.subr.bf16.mxu0 0
  %206 = vmatpush1.bf16.msra.mxu0 %v160
  %207 = vmatprep.subr.bf16.mxu0 0
  %208 = vmatpush1.bf16.msra.mxu0 %v161
  %209 = vmatprep.subr.bf16.mxu0 0
  %210 = vmatpush1.bf16.msra.mxu0 %v162
  %211 = vmatprep.subr.bf16.mxu0 0
  %212 = vmatpush1.bf16.msra.mxu0 %v163
  %213 = vmatprep.subr.bf16.mxu0 0
  %214 = vmatpush1.bf16.msra.mxu0 %v164
  %215 = vmatprep.subr.bf16.mxu0 0
  %216 = vmatpush1.bf16.msra.mxu0 %v165
  %217 = vmatprep.subr.bf16.mxu0 0
  %218 = vmatpush1.bf16.msra.mxu0 %v166
  %219 = vmatprep.subr.bf16.mxu0 0
  %220 = vmatpush1.bf16.msra.mxu0 %v167
  %221 = vmatprep.subr.bf16.mxu0 0
  %222 = vmatpush1.bf16.msra.mxu0 %v168
  %223 = vmatprep.subr.bf16.mxu0 0
  %224 = vmatpush1.bf16.msra.mxu0 %v169
  %225 = vmatprep.subr.bf16.mxu0 0
  %226 = vmatpush1.bf16.msra.mxu0 %v170
  %227 = vmatprep.subr.bf16.mxu0 0
  %228 = vmatpush1.bf16.msra.mxu0 %v171
  %229 = vmatprep.subr.bf16.mxu0 0
  %230 = vmatpush1.bf16.msra.mxu0 %v172
  %231 = vmatprep.subr.bf16.mxu0 0
  %232 = vmatpush1.bf16.msra.mxu0 %v173
  %233 = vmatprep.mubr.bf16.mxu0 %v77
  %234 = vmatmul.mubr.bf16.gmra.mrb[0].mxu0 %v76
  %v235 = vpop.f32.mrb[0].mxu0
  %v236 = vadd.f32 0.0, %v235
  %v237 = vpop.f32.mrb[0].mxu0
  %v238 = vpop.f32.mrb[0].mxu0
  %v239 = vadd.f32 0.0, %v238
  %v240 = vpop.f32.mrb[0].mxu0
  %241 = vmatprep.mubr.bf16.mxu0 %v80
  %242 = vmatmul.mubr.bf16.gmra.mrb[0].mxu0 %v79
  %v243 = vpop.f32.mrb[0].mxu0
  %v244 = vadd.f32 0.0, %v243
  %v245 = vpop.f32.mrb[0].mxu0
  %v246 = vpop.f32.mrb[0].mxu0
  %v247 = vadd.f32 0.0, %v246
  %v248 = vpop.f32.mrb[0].mxu0
  %249 = vdwg.mxu0
  %250 = vmatprep.subr.bf16.mxu0 0
  %251 = vmatpush1.bf16.msra.mxu0 %v174
  %252 = vmatprep.subr.bf16.mxu0 0
  %253 = vmatpush1.bf16.msra.mxu0 %v175
  %254 = vmatprep.subr.bf16.mxu0 0
  %255 = vmatpush1.bf16.msra.mxu0 0
  %256 = vmatprep.subr.bf16.mxu0 0
  %257 = vmatpush1.bf16.msra.mxu0 0
  %258 = vmatprep.subr.bf16.mxu0 0
  %259 = vmatpush1.bf16.msra.mxu0 0
  %260 = vmatprep.subr.bf16.mxu0 0
  %261 = vmatpush1.bf16.msra.mxu0 0
  %262 = vmatprep.subr.bf16.mxu0 0
  %263 = vmatpush1.bf16.msra.mxu0 0
  %264 = vmatprep.subr.bf16.mxu0 0
  %265 = vmatpush1.bf16.msra.mxu0 0
  %266 = vmatprep.subr.bf16.mxu0 0
  %267 = vmatpush1.bf16.msra.mxu0 0
  %268 = vmatprep.subr.bf16.mxu0 0
  %269 = vmatpush1.bf16.msra.mxu0 0
  %270 = vmatprep.subr.bf16.mxu0 0
  %271 = vmatpush1.bf16.msra.mxu0 0
  %272 = vmatprep.subr.bf16.mxu0 0
  %273 = vmatpush1.bf16.msra.mxu0 0
  %274 = vmatprep.subr.bf16.mxu0 0
  %275 = vmatpush1.bf16.msra.mxu0 0
  %276 = vmatprep.subr.bf16.mxu0 0
  %277 = vmatpush1.bf16.msra.mxu0 0
  %278 = vmatprep.subr.bf16.mxu0 0
  %279 = vmatpush1.bf16.msra.mxu0 0
  %280 = vmatprep.subr.bf16.mxu0 0
  %281 = vmatpush1.bf16.msra.mxu0 0
  %282 = vmatprep.mubr.bf16.mxu0 0
  %283 = vmatmul.mubr.bf16.gmra.mrb[0].mxu0 %v196
  %v284 = vpop.f32.mrb[0].mxu0
  %v285 = vadd.f32 %v236, %v284
  %v286 = vpop.f32.mrb[0].mxu0
  %v287 = vpop.f32.mrb[0].mxu0
  %v288 = vadd.f32 %v239, %v287
  %v289 = vpop.f32.mrb[0].mxu0
  %290 = vmatprep.mubr.bf16.mxu0 0
  %291 = vmatmul.mubr.bf16.gmra.mrb[0].mxu0 %v199
  %v292 = vpop.f32.mrb[0].mxu0
  %v293 = vadd.f32 %v244, %v292
  %v294 = vpop.f32.mrb[0].mxu0
  %v295 = vpop.f32.mrb[0].mxu0
  %v296 = vadd.f32 %v247, %v295
  %v297 = vpop.f32.mrb[0].mxu0
  %298 = vdwg.mxu0
  %vm299 = vcmask 523264
  %300 = vst.msk [vmem:[%s2] sm:$0xff] %vm299, %v285
  %301 = vst.msk [vmem:[%s2 + $0x8] sm:$0xff] %vm299, %v288
  %302 = vst.msk [vmem:[%s2 + $0x10] sm:$0xff] %vm299, %v293
  %303 = vst.msk [vmem:[%s2 + $0x18] sm:$0xff] %vm299, %v296
  // Predicated region
  $region10: #{a_call__.22} parent=0 // pred_check
    _
  $region11: #{a_call__.22} parent=0 // pred_check_branch
    %305 = sbr.rel (0) target = $region13
  $region12: #{a_call__.22} parent=0 // pred_region
    _
  $region13: #{a_call__.22} parent=0 // pred_fallthru
    _
  // Predicated region
  $region14: #{a_call__.22} parent=0 // pred_check
    _
  $region15: #{a_call__.22} parent=0 // pred_check_branch
    %307 = sbr.rel (0) target = $region17
  $region16: #{a_call__.22} parent=0 // pred_region
    _
  $region17: #{a_call__.22} parent=0 // pred_fallthru
    _

// kernel: a_call__.23
$region0: #{a_call__.23}
  #allocation0 [shape = 'u32[]', space=smem, size = 0x4, offset = 0x4, fixed_abs, tag = 'smem constant byte address 0x4 - core index']
  #allocation1 [shape = 'u32[144,128]{1,0:T(1,128)}', space=vmem, size = 0x12000, scoped, tag = 'internal scratch']
  %s0 = inlined_call_operand.vmem [shape: f32[128,16], index: 0, kind: input, shape index: {}]
  %s1 = inlined_call_operand.vmem [shape: f32[1,16], index: 1, kind: output, shape index: {0}]
  %s2 = inlined_call_operand.vmem [shape: f32[1,16], index: 2, kind: output, shape index: {1}]
  %3 = xla_tuple %s1, %s2
  %s4 = sld [smem:[#allocation0]]
  $region26: #{a_call__.23} parent=0
    _
  %s6 = ssub.s32 1, %s4
  %s7 = scalar_select 0, %s6, %s4
  // Predicated region
  $region2: #{a_call__.23} parent=0 // pred_check
    _
  $region3: #{a_call__.23} parent=0 // pred_check_branch
    %9 = sbr.rel (0) target = $region5
  $region4: #{a_call__.23} parent=0 // pred_region
    _
  $region5: #{a_call__.23} parent=0 // pred_fallthru
    _
  %p10 = scmp.eq.s32.totalorder 0, 0
  // Predicated region
  $region6: #{a_call__.23} parent=0 // pred_check
    %p11 = pneg %p10
  $region7: #{a_call__.23} parent=0 // pred_check_branch
    %13 = sbr.rel (%p11) target = $region9
  $region8: #{a_call__.23} parent=0 // pred_region
    %vm14 = vcmask 122880
    %15 = vst.msk [vmem:[%s1] sm:$0x1] %vm14, 0.0
    %16 = vst.msk [vmem:[%s2] sm:$0x1] %vm14, 0.0
  $region9: #{a_call__.23} parent=0 // pred_fallthru
    _
  %v17 = vld [vmem:[%s0] sm:$0xff]
  %v18 = vld [vmem:[%s0 + $0x8] sm:$0xff]
  %v19 = vld [vmem:[%s0 + $0x10] sm:$0xff]
  %v20 = vld [vmem:[%s0 + $0x18] sm:$0xff]
  %v21 = vld [vmem:[%s0 + $0x20] sm:$0xff]
  %v22 = vld [vmem:[%s0 + $0x28] sm:$0xff]
  %v23 = vld [vmem:[%s0 + $0x30] sm:$0xff]
  %v24 = vld [vmem:[%s0 + $0x38] sm:$0xff]
  %v25 = vld [vmem:[%s0 + $0x40] sm:$0xff]
  %v26 = vld [vmem:[%s0 + $0x48] sm:$0xff]
  %v27 = vld [vmem:[%s0 + $0x50] sm:$0xff]
  %v28 = vld [vmem:[%s0 + $0x58] sm:$0xff]
  %v29 = vld [vmem:[%s0 + $0x60] sm:$0xff]
  %v30 = vld [vmem:[%s0 + $0x68] sm:$0xff]
  %v31 = vld [vmem:[%s0 + $0x70] sm:$0xff]
  %v32 = vld [vmem:[%s0 + $0x78] sm:$0xff]
  %v33 = vld [vmem:[%s1] sm:$0x1]
  %vm34 = vcmask 130048
  %v35 = vsel %vm34, %v17, 0.0
  %v36 = vsel %vm34, %v18, 0.0
  %v37 = vadd.f32 %v35, %v36
  %v38 = vsel %vm34, %v19, 0.0
  %v39 = vadd.f32 %v37, %v38
  %v40 = vsel %vm34, %v20, 0.0
  %v41 = vadd.f32 %v39, %v40
  %v42 = vsel %vm34, %v21, 0.0
  %v43 = vadd.f32 %v41, %v42
  %v44 = vsel %vm34, %v22, 0.0
  %v45 = vadd.f32 %v43, %v44
  %v46 = vsel %vm34, %v23, 0.0
  %v47 = vadd.f32 %v45, %v46
  %v48 = vsel %vm34, %v24, 0.0
  %v49 = vadd.f32 %v47, %v48
  %v50 = vsel %vm34, %v25, 0.0
  %v51 = vadd.f32 %v49, %v50
  %v52 = vsel %vm34, %v26, 0.0
  %v53 = vadd.f32 %v51, %v52
  %v54 = vsel %vm34, %v27, 0.0
  %v55 = vadd.f32 %v53, %v54
  %v56 = vsel %vm34, %v28, 0.0
  %v57 = vadd.f32 %v55, %v56
  %v58 = vsel %vm34, %v29, 0.0
  %v59 = vadd.f32 %v57, %v58
  %v60 = vsel %vm34, %v30, 0.0
  %v61 = vadd.f32 %v59, %v60
  %v62 = vsel %vm34, %v31, 0.0
  %v63 = vadd.f32 %v61, %v62
  %v64 = vsel %vm34, %v32, 0.0
  %v65 = vadd.f32 %v63, %v64
  %v66 = vrot.slane %v65, 4
  %v67 = vadd.f32 %v65, %v66
  %v68 = vrot.slane %v67, 2
  %v69 = vadd.f32 %v67, %v68
  %v70 = vrot.slane %v69, 1
  %v71 = vadd.f32 %v69, %v70
  %v72 = vadd.f32 %v33, %v71
  %vm73 = vcmask 122880
  %74 = vst.msk [vmem:[%s1] sm:$0x1] %vm73, %v72
  %v75 = vld [vmem:[%s2] sm:$0x1]
  %v76 = vmul.f32 %v17, %v17
  %v77 = vmul.f32 %v18, %v18
  %v78 = vmul.f32 %v19, %v19
  %v79 = vmul.f32 %v20, %v20
  %v80 = vmul.f32 %v21, %v21
  %v81 = vmul.f32 %v22, %v22
  %v82 = vmul.f32 %v23, %v23
  %v83 = vmul.f32 %v24, %v24
  %v84 = vmul.f32 %v25, %v25
  %v85 = vmul.f32 %v26, %v26
  %v86 = vmul.f32 %v27, %v27
  %v87 = vmul.f32 %v28, %v28
  %v88 = vmul.f32 %v29, %v29
  %v89 = vmul.f32 %v30, %v30
  %v90 = vmul.f32 %v31, %v31
  %v91 = vmul.f32 %v32, %v32
  %v92 = vsel %vm34, %v76, 0.0
  %v93 = vsel %vm34, %v77, 0.0
  %v94 = vadd.f32 %v92, %v93
  %v95 = vsel %vm34, %v78, 0.0
  %v96 = vadd.f32 %v94, %v95
  %v97 = vsel %vm34, %v79, 0.0
  %v98 = vadd.f32 %v96, %v97
  %v99 = vsel %vm34, %v80, 0.0
  %v100 = vadd.f32 %v98, %v99
  %v101 = vsel %vm34, %v81, 0.0
  %v102 = vadd.f32 %v100, %v101
  %v103 = vsel %vm34, %v82, 0.0
  %v104 = vadd.f32 %v102, %v103
  %v105 = vsel %vm34, %v83, 0.0
  %v106 = vadd.f32 %v104, %v105
  %v107 = vsel %vm34, %v84, 0.0
  %v108 = vadd.f32 %v106, %v107
  %v109 = vsel %vm34, %v85, 0.0
  %v110 = vadd.f32 %v108, %v109
  %v111 = vsel %vm34, %v86, 0.0
  %v112 = vadd.f32 %v110, %v111
  %v113 = vsel %vm34, %v87, 0.0
  %v114 = vadd.f32 %v112, %v113
  %v115 = vsel %vm34, %v88, 0.0
  %v116 = vadd.f32 %v114, %v115
  %v117 = vsel %vm34, %v89, 0.0
  %v118 = vadd.f32 %v116, %v117
  %v119 = vsel %vm34, %v90, 0.0
  %v120 = vadd.f32 %v118, %v119
  %v121 = vsel %vm34, %v91, 0.0
  %v122 = vadd.f32 %v120, %v121
  %v123 = vrot.slane %v122, 4
  %v124 = vadd.f32 %v122, %v123
  %v125 = vrot.slane %v124, 2
  %v126 = vadd.f32 %v124, %v125
  %v127 = vrot.slane %v126, 1
  %v128 = vadd.f32 %v126, %v127
  %v129 = vadd.f32 %v75, %v128
  %130 = vst.msk [vmem:[%s2] sm:$0x1] %vm73, %v129
  // Predicated region
  $region10: #{a_call__.23} parent=0 // pred_check
    _
  $region11: #{a_call__.23} parent=0 // pred_check_branch
    %132 = sbr.rel (0) target = $region13
  $region12: #{a_call__.23} parent=0 // pred_region
    _
  $region13: #{a_call__.23} parent=0 // pred_fallthru
    _
  // Predicated region
  $region14: #{a_call__.23} parent=0 // pred_check
    _
  $region15: #{a_call__.23} parent=0 // pred_check_branch
    %134 = sbr.rel (0) target = $region17
  $region16: #{a_call__.23} parent=0 // pred_region
    _
  $region17: #{a_call__.23} parent=0 // pred_fallthru
    _
  // Predicated region
  $region18: #{a_call__.23} parent=0 // pred_check
    _
  $region19: #{a_call__.23} parent=0 // pred_check_branch
    %136 = sbr.rel (0) target = $region21
  $region20: #{a_call__.23} parent=0 // pred_region
    _
  $region21: #{a_call__.23} parent=0 // pred_fallthru
    _
  // Predicated region
  $region22: #{a_call__.23} parent=0 // pred_check
    _
  $region23: #{a_call__.23} parent=0 // pred_check_branch
    %138 = sbr.rel (0) target = $region25
  $region24: #{a_call__.23} parent=0 // pred_region
    _
  $region25: #{a_call__.23} parent=0 // pred_fallthru
    _

// kernel: a_call__.24
$region0: #{a_call__.24}
  #allocation0 [shape = 'u32[]', space=smem, size = 0x4, offset = 0x4, fixed_abs, tag = 'smem constant byte address 0x4 - core index']
  #allocation1 [shape = 'u32[144,128]{1,0:T(1,128)}', space=vmem, size = 0x12000, scoped, tag = 'internal scratch']
  %s0 = inlined_call_operand.vmem [shape: f32[128,16], index: 0, kind: input, shape index: {}]
  %s1 = inlined_call_operand.vmem [shape: f32[1,16], index: 1, kind: input, shape index: {}]
  %s2 = inlined_call_operand.vmem [shape: f32[1,16], index: 2, kind: input, shape index: {}]
  %s3 = inlined_call_operand.vmem [shape: bf16[128,16], index: 3, kind: output, shape index: {}]
  %s4 = sld [smem:[#allocation0]]
  $region22: #{a_call__.24} parent=0
    _
  %s6 = ssub.s32 1, %s4
  %s7 = scalar_select 0, %s6, %s4
  // Predicated region
  $region2: #{a_call__.24} parent=0 // pred_check
    _
  $region3: #{a_call__.24} parent=0 // pred_check_branch
    %9 = sbr.rel (0) target = $region5
  $region4: #{a_call__.24} parent=0 // pred_region
    _
  $region5: #{a_call__.24} parent=0 // pred_fallthru
    _
  // Predicated region
  $region6: #{a_call__.24} parent=0 // pred_check
    _
  $region7: #{a_call__.24} parent=0 // pred_check_branch
    %11 = sbr.rel (0) target = $region9
  $region8: #{a_call__.24} parent=0 // pred_region
    _
  $region9: #{a_call__.24} parent=0 // pred_fallthru
    _
  // Predicated region
  $region10: #{a_call__.24} parent=0 // pred_check
    _
  $region11: #{a_call__.24} parent=0 // pred_check_branch
    %13 = sbr.rel (0) target = $region13
  $region12: #{a_call__.24} parent=0 // pred_region
    _
  $region13: #{a_call__.24} parent=0 // pred_fallthru
    _
  %v14 = vld [vmem:[%s0] sm:$0xff]
  %v15 = vld [vmem:[%s0 + $0x8] sm:$0xff]
  %v16 = vld [vmem:[%s0 + $0x10] sm:$0xff]
  %v17 = vld [vmem:[%s0 + $0x18] sm:$0xff]
  %v18 = vld [vmem:[%s0 + $0x20] sm:$0xff]
  %v19 = vld [vmem:[%s0 + $0x28] sm:$0xff]
  %v20 = vld [vmem:[%s0 + $0x30] sm:$0xff]
  %v21 = vld [vmem:[%s0 + $0x38] sm:$0xff]
  %v22 = vld [vmem:[%s0 + $0x40] sm:$0xff]
  %v23 = vld [vmem:[%s0 + $0x48] sm:$0xff]
  %v24 = vld [vmem:[%s0 + $0x50] sm:$0xff]
  %v25 = vld [vmem:[%s0 + $0x58] sm:$0xff]
  %v26 = vld [vmem:[%s0 + $0x60] sm:$0xff]
  %v27 = vld [vmem:[%s0 + $0x68] sm:$0xff]
  %v28 = vld [vmem:[%s0 + $0x70] sm:$0xff]
  %v29 = vld [vmem:[%s0 + $0x78] sm:$0xff]
  %v30 = vld [vmem:[%s1] sm:$0x1]
  %v32 = vlaneseq
  %v33 = vshrl.u32 %v32, 7
  %v34 = vsub.s32 0, %v33
  %v35 = vrot.slane %v30, %v34
  %v37 = vmul.f32 %v14, %v35
  %v38 = vmul.f32 %v15, %v35
  %v39 = vmul.f32 %v16, %v35
  %v40 = vmul.f32 %v17, %v35
  %v41 = vmul.f32 %v18, %v35
  %v42 = vmul.f32 %v19, %v35
  %v43 = vmul.f32 %v20, %v35
  %v44 = vmul.f32 %v21, %v35
  %v45 = vmul.f32 %v22, %v35
  %v46 = vmul.f32 %v23, %v35
  %v47 = vmul.f32 %v24, %v35
  %v48 = vmul.f32 %v25, %v35
  %v49 = vmul.f32 %v26, %v35
  %v50 = vmul.f32 %v27, %v35
  %v51 = vmul.f32 %v28, %v35
  %v52 = vmul.f32 %v29, %v35
  %v53 = vld [vmem:[%s2] sm:$0x1]
  %v55 = vlaneseq
  %v56 = vshrl.u32 %v55, 7
  %v57 = vsub.s32 0, %v56
  %v58 = vrot.slane %v53, %v57
  %v60 = vadd.f32 %v37, %v58
  %v61 = vadd.f32 %v38, %v58
  %v62 = vadd.f32 %v39, %v58
  %v63 = vadd.f32 %v40, %v58
  %v64 = vadd.f32 %v41, %v58
  %v65 = vadd.f32 %v42, %v58
  %v66 = vadd.f32 %v43, %v58
  %v67 = vadd.f32 %v44, %v58
  %v68 = vadd.f32 %v45, %v58
  %v69 = vadd.f32 %v46, %v58
  %v70 = vadd.f32 %v47, %v58
  %v71 = vadd.f32 %v48, %v58
  %v72 = vadd.f32 %v49, %v58
  %v73 = vadd.f32 %v50, %v58
  %v74 = vadd.f32 %v51, %v58
  %v75 = vadd.f32 %v52, %v58
  %vm76 = vcmp.ge.f32.partialorder %v60, 0.0
  %vm77 = vcmp.ge.f32.partialorder %v61, 0.0
  %vm78 = vcmp.ge.f32.partialorder %v62, 0.0
  %vm79 = vcmp.ge.f32.partialorder %v63, 0.0
  %vm80 = vcmp.ge.f32.partialorder %v64, 0.0
  %vm81 = vcmp.ge.f32.partialorder %v65, 0.0
  %vm82 = vcmp.ge.f32.partialorder %v66, 0.0
  %vm83 = vcmp.ge.f32.partialorder %v67, 0.0
  %vm84 = vcmp.ge.f32.partialorder %v68, 0.0
  %vm85 = vcmp.ge.f32.partialorder %v69, 0.0
  %vm86 = vcmp.ge.f32.partialorder %v70, 0.0
  %vm87 = vcmp.ge.f32.partialorder %v71, 0.0
  %vm88 = vcmp.ge.f32.partialorder %v72, 0.0
  %vm89 = vcmp.ge.f32.partialorder %v73, 0.0
  %vm90 = vcmp.ge.f32.partialorder %v74, 0.0
  %vm91 = vcmp.ge.f32.partialorder %v75, 0.0
  %v92 = vmul.f32 %v60, 0.2
  %v93 = vmul.f32 %v61, 0.2
  %v94 = vmul.f32 %v62, 0.2
  %v95 = vmul.f32 %v63, 0.2
  %v96 = vmul.f32 %v64, 0.2
  %v97 = vmul.f32 %v65, 0.2
  %v98 = vmul.f32 %v66, 0.2
  %v99 = vmul.f32 %v67, 0.2
  %v100 = vmul.f32 %v68, 0.2
  %v101 = vmul.f32 %v69, 0.2
  %v102 = vmul.f32 %v70, 0.2
  %v103 = vmul.f32 %v71, 0.2
  %v104 = vmul.f32 %v72, 0.2
  %v105 = vmul.f32 %v73, 0.2
  %v106 = vmul.f32 %v74, 0.2
  %v107 = vmul.f32 %v75, 0.2
  %v108 = vsel %vm76, %v60, %v92
  %v109 = vsel %vm77, %v61, %v93
  %v110 = vsel %vm78, %v62, %v94
  %v111 = vsel %vm79, %v63, %v95
  %v112 = vsel %vm80, %v64, %v96
  %v113 = vsel %vm81, %v65, %v97
  %v114 = vsel %vm82, %v66, %v98
  %v115 = vsel %vm83, %v67, %v99
  %v116 = vsel %vm84, %v68, %v100
  %v117 = vsel %vm85, %v69, %v101
  %v118 = vsel %vm86, %v70, %v102
  %v119 = vsel %vm87, %v71, %v103
  %v120 = vsel %vm88, %v72, %v104
  %v121 = vsel %vm89, %v73, %v105
  %v122 = vsel %vm90, %v74, %v106
  %v123 = vsel %vm91, %v75, %v107
  %v124 = vpack.c.bf16 %v109, %v108
  %v125 = vpack.c.bf16 %v111, %v110
  %v126 = vpack.c.bf16 %v113, %v112
  %v127 = vpack.c.bf16 %v115, %v114
  %v128 = vpack.c.bf16 %v117, %v116
  %v129 = vpack.c.bf16 %v119, %v118
  %v130 = vpack.c.bf16 %v121, %v120
  %v131 = vpack.c.bf16 %v123, %v122
  %v140 = vunpack.c.l.b16 %v124
  %v141 = vunpack.c.h.b16 %v124
  %v142 = vunpack.c.l.b16 %v125
  %v143 = vunpack.c.h.b16 %v125
  %v144 = vunpack.c.l.b16 %v126
  %v145 = vunpack.c.h.b16 %v126
  %v146 = vunpack.c.l.b16 %v127
  %v147 = vunpack.c.h.b16 %v127
  %v148 = vunpack.c.l.b16 %v128
  %v149 = vunpack.c.h.b16 %v128
  %v150 = vunpack.c.l.b16 %v129
  %v151 = vunpack.c.h.b16 %v129
  %v152 = vunpack.c.l.b16 %v130
  %v153 = vunpack.c.h.b16 %v130
  %v154 = vunpack.c.l.b16 %v131
  %v155 = vunpack.c.h.b16 %v131
  %v156 = vpack.c.b16 %v140, %v140
  %v157 = vpack.c.b16 %v141, %v141
  %v158 = vpack.c.b16 %v142, %v142
  %v159 = vpack.c.b16 %v143, %v143
  %v160 = vpack.c.b16 %v144, %v144
  %v161 = vpack.c.b16 %v145, %v145
  %v162 = vpack.c.b16 %v146, %v146
  %v163 = vpack.c.b16 %v147, %v147
  %v164 = vpack.c.b16 %v148, %v148
  %v165 = vpack.c.b16 %v149, %v149
  %v166 = vpack.c.b16 %v150, %v150
  %v167 = vpack.c.b16 %v151, %v151
  %v168 = vpack.c.b16 %v152, %v152
  %v169 = vpack.c.b16 %v153, %v153
  %v170 = vpack.c.b16 %v154, %v154
  %v171 = vpack.c.b16 %v155, %v155
  %vm188 = vcmask 125952
  %189 = vst.msk [vmem:[%s3] sm:$0xf] %vm188, %v156
  %190 = vst.msk [vmem:[%s3 + $0x4] sm:$0xf] %vm188, %v157
  %191 = vst.msk [vmem:[%s3 + $0x8] sm:$0xf] %vm188, %v158
  %192 = vst.msk [vmem:[%s3 + $0xc] sm:$0xf] %vm188, %v159
  %193 = vst.msk [vmem:[%s3 + $0x10] sm:$0xf] %vm188, %v160
  %194 = vst.msk [vmem:[%s3 + $0x14] sm:$0xf] %vm188, %v161
  %195 = vst.msk [vmem:[%s3 + $0x18] sm:$0xf] %vm188, %v162
  %196 = vst.msk [vmem:[%s3 + $0x1c] sm:$0xf] %vm188, %v163
  %197 = vst.msk [vmem:[%s3 + $0x20] sm:$0xf] %vm188, %v164
  %198 = vst.msk [vmem:[%s3 + $0x24] sm:$0xf] %vm188, %v165
  %199 = vst.msk [vmem:[%s3 + $0x28] sm:$0xf] %vm188, %v166
  %200 = vst.msk [vmem:[%s3 + $0x2c] sm:$0xf] %vm188, %v167
  %201 = vst.msk [vmem:[%s3 + $0x30] sm:$0xf] %vm188, %v168
  %202 = vst.msk [vmem:[%s3 + $0x34] sm:$0xf] %vm188, %v169
  %203 = vst.msk [vmem:[%s3 + $0x38] sm:$0xf] %vm188, %v170
  %204 = vst.msk [vmem:[%s3 + $0x3c] sm:$0xf] %vm188, %v171
  // Predicated region
  $region14: #{a_call__.24} parent=0 // pred_check
    _
  $region15: #{a_call__.24} parent=0 // pred_check_branch
    %206 = sbr.rel (0) target = $region17
  $region16: #{a_call__.24} parent=0 // pred_region
    _
  $region17: #{a_call__.24} parent=0 // pred_fallthru
    _
  // Predicated region
  $region18: #{a_call__.24} parent=0 // pred_check
    _
  $region19: #{a_call__.24} parent=0 // pred_check_branch
    %208 = sbr.rel (0) target = $region21
  $region20: #{a_call__.24} parent=0 // pred_region
    _
  $region21: #{a_call__.24} parent=0 // pred_fallthru
    _

// kernel: a_call__.25
$region0: #{a_call__.25}
  #allocation0 [shape = 'u32[]', space=smem, size = 0x4, offset = 0x4, fixed_abs, tag = 'smem constant byte address 0x4 - core index']
  #allocation1 [shape = 'u32[144,128]{1,0:T(1,128)}', space=vmem, size = 0x12000, scoped, tag = 'internal scratch']
  %s0 = inlined_call_operand.vmem [shape: bf16[128,144], index: 0, kind: input, shape index: {}]
  %s1 = inlined_call_operand.vmem [shape: bf16[144,32], index: 1, kind: input, shape index: {}]
  %s2 = inlined_call_operand.vmem [shape: f32[128,32], index: 2, kind: output, shape index: {}]
  %s3 = sld [smem:[#allocation0]]
  $region18: #{a_call__.25} parent=0
    _
  %s5 = ssub.s32 1, %s3
  %s6 = scalar_select 0, %s5, %s3
  // Predicated region
  $region2: #{a_call__.25} parent=0 // pred_check
    _
  $region3: #{a_call__.25} parent=0 // pred_check_branch
    %8 = sbr.rel (0) target = $region5
  $region4: #{a_call__.25} parent=0 // pred_region
    _
  $region5: #{a_call__.25} parent=0 // pred_fallthru
    _
  // Predicated region
  $region6: #{a_call__.25} parent=0 // pred_check
    _
  $region7: #{a_call__.25} parent=0 // pred_check_branch
    %10 = sbr.rel (0) target = $region9
  $region8: #{a_call__.25} parent=0 // pred_region
    _
  $region9: #{a_call__.25} parent=0 // pred_fallthru
    _
  %v12 = vld [vmem:[%s0] sm:$0xff]
  %v13 = vld [vmem:[%s0 + $0x8] sm:$0xff]
  %v14 = vld [vmem:[%s0 + $0x10] sm:$0xff]
  %v15 = vld [vmem:[%s0 + $0x18] sm:$0xff]
  %v16 = vld [vmem:[%s0 + $0x20] sm:$0xff]
  %v17 = vld [vmem:[%s0 + $0x28] sm:$0xff]
  %v18 = vld [vmem:[%s0 + $0x30] sm:$0xff]
  %v19 = vld [vmem:[%s0 + $0x38] sm:$0xff]
  %v20 = vld [vmem:[%s0 + $0x40] sm:$0xff]
  %v21 = vld [vmem:[%s0 + $0x48] sm:$0xff]
  %v22 = vld [vmem:[%s0 + $0x50] sm:$0xff]
  %v23 = vld [vmem:[%s0 + $0x58] sm:$0xff]
  %v24 = vld [vmem:[%s0 + $0x60] sm:$0xff]
  %v25 = vld [vmem:[%s0 + $0x68] sm:$0xff]
  %v26 = vld [vmem:[%s0 + $0x70] sm:$0xff]
  %v27 = vld [vmem:[%s0 + $0x78] sm:$0xff]
  %v28 = vld [vmem:[%s1] sm:$0xf]
  %v29 = vld [vmem:[%s1 + $0x4] sm:$0xf]
  %v30 = vld [vmem:[%s1 + $0x8] sm:$0xf]
  %v31 = vld [vmem:[%s1 + $0xc] sm:$0xf]
  %v32 = vld [vmem:[%s1 + $0x10] sm:$0xf]
  %v33 = vld [vmem:[%s1 + $0x14] sm:$0xf]
  %v34 = vld [vmem:[%s1 + $0x18] sm:$0xf]
  %v35 = vld [vmem:[%s1 + $0x1c] sm:$0xf]
  %v36 = vld [vmem:[%s1 + $0x20] sm:$0xf]
  %v37 = vld [vmem:[%s1 + $0x24] sm:$0xf]
  %v38 = vld [vmem:[%s1 + $0x28] sm:$0xf]
  %v39 = vld [vmem:[%s1 + $0x2c] sm:$0xf]
  %v40 = vld [vmem:[%s1 + $0x30] sm:$0xf]
  %v41 = vld [vmem:[%s1 + $0x34] sm:$0xf]
  %v42 = vld [vmem:[%s1 + $0x38] sm:$0xf]
  %v43 = vld [vmem:[%s1 + $0x3c] sm:$0xf]
  %v44 = vld [vmem:[%s1 + $0x40] sm:$0xf]
  %v45 = vld [vmem:[%s1 + $0x44] sm:$0xf]
  %v62 = vunpack.c.l.b16 %v12
  %v63 = vunpack.c.h.b16 %v12
  %v64 = vunpack.c.l.b16 %v13
  %v65 = vunpack.c.h.b16 %v13
  %v66 = vunpack.c.l.b16 %v14
  %v67 = vunpack.c.h.b16 %v14
  %v68 = vunpack.c.l.b16 %v15
  %v69 = vunpack.c.h.b16 %v15
  %v70 = vunpack.c.l.b16 %v16
  %v71 = vunpack.c.h.b16 %v16
  %v72 = vunpack.c.l.b16 %v17
  %v73 = vunpack.c.h.b16 %v17
  %v74 = vunpack.c.l.b16 %v18
  %v75 = vunpack.c.h.b16 %v18
  %v76 = vunpack.c.l.b16 %v19
  %v77 = vunpack.c.h.b16 %v19
  %v78 = vunpack.c.l.b16 %v20
  %v79 = vunpack.c.h.b16 %v20
  %v80 = vunpack.c.l.b16 %v21
  %v81 = vunpack.c.h.b16 %v21
  %v82 = vunpack.c.l.b16 %v22
  %v83 = vunpack.c.h.b16 %v22
  %v84 = vunpack.c.l.b16 %v23
  %v85 = vunpack.c.h.b16 %v23
  %v86 = vunpack.c.l.b16 %v24
  %v87 = vunpack.c.h.b16 %v24
  %v88 = vunpack.c.l.b16 %v25
  %v89 = vunpack.c.h.b16 %v25
  %v90 = vunpack.c.l.b16 %v26
  %v91 = vunpack.c.h.b16 %v26
  %v92 = vunpack.c.l.b16 %v27
  %v93 = vunpack.c.h.b16 %v27
  %v94 = vpack.c.b16 %v64, %v62
  %v95 = vpack.c.b16 %v65, %v63
  %v96 = vpack.c.b16 %v68, %v66
  %v97 = vpack.c.b16 %v69, %v67
  %v98 = vpack.c.b16 %v72, %v70
  %v99 = vpack.c.b16 %v73, %v71
  %v100 = vpack.c.b16 %v76, %v74
  %v101 = vpack.c.b16 %v77, %v75
  %v102 = vpack.c.b16 %v80, %v78
  %v103 = vpack.c.b16 %v81, %v79
  %v104 = vpack.c.b16 %v84, %v82
  %v105 = vpack.c.b16 %v85, %v83
  %v106 = vpack.c.b16 %v88, %v86
  %v107 = vpack.c.b16 %v89, %v87
  %v108 = vpack.c.b16 %v92, %v90
  %v109 = vpack.c.b16 %v93, %v91
  %v136 = vunpack.c.l.b16 %v28
  %v137 = vunpack.c.l.b16 %v29
  %v138 = vunpack.c.l.b16 %v30
  %v139 = vunpack.c.l.b16 %v31
  %v140 = vunpack.c.l.b16 %v32
  %v141 = vunpack.c.l.b16 %v33
  %v142 = vunpack.c.l.b16 %v34
  %v143 = vunpack.c.l.b16 %v35
  %v144 = vunpack.c.l.b16 %v36
  %v145 = vunpack.c.l.b16 %v37
  %v146 = vunpack.c.l.b16 %v38
  %v147 = vunpack.c.l.b16 %v39
  %v148 = vunpack.c.l.b16 %v40
  %v149 = vunpack.c.l.b16 %v41
  %v150 = vunpack.c.l.b16 %v42
  %v151 = vunpack.c.l.b16 %v43
  %v152 = vunpack.c.l.b16 %v44
  %v153 = vunpack.c.l.b16 %v45
  %v154 = vpack.c.b16 %v137, %v136
  %v155 = vpack.c.b16 %v139, %v138
  %v156 = vpack.c.b16 %v141, %v140
  %v157 = vpack.c.b16 %v143, %v142
  %v158 = vpack.c.b16 %v145, %v144
  %v159 = vpack.c.b16 %v147, %v146
  %v160 = vpack.c.b16 %v149, %v148
  %v161 = vpack.c.b16 %v151, %v150
  %v162 = vpack.c.b16 %v153, %v152
  %vm172 = vcmask 130048
  %v174 = vsel %vm172, %v95, 0
  %v177 = vsel %vm172, %v97, 0
  %v180 = vsel %vm172, %v99, 0
  %v183 = vsel %vm172, %v101, 0
  %v186 = vsel %vm172, %v103, 0
  %v189 = vsel %vm172, %v105, 0
  %v192 = vsel %vm172, %v107, 0
  %v195 = vsel %vm172, %v109, 0
  %197 = vmatprep.subr.bf16.mxu0 0
  %198 = vmatpush1.bf16.msra.mxu0 %v154
  %199 = vmatprep.subr.bf16.mxu0 0
  %200 = vmatpush1.bf16.msra.mxu0 %v155
  %201 = vmatprep.subr.bf16.mxu0 0
  %202 = vmatpush1.bf16.msra.mxu0 %v156
  %203 = vmatprep.subr.bf16.mxu0 0
  %204 = vmatpush1.bf16.msra.mxu0 %v157
  %205 = vmatprep.subr.bf16.mxu0 0
  %206 = vmatpush1.bf16.msra.mxu0 %v158
  %207 = vmatprep.subr.bf16.mxu0 0
  %208 = vmatpush1.bf16.msra.mxu0 %v159
  %209 = vmatprep.subr.bf16.mxu0 0
  %210 = vmatpush1.bf16.msra.mxu0 %v160
  %211 = vmatprep.subr.bf16.mxu0 0
  %212 = vmatpush1.bf16.msra.mxu0 %v161
  %213 = vmatprep.subr.bf16.mxu0 0
  %214 = vmatpush1.bf16.msra.mxu0 %v162
  %215 = vmatprep.subr.bf16.mxu0 0
  %216 = vmatpush1.bf16.msra.mxu0 0
  %217 = vmatprep.subr.bf16.mxu0 0
  %218 = vmatpush1.bf16.msra.mxu0 0
  %219 = vmatprep.subr.bf16.mxu0 0
  %220 = vmatpush1.bf16.msra.mxu0 0
  %221 = vmatprep.subr.bf16.mxu0 0
  %222 = vmatpush1.bf16.msra.mxu0 0
  %223 = vmatprep.subr.bf16.mxu0 0
  %224 = vmatpush1.bf16.msra.mxu0 0
  %225 = vmatprep.subr.bf16.mxu0 0
  %226 = vmatpush1.bf16.msra.mxu0 0
  %227 = vmatprep.subr.bf16.mxu0 0
  %228 = vmatpush1.bf16.msra.mxu0 0
  %229 = vmatprep.mubr.bf16.mxu0 %v174
  %230 = vmatmul.mubr.bf16.gmra.mrb[0].mxu0 %v94
  %v231 = vpop.f32.mrb[0].mxu0
  %v232 = vadd.f32 0.0, %v231
  %v233 = vpop.f32.mrb[0].mxu0
  %v234 = vpop.f32.mrb[0].mxu0
  %v235 = vadd.f32 0.0, %v234
  %v236 = vpop.f32.mrb[0].mxu0
  %237 = vmatprep.mubr.bf16.mxu0 %v177
  %238 = vmatmul.mubr.bf16.gmra.mrb[0].mxu0 %v96
  %v239 = vpop.f32.mrb[0].mxu0
  %v240 = vadd.f32 0.0, %v239
  %v241 = vpop.f32.mrb[0].mxu0
  %v242 = vpop.f32.mrb[0].mxu0
  %v243 = vadd.f32 0.0, %v242
  %v244 = vpop.f32.mrb[0].mxu0
  %245 = vmatprep.mubr.bf16.mxu0 %v180
  %246 = vmatmul.mubr.bf16.gmra.mrb[0].mxu0 %v98
  %v247 = vpop.f32.mrb[0].mxu0
  %v248 = vadd.f32 0.0, %v247
  %v249 = vpop.f32.mrb[0].mxu0
  %v250 = vpop.f32.mrb[0].mxu0
  %v251 = vadd.f32 0.0, %v250
  %v252 = vpop.f32.mrb[0].mxu0
  %253 = vmatprep.mubr.bf16.mxu0 %v183
  %254 = vmatmul.mubr.bf16.gmra.mrb[0].mxu0 %v100
  %v255 = vpop.f32.mrb[0].mxu0
  %v256 = vadd.f32 0.0, %v255
  %v257 = vpop.f32.mrb[0].mxu0
  %v258 = vpop.f32.mrb[0].mxu0
  %v259 = vadd.f32 0.0, %v258
  %v260 = vpop.f32.mrb[0].mxu0
  %261 = vmatprep.mubr.bf16.mxu0 %v186
  %262 = vmatmul.mubr.bf16.gmra.mrb[0].mxu0 %v102
  %v263 = vpop.f32.mrb[0].mxu0
  %v264 = vadd.f32 0.0, %v263
  %v265 = vpop.f32.mrb[0].mxu0
  %v266 = vpop.f32.mrb[0].mxu0
  %v267 = vadd.f32 0.0, %v266
  %v268 = vpop.f32.mrb[0].mxu0
  %269 = vmatprep.mubr.bf16.mxu0 %v189
  %270 = vmatmul.mubr.bf16.gmra.mrb[0].mxu0 %v104
  %v271 = vpop.f32.mrb[0].mxu0
  %v272 = vadd.f32 0.0, %v271
  %v273 = vpop.f32.mrb[0].mxu0
  %v274 = vpop.f32.mrb[0].mxu0
  %v275 = vadd.f32 0.0, %v274
  %v276 = vpop.f32.mrb[0].mxu0
  %277 = vmatprep.mubr.bf16.mxu0 %v192
  %278 = vmatmul.mubr.bf16.gmra.mrb[0].mxu0 %v106
  %v279 = vpop.f32.mrb[0].mxu0
  %v280 = vadd.f32 0.0, %v279
  %v281 = vpop.f32.mrb[0].mxu0
  %v282 = vpop.f32.mrb[0].mxu0
  %v283 = vadd.f32 0.0, %v282
  %v284 = vpop.f32.mrb[0].mxu0
  %285 = vmatprep.mubr.bf16.mxu0 %v195
  %286 = vmatmul.mubr.bf16.gmra.mrb[0].mxu0 %v108
  %v287 = vpop.f32.mrb[0].mxu0
  %v288 = vadd.f32 0.0, %v287
  %v289 = vpop.f32.mrb[0].mxu0
  %v290 = vpop.f32.mrb[0].mxu0
  %v291 = vadd.f32 0.0, %v290
  %v292 = vpop.f32.mrb[0].mxu0
  %293 = vdwg.mxu0
  %vm294 = vcmask 261120
  %295 = vst.msk [vmem:[%s2] sm:$0xff] %vm294, %v232
  %296 = vst.msk [vmem:[%s2 + $0x8] sm:$0xff] %vm294, %v235
  %297 = vst.msk [vmem:[%s2 + $0x10] sm:$0xff] %vm294, %v240
  %298 = vst.msk [vmem:[%s2 + $0x18] sm:$0xff] %vm294, %v243
  %299 = vst.msk [vmem:[%s2 + $0x20] sm:$0xff] %vm294, %v248
  %300 = vst.msk [vmem:[%s2 + $0x28] sm:$0xff] %vm294, %v251
  %301 = vst.msk [vmem:[%s2 + $0x30] sm:$0xff] %vm294, %v256
  %302 = vst.msk [vmem:[%s2 + $0x38] sm:$0xff] %vm294, %v259
  %303 = vst.msk [vmem:[%s2 + $0x40] sm:$0xff] %vm294, %v264
  %304 = vst.msk [vmem:[%s2 + $0x48] sm:$0xff] %vm294, %v267
  %305 = vst.msk [vmem:[%s2 + $0x50] sm:$0xff] %vm294, %v272
  %306 = vst.msk [vmem:[%s2 + $0x58] sm:$0xff] %vm294, %v275
  %307 = vst.msk [vmem:[%s2 + $0x60] sm:$0xff] %vm294, %v280
  %308 = vst.msk [vmem:[%s2 + $0x68] sm:$0xff] %vm294, %v283
  %309 = vst.msk [vmem:[%s2 + $0x70] sm:$0xff] %vm294, %v288
  %310 = vst.msk [vmem:[%s2 + $0x78] sm:$0xff] %vm294, %v291
  // Predicated region
  $region10: #{a_call__.25} parent=0 // pred_check
    _
  $region11: #{a_call__.25} parent=0 // pred_check_branch
    %312 = sbr.rel (0) target = $region13
  $region12: #{a_call__.25} parent=0 // pred_region
    _
  $region13: #{a_call__.25} parent=0 // pred_fallthru
    _
  // Predicated region
  $region14: #{a_call__.25} parent=0 // pred_check
    _
  $region15: #{a_call__.25} parent=0 // pred_check_branch
    %314 = sbr.rel (0) target = $region17
  $region16: #{a_call__.25} parent=0 // pred_region
    _
  $region17: #{a_call__.25} parent=0 // pred_fallthru
    _

// kernel: a_call__.26
$region0: #{a_call__.26}
  #allocation0 [shape = 'u32[]', space=smem, size = 0x4, offset = 0x4, fixed_abs, tag = 'smem constant byte address 0x4 - core index']
  #allocation1 [shape = 'u32[144,128]{1,0:T(1,128)}', space=vmem, size = 0x12000, scoped, tag = 'internal scratch']
  %s0 = inlined_call_operand.vmem [shape: f32[512,8], index: 0, kind: input, shape index: {}]
  %s1 = inlined_call_operand.vmem [shape: f32[1,8], index: 1, kind: output, shape index: {0}]
  %s2 = inlined_call_operand.vmem [shape: f32[1,8], index: 2, kind: output, shape index: {1}]
  %3 = xla_tuple %s1, %s2
  %s4 = sld [smem:[#allocation0]]
  $region26: #{a_call__.26} parent=0
    _
  %s6 = ssub.s32 1, %s4
  %s7 = scalar_select 0, %s6, %s4
  // Predicated region
  $region2: #{a_call__.26} parent=0 // pred_check
    _
  $region3: #{a_call__.26} parent=0 // pred_check_branch
    %9 = sbr.rel (0) target = $region5
  $region4: #{a_call__.26} parent=0 // pred_region
    _
  $region5: #{a_call__.26} parent=0 // pred_fallthru
    _
  %p10 = scmp.eq.s32.totalorder 0, 0
  // Predicated region
  $region6: #{a_call__.26} parent=0 // pred_check
    %p11 = pneg %p10
  $region7: #{a_call__.26} parent=0 // pred_check_branch
    %13 = sbr.rel (%p11) target = $region9
  $region8: #{a_call__.26} parent=0 // pred_region
    %vm14 = vcmask 57344
    %15 = vst.msk [vmem:[%s1] sm:$0x1] %vm14, 0.0
    %16 = vst.msk [vmem:[%s2] sm:$0x1] %vm14, 0.0
  $region9: #{a_call__.26} parent=0 // pred_fallthru
    _
  %v17 = vld [vmem:[%s0] sm:$0xff]
  %v18 = vld [vmem:[%s0 + $0x8] sm:$0xff]
  %v19 = vld [vmem:[%s0 + $0x10] sm:$0xff]
  %v20 = vld [vmem:[%s0 + $0x18] sm:$0xff]
  %v21 = vld [vmem:[%s0 + $0x20] sm:$0xff]
  %v22 = vld [vmem:[%s0 + $0x28] sm:$0xff]
  %v23 = vld [vmem:[%s0 + $0x30] sm:$0xff]
  %v24 = vld [vmem:[%s0 + $0x38] sm:$0xff]
  %v25 = vld [vmem:[%s0 + $0x40] sm:$0xff]
  %v26 = vld [vmem:[%s0 + $0x48] sm:$0xff]
  %v27 = vld [vmem:[%s0 + $0x50] sm:$0xff]
  %v28 = vld [vmem:[%s0 + $0x58] sm:$0xff]
  %v29 = vld [vmem:[%s0 + $0x60] sm:$0xff]
  %v30 = vld [vmem:[%s0 + $0x68] sm:$0xff]
  %v31 = vld [vmem:[%s0 + $0x70] sm:$0xff]
  %v32 = vld [vmem:[%s0 + $0x78] sm:$0xff]
  %v33 = vld [vmem:[%s0 + $0x80] sm:$0xff]
  %v34 = vld [vmem:[%s0 + $0x88] sm:$0xff]
  %v35 = vld [vmem:[%s0 + $0x90] sm:$0xff]
  %v36 = vld [vmem:[%s0 + $0x98] sm:$0xff]
  %v37 = vld [vmem:[%s0 + $0xa0] sm:$0xff]
  %v38 = vld [vmem:[%s0 + $0xa8] sm:$0xff]
  %v39 = vld [vmem:[%s0 + $0xb0] sm:$0xff]
  %v40 = vld [vmem:[%s0 + $0xb8] sm:$0xff]
  %v41 = vld [vmem:[%s0 + $0xc0] sm:$0xff]
  %v42 = vld [vmem:[%s0 + $0xc8] sm:$0xff]
  %v43 = vld [vmem:[%s0 + $0xd0] sm:$0xff]
  %v44 = vld [vmem:[%s0 + $0xd8] sm:$0xff]
  %v45 = vld [vmem:[%s0 + $0xe0] sm:$0xff]
  %v46 = vld [vmem:[%s0 + $0xe8] sm:$0xff]
  %v47 = vld [vmem:[%s0 + $0xf0] sm:$0xff]
  %v48 = vld [vmem:[%s0 + $0xf8] sm:$0xff]
  %v49 = vld [vmem:[%s0 + $0x100] sm:$0xff]
  %v50 = vld [vmem:[%s0 + $0x108] sm:$0xff]
  %v51 = vld [vmem:[%s0 + $0x110] sm:$0xff]
  %v52 = vld [vmem:[%s0 + $0x118] sm:$0xff]
  %v53 = vld [vmem:[%s0 + $0x120] sm:$0xff]
  %v54 = vld [vmem:[%s0 + $0x128] sm:$0xff]
  %v55 = vld [vmem:[%s0 + $0x130] sm:$0xff]
  %v56 = vld [vmem:[%s0 + $0x138] sm:$0xff]
  %v57 = vld [vmem:[%s0 + $0x140] sm:$0xff]
  %v58 = vld [vmem:[%s0 + $0x148] sm:$0xff]
  %v59 = vld [vmem:[%s0 + $0x150] sm:$0xff]
  %v60 = vld [vmem:[%s0 + $0x158] sm:$0xff]
  %v61 = vld [vmem:[%s0 + $0x160] sm:$0xff]
  %v62 = vld [vmem:[%s0 + $0x168] sm:$0xff]
  %v63 = vld [vmem:[%s0 + $0x170] sm:$0xff]
  %v64 = vld [vmem:[%s0 + $0x178] sm:$0xff]
  %v65 = vld [vmem:[%s0 + $0x180] sm:$0xff]
  %v66 = vld [vmem:[%s0 + $0x188] sm:$0xff]
  %v67 = vld [vmem:[%s0 + $0x190] sm:$0xff]
  %v68 = vld [vmem:[%s0 + $0x198] sm:$0xff]
  %v69 = vld [vmem:[%s0 + $0x1a0] sm:$0xff]
  %v70 = vld [vmem:[%s0 + $0x1a8] sm:$0xff]
  %v71 = vld [vmem:[%s0 + $0x1b0] sm:$0xff]
  %v72 = vld [vmem:[%s0 + $0x1b8] sm:$0xff]
  %v73 = vld [vmem:[%s0 + $0x1c0] sm:$0xff]
  %v74 = vld [vmem:[%s0 + $0x1c8] sm:$0xff]
  %v75 = vld [vmem:[%s0 + $0x1d0] sm:$0xff]
  %v76 = vld [vmem:[%s0 + $0x1d8] sm:$0xff]
  %v77 = vld [vmem:[%s0 + $0x1e0] sm:$0xff]
  %v78 = vld [vmem:[%s0 + $0x1e8] sm:$0xff]
  %v79 = vld [vmem:[%s0 + $0x1f0] sm:$0xff]
  %v80 = vld [vmem:[%s0 + $0x1f8] sm:$0xff]
  %v81 = vld [vmem:[%s1] sm:$0x1]
  %vm82 = vcmask 64512
  %v83 = vsel %vm82, %v17, 0.0
  %v84 = vsel %vm82, %v18, 0.0
  %v85 = vadd.f32 %v83, %v84
  %v86 = vsel %vm82, %v19, 0.0
  %v87 = vadd.f32 %v85, %v86
  %v88 = vsel %vm82, %v20, 0.0
  %v89 = vadd.f32 %v87, %v88
  %v90 = vsel %vm82, %v21, 0.0
  %v91 = vadd.f32 %v89, %v90
  %v92 = vsel %vm82, %v22, 0.0
  %v93 = vadd.f32 %v91, %v92
  %v94 = vsel %vm82, %v23, 0.0
  %v95 = vadd.f32 %v93, %v94
  %v96 = vsel %vm82, %v24, 0.0
  %v97 = vadd.f32 %v95, %v96
  %v98 = vsel %vm82, %v25, 0.0
  %v99 = vadd.f32 %v97, %v98
  %v100 = vsel %vm82, %v26, 0.0
  %v101 = vadd.f32 %v99, %v100
  %v102 = vsel %vm82, %v27, 0.0
  %v103 = vadd.f32 %v101, %v102
  %v104 = vsel %vm82, %v28, 0.0
  %v105 = vadd.f32 %v103, %v104
  %v106 = vsel %vm82, %v29, 0.0
  %v107 = vadd.f32 %v105, %v106
  %v108 = vsel %vm82, %v30, 0.0
  %v109 = vadd.f32 %v107, %v108
  %v110 = vsel %vm82, %v31, 0.0
  %v111 = vadd.f32 %v109, %v110
  %v112 = vsel %vm82, %v32, 0.0
  %v113 = vadd.f32 %v111, %v112
  %v114 = vsel %vm82, %v33, 0.0
  %v115 = vadd.f32 %v113, %v114
  %v116 = vsel %vm82, %v34, 0.0
  %v117 = vadd.f32 %v115, %v116
  %v118 = vsel %vm82, %v35, 0.0
  %v119 = vadd.f32 %v117, %v118
  %v120 = vsel %vm82, %v36, 0.0
  %v121 = vadd.f32 %v119, %v120
  %v122 = vsel %vm82, %v37, 0.0
  %v123 = vadd.f32 %v121, %v122
  %v124 = vsel %vm82, %v38, 0.0
  %v125 = vadd.f32 %v123, %v124
  %v126 = vsel %vm82, %v39, 0.0
  %v127 = vadd.f32 %v125, %v126
  %v128 = vsel %vm82, %v40, 0.0
  %v129 = vadd.f32 %v127, %v128
  %v130 = vsel %vm82, %v41, 0.0
  %v131 = vadd.f32 %v129, %v130
  %v132 = vsel %vm82, %v42, 0.0
  %v133 = vadd.f32 %v131, %v132
  %v134 = vsel %vm82, %v43, 0.0
  %v135 = vadd.f32 %v133, %v134
  %v136 = vsel %vm82, %v44, 0.0
  %v137 = vadd.f32 %v135, %v136
  %v138 = vsel %vm82, %v45, 0.0
  %v139 = vadd.f32 %v137, %v138
  %v140 = vsel %vm82, %v46, 0.0
  %v141 = vadd.f32 %v139, %v140
  %v142 = vsel %vm82, %v47, 0.0
  %v143 = vadd.f32 %v141, %v142
  %v144 = vsel %vm82, %v48, 0.0
  %v145 = vadd.f32 %v143, %v144
  %v146 = vsel %vm82, %v49, 0.0
  %v147 = vadd.f32 %v145, %v146
  %v148 = vsel %vm82, %v50, 0.0
  %v149 = vadd.f32 %v147, %v148
  %v150 = vsel %vm82, %v51, 0.0
  %v151 = vadd.f32 %v149, %v150
  %v152 = vsel %vm82, %v52, 0.0
  %v153 = vadd.f32 %v151, %v152
  %v154 = vsel %vm82, %v53, 0.0
  %v155 = vadd.f32 %v153, %v154
  %v156 = vsel %vm82, %v54, 0.0
  %v157 = vadd.f32 %v155, %v156
  %v158 = vsel %vm82, %v55, 0.0
  %v159 = vadd.f32 %v157, %v158
  %v160 = vsel %vm82, %v56, 0.0
  %v161 = vadd.f32 %v159, %v160
  %v162 = vsel %vm82, %v57, 0.0
  %v163 = vadd.f32 %v161, %v162
  %v164 = vsel %vm82, %v58, 0.0
  %v165 = vadd.f32 %v163, %v164
  %v166 = vsel %vm82, %v59, 0.0
  %v167 = vadd.f32 %v165, %v166
  %v168 = vsel %vm82, %v60, 0.0
  %v169 = vadd.f32 %v167, %v168
  %v170 = vsel %vm82, %v61, 0.0
  %v171 = vadd.f32 %v169, %v170
  %v172 = vsel %vm82, %v62, 0.0
  %v173 = vadd.f32 %v171, %v172
  %v174 = vsel %vm82, %v63, 0.0
  %v175 = vadd.f32 %v173, %v174
  %v176 = vsel %vm82, %v64, 0.0
  %v177 = vadd.f32 %v175, %v176
  %v178 = vsel %vm82, %v65, 0.0
  %v179 = vadd.f32 %v177, %v178
  %v180 = vsel %vm82, %v66, 0.0
  %v181 = vadd.f32 %v179, %v180
  %v182 = vsel %vm82, %v67, 0.0
  %v183 = vadd.f32 %v181, %v182
  %v184 = vsel %vm82, %v68, 0.0
  %v185 = vadd.f32 %v183, %v184
  %v186 = vsel %vm82, %v69, 0.0
  %v187 = vadd.f32 %v185, %v186
  %v188 = vsel %vm82, %v70, 0.0
  %v189 = vadd.f32 %v187, %v188
  %v190 = vsel %vm82, %v71, 0.0
  %v191 = vadd.f32 %v189, %v190
  %v192 = vsel %vm82, %v72, 0.0
  %v193 = vadd.f32 %v191, %v192
  %v194 = vsel %vm82, %v73, 0.0
  %v195 = vadd.f32 %v193, %v194
  %v196 = vsel %vm82, %v74, 0.0
  %v197 = vadd.f32 %v195, %v196
  %v198 = vsel %vm82, %v75, 0.0
  %v199 = vadd.f32 %v197, %v198
  %v200 = vsel %vm82, %v76, 0.0
  %v201 = vadd.f32 %v199, %v200
  %v202 = vsel %vm82, %v77, 0.0
  %v203 = vadd.f32 %v201, %v202
  %v204 = vsel %vm82, %v78, 0.0
  %v205 = vadd.f32 %v203, %v204
  %v206 = vsel %vm82, %v79, 0.0
  %v207 = vadd.f32 %v205, %v206
  %v208 = vsel %vm82, %v80, 0.0
  %v209 = vadd.f32 %v207, %v208
  %v210 = vrot.slane %v209, 4
  %v211 = vadd.f32 %v209, %v210
  %v212 = vrot.slane %v211, 2
  %v213 = vadd.f32 %v211, %v212
  %v214 = vrot.slane %v213, 1
  %v215 = vadd.f32 %v213, %v214
  %v216 = vadd.f32 %v81, %v215
  %vm217 = vcmask 57344
  %218 = vst.msk [vmem:[%s1] sm:$0x1] %vm217, %v216
  %v219 = vld [vmem:[%s2] sm:$0x1]
  %v220 = vmul.f32 %v17, %v17
  %v221 = vmul.f32 %v18, %v18
  %v222 = vmul.f32 %v19, %v19
  %v223 = vmul.f32 %v20, %v20
  %v224 = vmul.f32 %v21, %v21
  %v225 = vmul.f32 %v22, %v22
  %v226 = vmul.f32 %v23, %v23
  %v227 = vmul.f32 %v24, %v24
  %v228 = vmul.f32 %v25, %v25
  %v229 = vmul.f32 %v26, %v26
  %v230 = vmul.f32 %v27, %v27
  %v231 = vmul.f32 %v28, %v28
  %v232 = vmul.f32 %v29, %v29
  %v233 = vmul.f32 %v30, %v30
  %v234 = vmul.f32 %v31, %v31
  %v235 = vmul.f32 %v32, %v32
  %v236 = vmul.f32 %v33, %v33
  %v237 = vmul.f32 %v34, %v34
  %v238 = vmul.f32 %v35, %v35
  %v239 = vmul.f32 %v36, %v36
  %v240 = vmul.f32 %v37, %v37
  %v241 = vmul.f32 %v38, %v38
  %v242 = vmul.f32 %v39, %v39
  %v243 = vmul.f32 %v40, %v40
  %v244 = vmul.f32 %v41, %v41
  %v245 = vmul.f32 %v42, %v42
  %v246 = vmul.f32 %v43, %v43
  %v247 = vmul.f32 %v44, %v44
  %v248 = vmul.f32 %v45, %v45
  %v249 = vmul.f32 %v46, %v46
  %v250 = vmul.f32 %v47, %v47
  %v251 = vmul.f32 %v48, %v48
  %v252 = vmul.f32 %v49, %v49
  %v253 = vmul.f32 %v50, %v50
  %v254 = vmul.f32 %v51, %v51
  %v255 = vmul.f32 %v52, %v52
  %v256 = vmul.f32 %v53, %v53
  %v257 = vmul.f32 %v54, %v54
  %v258 = vmul.f32 %v55, %v55
  %v259 = vmul.f32 %v56, %v56
  %v260 = vmul.f32 %v57, %v57
  %v261 = vmul.f32 %v58, %v58
  %v262 = vmul.f32 %v59, %v59
  %v263 = vmul.f32 %v60, %v60
  %v264 = vmul.f32 %v61, %v61
  %v265 = vmul.f32 %v62, %v62
  %v266 = vmul.f32 %v63, %v63
  %v267 = vmul.f32 %v64, %v64
  %v268 = vmul.f32 %v65, %v65
  %v269 = vmul.f32 %v66, %v66
  %v270 = vmul.f32 %v67, %v67
  %v271 = vmul.f32 %v68, %v68
  %v272 = vmul.f32 %v69, %v69
  %v273 = vmul.f32 %v70, %v70
  %v274 = vmul.f32 %v71, %v71
  %v275 = vmul.f32 %v72, %v72
  %v276 = vmul.f32 %v73, %v73
  %v277 = vmul.f32 %v74, %v74
  %v278 = vmul.f32 %v75, %v75
  %v279 = vmul.f32 %v76, %v76
  %v280 = vmul.f32 %v77, %v77
  %v281 = vmul.f32 %v78, %v78
  %v282 = vmul.f32 %v79, %v79
  %v283 = vmul.f32 %v80, %v80
  %v284 = vsel %vm82, %v220, 0.0
  %v285 = vsel %vm82, %v221, 0.0
  %v286 = vadd.f32 %v284, %v285
  %v287 = vsel %vm82, %v222, 0.0
  %v288 = vadd.f32 %v286, %v287
  %v289 = vsel %vm82, %v223, 0.0
  %v290 = vadd.f32 %v288, %v289
  %v291 = vsel %vm82, %v224, 0.0
  %v292 = vadd.f32 %v290, %v291
  %v293 = vsel %vm82, %v225, 0.0
  %v294 = vadd.f32 %v292, %v293
  %v295 = vsel %vm82, %v226, 0.0
  %v296 = vadd.f32 %v294, %v295
  %v297 = vsel %vm82, %v227, 0.0
  %v298 = vadd.f32 %v296, %v297
  %v299 = vsel %vm82, %v228, 0.0
  %v300 = vadd.f32 %v298, %v299
  %v301 = vsel %vm82, %v229, 0.0
  %v302 = vadd.f32 %v300, %v301
  %v303 = vsel %vm82, %v230, 0.0
  %v304 = vadd.f32 %v302, %v303
  %v305 = vsel %vm82, %v231, 0.0
  %v306 = vadd.f32 %v304, %v305
  %v307 = vsel %vm82, %v232, 0.0
  %v308 = vadd.f32 %v306, %v307
  %v309 = vsel %vm82, %v233, 0.0
  %v310 = vadd.f32 %v308, %v309
  %v311 = vsel %vm82, %v234, 0.0
  %v312 = vadd.f32 %v310, %v311
  %v313 = vsel %vm82, %v235, 0.0
  %v314 = vadd.f32 %v312, %v313
  %v315 = vsel %vm82, %v236, 0.0
  %v316 = vadd.f32 %v314, %v315
  %v317 = vsel %vm82, %v237, 0.0
  %v318 = vadd.f32 %v316, %v317
  %v319 = vsel %vm82, %v238, 0.0
  %v320 = vadd.f32 %v318, %v319
  %v321 = vsel %vm82, %v239, 0.0
  %v322 = vadd.f32 %v320, %v321
  %v323 = vsel %vm82, %v240, 0.0
  %v324 = vadd.f32 %v322, %v323
  %v325 = vsel %vm82, %v241, 0.0
  %v326 = vadd.f32 %v324, %v325
  %v327 = vsel %vm82, %v242, 0.0
  %v328 = vadd.f32 %v326, %v327
  %v329 = vsel %vm82, %v243, 0.0
  %v330 = vadd.f32 %v328, %v329
  %v331 = vsel %vm82, %v244, 0.0
  %v332 = vadd.f32 %v330, %v331
  %v333 = vsel %vm82, %v245, 0.0
  %v334 = vadd.f32 %v332, %v333
  %v335 = vsel %vm82, %v246, 0.0
  %v336 = vadd.f32 %v334, %v335
  %v337 = vsel %vm82, %v247, 0.0
  %v338 = vadd.f32 %v336, %v337
  %v339 = vsel %vm82, %v248, 0.0
  %v340 = vadd.f32 %v338, %v339
  %v341 = vsel %vm82, %v249, 0.0
  %v342 = vadd.f32 %v340, %v341
  %v343 = vsel %vm82, %v250, 0.0
  %v344 = vadd.f32 %v342, %v343
  %v345 = vsel %vm82, %v251, 0.0
  %v346 = vadd.f32 %v344, %v345
  %v347 = vsel %vm82, %v252, 0.0
  %v348 = vadd.f32 %v346, %v347
  %v349 = vsel %vm82, %v253, 0.0
  %v350 = vadd.f32 %v348, %v349
  %v351 = vsel %vm82, %v254, 0.0
  %v352 = vadd.f32 %v350, %v351
  %v353 = vsel %vm82, %v255, 0.0
  %v354 = vadd.f32 %v352, %v353
  %v355 = vsel %vm82, %v256, 0.0
  %v356 = vadd.f32 %v354, %v355
  %v357 = vsel %vm82, %v257, 0.0
  %v358 = vadd.f32 %v356, %v357
  %v359 = vsel %vm82, %v258, 0.0
  %v360 = vadd.f32 %v358, %v359
  %v361 = vsel %vm82, %v259, 0.0
  %v362 = vadd.f32 %v360, %v361
  %v363 = vsel %vm82, %v260, 0.0
  %v364 = vadd.f32 %v362, %v363
  %v365 = vsel %vm82, %v261, 0.0
  %v366 = vadd.f32 %v364, %v365
  %v367 = vsel %vm82, %v262, 0.0
  %v368 = vadd.f32 %v366, %v367
  %v369 = vsel %vm82, %v263, 0.0
  %v370 = vadd.f32 %v368, %v369
  %v371 = vsel %vm82, %v264, 0.0
  %v372 = vadd.f32 %v370, %v371
  %v373 = vsel %vm82, %v265, 0.0
  %v374 = vadd.f32 %v372, %v373
  %v375 = vsel %vm82, %v266, 0.0
  %v376 = vadd.f32 %v374, %v375
  %v377 = vsel %vm82, %v267, 0.0
  %v378 = vadd.f32 %v376, %v377
  %v379 = vsel %vm82, %v268, 0.0
  %v380 = vadd.f32 %v378, %v379
  %v381 = vsel %vm82, %v269, 0.0
  %v382 = vadd.f32 %v380, %v381
  %v383 = vsel %vm82, %v270, 0.0
  %v384 = vadd.f32 %v382, %v383
  %v385 = vsel %vm82, %v271, 0.0
  %v386 = vadd.f32 %v384, %v385
  %v387 = vsel %vm82, %v272, 0.0
  %v388 = vadd.f32 %v386, %v387
  %v389 = vsel %vm82, %v273, 0.0
  %v390 = vadd.f32 %v388, %v389
  %v391 = vsel %vm82, %v274, 0.0
  %v392 = vadd.f32 %v390, %v391
  %v393 = vsel %vm82, %v275, 0.0
  %v394 = vadd.f32 %v392, %v393
  %v395 = vsel %vm82, %v276, 0.0
  %v396 = vadd.f32 %v394, %v395
  %v397 = vsel %vm82, %v277, 0.0
  %v398 = vadd.f32 %v396, %v397
  %v399 = vsel %vm82, %v278, 0.0
  %v400 = vadd.f32 %v398, %v399
  %v401 = vsel %vm82, %v279, 0.0
  %v402 = vadd.f32 %v400, %v401
  %v403 = vsel %vm82, %v280, 0.0
  %v404 = vadd.f32 %v402, %v403
  %v405 = vsel %vm82, %v281, 0.0
  %v406 = vadd.f32 %v404, %v405
  %v407 = vsel %vm82, %v282, 0.0
  %v408 = vadd.f32 %v406, %v407
  %v409 = vsel %vm82, %v283, 0.0
  %v410 = vadd.f32 %v408, %v409
  %v411 = vrot.slane %v410, 4
  %v412 = vadd.f32 %v410, %v411
  %v413 = vrot.slane %v412, 2
  %v414 = vadd.f32 %v412, %v413
  %v415 = vrot.slane %v414, 1
  %v416 = vadd.f32 %v414, %v415
  %v417 = vadd.f32 %v219, %v416
  %418 = vst.msk [vmem:[%s2] sm:$0x1] %vm217, %v417
  // Predicated region
  $region10: #{a_call__.26} parent=0 // pred_check
    _
  $region11: #{a_call__.26} parent=0 // pred_check_branch
    %420 = sbr.rel (0) target = $region13
  $region12: #{a_call__.26} parent=0 // pred_region
    _
  $region13: #{a_call__.26} parent=0 // pred_fallthru
    _
  // Predicated region
  $region14: #{a_call__.26} parent=0 // pred_check
    _
  $region15: #{a_call__.26} parent=0 // pred_check_branch
    %422 = sbr.rel (0) target = $region17
  $region16: #{a_call__.26} parent=0 // pred_region
    _
  $region17: #{a_call__.26} parent=0 // pred_fallthru
    _
  // Predicated region
  $region18: #{a_call__.26} parent=0 // pred_check
    _
  $region19: #{a_call__.26} parent=0 // pred_check_branch
    %424 = sbr.rel (0) target = $region21
  $region20: #{a_call__.26} parent=0 // pred_region
    _
  $region21: #{a_call__.26} parent=0 // pred_fallthru
    _
  // Predicated region
  $region22: #{a_call__.26} parent=0 // pred_check
    _
  $region23: #{a_call__.26} parent=0 // pred_check_branch
    %426 = sbr.rel (0) target = $region25
  $region24: #{a_call__.26} parent=0 // pred_region
    _
  $region25: #{a_call__.26} parent=0 // pred_fallthru
    _

// kernel: a_call__.27
$region0: #{a_call__.27}
  #allocation0 [shape = 'u32[]', space=smem, size = 0x4, offset = 0x4, fixed_abs, tag = 'smem constant byte address 0x4 - core index']
  #allocation1 [shape = 'u32[144,128]{1,0:T(1,128)}', space=vmem, size = 0x12000, scoped, tag = 'internal scratch']
  %s0 = inlined_call_operand.vmem [shape: f32[512,8], index: 0, kind: input, shape index: {}]
  %s1 = inlined_call_operand.vmem [shape: f32[1,8], index: 1, kind: input, shape index: {}]
  %s2 = inlined_call_operand.vmem [shape: f32[1,8], index: 2, kind: input, shape index: {}]
  %s3 = inlined_call_operand.vmem [shape: bf16[512,8], index: 3, kind: output, shape index: {}]
  %s4 = sld [smem:[#allocation0]]
  $region22: #{a_call__.27} parent=0
    _
  %s6 = ssub.s32 1, %s4
  %s7 = scalar_select 0, %s6, %s4
  // Predicated region
  $region2: #{a_call__.27} parent=0 // pred_check
    _
  $region3: #{a_call__.27} parent=0 // pred_check_branch
    %9 = sbr.rel (0) target = $region5
  $region4: #{a_call__.27} parent=0 // pred_region
    _
  $region5: #{a_call__.27} parent=0 // pred_fallthru
    _
  // Predicated region
  $region6: #{a_call__.27} parent=0 // pred_check
    _
  $region7: #{a_call__.27} parent=0 // pred_check_branch
    %11 = sbr.rel (0) target = $region9
  $region8: #{a_call__.27} parent=0 // pred_region
    _
  $region9: #{a_call__.27} parent=0 // pred_fallthru
    _
  // Predicated region
  $region10: #{a_call__.27} parent=0 // pred_check
    _
  $region11: #{a_call__.27} parent=0 // pred_check_branch
    %13 = sbr.rel (0) target = $region13
  $region12: #{a_call__.27} parent=0 // pred_region
    _
  $region13: #{a_call__.27} parent=0 // pred_fallthru
    _
  %v14 = vld [vmem:[%s0] sm:$0xff]
  %v15 = vld [vmem:[%s0 + $0x8] sm:$0xff]
  %v16 = vld [vmem:[%s0 + $0x10] sm:$0xff]
  %v17 = vld [vmem:[%s0 + $0x18] sm:$0xff]
  %v18 = vld [vmem:[%s0 + $0x20] sm:$0xff]
  %v19 = vld [vmem:[%s0 + $0x28] sm:$0xff]
  %v20 = vld [vmem:[%s0 + $0x30] sm:$0xff]
  %v21 = vld [vmem:[%s0 + $0x38] sm:$0xff]
  %v22 = vld [vmem:[%s0 + $0x40] sm:$0xff]
  %v23 = vld [vmem:[%s0 + $0x48] sm:$0xff]
  %v24 = vld [vmem:[%s0 + $0x50] sm:$0xff]
  %v25 = vld [vmem:[%s0 + $0x58] sm:$0xff]
  %v26 = vld [vmem:[%s0 + $0x60] sm:$0xff]
  %v27 = vld [vmem:[%s0 + $0x68] sm:$0xff]
  %v28 = vld [vmem:[%s0 + $0x70] sm:$0xff]
  %v29 = vld [vmem:[%s0 + $0x78] sm:$0xff]
  %v30 = vld [vmem:[%s0 + $0x80] sm:$0xff]
  %v31 = vld [vmem:[%s0 + $0x88] sm:$0xff]
  %v32 = vld [vmem:[%s0 + $0x90] sm:$0xff]
  %v33 = vld [vmem:[%s0 + $0x98] sm:$0xff]
  %v34 = vld [vmem:[%s0 + $0xa0] sm:$0xff]
  %v35 = vld [vmem:[%s0 + $0xa8] sm:$0xff]
  %v36 = vld [vmem:[%s0 + $0xb0] sm:$0xff]
  %v37 = vld [vmem:[%s0 + $0xb8] sm:$0xff]
  %v38 = vld [vmem:[%s0 + $0xc0] sm:$0xff]
  %v39 = vld [vmem:[%s0 + $0xc8] sm:$0xff]
  %v40 = vld [vmem:[%s0 + $0xd0] sm:$0xff]
  %v41 = vld [vmem:[%s0 + $0xd8] sm:$0xff]
  %v42 = vld [vmem:[%s0 + $0xe0] sm:$0xff]
  %v43 = vld [vmem:[%s0 + $0xe8] sm:$0xff]
  %v44 = vld [vmem:[%s0 + $0xf0] sm:$0xff]
  %v45 = vld [vmem:[%s0 + $0xf8] sm:$0xff]
  %v46 = vld [vmem:[%s0 + $0x100] sm:$0xff]
  %v47 = vld [vmem:[%s0 + $0x108] sm:$0xff]
  %v48 = vld [vmem:[%s0 + $0x110] sm:$0xff]
  %v49 = vld [vmem:[%s0 + $0x118] sm:$0xff]
  %v50 = vld [vmem:[%s0 + $0x120] sm:$0xff]
  %v51 = vld [vmem:[%s0 + $0x128] sm:$0xff]
  %v52 = vld [vmem:[%s0 + $0x130] sm:$0xff]
  %v53 = vld [vmem:[%s0 + $0x138] sm:$0xff]
  %v54 = vld [vmem:[%s0 + $0x140] sm:$0xff]
  %v55 = vld [vmem:[%s0 + $0x148] sm:$0xff]
  %v56 = vld [vmem:[%s0 + $0x150] sm:$0xff]
  %v57 = vld [vmem:[%s0 + $0x158] sm:$0xff]
  %v58 = vld [vmem:[%s0 + $0x160] sm:$0xff]
  %v59 = vld [vmem:[%s0 + $0x168] sm:$0xff]
  %v60 = vld [vmem:[%s0 + $0x170] sm:$0xff]
  %v61 = vld [vmem:[%s0 + $0x178] sm:$0xff]
  %v62 = vld [vmem:[%s0 + $0x180] sm:$0xff]
  %v63 = vld [vmem:[%s0 + $0x188] sm:$0xff]
  %v64 = vld [vmem:[%s0 + $0x190] sm:$0xff]
  %v65 = vld [vmem:[%s0 + $0x198] sm:$0xff]
  %v66 = vld [vmem:[%s0 + $0x1a0] sm:$0xff]
  %v67 = vld [vmem:[%s0 + $0x1a8] sm:$0xff]
  %v68 = vld [vmem:[%s0 + $0x1b0] sm:$0xff]
  %v69 = vld [vmem:[%s0 + $0x1b8] sm:$0xff]
  %v70 = vld [vmem:[%s0 + $0x1c0] sm:$0xff]
  %v71 = vld [vmem:[%s0 + $0x1c8] sm:$0xff]
  %v72 = vld [vmem:[%s0 + $0x1d0] sm:$0xff]
  %v73 = vld [vmem:[%s0 + $0x1d8] sm:$0xff]
  %v74 = vld [vmem:[%s0 + $0x1e0] sm:$0xff]
  %v75 = vld [vmem:[%s0 + $0x1e8] sm:$0xff]
  %v76 = vld [vmem:[%s0 + $0x1f0] sm:$0xff]
  %v77 = vld [vmem:[%s0 + $0x1f8] sm:$0xff]
  %v78 = vld [vmem:[%s1] sm:$0x1]
  %v80 = vlaneseq
  %v81 = vshrl.u32 %v80, 7
  %v82 = vsub.s32 0, %v81
  %v83 = vrot.slane %v78, %v82
  %v85 = vmul.f32 %v14, %v83
  %v86 = vmul.f32 %v15, %v83
  %v87 = vmul.f32 %v16, %v83
  %v88 = vmul.f32 %v17, %v83
  %v89 = vmul.f32 %v18, %v83
  %v90 = vmul.f32 %v19, %v83
  %v91 = vmul.f32 %v20, %v83
  %v92 = vmul.f32 %v21, %v83
  %v93 = vmul.f32 %v22, %v83
  %v94 = vmul.f32 %v23, %v83
  %v95 = vmul.f32 %v24, %v83
  %v96 = vmul.f32 %v25, %v83
  %v97 = vmul.f32 %v26, %v83
  %v98 = vmul.f32 %v27, %v83
  %v99 = vmul.f32 %v28, %v83
  %v100 = vmul.f32 %v29, %v83
  %v101 = vmul.f32 %v30, %v83
  %v102 = vmul.f32 %v31, %v83
  %v103 = vmul.f32 %v32, %v83
  %v104 = vmul.f32 %v33, %v83
  %v105 = vmul.f32 %v34, %v83
  %v106 = vmul.f32 %v35, %v83
  %v107 = vmul.f32 %v36, %v83
  %v108 = vmul.f32 %v37, %v83
  %v109 = vmul.f32 %v38, %v83
  %v110 = vmul.f32 %v39, %v83
  %v111 = vmul.f32 %v40, %v83
  %v112 = vmul.f32 %v41, %v83
  %v113 = vmul.f32 %v42, %v83
  %v114 = vmul.f32 %v43, %v83
  %v115 = vmul.f32 %v44, %v83
  %v116 = vmul.f32 %v45, %v83
  %v117 = vmul.f32 %v46, %v83
  %v118 = vmul.f32 %v47, %v83
  %v119 = vmul.f32 %v48, %v83
  %v120 = vmul.f32 %v49, %v83
  %v121 = vmul.f32 %v50, %v83
  %v122 = vmul.f32 %v51, %v83
  %v123 = vmul.f32 %v52, %v83
  %v124 = vmul.f32 %v53, %v83
  %v125 = vmul.f32 %v54, %v83
  %v126 = vmul.f32 %v55, %v83
  %v127 = vmul.f32 %v56, %v83
  %v128 = vmul.f32 %v57, %v83
  %v129 = vmul.f32 %v58, %v83
  %v130 = vmul.f32 %v59, %v83
  %v131 = vmul.f32 %v60, %v83
  %v132 = vmul.f32 %v61, %v83
  %v133 = vmul.f32 %v62, %v83
  %v134 = vmul.f32 %v63, %v83
  %v135 = vmul.f32 %v64, %v83
  %v136 = vmul.f32 %v65, %v83
  %v137 = vmul.f32 %v66, %v83
  %v138 = vmul.f32 %v67, %v83
  %v139 = vmul.f32 %v68, %v83
  %v140 = vmul.f32 %v69, %v83
  %v141 = vmul.f32 %v70, %v83
  %v142 = vmul.f32 %v71, %v83
  %v143 = vmul.f32 %v72, %v83
  %v144 = vmul.f32 %v73, %v83
  %v145 = vmul.f32 %v74, %v83
  %v146 = vmul.f32 %v75, %v83
  %v147 = vmul.f32 %v76, %v83
  %v148 = vmul.f32 %v77, %v83
  %v149 = vld [vmem:[%s2] sm:$0x1]
  %v151 = vlaneseq
  %v152 = vshrl.u32 %v151, 7
  %v153 = vsub.s32 0, %v152
  %v154 = vrot.slane %v149, %v153
  %v156 = vadd.f32 %v85, %v154
  %v157 = vadd.f32 %v86, %v154
  %v158 = vadd.f32 %v87, %v154
  %v159 = vadd.f32 %v88, %v154
  %v160 = vadd.f32 %v89, %v154
  %v161 = vadd.f32 %v90, %v154
  %v162 = vadd.f32 %v91, %v154
  %v163 = vadd.f32 %v92, %v154
  %v164 = vadd.f32 %v93, %v154
  %v165 = vadd.f32 %v94, %v154
  %v166 = vadd.f32 %v95, %v154
  %v167 = vadd.f32 %v96, %v154
  %v168 = vadd.f32 %v97, %v154
  %v169 = vadd.f32 %v98, %v154
  %v170 = vadd.f32 %v99, %v154
  %v171 = vadd.f32 %v100, %v154
  %v172 = vadd.f32 %v101, %v154
  %v173 = vadd.f32 %v102, %v154
  %v174 = vadd.f32 %v103, %v154
  %v175 = vadd.f32 %v104, %v154
  %v176 = vadd.f32 %v105, %v154
  %v177 = vadd.f32 %v106, %v154
  %v178 = vadd.f32 %v107, %v154
  %v179 = vadd.f32 %v108, %v154
  %v180 = vadd.f32 %v109, %v154
  %v181 = vadd.f32 %v110, %v154
  %v182 = vadd.f32 %v111, %v154
  %v183 = vadd.f32 %v112, %v154
  %v184 = vadd.f32 %v113, %v154
  %v185 = vadd.f32 %v114, %v154
  %v186 = vadd.f32 %v115, %v154
  %v187 = vadd.f32 %v116, %v154
  %v188 = vadd.f32 %v117, %v154
  %v189 = vadd.f32 %v118, %v154
  %v190 = vadd.f32 %v119, %v154
  %v191 = vadd.f32 %v120, %v154
  %v192 = vadd.f32 %v121, %v154
  %v193 = vadd.f32 %v122, %v154
  %v194 = vadd.f32 %v123, %v154
  %v195 = vadd.f32 %v124, %v154
  %v196 = vadd.f32 %v125, %v154
  %v197 = vadd.f32 %v126, %v154
  %v198 = vadd.f32 %v127, %v154
  %v199 = vadd.f32 %v128, %v154
  %v200 = vadd.f32 %v129, %v154
  %v201 = vadd.f32 %v130, %v154
  %v202 = vadd.f32 %v131, %v154
  %v203 = vadd.f32 %v132, %v154
  %v204 = vadd.f32 %v133, %v154
  %v205 = vadd.f32 %v134, %v154
  %v206 = vadd.f32 %v135, %v154
  %v207 = vadd.f32 %v136, %v154
  %v208 = vadd.f32 %v137, %v154
  %v209 = vadd.f32 %v138, %v154
  %v210 = vadd.f32 %v139, %v154
  %v211 = vadd.f32 %v140, %v154
  %v212 = vadd.f32 %v141, %v154
  %v213 = vadd.f32 %v142, %v154
  %v214 = vadd.f32 %v143, %v154
  %v215 = vadd.f32 %v144, %v154
  %v216 = vadd.f32 %v145, %v154
  %v217 = vadd.f32 %v146, %v154
  %v218 = vadd.f32 %v147, %v154
  %v219 = vadd.f32 %v148, %v154
  %vm220 = vcmp.ge.f32.partialorder %v156, 0.0
  %vm221 = vcmp.ge.f32.partialorder %v157, 0.0
  %vm222 = vcmp.ge.f32.partialorder %v158, 0.0
  %vm223 = vcmp.ge.f32.partialorder %v159, 0.0
  %vm224 = vcmp.ge.f32.partialorder %v160, 0.0
  %vm225 = vcmp.ge.f32.partialorder %v161, 0.0
  %vm226 = vcmp.ge.f32.partialorder %v162, 0.0
  %vm227 = vcmp.ge.f32.partialorder %v163, 0.0
  %vm228 = vcmp.ge.f32.partialorder %v164, 0.0
  %vm229 = vcmp.ge.f32.partialorder %v165, 0.0
  %vm230 = vcmp.ge.f32.partialorder %v166, 0.0
  %vm231 = vcmp.ge.f32.partialorder %v167, 0.0
  %vm232 = vcmp.ge.f32.partialorder %v168, 0.0
  %vm233 = vcmp.ge.f32.partialorder %v169, 0.0
  %vm234 = vcmp.ge.f32.partialorder %v170, 0.0
  %vm235 = vcmp.ge.f32.partialorder %v171, 0.0
  %vm236 = vcmp.ge.f32.partialorder %v172, 0.0
  %vm237 = vcmp.ge.f32.partialorder %v173, 0.0
  %vm238 = vcmp.ge.f32.partialorder %v174, 0.0
  %vm239 = vcmp.ge.f32.partialorder %v175, 0.0
  %vm240 = vcmp.ge.f32.partialorder %v176, 0.0
  %vm241 = vcmp.ge.f32.partialorder %v177, 0.0
  %vm242 = vcmp.ge.f32.partialorder %v178, 0.0
  %vm243 = vcmp.ge.f32.partialorder %v179, 0.0
  %vm244 = vcmp.ge.f32.partialorder %v180, 0.0
  %vm245 = vcmp.ge.f32.partialorder %v181, 0.0
  %vm246 = vcmp.ge.f32.partialorder %v182, 0.0
  %vm247 = vcmp.ge.f32.partialorder %v183, 0.0
  %vm248 = vcmp.ge.f32.partialorder %v184, 0.0
  %vm249 = vcmp.ge.f32.partialorder %v185, 0.0
  %vm250 = vcmp.ge.f32.partialorder %v186, 0.0
  %vm251 = vcmp.ge.f32.partialorder %v187, 0.0
  %vm252 = vcmp.ge.f32.partialorder %v188, 0.0
  %vm253 = vcmp.ge.f32.partialorder %v189, 0.0
  %vm254 = vcmp.ge.f32.partialorder %v190, 0.0
  %vm255 = vcmp.ge.f32.partialorder %v191, 0.0
  %vm256 = vcmp.ge.f32.partialorder %v192, 0.0
  %vm257 = vcmp.ge.f32.partialorder %v193, 0.0
  %vm258 = vcmp.ge.f32.partialorder %v194, 0.0
  %vm259 = vcmp.ge.f32.partialorder %v195, 0.0
  %vm260 = vcmp.ge.f32.partialorder %v196, 0.0
  %vm261 = vcmp.ge.f32.partialorder %v197, 0.0
  %vm262 = vcmp.ge.f32.partialorder %v198, 0.0
  %vm263 = vcmp.ge.f32.partialorder %v199, 0.0
  %vm264 = vcmp.ge.f32.partialorder %v200, 0.0
  %vm265 = vcmp.ge.f32.partialorder %v201, 0.0
  %vm266 = vcmp.ge.f32.partialorder %v202, 0.0
  %vm267 = vcmp.ge.f32.partialorder %v203, 0.0
  %vm268 = vcmp.ge.f32.partialorder %v204, 0.0
  %vm269 = vcmp.ge.f32.partialorder %v205, 0.0
  %vm270 = vcmp.ge.f32.partialorder %v206, 0.0
  %vm271 = vcmp.ge.f32.partialorder %v207, 0.0
  %vm272 = vcmp.ge.f32.partialorder %v208, 0.0
  %vm273 = vcmp.ge.f32.partialorder %v209, 0.0
  %vm274 = vcmp.ge.f32.partialorder %v210, 0.0
  %vm275 = vcmp.ge.f32.partialorder %v211, 0.0
  %vm276 = vcmp.ge.f32.partialorder %v212, 0.0
  %vm277 = vcmp.ge.f32.partialorder %v213, 0.0
  %vm278 = vcmp.ge.f32.partialorder %v214, 0.0
  %vm279 = vcmp.ge.f32.partialorder %v215, 0.0
  %vm280 = vcmp.ge.f32.partialorder %v216, 0.0
  %vm281 = vcmp.ge.f32.partialorder %v217, 0.0
  %vm282 = vcmp.ge.f32.partialorder %v218, 0.0
  %vm283 = vcmp.ge.f32.partialorder %v219, 0.0
  %v284 = vmul.f32 %v156, 0.2
  %v285 = vmul.f32 %v157, 0.2
  %v286 = vmul.f32 %v158, 0.2
  %v287 = vmul.f32 %v159, 0.2
  %v288 = vmul.f32 %v160, 0.2
  %v289 = vmul.f32 %v161, 0.2
  %v290 = vmul.f32 %v162, 0.2
  %v291 = vmul.f32 %v163, 0.2
  %v292 = vmul.f32 %v164, 0.2
  %v293 = vmul.f32 %v165, 0.2
  %v294 = vmul.f32 %v166, 0.2
  %v295 = vmul.f32 %v167, 0.2
  %v296 = vmul.f32 %v168, 0.2
  %v297 = vmul.f32 %v169, 0.2
  %v298 = vmul.f32 %v170, 0.2
  %v299 = vmul.f32 %v171, 0.2
  %v300 = vmul.f32 %v172, 0.2
  %v301 = vmul.f32 %v173, 0.2
  %v302 = vmul.f32 %v174, 0.2
  %v303 = vmul.f32 %v175, 0.2
  %v304 = vmul.f32 %v176, 0.2
  %v305 = vmul.f32 %v177, 0.2
  %v306 = vmul.f32 %v178, 0.2
  %v307 = vmul.f32 %v179, 0.2
  %v308 = vmul.f32 %v180, 0.2
  %v309 = vmul.f32 %v181, 0.2
  %v310 = vmul.f32 %v182, 0.2
  %v311 = vmul.f32 %v183, 0.2
  %v312 = vmul.f32 %v184, 0.2
  %v313 = vmul.f32 %v185, 0.2
  %v314 = vmul.f32 %v186, 0.2
  %v315 = vmul.f32 %v187, 0.2
  %v316 = vmul.f32 %v188, 0.2
  %v317 = vmul.f32 %v189, 0.2
  %v318 = vmul.f32 %v190, 0.2
  %v319 = vmul.f32 %v191, 0.2
  %v320 = vmul.f32 %v192, 0.2
  %v321 = vmul.f32 %v193, 0.2
  %v322 = vmul.f32 %v194, 0.2
  %v323 = vmul.f32 %v195, 0.2
  %v324 = vmul.f32 %v196, 0.2
  %v325 = vmul.f32 %v197, 0.2
  %v326 = vmul.f32 %v198, 0.2
  %v327 = vmul.f32 %v199, 0.2
  %v328 = vmul.f32 %v200, 0.2
  %v329 = vmul.f32 %v201, 0.2
  %v330 = vmul.f32 %v202, 0.2
  %v331 = vmul.f32 %v203, 0.2
  %v332 = vmul.f32 %v204, 0.2
  %v333 = vmul.f32 %v205, 0.2
  %v334 = vmul.f32 %v206, 0.2
  %v335 = vmul.f32 %v207, 0.2
  %v336 = vmul.f32 %v208, 0.2
  %v337 = vmul.f32 %v209, 0.2
  %v338 = vmul.f32 %v210, 0.2
  %v339 = vmul.f32 %v211, 0.2
  %v340 = vmul.f32 %v212, 0.2
  %v341 = vmul.f32 %v213, 0.2
  %v342 = vmul.f32 %v214, 0.2
  %v343 = vmul.f32 %v215, 0.2
  %v344 = vmul.f32 %v216, 0.2
  %v345 = vmul.f32 %v217, 0.2
  %v346 = vmul.f32 %v218, 0.2
  %v347 = vmul.f32 %v219, 0.2
  %v348 = vsel %vm220, %v156, %v284
  %v349 = vsel %vm221, %v157, %v285
  %v350 = vsel %vm222, %v158, %v286
  %v351 = vsel %vm223, %v159, %v287
  %v352 = vsel %vm224, %v160, %v288
  %v353 = vsel %vm225, %v161, %v289
  %v354 = vsel %vm226, %v162, %v290
  %v355 = vsel %vm227, %v163, %v291
  %v356 = vsel %vm228, %v164, %v292
  %v357 = vsel %vm229, %v165, %v293
  %v358 = vsel %vm230, %v166, %v294
  %v359 = vsel %vm231, %v167, %v295
  %v360 = vsel %vm232, %v168, %v296
  %v361 = vsel %vm233, %v169, %v297
  %v362 = vsel %vm234, %v170, %v298
  %v363 = vsel %vm235, %v171, %v299
  %v364 = vsel %vm236, %v172, %v300
  %v365 = vsel %vm237, %v173, %v301
  %v366 = vsel %vm238, %v174, %v302
  %v367 = vsel %vm239, %v175, %v303
  %v368 = vsel %vm240, %v176, %v304
  %v369 = vsel %vm241, %v177, %v305
  %v370 = vsel %vm242, %v178, %v306
  %v371 = vsel %vm243, %v179, %v307
  %v372 = vsel %vm244, %v180, %v308
  %v373 = vsel %vm245, %v181, %v309
  %v374 = vsel %vm246, %v182, %v310
  %v375 = vsel %vm247, %v183, %v311
  %v376 = vsel %vm248, %v184, %v312
  %v377 = vsel %vm249, %v185, %v313
  %v378 = vsel %vm250, %v186, %v314
  %v379 = vsel %vm251, %v187, %v315
  %v380 = vsel %vm252, %v188, %v316
  %v381 = vsel %vm253, %v189, %v317
  %v382 = vsel %vm254, %v190, %v318
  %v383 = vsel %vm255, %v191, %v319
  %v384 = vsel %vm256, %v192, %v320
  %v385 = vsel %vm257, %v193, %v321
  %v386 = vsel %vm258, %v194, %v322
  %v387 = vsel %vm259, %v195, %v323
  %v388 = vsel %vm260, %v196, %v324
  %v389 = vsel %vm261, %v197, %v325
  %v390 = vsel %vm262, %v198, %v326
  %v391 = vsel %vm263, %v199, %v327
  %v392 = vsel %vm264, %v200, %v328
  %v393 = vsel %vm265, %v201, %v329
  %v394 = vsel %vm266, %v202, %v330
  %v395 = vsel %vm267, %v203, %v331
  %v396 = vsel %vm268, %v204, %v332
  %v397 = vsel %vm269, %v205, %v333
  %v398 = vsel %vm270, %v206, %v334
  %v399 = vsel %vm271, %v207, %v335
  %v400 = vsel %vm272, %v208, %v336
  %v401 = vsel %vm273, %v209, %v337
  %v402 = vsel %vm274, %v210, %v338
  %v403 = vsel %vm275, %v211, %v339
  %v404 = vsel %vm276, %v212, %v340
  %v405 = vsel %vm277, %v213, %v341
  %v406 = vsel %vm278, %v214, %v342
  %v407 = vsel %vm279, %v215, %v343
  %v408 = vsel %vm280, %v216, %v344
  %v409 = vsel %vm281, %v217, %v345
  %v410 = vsel %vm282, %v218, %v346
  %v411 = vsel %vm283, %v219, %v347
  %v412 = vpack.c.bf16 %v349, %v348
  %v413 = vpack.c.bf16 %v351, %v350
  %v414 = vpack.c.bf16 %v353, %v352
  %v415 = vpack.c.bf16 %v355, %v354
  %v416 = vpack.c.bf16 %v357, %v356
  %v417 = vpack.c.bf16 %v359, %v358
  %v418 = vpack.c.bf16 %v361, %v360
  %v419 = vpack.c.bf16 %v363, %v362
  %v420 = vpack.c.bf16 %v365, %v364
  %v421 = vpack.c.bf16 %v367, %v366
  %v422 = vpack.c.bf16 %v369, %v368
  %v423 = vpack.c.bf16 %v371, %v370
  %v424 = vpack.c.bf16 %v373, %v372
  %v425 = vpack.c.bf16 %v375, %v374
  %v426 = vpack.c.bf16 %v377, %v376
  %v427 = vpack.c.bf16 %v379, %v378
  %v428 = vpack.c.bf16 %v381, %v380
  %v429 = vpack.c.bf16 %v383, %v382
  %v430 = vpack.c.bf16 %v385, %v384
  %v431 = vpack.c.bf16 %v387, %v386
  %v432 = vpack.c.bf16 %v389, %v388
  %v433 = vpack.c.bf16 %v391, %v390
  %v434 = vpack.c.bf16 %v393, %v392
  %v435 = vpack.c.bf16 %v395, %v394
  %v436 = vpack.c.bf16 %v397, %v396
  %v437 = vpack.c.bf16 %v399, %v398
  %v438 = vpack.c.bf16 %v401, %v400
  %v439 = vpack.c.bf16 %v403, %v402
  %v440 = vpack.c.bf16 %v405, %v404
  %v441 = vpack.c.bf16 %v407, %v406
  %v442 = vpack.c.bf16 %v409, %v408
  %v443 = vpack.c.bf16 %v411, %v410
  %v476 = vunpack.c.l.b16 %v412
  %v477 = vunpack.c.h.b16 %v412
  %v478 = vunpack.c.l.b16 %v413
  %v479 = vunpack.c.h.b16 %v413
  %v480 = vunpack.c.l.b16 %v414
  %v481 = vunpack.c.h.b16 %v414
  %v482 = vunpack.c.l.b16 %v415
  %v483 = vunpack.c.h.b16 %v415
  %v484 = vunpack.c.l.b16 %v416
  %v485 = vunpack.c.h.b16 %v416
  %v486 = vunpack.c.l.b16 %v417
  %v487 = vunpack.c.h.b16 %v417
  %v488 = vunpack.c.l.b16 %v418
  %v489 = vunpack.c.h.b16 %v418
  %v490 = vunpack.c.l.b16 %v419
  %v491 = vunpack.c.h.b16 %v419
  %v492 = vunpack.c.l.b16 %v420
  %v493 = vunpack.c.h.b16 %v420
  %v494 = vunpack.c.l.b16 %v421
  %v495 = vunpack.c.h.b16 %v421
  %v496 = vunpack.c.l.b16 %v422
  %v497 = vunpack.c.h.b16 %v422
  %v498 = vunpack.c.l.b16 %v423
  %v499 = vunpack.c.h.b16 %v423
  %v500 = vunpack.c.l.b16 %v424
  %v501 = vunpack.c.h.b16 %v424
  %v502 = vunpack.c.l.b16 %v425
  %v503 = vunpack.c.h.b16 %v425
  %v504 = vunpack.c.l.b16 %v426
  %v505 = vunpack.c.h.b16 %v426
  %v506 = vunpack.c.l.b16 %v427
  %v507 = vunpack.c.h.b16 %v427
  %v508 = vunpack.c.l.b16 %v428
  %v509 = vunpack.c.h.b16 %v428
  %v510 = vunpack.c.l.b16 %v429
  %v511 = vunpack.c.h.b16 %v429
  %v512 = vunpack.c.l.b16 %v430
  %v513 = vunpack.c.h.b16 %v430
  %v514 = vunpack.c.l.b16 %v431
  %v515 = vunpack.c.h.b16 %v431
  %v516 = vunpack.c.l.b16 %v432
  %v517 = vunpack.c.h.b16 %v432
  %v518 = vunpack.c.l.b16 %v433
  %v519 = vunpack.c.h.b16 %v433
  %v520 = vunpack.c.l.b16 %v434
  %v521 = vunpack.c.h.b16 %v434
  %v522 = vunpack.c.l.b16 %v435
  %v523 = vunpack.c.h.b16 %v435
  %v524 = vunpack.c.l.b16 %v436
  %v525 = vunpack.c.h.b16 %v436
  %v526 = vunpack.c.l.b16 %v437
  %v527 = vunpack.c.h.b16 %v437
  %v528 = vunpack.c.l.b16 %v438
  %v529 = vunpack.c.h.b16 %v438
  %v530 = vunpack.c.l.b16 %v439
  %v531 = vunpack.c.h.b16 %v439
  %v532 = vunpack.c.l.b16 %v440
  %v533 = vunpack.c.h.b16 %v440
  %v534 = vunpack.c.l.b16 %v441
  %v535 = vunpack.c.h.b16 %v441
  %v536 = vunpack.c.l.b16 %v442
  %v537 = vunpack.c.h.b16 %v442
  %v538 = vunpack.c.l.b16 %v443
  %v539 = vunpack.c.h.b16 %v443
  %v540 = vpack.c.b16 %v476, %v476
  %v541 = vpack.c.b16 %v477, %v477
  %v542 = vpack.c.b16 %v478, %v478
  %v543 = vpack.c.b16 %v479, %v479
  %v544 = vpack.c.b16 %v480, %v480
  %v545 = vpack.c.b16 %v481, %v481
  %v546 = vpack.c.b16 %v482, %v482
  %v547 = vpack.c.b16 %v483, %v483
  %v548 = vpack.c.b16 %v484, %v484
  %v549 = vpack.c.b16 %v485, %v485
  %v550 = vpack.c.b16 %v486, %v486
  %v551 = vpack.c.b16 %v487, %v487
  %v552 = vpack.c.b16 %v488, %v488
  %v553 = vpack.c.b16 %v489, %v489
  %v554 = vpack.c.b16 %v490, %v490
  %v555 = vpack.c.b16 %v491, %v491
  %v556 = vpack.c.b16 %v492, %v492
  %v557 = vpack.c.b16 %v493, %v493
  %v558 = vpack.c.b16 %v494, %v494
  %v559 = vpack.c.b16 %v495, %v495
  %v560 = vpack.c.b16 %v496, %v496
  %v561 = vpack.c.b16 %v497, %v497
  %v562 = vpack.c.b16 %v498, %v498
  %v563 = vpack.c.b16 %v499, %v499
  %v564 = vpack.c.b16 %v500, %v500
  %v565 = vpack.c.b16 %v501, %v501
  %v566 = vpack.c.b16 %v502, %v502
  %v567 = vpack.c.b16 %v503, %v503
  %v568 = vpack.c.b16 %v504, %v504
  %v569 = vpack.c.b16 %v505, %v505
  %v570 = vpack.c.b16 %v506, %v506
  %v571 = vpack.c.b16 %v507, %v507
  %v572 = vpack.c.b16 %v508, %v508
  %v573 = vpack.c.b16 %v509, %v509
  %v574 = vpack.c.b16 %v510, %v510
  %v575 = vpack.c.b16 %v511, %v511
  %v576 = vpack.c.b16 %v512, %v512
  %v577 = vpack.c.b16 %v513, %v513
  %v578 = vpack.c.b16 %v514, %v514
  %v579 = vpack.c.b16 %v515, %v515
  %v580 = vpack.c.b16 %v516, %v516
  %v581 = vpack.c.b16 %v517, %v517
  %v582 = vpack.c.b16 %v518, %v518
  %v583 = vpack.c.b16 %v519, %v519
  %v584 = vpack.c.b16 %v520, %v520
  %v585 = vpack.c.b16 %v521, %v521
  %v586 = vpack.c.b16 %v522, %v522
  %v587 = vpack.c.b16 %v523, %v523
  %v588 = vpack.c.b16 %v524, %v524
  %v589 = vpack.c.b16 %v525, %v525
  %v590 = vpack.c.b16 %v526, %v526
  %v591 = vpack.c.b16 %v527, %v527
  %v592 = vpack.c.b16 %v528, %v528
  %v593 = vpack.c.b16 %v529, %v529
  %v594 = vpack.c.b16 %v530, %v530
  %v595 = vpack.c.b16 %v531, %v531
  %v596 = vpack.c.b16 %v532, %v532
  %v597 = vpack.c.b16 %v533, %v533
  %v598 = vpack.c.b16 %v534, %v534
  %v599 = vpack.c.b16 %v535, %v535
  %v600 = vpack.c.b16 %v536, %v536
  %v601 = vpack.c.b16 %v537, %v537
  %v602 = vpack.c.b16 %v538, %v538
  %v603 = vpack.c.b16 %v539, %v539
  %vm668 = vcmask 60416
  %669 = vst.msk [vmem:[%s3] sm:$0xf] %vm668, %v540
  %670 = vst.msk [vmem:[%s3 + $0x4] sm:$0xf] %vm668, %v541
  %671 = vst.msk [vmem:[%s3 + $0x8] sm:$0xf] %vm668, %v542
  %672 = vst.msk [vmem:[%s3 + $0xc] sm:$0xf] %vm668, %v543
  %673 = vst.msk [vmem:[%s3 + $0x10] sm:$0xf] %vm668, %v544
  %674 = vst.msk [vmem:[%s3 + $0x14] sm:$0xf] %vm668, %v545
  %675 = vst.msk [vmem:[%s3 + $0x18] sm:$0xf] %vm668, %v546
  %676 = vst.msk [vmem:[%s3 + $0x1c] sm:$0xf] %vm668, %v547
  %677 = vst.msk [vmem:[%s3 + $0x20] sm:$0xf] %vm668, %v548
  %678 = vst.msk [vmem:[%s3 + $0x24] sm:$0xf] %vm668, %v549
  %679 = vst.msk [vmem:[%s3 + $0x28] sm:$0xf] %vm668, %v550
  %680 = vst.msk [vmem:[%s3 + $0x2c] sm:$0xf] %vm668, %v551
  %681 = vst.msk [vmem:[%s3 + $0x30] sm:$0xf] %vm668, %v552
  %682 = vst.msk [vmem:[%s3 + $0x34] sm:$0xf] %vm668, %v553
  %683 = vst.msk [vmem:[%s3 + $0x38] sm:$0xf] %vm668, %v554
  %684 = vst.msk [vmem:[%s3 + $0x3c] sm:$0xf] %vm668, %v555
  %685 = vst.msk [vmem:[%s3 + $0x40] sm:$0xf] %vm668, %v556
  %686 = vst.msk [vmem:[%s3 + $0x44] sm:$0xf] %vm668, %v557
  %687 = vst.msk [vmem:[%s3 + $0x48] sm:$0xf] %vm668, %v558
  %688 = vst.msk [vmem:[%s3 + $0x4c] sm:$0xf] %vm668, %v559
  %689 = vst.msk [vmem:[%s3 + $0x50] sm:$0xf] %vm668, %v560
  %690 = vst.msk [vmem:[%s3 + $0x54] sm:$0xf] %vm668, %v561
  %691 = vst.msk [vmem:[%s3 + $0x58] sm:$0xf] %vm668, %v562
  %692 = vst.msk [vmem:[%s3 + $0x5c] sm:$0xf] %vm668, %v563
  %693 = vst.msk [vmem:[%s3 + $0x60] sm:$0xf] %vm668, %v564
  %694 = vst.msk [vmem:[%s3 + $0x64] sm:$0xf] %vm668, %v565
  %695 = vst.msk [vmem:[%s3 + $0x68] sm:$0xf] %vm668, %v566
  %696 = vst.msk [vmem:[%s3 + $0x6c] sm:$0xf] %vm668, %v567
  %697 = vst.msk [vmem:[%s3 + $0x70] sm:$0xf] %vm668, %v568
  %698 = vst.msk [vmem:[%s3 + $0x74] sm:$0xf] %vm668, %v569
  %699 = vst.msk [vmem:[%s3 + $0x78] sm:$0xf] %vm668, %v570
  %700 = vst.msk [vmem:[%s3 + $0x7c] sm:$0xf] %vm668, %v571
  %701 = vst.msk [vmem:[%s3 + $0x80] sm:$0xf] %vm668, %v572
  %702 = vst.msk [vmem:[%s3 + $0x84] sm:$0xf] %vm668, %v573
  %703 = vst.msk [vmem:[%s3 + $0x88] sm:$0xf] %vm668, %v574
  %704 = vst.msk [vmem:[%s3 + $0x8c] sm:$0xf] %vm668, %v575
  %705 = vst.msk [vmem:[%s3 + $0x90] sm:$0xf] %vm668, %v576
  %706 = vst.msk [vmem:[%s3 + $0x94] sm:$0xf] %vm668, %v577
  %707 = vst.msk [vmem:[%s3 + $0x98] sm:$0xf] %vm668, %v578
  %708 = vst.msk [vmem:[%s3 + $0x9c] sm:$0xf] %vm668, %v579
  %709 = vst.msk [vmem:[%s3 + $0xa0] sm:$0xf] %vm668, %v580
  %710 = vst.msk [vmem:[%s3 + $0xa4] sm:$0xf] %vm668, %v581
  %711 = vst.msk [vmem:[%s3 + $0xa8] sm:$0xf] %vm668, %v582
  %712 = vst.msk [vmem:[%s3 + $0xac] sm:$0xf] %vm668, %v583
  %713 = vst.msk [vmem:[%s3 + $0xb0] sm:$0xf] %vm668, %v584
  %714 = vst.msk [vmem:[%s3 + $0xb4] sm:$0xf] %vm668, %v585
  %715 = vst.msk [vmem:[%s3 + $0xb8] sm:$0xf] %vm668, %v586
  %716 = vst.msk [vmem:[%s3 + $0xbc] sm:$0xf] %vm668, %v587
  %717 = vst.msk [vmem:[%s3 + $0xc0] sm:$0xf] %vm668, %v588
  %718 = vst.msk [vmem:[%s3 + $0xc4] sm:$0xf] %vm668, %v589
  %719 = vst.msk [vmem:[%s3 + $0xc8] sm:$0xf] %vm668, %v590
  %720 = vst.msk [vmem:[%s3 + $0xcc] sm:$0xf] %vm668, %v591
  %721 = vst.msk [vmem:[%s3 + $0xd0] sm:$0xf] %vm668, %v592
  %722 = vst.msk [vmem:[%s3 + $0xd4] sm:$0xf] %vm668, %v593
  %723 = vst.msk [vmem:[%s3 + $0xd8] sm:$0xf] %vm668, %v594
  %724 = vst.msk [vmem:[%s3 + $0xdc] sm:$0xf] %vm668, %v595
  %725 = vst.msk [vmem:[%s3 + $0xe0] sm:$0xf] %vm668, %v596
  %726 = vst.msk [vmem:[%s3 + $0xe4] sm:$0xf] %vm668, %v597
  %727 = vst.msk [vmem:[%s3 + $0xe8] sm:$0xf] %vm668, %v598
  %728 = vst.msk [vmem:[%s3 + $0xec] sm:$0xf] %vm668, %v599
  %729 = vst.msk [vmem:[%s3 + $0xf0] sm:$0xf] %vm668, %v600
  %730 = vst.msk [vmem:[%s3 + $0xf4] sm:$0xf] %vm668, %v601
  %731 = vst.msk [vmem:[%s3 + $0xf8] sm:$0xf] %vm668, %v602
  %732 = vst.msk [vmem:[%s3 + $0xfc] sm:$0xf] %vm668, %v603
  // Predicated region
  $region14: #{a_call__.27} parent=0 // pred_check
    _
  $region15: #{a_call__.27} parent=0 // pred_check_branch
    %734 = sbr.rel (0) target = $region17
  $region16: #{a_call__.27} parent=0 // pred_region
    _
  $region17: #{a_call__.27} parent=0 // pred_fallthru
    _
  // Predicated region
  $region18: #{a_call__.27} parent=0 // pred_check
    _
  $region19: #{a_call__.27} parent=0 // pred_check_branch
    %736 = sbr.rel (0) target = $region21
  $region20: #{a_call__.27} parent=0 // pred_region
    _
  $region21: #{a_call__.27} parent=0 // pred_fallthru
    _

// kernel: a_call__.28
$region0: #{a_call__.28}
  #allocation0 [shape = 'u32[]', space=smem, size = 0x4, offset = 0x4, fixed_abs, tag = 'smem constant byte address 0x4 - core index']
  #allocation1 [shape = 'u32[144,128]{1,0:T(1,128)}', space=vmem, size = 0x12000, scoped, tag = 'internal scratch']
  %s0 = inlined_call_operand.vmem [shape: bf16[512,72], index: 0, kind: input, shape index: {}]
  %s1 = inlined_call_operand.vmem [shape: bf16[72,32], index: 1, kind: input, shape index: {}]
  %s2 = inlined_call_operand.vmem [shape: f32[512,32], index: 2, kind: output, shape index: {}]
  %s3 = sld [smem:[#allocation0]]
  $region18: #{a_call__.28} parent=0
    _
  %s5 = ssub.s32 1, %s3
  %s6 = scalar_select 0, %s5, %s3
  // Predicated region
  $region2: #{a_call__.28} parent=0 // pred_check
    _
  $region3: #{a_call__.28} parent=0 // pred_check_branch
    %8 = sbr.rel (0) target = $region5
  $region4: #{a_call__.28} parent=0 // pred_region
    _
  $region5: #{a_call__.28} parent=0 // pred_fallthru
    _
  // Predicated region
  $region6: #{a_call__.28} parent=0 // pred_check
    _
  $region7: #{a_call__.28} parent=0 // pred_check_branch
    %10 = sbr.rel (0) target = $region9
  $region8: #{a_call__.28} parent=0 // pred_region
    _
  $region9: #{a_call__.28} parent=0 // pred_fallthru
    _
  %v12 = vld [vmem:[%s0] sm:$0xf]
  %v13 = vld [vmem:[%s0 + $0x4] sm:$0xf]
  %v14 = vld [vmem:[%s0 + $0x8] sm:$0xf]
  %v15 = vld [vmem:[%s0 + $0xc] sm:$0xf]
  %v16 = vld [vmem:[%s0 + $0x10] sm:$0xf]
  %v17 = vld [vmem:[%s0 + $0x14] sm:$0xf]
  %v18 = vld [vmem:[%s0 + $0x18] sm:$0xf]
  %v19 = vld [vmem:[%s0 + $0x1c] sm:$0xf]
  %v20 = vld [vmem:[%s0 + $0x20] sm:$0xf]
  %v21 = vld [vmem:[%s0 + $0x24] sm:$0xf]
  %v22 = vld [vmem:[%s0 + $0x28] sm:$0xf]
  %v23 = vld [vmem:[%s0 + $0x2c] sm:$0xf]
  %v24 = vld [vmem:[%s0 + $0x30] sm:$0xf]
  %v25 = vld [vmem:[%s0 + $0x34] sm:$0xf]
  %v26 = vld [vmem:[%s0 + $0x38] sm:$0xf]
  %v27 = vld [vmem:[%s0 + $0x3c] sm:$0xf]
  %v28 = vld [vmem:[%s0 + $0x40] sm:$0xf]
  %v29 = vld [vmem:[%s0 + $0x44] sm:$0xf]
  %v30 = vld [vmem:[%s0 + $0x48] sm:$0xf]
  %v31 = vld [vmem:[%s0 + $0x4c] sm:$0xf]
  %v32 = vld [vmem:[%s0 + $0x50] sm:$0xf]
  %v33 = vld [vmem:[%s0 + $0x54] sm:$0xf]
  %v34 = vld [vmem:[%s0 + $0x58] sm:$0xf]
  %v35 = vld [vmem:[%s0 + $0x5c] sm:$0xf]
  %v36 = vld [vmem:[%s0 + $0x60] sm:$0xf]
  %v37 = vld [vmem:[%s0 + $0x64] sm:$0xf]
  %v38 = vld [vmem:[%s0 + $0x68] sm:$0xf]
  %v39 = vld [vmem:[%s0 + $0x6c] sm:$0xf]
  %v40 = vld [vmem:[%s0 + $0x70] sm:$0xf]
  %v41 = vld [vmem:[%s0 + $0x74] sm:$0xf]
  %v42 = vld [vmem:[%s0 + $0x78] sm:$0xf]
  %v43 = vld [vmem:[%s0 + $0x7c] sm:$0xf]
  %v44 = vld [vmem:[%s0 + $0x80] sm:$0xf]
  %v45 = vld [vmem:[%s0 + $0x84] sm:$0xf]
  %v46 = vld [vmem:[%s0 + $0x88] sm:$0xf]
  %v47 = vld [vmem:[%s0 + $0x8c] sm:$0xf]
  %v48 = vld [vmem:[%s0 + $0x90] sm:$0xf]
  %v49 = vld [vmem:[%s0 + $0x94] sm:$0xf]
  %v50 = vld [vmem:[%s0 + $0x98] sm:$0xf]
  %v51 = vld [vmem:[%s0 + $0x9c] sm:$0xf]
  %v52 = vld [vmem:[%s0 + $0xa0] sm:$0xf]
  %v53 = vld [vmem:[%s0 + $0xa4] sm:$0xf]
  %v54 = vld [vmem:[%s0 + $0xa8] sm:$0xf]
  %v55 = vld [vmem:[%s0 + $0xac] sm:$0xf]
  %v56 = vld [vmem:[%s0 + $0xb0] sm:$0xf]
  %v57 = vld [vmem:[%s0 + $0xb4] sm:$0xf]
  %v58 = vld [vmem:[%s0 + $0xb8] sm:$0xf]
  %v59 = vld [vmem:[%s0 + $0xbc] sm:$0xf]
  %v60 = vld [vmem:[%s0 + $0xc0] sm:$0xf]
  %v61 = vld [vmem:[%s0 + $0xc4] sm:$0xf]
  %v62 = vld [vmem:[%s0 + $0xc8] sm:$0xf]
  %v63 = vld [vmem:[%s0 + $0xcc] sm:$0xf]
  %v64 = vld [vmem:[%s0 + $0xd0] sm:$0xf]
  %v65 = vld [vmem:[%s0 + $0xd4] sm:$0xf]
  %v66 = vld [vmem:[%s0 + $0xd8] sm:$0xf]
  %v67 = vld [vmem:[%s0 + $0xdc] sm:$0xf]
  %v68 = vld [vmem:[%s0 + $0xe0] sm:$0xf]
  %v69 = vld [vmem:[%s0 + $0xe4] sm:$0xf]
  %v70 = vld [vmem:[%s0 + $0xe8] sm:$0xf]
  %v71 = vld [vmem:[%s0 + $0xec] sm:$0xf]
  %v72 = vld [vmem:[%s0 + $0xf0] sm:$0xf]
  %v73 = vld [vmem:[%s0 + $0xf4] sm:$0xf]
  %v74 = vld [vmem:[%s0 + $0xf8] sm:$0xf]
  %v75 = vld [vmem:[%s0 + $0xfc] sm:$0xf]
  %v76 = vld [vmem:[%s1] sm:$0xf]
  %v77 = vld [vmem:[%s1 + $0x4] sm:$0xf]
  %v78 = vld [vmem:[%s1 + $0x8] sm:$0xf]
  %v79 = vld [vmem:[%s1 + $0xc] sm:$0xf]
  %v80 = vld [vmem:[%s1 + $0x10] sm:$0xf]
  %v81 = vld [vmem:[%s1 + $0x14] sm:$0xf]
  %v82 = vld [vmem:[%s1 + $0x18] sm:$0xf]
  %v83 = vld [vmem:[%s1 + $0x1c] sm:$0xf]
  %v84 = vld [vmem:[%s1 + $0x20] sm:$0xf]
  %v149 = vunpack.c.l.b16 %v12
  %v150 = vunpack.c.l.b16 %v13
  %v151 = vunpack.c.l.b16 %v14
  %v152 = vunpack.c.l.b16 %v15
  %v153 = vunpack.c.l.b16 %v16
  %v154 = vunpack.c.l.b16 %v17
  %v155 = vunpack.c.l.b16 %v18
  %v156 = vunpack.c.l.b16 %v19
  %v157 = vunpack.c.l.b16 %v20
  %v158 = vunpack.c.l.b16 %v21
  %v159 = vunpack.c.l.b16 %v22
  %v160 = vunpack.c.l.b16 %v23
  %v161 = vunpack.c.l.b16 %v24
  %v162 = vunpack.c.l.b16 %v25
  %v163 = vunpack.c.l.b16 %v26
  %v164 = vunpack.c.l.b16 %v27
  %v165 = vunpack.c.l.b16 %v28
  %v166 = vunpack.c.l.b16 %v29
  %v167 = vunpack.c.l.b16 %v30
  %v168 = vunpack.c.l.b16 %v31
  %v169 = vunpack.c.l.b16 %v32
  %v170 = vunpack.c.l.b16 %v33
  %v171 = vunpack.c.l.b16 %v34
  %v172 = vunpack.c.l.b16 %v35
  %v173 = vunpack.c.l.b16 %v36
  %v174 = vunpack.c.l.b16 %v37
  %v175 = vunpack.c.l.b16 %v38
  %v176 = vunpack.c.l.b16 %v39
  %v177 = vunpack.c.l.b16 %v40
  %v178 = vunpack.c.l.b16 %v41
  %v179 = vunpack.c.l.b16 %v42
  %v180 = vunpack.c.l.b16 %v43
  %v181 = vunpack.c.l.b16 %v44
  %v182 = vunpack.c.l.b16 %v45
  %v183 = vunpack.c.l.b16 %v46
  %v184 = vunpack.c.l.b16 %v47
  %v185 = vunpack.c.l.b16 %v48
  %v186 = vunpack.c.l.b16 %v49
  %v187 = vunpack.c.l.b16 %v50
  %v188 = vunpack.c.l.b16 %v51
  %v189 = vunpack.c.l.b16 %v52
  %v190 = vunpack.c.l.b16 %v53
  %v191 = vunpack.c.l.b16 %v54
  %v192 = vunpack.c.l.b16 %v55
  %v193 = vunpack.c.l.b16 %v56
  %v194 = vunpack.c.l.b16 %v57
  %v195 = vunpack.c.l.b16 %v58
  %v196 = vunpack.c.l.b16 %v59
  %v197 = vunpack.c.l.b16 %v60
  %v198 = vunpack.c.l.b16 %v61
  %v199 = vunpack.c.l.b16 %v62
  %v200 = vunpack.c.l.b16 %v63
  %v201 = vunpack.c.l.b16 %v64
  %v202 = vunpack.c.l.b16 %v65
  %v203 = vunpack.c.l.b16 %v66
  %v204 = vunpack.c.l.b16 %v67
  %v205 = vunpack.c.l.b16 %v68
  %v206 = vunpack.c.l.b16 %v69
  %v207 = vunpack.c.l.b16 %v70
  %v208 = vunpack.c.l.b16 %v71
  %v209 = vunpack.c.l.b16 %v72
  %v210 = vunpack.c.l.b16 %v73
  %v211 = vunpack.c.l.b16 %v74
  %v212 = vunpack.c.l.b16 %v75
  %v213 = vpack.c.b16 %v150, %v149
  %v214 = vpack.c.b16 %v152, %v151
  %v215 = vpack.c.b16 %v154, %v153
  %v216 = vpack.c.b16 %v156, %v155
  %v217 = vpack.c.b16 %v158, %v157
  %v218 = vpack.c.b16 %v160, %v159
  %v219 = vpack.c.b16 %v162, %v161
  %v220 = vpack.c.b16 %v164, %v163
  %v221 = vpack.c.b16 %v166, %v165
  %v222 = vpack.c.b16 %v168, %v167
  %v223 = vpack.c.b16 %v170, %v169
  %v224 = vpack.c.b16 %v172, %v171
  %v225 = vpack.c.b16 %v174, %v173
  %v226 = vpack.c.b16 %v176, %v175
  %v227 = vpack.c.b16 %v178, %v177
  %v228 = vpack.c.b16 %v180, %v179
  %v229 = vpack.c.b16 %v182, %v181
  %v230 = vpack.c.b16 %v184, %v183
  %v231 = vpack.c.b16 %v186, %v185
  %v232 = vpack.c.b16 %v188, %v187
  %v233 = vpack.c.b16 %v190, %v189
  %v234 = vpack.c.b16 %v192, %v191
  %v235 = vpack.c.b16 %v194, %v193
  %v236 = vpack.c.b16 %v196, %v195
  %v237 = vpack.c.b16 %v198, %v197
  %v238 = vpack.c.b16 %v200, %v199
  %v239 = vpack.c.b16 %v202, %v201
  %v240 = vpack.c.b16 %v204, %v203
  %v241 = vpack.c.b16 %v206, %v205
  %v242 = vpack.c.b16 %v208, %v207
  %v243 = vpack.c.b16 %v210, %v209
  %v244 = vpack.c.b16 %v212, %v211
  %v254 = vunpack.c.l.b16 %v76
  %v255 = vunpack.c.l.b16 %v77
  %v256 = vunpack.c.l.b16 %v78
  %v257 = vunpack.c.l.b16 %v79
  %v258 = vunpack.c.l.b16 %v80
  %v259 = vunpack.c.l.b16 %v81
  %v260 = vunpack.c.l.b16 %v82
  %v261 = vunpack.c.l.b16 %v83
  %v262 = vunpack.c.l.b16 %v84
  %v263 = vpack.c.b16 %v255, %v254
  %v264 = vpack.c.b16 %v257, %v256
  %v265 = vpack.c.b16 %v259, %v258
  %v266 = vpack.c.b16 %v261, %v260
  %v267 = vpack.c.b16 %v262, %v262
  %vm272 = vcmask 588800
  %v274 = vsel %vm272, %v213, 0
  %v277 = vsel %vm272, %v214, 0
  %v280 = vsel %vm272, %v215, 0
  %v283 = vsel %vm272, %v216, 0
  %v286 = vsel %vm272, %v217, 0
  %v289 = vsel %vm272, %v218, 0
  %v292 = vsel %vm272, %v219, 0
  %v295 = vsel %vm272, %v220, 0
  %v298 = vsel %vm272, %v221, 0
  %v301 = vsel %vm272, %v222, 0
  %v304 = vsel %vm272, %v223, 0
  %v307 = vsel %vm272, %v224, 0
  %v310 = vsel %vm272, %v225, 0
  %v313 = vsel %vm272, %v226, 0
  %v316 = vsel %vm272, %v227, 0
  %v319 = vsel %vm272, %v228, 0
  %v322 = vsel %vm272, %v229, 0
  %v325 = vsel %vm272, %v230, 0
  %v328 = vsel %vm272, %v231, 0
  %v331 = vsel %vm272, %v232, 0
  %v334 = vsel %vm272, %v233, 0
  %v337 = vsel %vm272, %v234, 0
  %v340 = vsel %vm272, %v235, 0
  %v343 = vsel %vm272, %v236, 0
  %v346 = vsel %vm272, %v237, 0
  %v349 = vsel %vm272, %v238, 0
  %v352 = vsel %vm272, %v239, 0
  %v355 = vsel %vm272, %v240, 0
  %v358 = vsel %vm272, %v241, 0
  %v361 = vsel %vm272, %v242, 0
  %v364 = vsel %vm272, %v243, 0
  %v367 = vsel %vm272, %v244, 0
  %vm369 = vcmask 1043456
  %v371 = vsel %vm369, %v267, 0
  %373 = vmatprep.subr.bf16.mxu0 0
  %374 = vmatpush1.bf16.msra.mxu0 %v263
  %375 = vmatprep.subr.bf16.mxu0 0
  %376 = vmatpush1.bf16.msra.mxu0 %v264
  %377 = vmatprep.subr.bf16.mxu0 0
  %378 = vmatpush1.bf16.msra.mxu0 %v265
  %379 = vmatprep.subr.bf16.mxu0 0
  %380 = vmatpush1.bf16.msra.mxu0 %v266
  %381 = vmatprep.subr.bf16.mxu0 0
  %382 = vmatpush1.bf16.msra.mxu0 %v371
  %383 = vmatprep.subr.bf16.mxu0 0
  %384 = vmatpush1.bf16.msra.mxu0 0
  %385 = vmatprep.subr.bf16.mxu0 0
  %386 = vmatpush1.bf16.msra.mxu0 0
  %387 = vmatprep.subr.bf16.mxu0 0
  %388 = vmatpush1.bf16.msra.mxu0 0
  %389 = vmatprep.subr.bf16.mxu0 0
  %390 = vmatpush1.bf16.msra.mxu0 0
  %391 = vmatprep.subr.bf16.mxu0 0
  %392 = vmatpush1.bf16.msra.mxu0 0
  %393 = vmatprep.subr.bf16.mxu0 0
  %394 = vmatpush1.bf16.msra.mxu0 0
  %395 = vmatprep.subr.bf16.mxu0 0
  %396 = vmatpush1.bf16.msra.mxu0 0
  %397 = vmatprep.subr.bf16.mxu0 0
  %398 = vmatpush1.bf16.msra.mxu0 0
  %399 = vmatprep.subr.bf16.mxu0 0
  %400 = vmatpush1.bf16.msra.mxu0 0
  %401 = vmatprep.subr.bf16.mxu0 0
  %402 = vmatpush1.bf16.msra.mxu0 0
  %403 = vmatprep.subr.bf16.mxu0 0
  %404 = vmatpush1.bf16.msra.mxu0 0
  %405 = vmatprep.mubr.bf16.mxu0 0
  %406 = vmatmul.mubr.bf16.gmra.mrb[0].mxu0 %v274
  %v407 = vpop.f32.mrb[0].mxu0
  %v408 = vadd.f32 0.0, %v407
  %v409 = vpop.f32.mrb[0].mxu0
  %v410 = vpop.f32.mrb[0].mxu0
  %v411 = vadd.f32 0.0, %v410
  %v412 = vpop.f32.mrb[0].mxu0
  %413 = vmatprep.mubr.bf16.mxu0 0
  %414 = vmatmul.mubr.bf16.gmra.mrb[0].mxu0 %v277
  %v415 = vpop.f32.mrb[0].mxu0
  %v416 = vadd.f32 0.0, %v415
  %v417 = vpop.f32.mrb[0].mxu0
  %v418 = vpop.f32.mrb[0].mxu0
  %v419 = vadd.f32 0.0, %v418
  %v420 = vpop.f32.mrb[0].mxu0
  %421 = vmatprep.mubr.bf16.mxu0 0
  %422 = vmatmul.mubr.bf16.gmra.mrb[0].mxu0 %v280
  %v423 = vpop.f32.mrb[0].mxu0
  %v424 = vadd.f32 0.0, %v423
  %v425 = vpop.f32.mrb[0].mxu0
  %v426 = vpop.f32.mrb[0].mxu0
  %v427 = vadd.f32 0.0, %v426
  %v428 = vpop.f32.mrb[0].mxu0
  %429 = vmatprep.mubr.bf16.mxu0 0
  %430 = vmatmul.mubr.bf16.gmra.mrb[0].mxu0 %v283
  %v431 = vpop.f32.mrb[0].mxu0
  %v432 = vadd.f32 0.0, %v431
  %v433 = vpop.f32.mrb[0].mxu0
  %v434 = vpop.f32.mrb[0].mxu0
  %v435 = vadd.f32 0.0, %v434
  %v436 = vpop.f32.mrb[0].mxu0
  %437 = vmatprep.mubr.bf16.mxu0 0
  %438 = vmatmul.mubr.bf16.gmra.mrb[0].mxu0 %v286
  %v439 = vpop.f32.mrb[0].mxu0
  %v440 = vadd.f32 0.0, %v439
  %v441 = vpop.f32.mrb[0].mxu0
  %v442 = vpop.f32.mrb[0].mxu0
  %v443 = vadd.f32 0.0, %v442
  %v444 = vpop.f32.mrb[0].mxu0
  %445 = vmatprep.mubr.bf16.mxu0 0
  %446 = vmatmul.mubr.bf16.gmra.mrb[0].mxu0 %v289
  %v447 = vpop.f32.mrb[0].mxu0
  %v448 = vadd.f32 0.0, %v447
  %v449 = vpop.f32.mrb[0].mxu0
  %v450 = vpop.f32.mrb[0].mxu0
  %v451 = vadd.f32 0.0, %v450
  %v452 = vpop.f32.mrb[0].mxu0
  %453 = vmatprep.mubr.bf16.mxu0 0
  %454 = vmatmul.mubr.bf16.gmra.mrb[0].mxu0 %v292
  %v455 = vpop.f32.mrb[0].mxu0
  %v456 = vadd.f32 0.0, %v455
  %v457 = vpop.f32.mrb[0].mxu0
  %v458 = vpop.f32.mrb[0].mxu0
  %v459 = vadd.f32 0.0, %v458
  %v460 = vpop.f32.mrb[0].mxu0
  %461 = vmatprep.mubr.bf16.mxu0 0
  %462 = vmatmul.mubr.bf16.gmra.mrb[0].mxu0 %v295
  %v463 = vpop.f32.mrb[0].mxu0
  %v464 = vadd.f32 0.0, %v463
  %v465 = vpop.f32.mrb[0].mxu0
  %v466 = vpop.f32.mrb[0].mxu0
  %v467 = vadd.f32 0.0, %v466
  %v468 = vpop.f32.mrb[0].mxu0
  %469 = vmatprep.mubr.bf16.mxu0 0
  %470 = vmatmul.mubr.bf16.gmra.mrb[0].mxu0 %v298
  %v471 = vpop.f32.mrb[0].mxu0
  %v472 = vadd.f32 0.0, %v471
  %v473 = vpop.f32.mrb[0].mxu0
  %v474 = vpop.f32.mrb[0].mxu0
  %v475 = vadd.f32 0.0, %v474
  %v476 = vpop.f32.mrb[0].mxu0
  %477 = vmatprep.mubr.bf16.mxu0 0
  %478 = vmatmul.mubr.bf16.gmra.mrb[0].mxu0 %v301
  %v479 = vpop.f32.mrb[0].mxu0
  %v480 = vadd.f32 0.0, %v479
  %v481 = vpop.f32.mrb[0].mxu0
  %v482 = vpop.f32.mrb[0].mxu0
  %v483 = vadd.f32 0.0, %v482
  %v484 = vpop.f32.mrb[0].mxu0
  %485 = vmatprep.mubr.bf16.mxu0 0
  %486 = vmatmul.mubr.bf16.gmra.mrb[0].mxu0 %v304
  %v487 = vpop.f32.mrb[0].mxu0
  %v488 = vadd.f32 0.0, %v487
  %v489 = vpop.f32.mrb[0].mxu0
  %v490 = vpop.f32.mrb[0].mxu0
  %v491 = vadd.f32 0.0, %v490
  %v492 = vpop.f32.mrb[0].mxu0
  %493 = vmatprep.mubr.bf16.mxu0 0
  %494 = vmatmul.mubr.bf16.gmra.mrb[0].mxu0 %v307
  %v495 = vpop.f32.mrb[0].mxu0
  %v496 = vadd.f32 0.0, %v495
  %v497 = vpop.f32.mrb[0].mxu0
  %v498 = vpop.f32.mrb[0].mxu0
  %v499 = vadd.f32 0.0, %v498
  %v500 = vpop.f32.mrb[0].mxu0
  %501 = vmatprep.mubr.bf16.mxu0 0
  %502 = vmatmul.mubr.bf16.gmra.mrb[0].mxu0 %v310
  %v503 = vpop.f32.mrb[0].mxu0
  %v504 = vadd.f32 0.0, %v503
  %v505 = vpop.f32.mrb[0].mxu0
  %v506 = vpop.f32.mrb[0].mxu0
  %v507 = vadd.f32 0.0, %v506
  %v508 = vpop.f32.mrb[0].mxu0
  %509 = vmatprep.mubr.bf16.mxu0 0
  %510 = vmatmul.mubr.bf16.gmra.mrb[0].mxu0 %v313
  %v511 = vpop.f32.mrb[0].mxu0
  %v512 = vadd.f32 0.0, %v511
  %v513 = vpop.f32.mrb[0].mxu0
  %v514 = vpop.f32.mrb[0].mxu0
  %v515 = vadd.f32 0.0, %v514
  %v516 = vpop.f32.mrb[0].mxu0
  %517 = vmatprep.mubr.bf16.mxu0 0
  %518 = vmatmul.mubr.bf16.gmra.mrb[0].mxu0 %v316
  %v519 = vpop.f32.mrb[0].mxu0
  %v520 = vadd.f32 0.0, %v519
  %v521 = vpop.f32.mrb[0].mxu0
  %v522 = vpop.f32.mrb[0].mxu0
  %v523 = vadd.f32 0.0, %v522
  %v524 = vpop.f32.mrb[0].mxu0
  %525 = vmatprep.mubr.bf16.mxu0 0
  %526 = vmatmul.mubr.bf16.gmra.mrb[0].mxu0 %v319
  %v527 = vpop.f32.mrb[0].mxu0
  %v528 = vadd.f32 0.0, %v527
  %v529 = vpop.f32.mrb[0].mxu0
  %v530 = vpop.f32.mrb[0].mxu0
  %v531 = vadd.f32 0.0, %v530
  %v532 = vpop.f32.mrb[0].mxu0
  %533 = vmatprep.mubr.bf16.mxu0 0
  %534 = vmatmul.mubr.bf16.gmra.mrb[0].mxu0 %v322
  %v535 = vpop.f32.mrb[0].mxu0
  %v536 = vadd.f32 0.0, %v535
  %v537 = vpop.f32.mrb[0].mxu0
  %v538 = vpop.f32.mrb[0].mxu0
  %v539 = vadd.f32 0.0, %v538
  %v540 = vpop.f32.mrb[0].mxu0
  %541 = vmatprep.mubr.bf16.mxu0 0
  %542 = vmatmul.mubr.bf16.gmra.mrb[0].mxu0 %v325
  %v543 = vpop.f32.mrb[0].mxu0
  %v544 = vadd.f32 0.0, %v543
  %v545 = vpop.f32.mrb[0].mxu0
  %v546 = vpop.f32.mrb[0].mxu0
  %v547 = vadd.f32 0.0, %v546
  %v548 = vpop.f32.mrb[0].mxu0
  %549 = vmatprep.mubr.bf16.mxu0 0
  %550 = vmatmul.mubr.bf16.gmra.mrb[0].mxu0 %v328
  %v551 = vpop.f32.mrb[0].mxu0
  %v552 = vadd.f32 0.0, %v551
  %v553 = vpop.f32.mrb[0].mxu0
  %v554 = vpop.f32.mrb[0].mxu0
  %v555 = vadd.f32 0.0, %v554
  %v556 = vpop.f32.mrb[0].mxu0
  %557 = vmatprep.mubr.bf16.mxu0 0
  %558 = vmatmul.mubr.bf16.gmra.mrb[0].mxu0 %v331
  %v559 = vpop.f32.mrb[0].mxu0
  %v560 = vadd.f32 0.0, %v559
  %v561 = vpop.f32.mrb[0].mxu0
  %v562 = vpop.f32.mrb[0].mxu0
  %v563 = vadd.f32 0.0, %v562
  %v564 = vpop.f32.mrb[0].mxu0
  %565 = vmatprep.mubr.bf16.mxu0 0
  %566 = vmatmul.mubr.bf16.gmra.mrb[0].mxu0 %v334
  %v567 = vpop.f32.mrb[0].mxu0
  %v568 = vadd.f32 0.0, %v567
  %v569 = vpop.f32.mrb[0].mxu0
  %v570 = vpop.f32.mrb[0].mxu0
  %v571 = vadd.f32 0.0, %v570
  %v572 = vpop.f32.mrb[0].mxu0
  %573 = vmatprep.mubr.bf16.mxu0 0
  %574 = vmatmul.mubr.bf16.gmra.mrb[0].mxu0 %v337
  %v575 = vpop.f32.mrb[0].mxu0
  %v576 = vadd.f32 0.0, %v575
  %v577 = vpop.f32.mrb[0].mxu0
  %v578 = vpop.f32.mrb[0].mxu0
  %v579 = vadd.f32 0.0, %v578
  %v580 = vpop.f32.mrb[0].mxu0
  %581 = vmatprep.mubr.bf16.mxu0 0
  %582 = vmatmul.mubr.bf16.gmra.mrb[0].mxu0 %v340
  %v583 = vpop.f32.mrb[0].mxu0
  %v584 = vadd.f32 0.0, %v583
  %v585 = vpop.f32.mrb[0].mxu0
  %v586 = vpop.f32.mrb[0].mxu0
  %v587 = vadd.f32 0.0, %v586
  %v588 = vpop.f32.mrb[0].mxu0
  %589 = vmatprep.mubr.bf16.mxu0 0
  %590 = vmatmul.mubr.bf16.gmra.mrb[0].mxu0 %v343
  %v591 = vpop.f32.mrb[0].mxu0
  %v592 = vadd.f32 0.0, %v591
  %v593 = vpop.f32.mrb[0].mxu0
  %v594 = vpop.f32.mrb[0].mxu0
  %v595 = vadd.f32 0.0, %v594
  %v596 = vpop.f32.mrb[0].mxu0
  %597 = vmatprep.mubr.bf16.mxu0 0
  %598 = vmatmul.mubr.bf16.gmra.mrb[0].mxu0 %v346
  %v599 = vpop.f32.mrb[0].mxu0
  %v600 = vadd.f32 0.0, %v599
  %v601 = vpop.f32.mrb[0].mxu0
  %v602 = vpop.f32.mrb[0].mxu0
  %v603 = vadd.f32 0.0, %v602
  %v604 = vpop.f32.mrb[0].mxu0
  %605 = vmatprep.mubr.bf16.mxu0 0
  %606 = vmatmul.mubr.bf16.gmra.mrb[0].mxu0 %v349
  %v607 = vpop.f32.mrb[0].mxu0
  %v608 = vadd.f32 0.0, %v607
  %v609 = vpop.f32.mrb[0].mxu0
  %v610 = vpop.f32.mrb[0].mxu0
  %v611 = vadd.f32 0.0, %v610
  %v612 = vpop.f32.mrb[0].mxu0
  %613 = vmatprep.mubr.bf16.mxu0 0
  %614 = vmatmul.mubr.bf16.gmra.mrb[0].mxu0 %v352
  %v615 = vpop.f32.mrb[0].mxu0
  %v616 = vadd.f32 0.0, %v615
  %v617 = vpop.f32.mrb[0].mxu0
  %v618 = vpop.f32.mrb[0].mxu0
  %v619 = vadd.f32 0.0, %v618
  %v620 = vpop.f32.mrb[0].mxu0
  %621 = vmatprep.mubr.bf16.mxu0 0
  %622 = vmatmul.mubr.bf16.gmra.mrb[0].mxu0 %v355
  %v623 = vpop.f32.mrb[0].mxu0
  %v624 = vadd.f32 0.0, %v623
  %v625 = vpop.f32.mrb[0].mxu0
  %v626 = vpop.f32.mrb[0].mxu0
  %v627 = vadd.f32 0.0, %v626
  %v628 = vpop.f32.mrb[0].mxu0
  %629 = vmatprep.mubr.bf16.mxu0 0
  %630 = vmatmul.mubr.bf16.gmra.mrb[0].mxu0 %v358
  %v631 = vpop.f32.mrb[0].mxu0
  %v632 = vadd.f32 0.0, %v631
  %v633 = vpop.f32.mrb[0].mxu0
  %v634 = vpop.f32.mrb[0].mxu0
  %v635 = vadd.f32 0.0, %v634
  %v636 = vpop.f32.mrb[0].mxu0
  %637 = vmatprep.mubr.bf16.mxu0 0
  %638 = vmatmul.mubr.bf16.gmra.mrb[0].mxu0 %v361
  %v639 = vpop.f32.mrb[0].mxu0
  %v640 = vadd.f32 0.0, %v639
  %v641 = vpop.f32.mrb[0].mxu0
  %v642 = vpop.f32.mrb[0].mxu0
  %v643 = vadd.f32 0.0, %v642
  %v644 = vpop.f32.mrb[0].mxu0
  %645 = vmatprep.mubr.bf16.mxu0 0
  %646 = vmatmul.mubr.bf16.gmra.mrb[0].mxu0 %v364
  %v647 = vpop.f32.mrb[0].mxu0
  %v648 = vadd.f32 0.0, %v647
  %v649 = vpop.f32.mrb[0].mxu0
  %v650 = vpop.f32.mrb[0].mxu0
  %v651 = vadd.f32 0.0, %v650
  %v652 = vpop.f32.mrb[0].mxu0
  %653 = vmatprep.mubr.bf16.mxu0 0
  %654 = vmatmul.mubr.bf16.gmra.mrb[0].mxu0 %v367
  %v655 = vpop.f32.mrb[0].mxu0
  %v656 = vadd.f32 0.0, %v655
  %v657 = vpop.f32.mrb[0].mxu0
  %v658 = vpop.f32.mrb[0].mxu0
  %v659 = vadd.f32 0.0, %v658
  %v660 = vpop.f32.mrb[0].mxu0
  %661 = vdwg.mxu0
  %vm662 = vcmask 261120
  %663 = vst.msk [vmem:[%s2] sm:$0xff] %vm662, %v408
  %664 = vst.msk [vmem:[%s2 + $0x8] sm:$0xff] %vm662, %v411
  %665 = vst.msk [vmem:[%s2 + $0x10] sm:$0xff] %vm662, %v416
  %666 = vst.msk [vmem:[%s2 + $0x18] sm:$0xff] %vm662, %v419
  %667 = vst.msk [vmem:[%s2 + $0x20] sm:$0xff] %vm662, %v424
  %668 = vst.msk [vmem:[%s2 + $0x28] sm:$0xff] %vm662, %v427
  %669 = vst.msk [vmem:[%s2 + $0x30] sm:$0xff] %vm662, %v432
  %670 = vst.msk [vmem:[%s2 + $0x38] sm:$0xff] %vm662, %v435
  %671 = vst.msk [vmem:[%s2 + $0x40] sm:$0xff] %vm662, %v440
  %672 = vst.msk [vmem:[%s2 + $0x48] sm:$0xff] %vm662, %v443
  %673 = vst.msk [vmem:[%s2 + $0x50] sm:$0xff] %vm662, %v448
  %674 = vst.msk [vmem:[%s2 + $0x58] sm:$0xff] %vm662, %v451
  %675 = vst.msk [vmem:[%s2 + $0x60] sm:$0xff] %vm662, %v456
  %676 = vst.msk [vmem:[%s2 + $0x68] sm:$0xff] %vm662, %v459
  %677 = vst.msk [vmem:[%s2 + $0x70] sm:$0xff] %vm662, %v464
  %678 = vst.msk [vmem:[%s2 + $0x78] sm:$0xff] %vm662, %v467
  %679 = vst.msk [vmem:[%s2 + $0x80] sm:$0xff] %vm662, %v472
  %680 = vst.msk [vmem:[%s2 + $0x88] sm:$0xff] %vm662, %v475
  %681 = vst.msk [vmem:[%s2 + $0x90] sm:$0xff] %vm662, %v480
  %682 = vst.msk [vmem:[%s2 + $0x98] sm:$0xff] %vm662, %v483
  %683 = vst.msk [vmem:[%s2 + $0xa0] sm:$0xff] %vm662, %v488
  %684 = vst.msk [vmem:[%s2 + $0xa8] sm:$0xff] %vm662, %v491
  %685 = vst.msk [vmem:[%s2 + $0xb0] sm:$0xff] %vm662, %v496
  %686 = vst.msk [vmem:[%s2 + $0xb8] sm:$0xff] %vm662, %v499
  %687 = vst.msk [vmem:[%s2 + $0xc0] sm:$0xff] %vm662, %v504
  %688 = vst.msk [vmem:[%s2 + $0xc8] sm:$0xff] %vm662, %v507
  %689 = vst.msk [vmem:[%s2 + $0xd0] sm:$0xff] %vm662, %v512
  %690 = vst.msk [vmem:[%s2 + $0xd8] sm:$0xff] %vm662, %v515
  %691 = vst.msk [vmem:[%s2 + $0xe0] sm:$0xff] %vm662, %v520
  %692 = vst.msk [vmem:[%s2 + $0xe8] sm:$0xff] %vm662, %v523
  %693 = vst.msk [vmem:[%s2 + $0xf0] sm:$0xff] %vm662, %v528
  %694 = vst.msk [vmem:[%s2 + $0xf8] sm:$0xff] %vm662, %v531
  %695 = vst.msk [vmem:[%s2 + $0x100] sm:$0xff] %vm662, %v536
  %696 = vst.msk [vmem:[%s2 + $0x108] sm:$0xff] %vm662, %v539
  %697 = vst.msk [vmem:[%s2 + $0x110] sm:$0xff] %vm662, %v544
  %698 = vst.msk [vmem:[%s2 + $0x118] sm:$0xff] %vm662, %v547
  %699 = vst.msk [vmem:[%s2 + $0x120] sm:$0xff] %vm662, %v552
  %700 = vst.msk [vmem:[%s2 + $0x128] sm:$0xff] %vm662, %v555
  %701 = vst.msk [vmem:[%s2 + $0x130] sm:$0xff] %vm662, %v560
  %702 = vst.msk [vmem:[%s2 + $0x138] sm:$0xff] %vm662, %v563
  %703 = vst.msk [vmem:[%s2 + $0x140] sm:$0xff] %vm662, %v568
  %704 = vst.msk [vmem:[%s2 + $0x148] sm:$0xff] %vm662, %v571
  %705 = vst.msk [vmem:[%s2 + $0x150] sm:$0xff] %vm662, %v576
  %706 = vst.msk [vmem:[%s2 + $0x158] sm:$0xff] %vm662, %v579
  %707 = vst.msk [vmem:[%s2 + $0x160] sm:$0xff] %vm662, %v584
  %708 = vst.msk [vmem:[%s2 + $0x168] sm:$0xff] %vm662, %v587
  %709 = vst.msk [vmem:[%s2 + $0x170] sm:$0xff] %vm662, %v592
  %710 = vst.msk [vmem:[%s2 + $0x178] sm:$0xff] %vm662, %v595
  %711 = vst.msk [vmem:[%s2 + $0x180] sm:$0xff] %vm662, %v600
  %712 = vst.msk [vmem:[%s2 + $0x188] sm:$0xff] %vm662, %v603
  %713 = vst.msk [vmem:[%s2 + $0x190] sm:$0xff] %vm662, %v608
  %714 = vst.msk [vmem:[%s2 + $0x198] sm:$0xff] %vm662, %v611
  %715 = vst.msk [vmem:[%s2 + $0x1a0] sm:$0xff] %vm662, %v616
  %716 = vst.msk [vmem:[%s2 + $0x1a8] sm:$0xff] %vm662, %v619
  %717 = vst.msk [vmem:[%s2 + $0x1b0] sm:$0xff] %vm662, %v624
  %718 = vst.msk [vmem:[%s2 + $0x1b8] sm:$0xff] %vm662, %v627
  %719 = vst.msk [vmem:[%s2 + $0x1c0] sm:$0xff] %vm662, %v632
  %720 = vst.msk [vmem:[%s2 + $0x1c8] sm:$0xff] %vm662, %v635
  %721 = vst.msk [vmem:[%s2 + $0x1d0] sm:$0xff] %vm662, %v640
  %722 = vst.msk [vmem:[%s2 + $0x1d8] sm:$0xff] %vm662, %v643
  %723 = vst.msk [vmem:[%s2 + $0x1e0] sm:$0xff] %vm662, %v648
  %724 = vst.msk [vmem:[%s2 + $0x1e8] sm:$0xff] %vm662, %v651
  %725 = vst.msk [vmem:[%s2 + $0x1f0] sm:$0xff] %vm662, %v656
  %726 = vst.msk [vmem:[%s2 + $0x1f8] sm:$0xff] %vm662, %v659
  // Predicated region
  $region10: #{a_call__.28} parent=0 // pred_check
    _
  $region11: #{a_call__.28} parent=0 // pred_check_branch
    %728 = sbr.rel (0) target = $region13
  $region12: #{a_call__.28} parent=0 // pred_region
    _
  $region13: #{a_call__.28} parent=0 // pred_fallthru
    _
  // Predicated region
  $region14: #{a_call__.28} parent=0 // pred_check
    _
  $region15: #{a_call__.28} parent=0 // pred_check_branch
    %730 = sbr.rel (0) target = $region17
  $region16: #{a_call__.28} parent=0 // pred_region
    _
  $region17: #{a_call__.28} parent=0 // pred_fallthru
    _

// kernel: a_call__.29
$region0: #{a_call__.29}
  #allocation0 [shape = 'u32[]', space=smem, size = 0x4, offset = 0x4, fixed_abs, tag = 'smem constant byte address 0x4 - core index']
  #allocation1 [shape = 'u32[144,128]{1,0:T(1,128)}', space=vmem, size = 0x12000, scoped, tag = 'internal scratch']
  %s0 = inlined_call_operand.vmem [shape: f32[2048,8], index: 0, kind: input, shape index: {}]
  %s1 = inlined_call_operand.vmem [shape: f32[1,8], index: 1, kind: output, shape index: {0}]
  %s2 = inlined_call_operand.vmem [shape: f32[1,8], index: 2, kind: output, shape index: {1}]
  %3 = xla_tuple %s1, %s2
  %s4 = sld [smem:[#allocation0]]
  $region26: #{a_call__.29} parent=0
    _
  %s6 = ssub.s32 1, %s4
  %s7 = scalar_select 0, %s6, %s4
  // Predicated region
  $region2: #{a_call__.29} parent=0 // pred_check
    _
  $region3: #{a_call__.29} parent=0 // pred_check_branch
    %9 = sbr.rel (0) target = $region5
  $region4: #{a_call__.29} parent=0 // pred_region
    _
  $region5: #{a_call__.29} parent=0 // pred_fallthru
    _
  %p10 = scmp.eq.s32.totalorder 0, 0
  // Predicated region
  $region6: #{a_call__.29} parent=0 // pred_check
    %p11 = pneg %p10
  $region7: #{a_call__.29} parent=0 // pred_check_branch
    %13 = sbr.rel (%p11) target = $region9
  $region8: #{a_call__.29} parent=0 // pred_region
    %vm14 = vcmask 57344
    %15 = vst.msk [vmem:[%s1] sm:$0x1] %vm14, 0.0
    %16 = vst.msk [vmem:[%s2] sm:$0x1] %vm14, 0.0
  $region9: #{a_call__.29} parent=0 // pred_fallthru
    _
  %v17 = vld [vmem:[%s0] sm:$0xff]
  %v18 = vld [vmem:[%s0 + $0x8] sm:$0xff]
  %v19 = vld [vmem:[%s0 + $0x10] sm:$0xff]
  %v20 = vld [vmem:[%s0 + $0x18] sm:$0xff]
  %v21 = vld [vmem:[%s0 + $0x20] sm:$0xff]
  %v22 = vld [vmem:[%s0 + $0x28] sm:$0xff]
  %v23 = vld [vmem:[%s0 + $0x30] sm:$0xff]
  %v24 = vld [vmem:[%s0 + $0x38] sm:$0xff]
  %v25 = vld [vmem:[%s0 + $0x40] sm:$0xff]
  %v26 = vld [vmem:[%s0 + $0x48] sm:$0xff]
  %v27 = vld [vmem:[%s0 + $0x50] sm:$0xff]
  %v28 = vld [vmem:[%s0 + $0x58] sm:$0xff]
  %v29 = vld [vmem:[%s0 + $0x60] sm:$0xff]
  %v30 = vld [vmem:[%s0 + $0x68] sm:$0xff]
  %v31 = vld [vmem:[%s0 + $0x70] sm:$0xff]
  %v32 = vld [vmem:[%s0 + $0x78] sm:$0xff]
  %v33 = vld [vmem:[%s0 + $0x80] sm:$0xff]
  %v34 = vld [vmem:[%s0 + $0x88] sm:$0xff]
  %v35 = vld [vmem:[%s0 + $0x90] sm:$0xff]
  %v36 = vld [vmem:[%s0 + $0x98] sm:$0xff]
  %v37 = vld [vmem:[%s0 + $0xa0] sm:$0xff]
  %v38 = vld [vmem:[%s0 + $0xa8] sm:$0xff]
  %v39 = vld [vmem:[%s0 + $0xb0] sm:$0xff]
  %v40 = vld [vmem:[%s0 + $0xb8] sm:$0xff]
  %v41 = vld [vmem:[%s0 + $0xc0] sm:$0xff]
  %v42 = vld [vmem:[%s0 + $0xc8] sm:$0xff]
  %v43 = vld [vmem:[%s0 + $0xd0] sm:$0xff]
  %v44 = vld [vmem:[%s0 + $0xd8] sm:$0xff]
  %v45 = vld [vmem:[%s0 + $0xe0] sm:$0xff]
  %v46 = vld [vmem:[%s0 + $0xe8] sm:$0xff]
  %v47 = vld [vmem:[%s0 + $0xf0] sm:$0xff]
  %v48 = vld [vmem:[%s0 + $0xf8] sm:$0xff]
  %v49 = vld [vmem:[%s0 + $0x100] sm:$0xff]
  %v50 = vld [vmem:[%s0 + $0x108] sm:$0xff]
  %v51 = vld [vmem:[%s0 + $0x110] sm:$0xff]
  %v52 = vld [vmem:[%s0 + $0x118] sm:$0xff]
  %v53 = vld [vmem:[%s0 + $0x120] sm:$0xff]
  %v54 = vld [vmem:[%s0 + $0x128] sm:$0xff]
  %v55 = vld [vmem:[%s0 + $0x130] sm:$0xff]
  %v56 = vld [vmem:[%s0 + $0x138] sm:$0xff]
  %v57 = vld [vmem:[%s0 + $0x140] sm:$0xff]
  %v58 = vld [vmem:[%s0 + $0x148] sm:$0xff]
  %v59 = vld [vmem:[%s0 + $0x150] sm:$0xff]
  %v60 = vld [vmem:[%s0 + $0x158] sm:$0xff]
  %v61 = vld [vmem:[%s0 + $0x160] sm:$0xff]
  %v62 = vld [vmem:[%s0 + $0x168] sm:$0xff]
  %v63 = vld [vmem:[%s0 + $0x170] sm:$0xff]
  %v64 = vld [vmem:[%s0 + $0x178] sm:$0xff]
  %v65 = vld [vmem:[%s0 + $0x180] sm:$0xff]
  %v66 = vld [vmem:[%s0 + $0x188] sm:$0xff]
  %v67 = vld [vmem:[%s0 + $0x190] sm:$0xff]
  %v68 = vld [vmem:[%s0 + $0x198] sm:$0xff]
  %v69 = vld [vmem:[%s0 + $0x1a0] sm:$0xff]
  %v70 = vld [vmem:[%s0 + $0x1a8] sm:$0xff]
  %v71 = vld [vmem:[%s0 + $0x1b0] sm:$0xff]
  %v72 = vld [vmem:[%s0 + $0x1b8] sm:$0xff]
  %v73 = vld [vmem:[%s0 + $0x1c0] sm:$0xff]
  %v74 = vld [vmem:[%s0 + $0x1c8] sm:$0xff]
  %v75 = vld [vmem:[%s0 + $0x1d0] sm:$0xff]
  %v76 = vld [vmem:[%s0 + $0x1d8] sm:$0xff]
  %v77 = vld [vmem:[%s0 + $0x1e0] sm:$0xff]
  %v78 = vld [vmem:[%s0 + $0x1e8] sm:$0xff]
  %v79 = vld [vmem:[%s0 + $0x1f0] sm:$0xff]
  %v80 = vld [vmem:[%s0 + $0x1f8] sm:$0xff]
  %v81 = vld [vmem:[%s0 + $0x200] sm:$0xff]
  %v82 = vld [vmem:[%s0 + $0x208] sm:$0xff]
  %v83 = vld [vmem:[%s0 + $0x210] sm:$0xff]
  %v84 = vld [vmem:[%s0 + $0x218] sm:$0xff]
  %v85 = vld [vmem:[%s0 + $0x220] sm:$0xff]
  %v86 = vld [vmem:[%s0 + $0x228] sm:$0xff]
  %v87 = vld [vmem:[%s0 + $0x230] sm:$0xff]
  %v88 = vld [vmem:[%s0 + $0x238] sm:$0xff]
  %v89 = vld [vmem:[%s0 + $0x240] sm:$0xff]
  %v90 = vld [vmem:[%s0 + $0x248] sm:$0xff]
  %v91 = vld [vmem:[%s0 + $0x250] sm:$0xff]
  %v92 = vld [vmem:[%s0 + $0x258] sm:$0xff]
  %v93 = vld [vmem:[%s0 + $0x260] sm:$0xff]
  %v94 = vld [vmem:[%s0 + $0x268] sm:$0xff]
  %v95 = vld [vmem:[%s0 + $0x270] sm:$0xff]
  %v96 = vld [vmem:[%s0 + $0x278] sm:$0xff]
  %v97 = vld [vmem:[%s0 + $0x280] sm:$0xff]
  %v98 = vld [vmem:[%s0 + $0x288] sm:$0xff]
  %v99 = vld [vmem:[%s0 + $0x290] sm:$0xff]
  %v100 = vld [vmem:[%s0 + $0x298] sm:$0xff]
  %v101 = vld [vmem:[%s0 + $0x2a0] sm:$0xff]
  %v102 = vld [vmem:[%s0 + $0x2a8] sm:$0xff]
  %v103 = vld [vmem:[%s0 + $0x2b0] sm:$0xff]
  %v104 = vld [vmem:[%s0 + $0x2b8] sm:$0xff]
  %v105 = vld [vmem:[%s0 + $0x2c0] sm:$0xff]
  %v106 = vld [vmem:[%s0 + $0x2c8] sm:$0xff]
  %v107 = vld [vmem:[%s0 + $0x2d0] sm:$0xff]
  %v108 = vld [vmem:[%s0 + $0x2d8] sm:$0xff]
  %v109 = vld [vmem:[%s0 + $0x2e0] sm:$0xff]
  %v110 = vld [vmem:[%s0 + $0x2e8] sm:$0xff]
  %v111 = vld [vmem:[%s0 + $0x2f0] sm:$0xff]
  %v112 = vld [vmem:[%s0 + $0x2f8] sm:$0xff]
  %v113 = vld [vmem:[%s0 + $0x300] sm:$0xff]
  %v114 = vld [vmem:[%s0 + $0x308] sm:$0xff]
  %v115 = vld [vmem:[%s0 + $0x310] sm:$0xff]
  %v116 = vld [vmem:[%s0 + $0x318] sm:$0xff]
  %v117 = vld [vmem:[%s0 + $0x320] sm:$0xff]
  %v118 = vld [vmem:[%s0 + $0x328] sm:$0xff]
  %v119 = vld [vmem:[%s0 + $0x330] sm:$0xff]
  %v120 = vld [vmem:[%s0 + $0x338] sm:$0xff]
  %v121 = vld [vmem:[%s0 + $0x340] sm:$0xff]
  %v122 = vld [vmem:[%s0 + $0x348] sm:$0xff]
  %v123 = vld [vmem:[%s0 + $0x350] sm:$0xff]
  %v124 = vld [vmem:[%s0 + $0x358] sm:$0xff]
  %v125 = vld [vmem:[%s0 + $0x360] sm:$0xff]
  %v126 = vld [vmem:[%s0 + $0x368] sm:$0xff]
  %v127 = vld [vmem:[%s0 + $0x370] sm:$0xff]
  %v128 = vld [vmem:[%s0 + $0x378] sm:$0xff]
  %v129 = vld [vmem:[%s0 + $0x380] sm:$0xff]
  %v130 = vld [vmem:[%s0 + $0x388] sm:$0xff]
  %v131 = vld [vmem:[%s0 + $0x390] sm:$0xff]
  %v132 = vld [vmem:[%s0 + $0x398] sm:$0xff]
  %v133 = vld [vmem:[%s0 + $0x3a0] sm:$0xff]
  %v134 = vld [vmem:[%s0 + $0x3a8] sm:$0xff]
  %v135 = vld [vmem:[%s0 + $0x3b0] sm:$0xff]
  %v136 = vld [vmem:[%s0 + $0x3b8] sm:$0xff]
  %v137 = vld [vmem:[%s0 + $0x3c0] sm:$0xff]
  %v138 = vld [vmem:[%s0 + $0x3c8] sm:$0xff]
  %v139 = vld [vmem:[%s0 + $0x3d0] sm:$0xff]
  %v140 = vld [vmem:[%s0 + $0x3d8] sm:$0xff]
  %v141 = vld [vmem:[%s0 + $0x3e0] sm:$0xff]
  %v142 = vld [vmem:[%s0 + $0x3e8] sm:$0xff]
  %v143 = vld [vmem:[%s0 + $0x3f0] sm:$0xff]
  %v144 = vld [vmem:[%s0 + $0x3f8] sm:$0xff]
  %v145 = vld [vmem:[%s0 + $0x400] sm:$0xff]
  %v146 = vld [vmem:[%s0 + $0x408] sm:$0xff]
  %v147 = vld [vmem:[%s0 + $0x410] sm:$0xff]
  %v148 = vld [vmem:[%s0 + $0x418] sm:$0xff]
  %v149 = vld [vmem:[%s0 + $0x420] sm:$0xff]
  %v150 = vld [vmem:[%s0 + $0x428] sm:$0xff]
  %v151 = vld [vmem:[%s0 + $0x430] sm:$0xff]
  %v152 = vld [vmem:[%s0 + $0x438] sm:$0xff]
  %v153 = vld [vmem:[%s0 + $0x440] sm:$0xff]
  %v154 = vld [vmem:[%s0 + $0x448] sm:$0xff]
  %v155 = vld [vmem:[%s0 + $0x450] sm:$0xff]
  %v156 = vld [vmem:[%s0 + $0x458] sm:$0xff]
  %v157 = vld [vmem:[%s0 + $0x460] sm:$0xff]
  %v158 = vld [vmem:[%s0 + $0x468] sm:$0xff]
  %v159 = vld [vmem:[%s0 + $0x470] sm:$0xff]
  %v160 = vld [vmem:[%s0 + $0x478] sm:$0xff]
  %v161 = vld [vmem:[%s0 + $0x480] sm:$0xff]
  %v162 = vld [vmem:[%s0 + $0x488] sm:$0xff]
  %v163 = vld [vmem:[%s0 + $0x490] sm:$0xff]
  %v164 = vld [vmem:[%s0 + $0x498] sm:$0xff]
  %v165 = vld [vmem:[%s0 + $0x4a0] sm:$0xff]
  %v166 = vld [vmem:[%s0 + $0x4a8] sm:$0xff]
  %v167 = vld [vmem:[%s0 + $0x4b0] sm:$0xff]
  %v168 = vld [vmem:[%s0 + $0x4b8] sm:$0xff]
  %v169 = vld [vmem:[%s0 + $0x4c0] sm:$0xff]
  %v170 = vld [vmem:[%s0 + $0x4c8] sm:$0xff]
  %v171 = vld [vmem:[%s0 + $0x4d0] sm:$0xff]
  %v172 = vld [vmem:[%s0 + $0x4d8] sm:$0xff]
  %v173 = vld [vmem:[%s0 + $0x4e0] sm:$0xff]
  %v174 = vld [vmem:[%s0 + $0x4e8] sm:$0xff]
  %v175 = vld [vmem:[%s0 + $0x4f0] sm:$0xff]
  %v176 = vld [vmem:[%s0 + $0x4f8] sm:$0xff]
  %v177 = vld [vmem:[%s0 + $0x500] sm:$0xff]
  %v178 = vld [vmem:[%s0 + $0x508] sm:$0xff]
  %v179 = vld [vmem:[%s0 + $0x510] sm:$0xff]
  %v180 = vld [vmem:[%s0 + $0x518] sm:$0xff]
  %v181 = vld [vmem:[%s0 + $0x520] sm:$0xff]
  %v182 = vld [vmem:[%s0 + $0x528] sm:$0xff]
  %v183 = vld [vmem:[%s0 + $0x530] sm:$0xff]
  %v184 = vld [vmem:[%s0 + $0x538] sm:$0xff]
  %v185 = vld [vmem:[%s0 + $0x540] sm:$0xff]
  %v186 = vld [vmem:[%s0 + $0x548] sm:$0xff]
  %v187 = vld [vmem:[%s0 + $0x550] sm:$0xff]
  %v188 = vld [vmem:[%s0 + $0x558] sm:$0xff]
  %v189 = vld [vmem:[%s0 + $0x560] sm:$0xff]
  %v190 = vld [vmem:[%s0 + $0x568] sm:$0xff]
  %v191 = vld [vmem:[%s0 + $0x570] sm:$0xff]
  %v192 = vld [vmem:[%s0 + $0x578] sm:$0xff]
  %v193 = vld [vmem:[%s0 + $0x580] sm:$0xff]
  %v194 = vld [vmem:[%s0 + $0x588] sm:$0xff]
  %v195 = vld [vmem:[%s0 + $0x590] sm:$0xff]
  %v196 = vld [vmem:[%s0 + $0x598] sm:$0xff]
  %v197 = vld [vmem:[%s0 + $0x5a0] sm:$0xff]
  %v198 = vld [vmem:[%s0 + $0x5a8] sm:$0xff]
  %v199 = vld [vmem:[%s0 + $0x5b0] sm:$0xff]
  %v200 = vld [vmem:[%s0 + $0x5b8] sm:$0xff]
  %v201 = vld [vmem:[%s0 + $0x5c0] sm:$0xff]
  %v202 = vld [vmem:[%s0 + $0x5c8] sm:$0xff]
  %v203 = vld [vmem:[%s0 + $0x5d0] sm:$0xff]
  %v204 = vld [vmem:[%s0 + $0x5d8] sm:$0xff]
  %v205 = vld [vmem:[%s0 + $0x5e0] sm:$0xff]
  %v206 = vld [vmem:[%s0 + $0x5e8] sm:$0xff]
  %v207 = vld [vmem:[%s0 + $0x5f0] sm:$0xff]
  %v208 = vld [vmem:[%s0 + $0x5f8] sm:$0xff]
  %v209 = vld [vmem:[%s0 + $0x600] sm:$0xff]
  %v210 = vld [vmem:[%s0 + $0x608] sm:$0xff]
  %v211 = vld [vmem:[%s0 + $0x610] sm:$0xff]
  %v212 = vld [vmem:[%s0 + $0x618] sm:$0xff]
  %v213 = vld [vmem:[%s0 + $0x620] sm:$0xff]
  %v214 = vld [vmem:[%s0 + $0x628] sm:$0xff]
  %v215 = vld [vmem:[%s0 + $0x630] sm:$0xff]
  %v216 = vld [vmem:[%s0 + $0x638] sm:$0xff]
  %v217 = vld [vmem:[%s0 + $0x640] sm:$0xff]
  %v218 = vld [vmem:[%s0 + $0x648] sm:$0xff]
  %v219 = vld [vmem:[%s0 + $0x650] sm:$0xff]
  %v220 = vld [vmem:[%s0 + $0x658] sm:$0xff]
  %v221 = vld [vmem:[%s0 + $0x660] sm:$0xff]
  %v222 = vld [vmem:[%s0 + $0x668] sm:$0xff]
  %v223 = vld [vmem:[%s0 + $0x670] sm:$0xff]
  %v224 = vld [vmem:[%s0 + $0x678] sm:$0xff]
  %v225 = vld [vmem:[%s0 + $0x680] sm:$0xff]
  %v226 = vld [vmem:[%s0 + $0x688] sm:$0xff]
  %v227 = vld [vmem:[%s0 + $0x690] sm:$0xff]
  %v228 = vld [vmem:[%s0 + $0x698] sm:$0xff]
  %v229 = vld [vmem:[%s0 + $0x6a0] sm:$0xff]
  %v230 = vld [vmem:[%s0 + $0x6a8] sm:$0xff]
  %v231 = vld [vmem:[%s0 + $0x6b0] sm:$0xff]
  %v232 = vld [vmem:[%s0 + $0x6b8] sm:$0xff]
  %v233 = vld [vmem:[%s0 + $0x6c0] sm:$0xff]
  %v234 = vld [vmem:[%s0 + $0x6c8] sm:$0xff]
  %v235 = vld [vmem:[%s0 + $0x6d0] sm:$0xff]
  %v236 = vld [vmem:[%s0 + $0x6d8] sm:$0xff]
  %v237 = vld [vmem:[%s0 + $0x6e0] sm:$0xff]
  %v238 = vld [vmem:[%s0 + $0x6e8] sm:$0xff]
  %v239 = vld [vmem:[%s0 + $0x6f0] sm:$0xff]
  %v240 = vld [vmem:[%s0 + $0x6f8] sm:$0xff]
  %v241 = vld [vmem:[%s0 + $0x700] sm:$0xff]
  %v242 = vld [vmem:[%s0 + $0x708] sm:$0xff]
  %v243 = vld [vmem:[%s0 + $0x710] sm:$0xff]
  %v244 = vld [vmem:[%s0 + $0x718] sm:$0xff]
  %v245 = vld [vmem:[%s0 + $0x720] sm:$0xff]
  %v246 = vld [vmem:[%s0 + $0x728] sm:$0xff]
  %v247 = vld [vmem:[%s0 + $0x730] sm:$0xff]
  %v248 = vld [vmem:[%s0 + $0x738] sm:$0xff]
  %v249 = vld [vmem:[%s0 + $0x740] sm:$0xff]
  %v250 = vld [vmem:[%s0 + $0x748] sm:$0xff]
  %v251 = vld [vmem:[%s0 + $0x750] sm:$0xff]
  %v252 = vld [vmem:[%s0 + $0x758] sm:$0xff]
  %v253 = vld [vmem:[%s0 + $0x760] sm:$0xff]
  %v254 = vld [vmem:[%s0 + $0x768] sm:$0xff]
  %v255 = vld [vmem:[%s0 + $0x770] sm:$0xff]
  %v256 = vld [vmem:[%s0 + $0x778] sm:$0xff]
  %v257 = vld [vmem:[%s0 + $0x780] sm:$0xff]
  %v258 = vld [vmem:[%s0 + $0x788] sm:$0xff]
  %v259 = vld [vmem:[%s0 + $0x790] sm:$0xff]
  %v260 = vld [vmem:[%s0 + $0x798] sm:$0xff]
  %v261 = vld [vmem:[%s0 + $0x7a0] sm:$0xff]
  %v262 = vld [vmem:[%s0 + $0x7a8] sm:$0xff]
  %v263 = vld [vmem:[%s0 + $0x7b0] sm:$0xff]
  %v264 = vld [vmem:[%s0 + $0x7b8] sm:$0xff]
  %v265 = vld [vmem:[%s0 + $0x7c0] sm:$0xff]
  %v266 = vld [vmem:[%s0 + $0x7c8] sm:$0xff]
  %v267 = vld [vmem:[%s0 + $0x7d0] sm:$0xff]
  %v268 = vld [vmem:[%s0 + $0x7d8] sm:$0xff]
  %v269 = vld [vmem:[%s0 + $0x7e0] sm:$0xff]
  %v270 = vld [vmem:[%s0 + $0x7e8] sm:$0xff]
  %v271 = vld [vmem:[%s0 + $0x7f0] sm:$0xff]
  %v272 = vld [vmem:[%s0 + $0x7f8] sm:$0xff]
  %v273 = vld [vmem:[%s1] sm:$0x1]
  %vm274 = vcmask 64512
  %v275 = vsel %vm274, %v17, 0.0
  %v276 = vsel %vm274, %v18, 0.0
  %v277 = vadd.f32 %v275, %v276
  %v278 = vsel %vm274, %v19, 0.0
  %v279 = vadd.f32 %v277, %v278
  %v280 = vsel %vm274, %v20, 0.0
  %v281 = vadd.f32 %v279, %v280
  %v282 = vsel %vm274, %v21, 0.0
  %v283 = vadd.f32 %v281, %v282
  %v284 = vsel %vm274, %v22, 0.0
  %v285 = vadd.f32 %v283, %v284
  %v286 = vsel %vm274, %v23, 0.0
  %v287 = vadd.f32 %v285, %v286
  %v288 = vsel %vm274, %v24, 0.0
  %v289 = vadd.f32 %v287, %v288
  %v290 = vsel %vm274, %v25, 0.0
  %v291 = vadd.f32 %v289, %v290
  %v292 = vsel %vm274, %v26, 0.0
  %v293 = vadd.f32 %v291, %v292
  %v294 = vsel %vm274, %v27, 0.0
  %v295 = vadd.f32 %v293, %v294
  %v296 = vsel %vm274, %v28, 0.0
  %v297 = vadd.f32 %v295, %v296
  %v298 = vsel %vm274, %v29, 0.0
  %v299 = vadd.f32 %v297, %v298
  %v300 = vsel %vm274, %v30, 0.0
  %v301 = vadd.f32 %v299, %v300
  %v302 = vsel %vm274, %v31, 0.0
  %v303 = vadd.f32 %v301, %v302
  %v304 = vsel %vm274, %v32, 0.0
  %v305 = vadd.f32 %v303, %v304
  %v306 = vsel %vm274, %v33, 0.0
  %v307 = vadd.f32 %v305, %v306
  %v308 = vsel %vm274, %v34, 0.0
  %v309 = vadd.f32 %v307, %v308
  %v310 = vsel %vm274, %v35, 0.0
  %v311 = vadd.f32 %v309, %v310
  %v312 = vsel %vm274, %v36, 0.0
  %v313 = vadd.f32 %v311, %v312
  %v314 = vsel %vm274, %v37, 0.0
  %v315 = vadd.f32 %v313, %v314
  %v316 = vsel %vm274, %v38, 0.0
  %v317 = vadd.f32 %v315, %v316
  %v318 = vsel %vm274, %v39, 0.0
  %v319 = vadd.f32 %v317, %v318
  %v320 = vsel %vm274, %v40, 0.0
  %v321 = vadd.f32 %v319, %v320
  %v322 = vsel %vm274, %v41, 0.0
  %v323 = vadd.f32 %v321, %v322
  %v324 = vsel %vm274, %v42, 0.0
  %v325 = vadd.f32 %v323, %v324
  %v326 = vsel %vm274, %v43, 0.0
  %v327 = vadd.f32 %v325, %v326
  %v328 = vsel %vm274, %v44, 0.0
  %v329 = vadd.f32 %v327, %v328
  %v330 = vsel %vm274, %v45, 0.0
  %v331 = vadd.f32 %v329, %v330
  %v332 = vsel %vm274, %v46, 0.0
  %v333 = vadd.f32 %v331, %v332
  %v334 = vsel %vm274, %v47, 0.0
  %v335 = vadd.f32 %v333, %v334
  %v336 = vsel %vm274, %v48, 0.0
  %v337 = vadd.f32 %v335, %v336
  %v338 = vsel %vm274, %v49, 0.0
  %v339 = vadd.f32 %v337, %v338
  %v340 = vsel %vm274, %v50, 0.0
  %v341 = vadd.f32 %v339, %v340
  %v342 = vsel %vm274, %v51, 0.0
  %v343 = vadd.f32 %v341, %v342
  %v344 = vsel %vm274, %v52, 0.0
  %v345 = vadd.f32 %v343, %v344
  %v346 = vsel %vm274, %v53, 0.0
  %v347 = vadd.f32 %v345, %v346
  %v348 = vsel %vm274, %v54, 0.0
  %v349 = vadd.f32 %v347, %v348
  %v350 = vsel %vm274, %v55, 0.0
  %v351 = vadd.f32 %v349, %v350
  %v352 = vsel %vm274, %v56, 0.0
  %v353 = vadd.f32 %v351, %v352
  %v354 = vsel %vm274, %v57, 0.0
  %v355 = vadd.f32 %v353, %v354
  %v356 = vsel %vm274, %v58, 0.0
  %v357 = vadd.f32 %v355, %v356
  %v358 = vsel %vm274, %v59, 0.0
  %v359 = vadd.f32 %v357, %v358
  %v360 = vsel %vm274, %v60, 0.0
  %v361 = vadd.f32 %v359, %v360
  %v362 = vsel %vm274, %v61, 0.0
  %v363 = vadd.f32 %v361, %v362
  %v364 = vsel %vm274, %v62, 0.0
  %v365 = vadd.f32 %v363, %v364
  %v366 = vsel %vm274, %v63, 0.0
  %v367 = vadd.f32 %v365, %v366
  %v368 = vsel %vm274, %v64, 0.0
  %v369 = vadd.f32 %v367, %v368
  %v370 = vsel %vm274, %v65, 0.0
  %v371 = vadd.f32 %v369, %v370
  %v372 = vsel %vm274, %v66, 0.0
  %v373 = vadd.f32 %v371, %v372
  %v374 = vsel %vm274, %v67, 0.0
  %v375 = vadd.f32 %v373, %v374
  %v376 = vsel %vm274, %v68, 0.0
  %v377 = vadd.f32 %v375, %v376
  %v378 = vsel %vm274, %v69, 0.0
  %v379 = vadd.f32 %v377, %v378
  %v380 = vsel %vm274, %v70, 0.0
  %v381 = vadd.f32 %v379, %v380
  %v382 = vsel %vm274, %v71, 0.0
  %v383 = vadd.f32 %v381, %v382
  %v384 = vsel %vm274, %v72, 0.0
  %v385 = vadd.f32 %v383, %v384
  %v386 = vsel %vm274, %v73, 0.0
  %v387 = vadd.f32 %v385, %v386
  %v388 = vsel %vm274, %v74, 0.0
  %v389 = vadd.f32 %v387, %v388
  %v390 = vsel %vm274, %v75, 0.0
  %v391 = vadd.f32 %v389, %v390
  %v392 = vsel %vm274, %v76, 0.0
  %v393 = vadd.f32 %v391, %v392
  %v394 = vsel %vm274, %v77, 0.0
  %v395 = vadd.f32 %v393, %v394
  %v396 = vsel %vm274, %v78, 0.0
  %v397 = vadd.f32 %v395, %v396
  %v398 = vsel %vm274, %v79, 0.0
  %v399 = vadd.f32 %v397, %v398
  %v400 = vsel %vm274, %v80, 0.0
  %v401 = vadd.f32 %v399, %v400
  %v402 = vsel %vm274, %v81, 0.0
  %v403 = vadd.f32 %v401, %v402
  %v404 = vsel %vm274, %v82, 0.0
  %v405 = vadd.f32 %v403, %v404
  %v406 = vsel %vm274, %v83, 0.0
  %v407 = vadd.f32 %v405, %v406
  %v408 = vsel %vm274, %v84, 0.0
  %v409 = vadd.f32 %v407, %v408
  %v410 = vsel %vm274, %v85, 0.0
  %v411 = vadd.f32 %v409, %v410
  %v412 = vsel %vm274, %v86, 0.0
  %v413 = vadd.f32 %v411, %v412
  %v414 = vsel %vm274, %v87, 0.0
  %v415 = vadd.f32 %v413, %v414
  %v416 = vsel %vm274, %v88, 0.0
  %v417 = vadd.f32 %v415, %v416
  %v418 = vsel %vm274, %v89, 0.0
  %v419 = vadd.f32 %v417, %v418
  %v420 = vsel %vm274, %v90, 0.0
  %v421 = vadd.f32 %v419, %v420
  %v422 = vsel %vm274, %v91, 0.0
  %v423 = vadd.f32 %v421, %v422
  %v424 = vsel %vm274, %v92, 0.0
  %v425 = vadd.f32 %v423, %v424
  %v426 = vsel %vm274, %v93, 0.0
  %v427 = vadd.f32 %v425, %v426
  %v428 = vsel %vm274, %v94, 0.0
  %v429 = vadd.f32 %v427, %v428
  %v430 = vsel %vm274, %v95, 0.0
  %v431 = vadd.f32 %v429, %v430
  %v432 = vsel %vm274, %v96, 0.0
  %v433 = vadd.f32 %v431, %v432
  %v434 = vsel %vm274, %v97, 0.0
  %v435 = vadd.f32 %v433, %v434
  %v436 = vsel %vm274, %v98, 0.0
  %v437 = vadd.f32 %v435, %v436
  %v438 = vsel %vm274, %v99, 0.0
  %v439 = vadd.f32 %v437, %v438
  %v440 = vsel %vm274, %v100, 0.0
  %v441 = vadd.f32 %v439, %v440
  %v442 = vsel %vm274, %v101, 0.0
  %v443 = vadd.f32 %v441, %v442
  %v444 = vsel %vm274, %v102, 0.0
  %v445 = vadd.f32 %v443, %v444
  %v446 = vsel %vm274, %v103, 0.0
  %v447 = vadd.f32 %v445, %v446
  %v448 = vsel %vm274, %v104, 0.0
  %v449 = vadd.f32 %v447, %v448
  %v450 = vsel %vm274, %v105, 0.0
  %v451 = vadd.f32 %v449, %v450
  %v452 = vsel %vm274, %v106, 0.0
  %v453 = vadd.f32 %v451, %v452
  %v454 = vsel %vm274, %v107, 0.0
  %v455 = vadd.f32 %v453, %v454
  %v456 = vsel %vm274, %v108, 0.0
  %v457 = vadd.f32 %v455, %v456
  %v458 = vsel %vm274, %v109, 0.0
  %v459 = vadd.f32 %v457, %v458
  %v460 = vsel %vm274, %v110, 0.0
  %v461 = vadd.f32 %v459, %v460
  %v462 = vsel %vm274, %v111, 0.0
  %v463 = vadd.f32 %v461, %v462
  %v464 = vsel %vm274, %v112, 0.0
  %v465 = vadd.f32 %v463, %v464
  %v466 = vsel %vm274, %v113, 0.0
  %v467 = vadd.f32 %v465, %v466
  %v468 = vsel %vm274, %v114, 0.0
  %v469 = vadd.f32 %v467, %v468
  %v470 = vsel %vm274, %v115, 0.0
  %v471 = vadd.f32 %v469, %v470
  %v472 = vsel %vm274, %v116, 0.0
  %v473 = vadd.f32 %v471, %v472
  %v474 = vsel %vm274, %v117, 0.0
  %v475 = vadd.f32 %v473, %v474
  %v476 = vsel %vm274, %v118, 0.0
  %v477 = vadd.f32 %v475, %v476
  %v478 = vsel %vm274, %v119, 0.0
  %v479 = vadd.f32 %v477, %v478
  %v480 = vsel %vm274, %v120, 0.0
  %v481 = vadd.f32 %v479, %v480
  %v482 = vsel %vm274, %v121, 0.0
  %v483 = vadd.f32 %v481, %v482
  %v484 = vsel %vm274, %v122, 0.0
  %v485 = vadd.f32 %v483, %v484
  %v486 = vsel %vm274, %v123, 0.0
  %v487 = vadd.f32 %v485, %v486
  %v488 = vsel %vm274, %v124, 0.0
  %v489 = vadd.f32 %v487, %v488
  %v490 = vsel %vm274, %v125, 0.0
  %v491 = vadd.f32 %v489, %v490
  %v492 = vsel %vm274, %v126, 0.0
  %v493 = vadd.f32 %v491, %v492
  %v494 = vsel %vm274, %v127, 0.0
  %v495 = vadd.f32 %v493, %v494
  %v496 = vsel %vm274, %v128, 0.0
  %v497 = vadd.f32 %v495, %v496
  %v498 = vsel %vm274, %v129, 0.0
  %v499 = vadd.f32 %v497, %v498
  %v500 = vsel %vm274, %v130, 0.0
  %v501 = vadd.f32 %v499, %v500
  %v502 = vsel %vm274, %v131, 0.0
  %v503 = vadd.f32 %v501, %v502
  %v504 = vsel %vm274, %v132, 0.0
  %v505 = vadd.f32 %v503, %v504
  %v506 = vsel %vm274, %v133, 0.0
  %v507 = vadd.f32 %v505, %v506
  %v508 = vsel %vm274, %v134, 0.0
  %v509 = vadd.f32 %v507, %v508
  %v510 = vsel %vm274, %v135, 0.0
  %v511 = vadd.f32 %v509, %v510
  %v512 = vsel %vm274, %v136, 0.0
  %v513 = vadd.f32 %v511, %v512
  %v514 = vsel %vm274, %v137, 0.0
  %v515 = vadd.f32 %v513, %v514
  %v516 = vsel %vm274, %v138, 0.0
  %v517 = vadd.f32 %v515, %v516
  %v518 = vsel %vm274, %v139, 0.0
  %v519 = vadd.f32 %v517, %v518
  %v520 = vsel %vm274, %v140, 0.0
  %v521 = vadd.f32 %v519, %v520
  %v522 = vsel %vm274, %v141, 0.0
  %v523 = vadd.f32 %v521, %v522
  %v524 = vsel %vm274, %v142, 0.0
  %v525 = vadd.f32 %v523, %v524
  %v526 = vsel %vm274, %v143, 0.0
  %v527 = vadd.f32 %v525, %v526
  %v528 = vsel %vm274, %v144, 0.0
  %v529 = vadd.f32 %v527, %v528
  %v530 = vsel %vm274, %v145, 0.0
  %v531 = vadd.f32 %v529, %v530
  %v532 = vsel %vm274, %v146, 0.0
  %v533 = vadd.f32 %v531, %v532
  %v534 = vsel %vm274, %v147, 0.0
  %v535 = vadd.f32 %v533, %v534
  %v536 = vsel %vm274, %v148, 0.0
  %v537 = vadd.f32 %v535, %v536
  %v538 = vsel %vm274, %v149, 0.0
  %v539 = vadd.f32 %v537, %v538
  %v540 = vsel %vm274, %v150, 0.0
  %v541 = vadd.f32 %v539, %v540
  %v542 = vsel %vm274, %v151, 0.0
  %v543 = vadd.f32 %v541, %v542
  %v544 = vsel %vm274, %v152, 0.0
  %v545 = vadd.f32 %v543, %v544
  %v546 = vsel %vm274, %v153, 0.0
  %v547 = vadd.f32 %v545, %v546
  %v548 = vsel %vm274, %v154, 0.0
  %v549 = vadd.f32 %v547, %v548
  %v550 = vsel %vm274, %v155, 0.0
  %v551 = vadd.f32 %v549, %v550
  %v552 = vsel %vm274, %v156, 0.0
  %v553 = vadd.f32 %v551, %v552
  %v554 = vsel %vm274, %v157, 0.0
  %v555 = vadd.f32 %v553, %v554
  %v556 = vsel %vm274, %v158, 0.0
  %v557 = vadd.f32 %v555, %v556
  %v558 = vsel %vm274, %v159, 0.0
  %v559 = vadd.f32 %v557, %v558
  %v560 = vsel %vm274, %v160, 0.0
  %v561 = vadd.f32 %v559, %v560
  %v562 = vsel %vm274, %v161, 0.0
  %v563 = vadd.f32 %v561, %v562
  %v564 = vsel %vm274, %v162, 0.0
  %v565 = vadd.f32 %v563, %v564
  %v566 = vsel %vm274, %v163, 0.0
  %v567 = vadd.f32 %v565, %v566
  %v568 = vsel %vm274, %v164, 0.0
  %v569 = vadd.f32 %v567, %v568
  %v570 = vsel %vm274, %v165, 0.0
  %v571 = vadd.f32 %v569, %v570
  %v572 = vsel %vm274, %v166, 0.0
  %v573 = vadd.f32 %v571, %v572
  %v574 = vsel %vm274, %v167, 0.0
  %v575 = vadd.f32 %v573, %v574
  %v576 = vsel %vm274, %v168, 0.0
  %v577 = vadd.f32 %v575, %v576
  %v578 = vsel %vm274, %v169, 0.0
  %v579 = vadd.f32 %v577, %v578
  %v580 = vsel %vm274, %v170, 0.0
  %v581 = vadd.f32 %v579, %v580
  %v582 = vsel %vm274, %v171, 0.0
  %v583 = vadd.f32 %v581, %v582
  %v584 = vsel %vm274, %v172, 0.0
  %v585 = vadd.f32 %v583, %v584
  %v586 = vsel %vm274, %v173, 0.0
  %v587 = vadd.f32 %v585, %v586
  %v588 = vsel %vm274, %v174, 0.0
  %v589 = vadd.f32 %v587, %v588
  %v590 = vsel %vm274, %v175, 0.0
  %v591 = vadd.f32 %v589, %v590
  %v592 = vsel %vm274, %v176, 0.0
  %v593 = vadd.f32 %v591, %v592
  %v594 = vsel %vm274, %v177, 0.0
  %v595 = vadd.f32 %v593, %v594
  %v596 = vsel %vm274, %v178, 0.0
  %v597 = vadd.f32 %v595, %v596
  %v598 = vsel %vm274, %v179, 0.0
  %v599 = vadd.f32 %v597, %v598
  %v600 = vsel %vm274, %v180, 0.0
  %v601 = vadd.f32 %v599, %v600
  %v602 = vsel %vm274, %v181, 0.0
  %v603 = vadd.f32 %v601, %v602
  %v604 = vsel %vm274, %v182, 0.0
  %v605 = vadd.f32 %v603, %v604
  %v606 = vsel %vm274, %v183, 0.0
  %v607 = vadd.f32 %v605, %v606
  %v608 = vsel %vm274, %v184, 0.0
  %v609 = vadd.f32 %v607, %v608
  %v610 = vsel %vm274, %v185, 0.0
  %v611 = vadd.f32 %v609, %v610
  %v612 = vsel %vm274, %v186, 0.0
  %v613 = vadd.f32 %v611, %v612
  %v614 = vsel %vm274, %v187, 0.0
  %v615 = vadd.f32 %v613, %v614
  %v616 = vsel %vm274, %v188, 0.0
  %v617 = vadd.f32 %v615, %v616
  %v618 = vsel %vm274, %v189, 0.0
  %v619 = vadd.f32 %v617, %v618
  %v620 = vsel %vm274, %v190, 0.0
  %v621 = vadd.f32 %v619, %v620
  %v622 = vsel %vm274, %v191, 0.0
  %v623 = vadd.f32 %v621, %v622
  %v624 = vsel %vm274, %v192, 0.0
  %v625 = vadd.f32 %v623, %v624
  %v626 = vsel %vm274, %v193, 0.0
  %v627 = vadd.f32 %v625, %v626
  %v628 = vsel %vm274, %v194, 0.0
  %v629 = vadd.f32 %v627, %v628
  %v630 = vsel %vm274, %v195, 0.0
  %v631 = vadd.f32 %v629, %v630
  %v632 = vsel %vm274, %v196, 0.0
  %v633 = vadd.f32 %v631, %v632
  %v634 = vsel %vm274, %v197, 0.0
  %v635 = vadd.f32 %v633, %v634
  %v636 = vsel %vm274, %v198, 0.0
  %v637 = vadd.f32 %v635, %v636
  %v638 = vsel %vm274, %v199, 0.0
  %v639 = vadd.f32 %v637, %v638
  %v640 = vsel %vm274, %v200, 0.0
  %v641 = vadd.f32 %v639, %v640
  %v642 = vsel %vm274, %v201, 0.0
  %v643 = vadd.f32 %v641, %v642
  %v644 = vsel %vm274, %v202, 0.0
  %v645 = vadd.f32 %v643, %v644
  %v646 = vsel %vm274, %v203, 0.0
  %v647 = vadd.f32 %v645, %v646
  %v648 = vsel %vm274, %v204, 0.0
  %v649 = vadd.f32 %v647, %v648
  %v650 = vsel %vm274, %v205, 0.0
  %v651 = vadd.f32 %v649, %v650
  %v652 = vsel %vm274, %v206, 0.0
  %v653 = vadd.f32 %v651, %v652
  %v654 = vsel %vm274, %v207, 0.0
  %v655 = vadd.f32 %v653, %v654
  %v656 = vsel %vm274, %v208, 0.0
  %v657 = vadd.f32 %v655, %v656
  %v658 = vsel %vm274, %v209, 0.0
  %v659 = vadd.f32 %v657, %v658
  %v660 = vsel %vm274, %v210, 0.0
  %v661 = vadd.f32 %v659, %v660
  %v662 = vsel %vm274, %v211, 0.0
  %v663 = vadd.f32 %v661, %v662
  %v664 = vsel %vm274, %v212, 0.0
  %v665 = vadd.f32 %v663, %v664
  %v666 = vsel %vm274, %v213, 0.0
  %v667 = vadd.f32 %v665, %v666
  %v668 = vsel %vm274, %v214, 0.0
  %v669 = vadd.f32 %v667, %v668
  %v670 = vsel %vm274, %v215, 0.0
  %v671 = vadd.f32 %v669, %v670
  %v672 = vsel %vm274, %v216, 0.0
  %v673 = vadd.f32 %v671, %v672
  %v674 = vsel %vm274, %v217, 0.0
  %v675 = vadd.f32 %v673, %v674
  %v676 = vsel %vm274, %v218, 0.0
  %v677 = vadd.f32 %v675, %v676
  %v678 = vsel %vm274, %v219, 0.0
  %v679 = vadd.f32 %v677, %v678
  %v680 = vsel %vm274, %v220, 0.0
  %v681 = vadd.f32 %v679, %v680
  %v682 = vsel %vm274, %v221, 0.0
  %v683 = vadd.f32 %v681, %v682
  %v684 = vsel %vm274, %v222, 0.0
  %v685 = vadd.f32 %v683, %v684
  %v686 = vsel %vm274, %v223, 0.0
  %v687 = vadd.f32 %v685, %v686
  %v688 = vsel %vm274, %v224, 0.0
  %v689 = vadd.f32 %v687, %v688
  %v690 = vsel %vm274, %v225, 0.0
  %v691 = vadd.f32 %v689, %v690
  %v692 = vsel %vm274, %v226, 0.0
  %v693 = vadd.f32 %v691, %v692
  %v694 = vsel %vm274, %v227, 0.0
  %v695 = vadd.f32 %v693, %v694
  %v696 = vsel %vm274, %v228, 0.0
  %v697 = vadd.f32 %v695, %v696
  %v698 = vsel %vm274, %v229, 0.0
  %v699 = vadd.f32 %v697, %v698
  %v700 = vsel %vm274, %v230, 0.0
  %v701 = vadd.f32 %v699, %v700
  %v702 = vsel %vm274, %v231, 0.0
  %v703 = vadd.f32 %v701, %v702
  %v704 = vsel %vm274, %v232, 0.0
  %v705 = vadd.f32 %v703, %v704
  %v706 = vsel %vm274, %v233, 0.0
  %v707 = vadd.f32 %v705, %v706
  %v708 = vsel %vm274, %v234, 0.0
  %v709 = vadd.f32 %v707, %v708
  %v710 = vsel %vm274, %v235, 0.0
  %v711 = vadd.f32 %v709, %v710
  %v712 = vsel %vm274, %v236, 0.0
  %v713 = vadd.f32 %v711, %v712
  %v714 = vsel %vm274, %v237, 0.0
  %v715 = vadd.f32 %v713, %v714
  %v716 = vsel %vm274, %v238, 0.0
  %v717 = vadd.f32 %v715, %v716
  %v718 = vsel %vm274, %v239, 0.0
  %v719 = vadd.f32 %v717, %v718
  %v720 = vsel %vm274, %v240, 0.0
  %v721 = vadd.f32 %v719, %v720
  %v722 = vsel %vm274, %v241, 0.0
  %v723 = vadd.f32 %v721, %v722
  %v724 = vsel %vm274, %v242, 0.0
  %v725 = vadd.f32 %v723, %v724
  %v726 = vsel %vm274, %v243, 0.0
  %v727 = vadd.f32 %v725, %v726
  %v728 = vsel %vm274, %v244, 0.0
  %v729 = vadd.f32 %v727, %v728
  %v730 = vsel %vm274, %v245, 0.0
  %v731 = vadd.f32 %v729, %v730
  %v732 = vsel %vm274, %v246, 0.0
  %v733 = vadd.f32 %v731, %v732
  %v734 = vsel %vm274, %v247, 0.0
  %v735 = vadd.f32 %v733, %v734
  %v736 = vsel %vm274, %v248, 0.0
  %v737 = vadd.f32 %v735, %v736
  %v738 = vsel %vm274, %v249, 0.0
  %v739 = vadd.f32 %v737, %v738
  %v740 = vsel %vm274, %v250, 0.0
  %v741 = vadd.f32 %v739, %v740
  %v742 = vsel %vm274, %v251, 0.0
  %v743 = vadd.f32 %v741, %v742
  %v744 = vsel %vm274, %v252, 0.0
  %v745 = vadd.f32 %v743, %v744
  %v746 = vsel %vm274, %v253, 0.0
  %v747 = vadd.f32 %v745, %v746
  %v748 = vsel %vm274, %v254, 0.0
  %v749 = vadd.f32 %v747, %v748
  %v750 = vsel %vm274, %v255, 0.0
  %v751 = vadd.f32 %v749, %v750
  %v752 = vsel %vm274, %v256, 0.0
  %v753 = vadd.f32 %v751, %v752
  %v754 = vsel %vm274, %v257, 0.0
  %v755 = vadd.f32 %v753, %v754
  %v756 = vsel %vm274, %v258, 0.0
  %v757 = vadd.f32 %v755, %v756
  %v758 = vsel %vm274, %v259, 0.0
  %v759 = vadd.f32 %v757, %v758
  %v760 = vsel %vm274, %v260, 0.0
  %v761 = vadd.f32 %v759, %v760
  %v762 = vsel %vm274, %v261, 0.0
  %v763 = vadd.f32 %v761, %v762
  %v764 = vsel %vm274, %v262, 0.0
  %v765 = vadd.f32 %v763, %v764
  %v766 = vsel %vm274, %v263, 0.0
  %v767 = vadd.f32 %v765, %v766
  %v768 = vsel %vm274, %v264, 0.0
  %v769 = vadd.f32 %v767, %v768
  %v770 = vsel %vm274, %v265, 0.0
  %v771 = vadd.f32 %v769, %v770
  %v772 = vsel %vm274, %v266, 0.0
  %v773 = vadd.f32 %v771, %v772
  %v774 = vsel %vm274, %v267, 0.0
  %v775 = vadd.f32 %v773, %v774
  %v776 = vsel %vm274, %v268, 0.0
  %v777 = vadd.f32 %v775, %v776
  %v778 = vsel %vm274, %v269, 0.0
  %v779 = vadd.f32 %v777, %v778
  %v780 = vsel %vm274, %v270, 0.0
  %v781 = vadd.f32 %v779, %v780
  %v782 = vsel %vm274, %v271, 0.0
  %v783 = vadd.f32 %v781, %v782
  %v784 = vsel %vm274, %v272, 0.0
  %v785 = vadd.f32 %v783, %v784
  %v786 = vrot.slane %v785, 4
  %v787 = vadd.f32 %v785, %v786
  %v788 = vrot.slane %v787, 2
  %v789 = vadd.f32 %v787, %v788
  %v790 = vrot.slane %v789, 1
  %v791 = vadd.f32 %v789, %v790
  %v792 = vadd.f32 %v273, %v791
  %vm793 = vcmask 57344
  %794 = vst.msk [vmem:[%s1] sm:$0x1] %vm793, %v792
  %v795 = vld [vmem:[%s2] sm:$0x1]
  %v796 = vmul.f32 %v17, %v17
  %v797 = vmul.f32 %v18, %v18
  %v798 = vmul.f32 %v19, %v19
  %v799 = vmul.f32 %v20, %v20
  %v800 = vmul.f32 %v21, %v21
  %v801 = vmul.f32 %v22, %v22
  %v802 = vmul.f32 %v23, %v23
  %v803 = vmul.f32 %v24, %v24
  %v804 = vmul.f32 %v25, %v25
  %v805 = vmul.f32 %v26, %v26
  %v806 = vmul.f32 %v27, %v27
  %v807 = vmul.f32 %v28, %v28
  %v808 = vmul.f32 %v29, %v29
  %v809 = vmul.f32 %v30, %v30
  %v810 = vmul.f32 %v31, %v31
  %v811 = vmul.f32 %v32, %v32
  %v812 = vmul.f32 %v33, %v33
  %v813 = vmul.f32 %v34, %v34
  %v814 = vmul.f32 %v35, %v35
  %v815 = vmul.f32 %v36, %v36
  %v816 = vmul.f32 %v37, %v37
  %v817 = vmul.f32 %v38, %v38
  %v818 = vmul.f32 %v39, %v39
  %v819 = vmul.f32 %v40, %v40
  %v820 = vmul.f32 %v41, %v41
  %v821 = vmul.f32 %v42, %v42
  %v822 = vmul.f32 %v43, %v43
  %v823 = vmul.f32 %v44, %v44
  %v824 = vmul.f32 %v45, %v45
  %v825 = vmul.f32 %v46, %v46
  %v826 = vmul.f32 %v47, %v47
  %v827 = vmul.f32 %v48, %v48
  %v828 = vmul.f32 %v49, %v49
  %v829 = vmul.f32 %v50, %v50
  %v830 = vmul.f32 %v51, %v51
  %v831 = vmul.f32 %v52, %v52
  %v832 = vmul.f32 %v53, %v53
  %v833 = vmul.f32 %v54, %v54
  %v834 = vmul.f32 %v55, %v55
  %v835 = vmul.f32 %v56, %v56
  %v836 = vmul.f32 %v57, %v57
  %v837 = vmul.f32 %v58, %v58
  %v838 = vmul.f32 %v59, %v59
  %v839 = vmul.f32 %v60, %v60
  %v840 = vmul.f32 %v61, %v61
  %v841 = vmul.f32 %v62, %v62
  %v842 = vmul.f32 %v63, %v63
  %v843 = vmul.f32 %v64, %v64
  %v844 = vmul.f32 %v65, %v65
  %v845 = vmul.f32 %v66, %v66
  %v846 = vmul.f32 %v67, %v67
  %v847 = vmul.f32 %v68, %v68
  %v848 = vmul.f32 %v69, %v69
  %v849 = vmul.f32 %v70, %v70
  %v850 = vmul.f32 %v71, %v71
  %v851 = vmul.f32 %v72, %v72
  %v852 = vmul.f32 %v73, %v73
  %v853 = vmul.f32 %v74, %v74
  %v854 = vmul.f32 %v75, %v75
  %v855 = vmul.f32 %v76, %v76
  %v856 = vmul.f32 %v77, %v77
  %v857 = vmul.f32 %v78, %v78
  %v858 = vmul.f32 %v79, %v79
  %v859 = vmul.f32 %v80, %v80
  %v860 = vmul.f32 %v81, %v81
  %v861 = vmul.f32 %v82, %v82
  %v862 = vmul.f32 %v83, %v83
  %v863 = vmul.f32 %v84, %v84
  %v864 = vmul.f32 %v85, %v85
  %v865 = vmul.f32 %v86, %v86
  %v866 = vmul.f32 %v87, %v87
  %v867 = vmul.f32 %v88, %v88
  %v868 = vmul.f32 %v89, %v89
  %v869 = vmul.f32 %v90, %v90
  %v870 = vmul.f32 %v91, %v91
  %v871 = vmul.f32 %v92, %v92
  %v872 = vmul.f32 %v93, %v93
  %v873 = vmul.f32 %v94, %v94
  %v874 = vmul.f32 %v95, %v95
  %v875 = vmul.f32 %v96, %v96
  %v876 = vmul.f32 %v97, %v97
  %v877 = vmul.f32 %v98, %v98
  %v878 = vmul.f32 %v99, %v99
  %v879 = vmul.f32 %v100, %v100
  %v880 = vmul.f32 %v101, %v101
  %v881 = vmul.f32 %v102, %v102
  %v882 = vmul.f32 %v103, %v103
  %v883 = vmul.f32 %v104, %v104
  %v884 = vmul.f32 %v105, %v105
  %v885 = vmul.f32 %v106, %v106
  %v886 = vmul.f32 %v107, %v107
  %v887 = vmul.f32 %v108, %v108
  %v888 = vmul.f32 %v109, %v109
  %v889 = vmul.f32 %v110, %v110
  %v890 = vmul.f32 %v111, %v111
  %v891 = vmul.f32 %v112, %v112
  %v892 = vmul.f32 %v113, %v113
  %v893 = vmul.f32 %v114, %v114
  %v894 = vmul.f32 %v115, %v115
  %v895 = vmul.f32 %v116, %v116
  %v896 = vmul.f32 %v117, %v117
  %v897 = vmul.f32 %v118, %v118
  %v898 = vmul.f32 %v119, %v119
  %v899 = vmul.f32 %v120, %v120
  %v900 = vmul.f32 %v121, %v121
  %v901 = vmul.f32 %v122, %v122
  %v902 = vmul.f32 %v123, %v123
  %v903 = vmul.f32 %v124, %v124
  %v904 = vmul.f32 %v125, %v125
  %v905 = vmul.f32 %v126, %v126
  %v906 = vmul.f32 %v127, %v127
  %v907 = vmul.f32 %v128, %v128
  %v908 = vmul.f32 %v129, %v129
  %v909 = vmul.f32 %v130, %v130
  %v910 = vmul.f32 %v131, %v131
  %v911 = vmul.f32 %v132, %v132
  %v912 = vmul.f32 %v133, %v133
  %v913 = vmul.f32 %v134, %v134
  %v914 = vmul.f32 %v135, %v135
  %v915 = vmul.f32 %v136, %v136
  %v916 = vmul.f32 %v137, %v137
  %v917 = vmul.f32 %v138, %v138
  %v918 = vmul.f32 %v139, %v139
  %v919 = vmul.f32 %v140, %v140
  %v920 = vmul.f32 %v141, %v141
  %v921 = vmul.f32 %v142, %v142
  %v922 = vmul.f32 %v143, %v143
  %v923 = vmul.f32 %v144, %v144
  %v924 = vmul.f32 %v145, %v145
  %v925 = vmul.f32 %v146, %v146
  %v926 = vmul.f32 %v147, %v147
  %v927 = vmul.f32 %v148, %v148
  %v928 = vmul.f32 %v149, %v149
  %v929 = vmul.f32 %v150, %v150
  %v930 = vmul.f32 %v151, %v151
  %v931 = vmul.f32 %v152, %v152
  %v932 = vmul.f32 %v153, %v153
  %v933 = vmul.f32 %v154, %v154
  %v934 = vmul.f32 %v155, %v155
  %v935 = vmul.f32 %v156, %v156
  %v936 = vmul.f32 %v157, %v157
  %v937 = vmul.f32 %v158, %v158
  %v938 = vmul.f32 %v159, %v159
  %v939 = vmul.f32 %v160, %v160
  %v940 = vmul.f32 %v161, %v161
  %v941 = vmul.f32 %v162, %v162
  %v942 = vmul.f32 %v163, %v163
  %v943 = vmul.f32 %v164, %v164
  %v944 = vmul.f32 %v165, %v165
  %v945 = vmul.f32 %v166, %v166
  %v946 = vmul.f32 %v167, %v167
  %v947 = vmul.f32 %v168, %v168
  %v948 = vmul.f32 %v169, %v169
  %v949 = vmul.f32 %v170, %v170
  %v950 = vmul.f32 %v171, %v171
  %v951 = vmul.f32 %v172, %v172
  %v952 = vmul.f32 %v173, %v173
  %v953 = vmul.f32 %v174, %v174
  %v954 = vmul.f32 %v175, %v175
  %v955 = vmul.f32 %v176, %v176
  %v956 = vmul.f32 %v177, %v177
  %v957 = vmul.f32 %v178, %v178
  %v958 = vmul.f32 %v179, %v179
  %v959 = vmul.f32 %v180, %v180
  %v960 = vmul.f32 %v181, %v181
  %v961 = vmul.f32 %v182, %v182
  %v962 = vmul.f32 %v183, %v183
  %v963 = vmul.f32 %v184, %v184
  %v964 = vmul.f32 %v185, %v185
  %v965 = vmul.f32 %v186, %v186
  %v966 = vmul.f32 %v187, %v187
  %v967 = vmul.f32 %v188, %v188
  %v968 = vmul.f32 %v189, %v189
  %v969 = vmul.f32 %v190, %v190
  %v970 = vmul.f32 %v191, %v191
  %v971 = vmul.f32 %v192, %v192
  %v972 = vmul.f32 %v193, %v193
  %v973 = vmul.f32 %v194, %v194
  %v974 = vmul.f32 %v195, %v195
  %v975 = vmul.f32 %v196, %v196
  %v976 = vmul.f32 %v197, %v197
  %v977 = vmul.f32 %v198, %v198
  %v978 = vmul.f32 %v199, %v199
  %v979 = vmul.f32 %v200, %v200
  %v980 = vmul.f32 %v201, %v201
  %v981 = vmul.f32 %v202, %v202
  %v982 = vmul.f32 %v203, %v203
  %v983 = vmul.f32 %v204, %v204
  %v984 = vmul.f32 %v205, %v205
  %v985 = vmul.f32 %v206, %v206
  %v986 = vmul.f32 %v207, %v207
  %v987 = vmul.f32 %v208, %v208
  %v988 = vmul.f32 %v209, %v209
  %v989 = vmul.f32 %v210, %v210
  %v990 = vmul.f32 %v211, %v211
  %v991 = vmul.f32 %v212, %v212
  %v992 = vmul.f32 %v213, %v213
  %v993 = vmul.f32 %v214, %v214
  %v994 = vmul.f32 %v215, %v215
  %v995 = vmul.f32 %v216, %v216
  %v996 = vmul.f32 %v217, %v217
  %v997 = vmul.f32 %v218, %v218
  %v998 = vmul.f32 %v219, %v219
  %v999 = vmul.f32 %v220, %v220
  %v1000 = vmul.f32 %v221, %v221
  %v1001 = vmul.f32 %v222, %v222
  %v1002 = vmul.f32 %v223, %v223
  %v1003 = vmul.f32 %v224, %v224
  %v1004 = vmul.f32 %v225, %v225
  %v1005 = vmul.f32 %v226, %v226
  %v1006 = vmul.f32 %v227, %v227
  %v1007 = vmul.f32 %v228, %v228
  %v1008 = vmul.f32 %v229, %v229
  %v1009 = vmul.f32 %v230, %v230
  %v1010 = vmul.f32 %v231, %v231
  %v1011 = vmul.f32 %v232, %v232
  %v1012 = vmul.f32 %v233, %v233
  %v1013 = vmul.f32 %v234, %v234
  %v1014 = vmul.f32 %v235, %v235
  %v1015 = vmul.f32 %v236, %v236
  %v1016 = vmul.f32 %v237, %v237
  %v1017 = vmul.f32 %v238, %v238
  %v1018 = vmul.f32 %v239, %v239
  %v1019 = vmul.f32 %v240, %v240
  %v1020 = vmul.f32 %v241, %v241
  %v1021 = vmul.f32 %v242, %v242
  %v1022 = vmul.f32 %v243, %v243
  %v1023 = vmul.f32 %v244, %v244
  %v1024 = vmul.f32 %v245, %v245
  %v1025 = vmul.f32 %v246, %v246
  %v1026 = vmul.f32 %v247, %v247
  %v1027 = vmul.f32 %v248, %v248
  %v1028 = vmul.f32 %v249, %v249
  %v1029 = vmul.f32 %v250, %v250
  %v1030 = vmul.f32 %v251, %v251
  %v1031 = vmul.f32 %v252, %v252
  %v1032 = vmul.f32 %v253, %v253
  %v1033 = vmul.f32 %v254, %v254
  %v1034 = vmul.f32 %v255, %v255
  %v1035 = vmul.f32 %v256, %v256
  %v1036 = vmul.f32 %v257, %v257
  %v1037 = vmul.f32 %v258, %v258
  %v1038 = vmul.f32 %v259, %v259
  %v1039 = vmul.f32 %v260, %v260
  %v1040 = vmul.f32 %v261, %v261
  %v1041 = vmul.f32 %v262, %v262
  %v1042 = vmul.f32 %v263, %v263
  %v1043 = vmul.f32 %v264, %v264
  %v1044 = vmul.f32 %v265, %v265
  %v1045 = vmul.f32 %v266, %v266
  %v1046 = vmul.f32 %v267, %v267
  %v1047 = vmul.f32 %v268, %v268
  %v1048 = vmul.f32 %v269, %v269
  %v1049 = vmul.f32 %v270, %v270
  %v1050 = vmul.f32 %v271, %v271
  %v1051 = vmul.f32 %v272, %v272
  %v1052 = vsel %vm274, %v796, 0.0
  %v1053 = vsel %vm274, %v797, 0.0
  %v1054 = vadd.f32 %v1052, %v1053
  %v1055 = vsel %vm274, %v798, 0.0
  %v1056 = vadd.f32 %v1054, %v1055
  %v1057 = vsel %vm274, %v799, 0.0
  %v1058 = vadd.f32 %v1056, %v1057
  %v1059 = vsel %vm274, %v800, 0.0
  %v1060 = vadd.f32 %v1058, %v1059
  %v1061 = vsel %vm274, %v801, 0.0
  %v1062 = vadd.f32 %v1060, %v1061
  %v1063 = vsel %vm274, %v802, 0.0
  %v1064 = vadd.f32 %v1062, %v1063
  %v1065 = vsel %vm274, %v803, 0.0
  %v1066 = vadd.f32 %v1064, %v1065
  %v1067 = vsel %vm274, %v804, 0.0
  %v1068 = vadd.f32 %v1066, %v1067
  %v1069 = vsel %vm274, %v805, 0.0
  %v1070 = vadd.f32 %v1068, %v1069
  %v1071 = vsel %vm274, %v806, 0.0
  %v1072 = vadd.f32 %v1070, %v1071
  %v1073 = vsel %vm274, %v807, 0.0
  %v1074 = vadd.f32 %v1072, %v1073
  %v1075 = vsel %vm274, %v808, 0.0
  %v1076 = vadd.f32 %v1074, %v1075
  %v1077 = vsel %vm274, %v809, 0.0
  %v1078 = vadd.f32 %v1076, %v1077
  %v1079 = vsel %vm274, %v810, 0.0
  %v1080 = vadd.f32 %v1078, %v1079
  %v1081 = vsel %vm274, %v811, 0.0
  %v1082 = vadd.f32 %v1080, %v1081
  %v1083 = vsel %vm274, %v812, 0.0
  %v1084 = vadd.f32 %v1082, %v1083
  %v1085 = vsel %vm274, %v813, 0.0
  %v1086 = vadd.f32 %v1084, %v1085
  %v1087 = vsel %vm274, %v814, 0.0
  %v1088 = vadd.f32 %v1086, %v1087
  %v1089 = vsel %vm274, %v815, 0.0
  %v1090 = vadd.f32 %v1088, %v1089
  %v1091 = vsel %vm274, %v816, 0.0
  %v1092 = vadd.f32 %v1090, %v1091
  %v1093 = vsel %vm274, %v817, 0.0
  %v1094 = vadd.f32 %v1092, %v1093
  %v1095 = vsel %vm274, %v818, 0.0
  %v1096 = vadd.f32 %v1094, %v1095
  %v1097 = vsel %vm274, %v819, 0.0
  %v1098 = vadd.f32 %v1096, %v1097
  %v1099 = vsel %vm274, %v820, 0.0
  %v1100 = vadd.f32 %v1098, %v1099
  %v1101 = vsel %vm274, %v821, 0.0
  %v1102 = vadd.f32 %v1100, %v1101
  %v1103 = vsel %vm274, %v822, 0.0
  %v1104 = vadd.f32 %v1102, %v1103
  %v1105 = vsel %vm274, %v823, 0.0
  %v1106 = vadd.f32 %v1104, %v1105
  %v1107 = vsel %vm274, %v824, 0.0
  %v1108 = vadd.f32 %v1106, %v1107
  %v1109 = vsel %vm274, %v825, 0.0
  %v1110 = vadd.f32 %v1108, %v1109
  %v1111 = vsel %vm274, %v826, 0.0
  %v1112 = vadd.f32 %v1110, %v1111
  %v1113 = vsel %vm274, %v827, 0.0
  %v1114 = vadd.f32 %v1112, %v1113
  %v1115 = vsel %vm274, %v828, 0.0
  %v1116 = vadd.f32 %v1114, %v1115
  %v1117 = vsel %vm274, %v829, 0.0
  %v1118 = vadd.f32 %v1116, %v1117
  %v1119 = vsel %vm274, %v830, 0.0
  %v1120 = vadd.f32 %v1118, %v1119
  %v1121 = vsel %vm274, %v831, 0.0
  %v1122 = vadd.f32 %v1120, %v1121
  %v1123 = vsel %vm274, %v832, 0.0
  %v1124 = vadd.f32 %v1122, %v1123
  %v1125 = vsel %vm274, %v833, 0.0
  %v1126 = vadd.f32 %v1124, %v1125
  %v1127 = vsel %vm274, %v834, 0.0
  %v1128 = vadd.f32 %v1126, %v1127
  %v1129 = vsel %vm274, %v835, 0.0
  %v1130 = vadd.f32 %v1128, %v1129
  %v1131 = vsel %vm274, %v836, 0.0
  %v1132 = vadd.f32 %v1130, %v1131
  %v1133 = vsel %vm274, %v837, 0.0
  %v1134 = vadd.f32 %v1132, %v1133
  %v1135 = vsel %vm274, %v838, 0.0
  %v1136 = vadd.f32 %v1134, %v1135
  %v1137 = vsel %vm274, %v839, 0.0
  %v1138 = vadd.f32 %v1136, %v1137
  %v1139 = vsel %vm274, %v840, 0.0
  %v1140 = vadd.f32 %v1138, %v1139
  %v1141 = vsel %vm274, %v841, 0.0
  %v1142 = vadd.f32 %v1140, %v1141
  %v1143 = vsel %vm274, %v842, 0.0
  %v1144 = vadd.f32 %v1142, %v1143
  %v1145 = vsel %vm274, %v843, 0.0
  %v1146 = vadd.f32 %v1144, %v1145
  %v1147 = vsel %vm274, %v844, 0.0
  %v1148 = vadd.f32 %v1146, %v1147
  %v1149 = vsel %vm274, %v845, 0.0
  %v1150 = vadd.f32 %v1148, %v1149
  %v1151 = vsel %vm274, %v846, 0.0
  %v1152 = vadd.f32 %v1150, %v1151
  %v1153 = vsel %vm274, %v847, 0.0
  %v1154 = vadd.f32 %v1152, %v1153
  %v1155 = vsel %vm274, %v848, 0.0
  %v1156 = vadd.f32 %v1154, %v1155
  %v1157 = vsel %vm274, %v849, 0.0
  %v1158 = vadd.f32 %v1156, %v1157
  %v1159 = vsel %vm274, %v850, 0.0
  %v1160 = vadd.f32 %v1158, %v1159
  %v1161 = vsel %vm274, %v851, 0.0
  %v1162 = vadd.f32 %v1160, %v1161
  %v1163 = vsel %vm274, %v852, 0.0
  %v1164 = vadd.f32 %v1162, %v1163
  %v1165 = vsel %vm274, %v853, 0.0
  %v1166 = vadd.f32 %v1164, %v1165
  %v1167 = vsel %vm274, %v854, 0.0
  %v1168 = vadd.f32 %v1166, %v1167
  %v1169 = vsel %vm274, %v855, 0.0
  %v1170 = vadd.f32 %v1168, %v1169
  %v1171 = vsel %vm274, %v856, 0.0
  %v1172 = vadd.f32 %v1170, %v1171
  %v1173 = vsel %vm274, %v857, 0.0
  %v1174 = vadd.f32 %v1172, %v1173
  %v1175 = vsel %vm274, %v858, 0.0
  %v1176 = vadd.f32 %v1174, %v1175
  %v1177 = vsel %vm274, %v859, 0.0
  %v1178 = vadd.f32 %v1176, %v1177
  %v1179 = vsel %vm274, %v860, 0.0
  %v1180 = vadd.f32 %v1178, %v1179
  %v1181 = vsel %vm274, %v861, 0.0
  %v1182 = vadd.f32 %v1180, %v1181
  %v1183 = vsel %vm274, %v862, 0.0
  %v1184 = vadd.f32 %v1182, %v1183
  %v1185 = vsel %vm274, %v863, 0.0
  %v1186 = vadd.f32 %v1184, %v1185
  %v1187 = vsel %vm274, %v864, 0.0
  %v1188 = vadd.f32 %v1186, %v1187
  %v1189 = vsel %vm274, %v865, 0.0
  %v1190 = vadd.f32 %v1188, %v1189
  %v1191 = vsel %vm274, %v866, 0.0
  %v1192 = vadd.f32 %v1190, %v1191
  %v1193 = vsel %vm274, %v867, 0.0
  %v1194 = vadd.f32 %v1192, %v1193
  %v1195 = vsel %vm274, %v868, 0.0
  %v1196 = vadd.f32 %v1194, %v1195
  %v1197 = vsel %vm274, %v869, 0.0
  %v1198 = vadd.f32 %v1196, %v1197
  %v1199 = vsel %vm274, %v870, 0.0
  %v1200 = vadd.f32 %v1198, %v1199
  %v1201 = vsel %vm274, %v871, 0.0
  %v1202 = vadd.f32 %v1200, %v1201
  %v1203 = vsel %vm274, %v872, 0.0
  %v1204 = vadd.f32 %v1202, %v1203
  %v1205 = vsel %vm274, %v873, 0.0
  %v1206 = vadd.f32 %v1204, %v1205
  %v1207 = vsel %vm274, %v874, 0.0
  %v1208 = vadd.f32 %v1206, %v1207
  %v1209 = vsel %vm274, %v875, 0.0
  %v1210 = vadd.f32 %v1208, %v1209
  %v1211 = vsel %vm274, %v876, 0.0
  %v1212 = vadd.f32 %v1210, %v1211
  %v1213 = vsel %vm274, %v877, 0.0
  %v1214 = vadd.f32 %v1212, %v1213
  %v1215 = vsel %vm274, %v878, 0.0
  %v1216 = vadd.f32 %v1214, %v1215
  %v1217 = vsel %vm274, %v879, 0.0
  %v1218 = vadd.f32 %v1216, %v1217
  %v1219 = vsel %vm274, %v880, 0.0
  %v1220 = vadd.f32 %v1218, %v1219
  %v1221 = vsel %vm274, %v881, 0.0
  %v1222 = vadd.f32 %v1220, %v1221
  %v1223 = vsel %vm274, %v882, 0.0
  %v1224 = vadd.f32 %v1222, %v1223
  %v1225 = vsel %vm274, %v883, 0.0
  %v1226 = vadd.f32 %v1224, %v1225
  %v1227 = vsel %vm274, %v884, 0.0
  %v1228 = vadd.f32 %v1226, %v1227
  %v1229 = vsel %vm274, %v885, 0.0
  %v1230 = vadd.f32 %v1228, %v1229
  %v1231 = vsel %vm274, %v886, 0.0
  %v1232 = vadd.f32 %v1230, %v1231
  %v1233 = vsel %vm274, %v887, 0.0
  %v1234 = vadd.f32 %v1232, %v1233
  %v1235 = vsel %vm274, %v888, 0.0
  %v1236 = vadd.f32 %v1234, %v1235
  %v1237 = vsel %vm274, %v889, 0.0
  %v1238 = vadd.f32 %v1236, %v1237
  %v1239 = vsel %vm274, %v890, 0.0
  %v1240 = vadd.f32 %v1238, %v1239
  %v1241 = vsel %vm274, %v891, 0.0
  %v1242 = vadd.f32 %v1240, %v1241
  %v1243 = vsel %vm274, %v892, 0.0
  %v1244 = vadd.f32 %v1242, %v1243
  %v1245 = vsel %vm274, %v893, 0.0
  %v1246 = vadd.f32 %v1244, %v1245
  %v1247 = vsel %vm274, %v894, 0.0
  %v1248 = vadd.f32 %v1246, %v1247
  %v1249 = vsel %vm274, %v895, 0.0
  %v1250 = vadd.f32 %v1248, %v1249
  %v1251 = vsel %vm274, %v896, 0.0
  %v1252 = vadd.f32 %v1250, %v1251
  %v1253 = vsel %vm274, %v897, 0.0
  %v1254 = vadd.f32 %v1252, %v1253
  %v1255 = vsel %vm274, %v898, 0.0
  %v1256 = vadd.f32 %v1254, %v1255
  %v1257 = vsel %vm274, %v899, 0.0
  %v1258 = vadd.f32 %v1256, %v1257
  %v1259 = vsel %vm274, %v900, 0.0
  %v1260 = vadd.f32 %v1258, %v1259
  %v1261 = vsel %vm274, %v901, 0.0
  %v1262 = vadd.f32 %v1260, %v1261
  %v1263 = vsel %vm274, %v902, 0.0
  %v1264 = vadd.f32 %v1262, %v1263
  %v1265 = vsel %vm274, %v903, 0.0
  %v1266 = vadd.f32 %v1264, %v1265
  %v1267 = vsel %vm274, %v904, 0.0
  %v1268 = vadd.f32 %v1266, %v1267
  %v1269 = vsel %vm274, %v905, 0.0
  %v1270 = vadd.f32 %v1268, %v1269
  %v1271 = vsel %vm274, %v906, 0.0
  %v1272 = vadd.f32 %v1270, %v1271
  %v1273 = vsel %vm274, %v907, 0.0
  %v1274 = vadd.f32 %v1272, %v1273
  %v1275 = vsel %vm274, %v908, 0.0
  %v1276 = vadd.f32 %v1274, %v1275
  %v1277 = vsel %vm274, %v909, 0.0
  %v1278 = vadd.f32 %v1276, %v1277
  %v1279 = vsel %vm274, %v910, 0.0
  %v1280 = vadd.f32 %v1278, %v1279
  %v1281 = vsel %vm274, %v911, 0.0
  %v1282 = vadd.f32 %v1280, %v1281
  %v1283 = vsel %vm274, %v912, 0.0
  %v1284 = vadd.f32 %v1282, %v1283
  %v1285 = vsel %vm274, %v913, 0.0
  %v1286 = vadd.f32 %v1284, %v1285
  %v1287 = vsel %vm274, %v914, 0.0
  %v1288 = vadd.f32 %v1286, %v1287
  %v1289 = vsel %vm274, %v915, 0.0
  %v1290 = vadd.f32 %v1288, %v1289
  %v1291 = vsel %vm274, %v916, 0.0
  %v1292 = vadd.f32 %v1290, %v1291
  %v1293 = vsel %vm274, %v917, 0.0
  %v1294 = vadd.f32 %v1292, %v1293
  %v1295 = vsel %vm274, %v918, 0.0
  %v1296 = vadd.f32 %v1294, %v1295
  %v1297 = vsel %vm274, %v919, 0.0
  %v1298 = vadd.f32 %v1296, %v1297
  %v1299 = vsel %vm274, %v920, 0.0
  %v1300 = vadd.f32 %v1298, %v1299
  %v1301 = vsel %vm274, %v921, 0.0
  %v1302 = vadd.f32 %v1300, %v1301
  %v1303 = vsel %vm274, %v922, 0.0
  %v1304 = vadd.f32 %v1302, %v1303
  %v1305 = vsel %vm274, %v923, 0.0
  %v1306 = vadd.f32 %v1304, %v1305
  %v1307 = vsel %vm274, %v924, 0.0
  %v1308 = vadd.f32 %v1306, %v1307
  %v1309 = vsel %vm274, %v925, 0.0
  %v1310 = vadd.f32 %v1308, %v1309
  %v1311 = vsel %vm274, %v926, 0.0
  %v1312 = vadd.f32 %v1310, %v1311
  %v1313 = vsel %vm274, %v927, 0.0
  %v1314 = vadd.f32 %v1312, %v1313
  %v1315 = vsel %vm274, %v928, 0.0
  %v1316 = vadd.f32 %v1314, %v1315
  %v1317 = vsel %vm274, %v929, 0.0
  %v1318 = vadd.f32 %v1316, %v1317
  %v1319 = vsel %vm274, %v930, 0.0
  %v1320 = vadd.f32 %v1318, %v1319
  %v1321 = vsel %vm274, %v931, 0.0
  %v1322 = vadd.f32 %v1320, %v1321
  %v1323 = vsel %vm274, %v932, 0.0
  %v1324 = vadd.f32 %v1322, %v1323
  %v1325 = vsel %vm274, %v933, 0.0
  %v1326 = vadd.f32 %v1324, %v1325
  %v1327 = vsel %vm274, %v934, 0.0
  %v1328 = vadd.f32 %v1326, %v1327
  %v1329 = vsel %vm274, %v935, 0.0
  %v1330 = vadd.f32 %v1328, %v1329
  %v1331 = vsel %vm274, %v936, 0.0
  %v1332 = vadd.f32 %v1330, %v1331
  %v1333 = vsel %vm274, %v937, 0.0
  %v1334 = vadd.f32 %v1332, %v1333
  %v1335 = vsel %vm274, %v938, 0.0
  %v1336 = vadd.f32 %v1334, %v1335
  %v1337 = vsel %vm274, %v939, 0.0
  %v1338 = vadd.f32 %v1336, %v1337
  %v1339 = vsel %vm274, %v940, 0.0
  %v1340 = vadd.f32 %v1338, %v1339
  %v1341 = vsel %vm274, %v941, 0.0
  %v1342 = vadd.f32 %v1340, %v1341
  %v1343 = vsel %vm274, %v942, 0.0
  %v1344 = vadd.f32 %v1342, %v1343
  %v1345 = vsel %vm274, %v943, 0.0
  %v1346 = vadd.f32 %v1344, %v1345
  %v1347 = vsel %vm274, %v944, 0.0
  %v1348 = vadd.f32 %v1346, %v1347
  %v1349 = vsel %vm274, %v945, 0.0
  %v1350 = vadd.f32 %v1348, %v1349
  %v1351 = vsel %vm274, %v946, 0.0
  %v1352 = vadd.f32 %v1350, %v1351
  %v1353 = vsel %vm274, %v947, 0.0
  %v1354 = vadd.f32 %v1352, %v1353
  %v1355 = vsel %vm274, %v948, 0.0
  %v1356 = vadd.f32 %v1354, %v1355
  %v1357 = vsel %vm274, %v949, 0.0
  %v1358 = vadd.f32 %v1356, %v1357
  %v1359 = vsel %vm274, %v950, 0.0
  %v1360 = vadd.f32 %v1358, %v1359
  %v1361 = vsel %vm274, %v951, 0.0
  %v1362 = vadd.f32 %v1360, %v1361
  %v1363 = vsel %vm274, %v952, 0.0
  %v1364 = vadd.f32 %v1362, %v1363
  %v1365 = vsel %vm274, %v953, 0.0
  %v1366 = vadd.f32 %v1364, %v1365
  %v1367 = vsel %vm274, %v954, 0.0
  %v1368 = vadd.f32 %v1366, %v1367
  %v1369 = vsel %vm274, %v955, 0.0
  %v1370 = vadd.f32 %v1368, %v1369
  %v1371 = vsel %vm274, %v956, 0.0
  %v1372 = vadd.f32 %v1370, %v1371
  %v1373 = vsel %vm274, %v957, 0.0
  %v1374 = vadd.f32 %v1372, %v1373
  %v1375 = vsel %vm274, %v958, 0.0
  %v1376 = vadd.f32 %v1374, %v1375
  %v1377 = vsel %vm274, %v959, 0.0
  %v1378 = vadd.f32 %v1376, %v1377
  %v1379 = vsel %vm274, %v960, 0.0
  %v1380 = vadd.f32 %v1378, %v1379
  %v1381 = vsel %vm274, %v961, 0.0
  %v1382 = vadd.f32 %v1380, %v1381
  %v1383 = vsel %vm274, %v962, 0.0
  %v1384 = vadd.f32 %v1382, %v1383
  %v1385 = vsel %vm274, %v963, 0.0
  %v1386 = vadd.f32 %v1384, %v1385
  %v1387 = vsel %vm274, %v964, 0.0
  %v1388 = vadd.f32 %v1386, %v1387
  %v1389 = vsel %vm274, %v965, 0.0
  %v1390 = vadd.f32 %v1388, %v1389
  %v1391 = vsel %vm274, %v966, 0.0
  %v1392 = vadd.f32 %v1390, %v1391
  %v1393 = vsel %vm274, %v967, 0.0
  %v1394 = vadd.f32 %v1392, %v1393
  %v1395 = vsel %vm274, %v968, 0.0
  %v1396 = vadd.f32 %v1394, %v1395
  %v1397 = vsel %vm274, %v969, 0.0
  %v1398 = vadd.f32 %v1396, %v1397
  %v1399 = vsel %vm274, %v970, 0.0
  %v1400 = vadd.f32 %v1398, %v1399
  %v1401 = vsel %vm274, %v971, 0.0
  %v1402 = vadd.f32 %v1400, %v1401
  %v1403 = vsel %vm274, %v972, 0.0
  %v1404 = vadd.f32 %v1402, %v1403
  %v1405 = vsel %vm274, %v973, 0.0
  %v1406 = vadd.f32 %v1404, %v1405
  %v1407 = vsel %vm274, %v974, 0.0
  %v1408 = vadd.f32 %v1406, %v1407
  %v1409 = vsel %vm274, %v975, 0.0
  %v1410 = vadd.f32 %v1408, %v1409
  %v1411 = vsel %vm274, %v976, 0.0
  %v1412 = vadd.f32 %v1410, %v1411
  %v1413 = vsel %vm274, %v977, 0.0
  %v1414 = vadd.f32 %v1412, %v1413
  %v1415 = vsel %vm274, %v978, 0.0
  %v1416 = vadd.f32 %v1414, %v1415
  %v1417 = vsel %vm274, %v979, 0.0
  %v1418 = vadd.f32 %v1416, %v1417
  %v1419 = vsel %vm274, %v980, 0.0
  %v1420 = vadd.f32 %v1418, %v1419
  %v1421 = vsel %vm274, %v981, 0.0
  %v1422 = vadd.f32 %v1420, %v1421
  %v1423 = vsel %vm274, %v982, 0.0
  %v1424 = vadd.f32 %v1422, %v1423
  %v1425 = vsel %vm274, %v983, 0.0
  %v1426 = vadd.f32 %v1424, %v1425
  %v1427 = vsel %vm274, %v984, 0.0
  %v1428 = vadd.f32 %v1426, %v1427
  %v1429 = vsel %vm274, %v985, 0.0
  %v1430 = vadd.f32 %v1428, %v1429
  %v1431 = vsel %vm274, %v986, 0.0
  %v1432 = vadd.f32 %v1430, %v1431
  %v1433 = vsel %vm274, %v987, 0.0
  %v1434 = vadd.f32 %v1432, %v1433
  %v1435 = vsel %vm274, %v988, 0.0
  %v1436 = vadd.f32 %v1434, %v1435
  %v1437 = vsel %vm274, %v989, 0.0
  %v1438 = vadd.f32 %v1436, %v1437
  %v1439 = vsel %vm274, %v990, 0.0
  %v1440 = vadd.f32 %v1438, %v1439
  %v1441 = vsel %vm274, %v991, 0.0
  %v1442 = vadd.f32 %v1440, %v1441
  %v1443 = vsel %vm274, %v992, 0.0
  %v1444 = vadd.f32 %v1442, %v1443
  %v1445 = vsel %vm274, %v993, 0.0
  %v1446 = vadd.f32 %v1444, %v1445
  %v1447 = vsel %vm274, %v994, 0.0
  %v1448 = vadd.f32 %v1446, %v1447
  %v1449 = vsel %vm274, %v995, 0.0
  %v1450 = vadd.f32 %v1448, %v1449
  %v1451 = vsel %vm274, %v996, 0.0
  %v1452 = vadd.f32 %v1450, %v1451
  %v1453 = vsel %vm274, %v997, 0.0
  %v1454 = vadd.f32 %v1452, %v1453
  %v1455 = vsel %vm274, %v998, 0.0
  %v1456 = vadd.f32 %v1454, %v1455
  %v1457 = vsel %vm274, %v999, 0.0
  %v1458 = vadd.f32 %v1456, %v1457
  %v1459 = vsel %vm274, %v1000, 0.0
  %v1460 = vadd.f32 %v1458, %v1459
  %v1461 = vsel %vm274, %v1001, 0.0
  %v1462 = vadd.f32 %v1460, %v1461
  %v1463 = vsel %vm274, %v1002, 0.0
  %v1464 = vadd.f32 %v1462, %v1463
  %v1465 = vsel %vm274, %v1003, 0.0
  %v1466 = vadd.f32 %v1464, %v1465
  %v1467 = vsel %vm274, %v1004, 0.0
  %v1468 = vadd.f32 %v1466, %v1467
  %v1469 = vsel %vm274, %v1005, 0.0
  %v1470 = vadd.f32 %v1468, %v1469
  %v1471 = vsel %vm274, %v1006, 0.0
  %v1472 = vadd.f32 %v1470, %v1471
  %v1473 = vsel %vm274, %v1007, 0.0
  %v1474 = vadd.f32 %v1472, %v1473
  %v1475 = vsel %vm274, %v1008, 0.0
  %v1476 = vadd.f32 %v1474, %v1475
  %v1477 = vsel %vm274, %v1009, 0.0
  %v1478 = vadd.f32 %v1476, %v1477
  %v1479 = vsel %vm274, %v1010, 0.0
  %v1480 = vadd.f32 %v1478, %v1479
  %v1481 = vsel %vm274, %v1011, 0.0
  %v1482 = vadd.f32 %v1480, %v1481
  %v1483 = vsel %vm274, %v1012, 0.0
  %v1484 = vadd.f32 %v1482, %v1483
  %v1485 = vsel %vm274, %v1013, 0.0
  %v1486 = vadd.f32 %v1484, %v1485
  %v1487 = vsel %vm274, %v1014, 0.0
  %v1488 = vadd.f32 %v1486, %v1487
  %v1489 = vsel %vm274, %v1015, 0.0
  %v1490 = vadd.f32 %v1488, %v1489
  %v1491 = vsel %vm274, %v1016, 0.0
  %v1492 = vadd.f32 %v1490, %v1491
  %v1493 = vsel %vm274, %v1017, 0.0
  %v1494 = vadd.f32 %v1492, %v1493
  %v1495 = vsel %vm274, %v1018, 0.0
  %v1496 = vadd.f32 %v1494, %v1495
  %v1497 = vsel %vm274, %v1019, 0.0
  %v1498 = vadd.f32 %v1496, %v1497
  %v1499 = vsel %vm274, %v1020, 0.0
  %v1500 = vadd.f32 %v1498, %v1499
  %v1501 = vsel %vm274, %v1021, 0.0
  %v1502 = vadd.f32 %v1500, %v1501
  %v1503 = vsel %vm274, %v1022, 0.0
  %v1504 = vadd.f32 %v1502, %v1503
  %v1505 = vsel %vm274, %v1023, 0.0
  %v1506 = vadd.f32 %v1504, %v1505
  %v1507 = vsel %vm274, %v1024, 0.0
  %v1508 = vadd.f32 %v1506, %v1507
  %v1509 = vsel %vm274, %v1025, 0.0
  %v1510 = vadd.f32 %v1508, %v1509
  %v1511 = vsel %vm274, %v1026, 0.0
  %v1512 = vadd.f32 %v1510, %v1511
  %v1513 = vsel %vm274, %v1027, 0.0
  %v1514 = vadd.f32 %v1512, %v1513
  %v1515 = vsel %vm274, %v1028, 0.0
  %v1516 = vadd.f32 %v1514, %v1515
  %v1517 = vsel %vm274, %v1029, 0.0
  %v1518 = vadd.f32 %v1516, %v1517
  %v1519 = vsel %vm274, %v1030, 0.0
  %v1520 = vadd.f32 %v1518, %v1519
  %v1521 = vsel %vm274, %v1031, 0.0
  %v1522 = vadd.f32 %v1520, %v1521
  %v1523 = vsel %vm274, %v1032, 0.0
  %v1524 = vadd.f32 %v1522, %v1523
  %v1525 = vsel %vm274, %v1033, 0.0
  %v1526 = vadd.f32 %v1524, %v1525
  %v1527 = vsel %vm274, %v1034, 0.0
  %v1528 = vadd.f32 %v1526, %v1527
  %v1529 = vsel %vm274, %v1035, 0.0
  %v1530 = vadd.f32 %v1528, %v1529
  %v1531 = vsel %vm274, %v1036, 0.0
  %v1532 = vadd.f32 %v1530, %v1531
  %v1533 = vsel %vm274, %v1037, 0.0
  %v1534 = vadd.f32 %v1532, %v1533
  %v1535 = vsel %vm274, %v1038, 0.0
  %v1536 = vadd.f32 %v1534, %v1535
  %v1537 = vsel %vm274, %v1039, 0.0
  %v1538 = vadd.f32 %v1536, %v1537
  %v1539 = vsel %vm274, %v1040, 0.0
  %v1540 = vadd.f32 %v1538, %v1539
  %v1541 = vsel %vm274, %v1041, 0.0
  %v1542 = vadd.f32 %v1540, %v1541
  %v1543 = vsel %vm274, %v1042, 0.0
  %v1544 = vadd.f32 %v1542, %v1543
  %v1545 = vsel %vm274, %v1043, 0.0
  %v1546 = vadd.f32 %v1544, %v1545
  %v1547 = vsel %vm274, %v1044, 0.0
  %v1548 = vadd.f32 %v1546, %v1547
  %v1549 = vsel %vm274, %v1045, 0.0
  %v1550 = vadd.f32 %v1548, %v1549
  %v1551 = vsel %vm274, %v1046, 0.0
  %v1552 = vadd.f32 %v1550, %v1551
  %v1553 = vsel %vm274, %v1047, 0.0
  %v1554 = vadd.f32 %v1552, %v1553
  %v1555 = vsel %vm274, %v1048, 0.0
  %v1556 = vadd.f32 %v1554, %v1555
  %v1557 = vsel %vm274, %v1049, 0.0
  %v1558 = vadd.f32 %v1556, %v1557
  %v1559 = vsel %vm274, %v1050, 0.0
  %v1560 = vadd.f32 %v1558, %v1559
  %v1561 = vsel %vm274, %v1051, 0.0
  %v1562 = vadd.f32 %v1560, %v1561
  %v1563 = vrot.slane %v1562, 4
  %v1564 = vadd.f32 %v1562, %v1563
  %v1565 = vrot.slane %v1564, 2
  %v1566 = vadd.f32 %v1564, %v1565
  %v1567 = vrot.slane %v1566, 1
  %v1568 = vadd.f32 %v1566, %v1567
  %v1569 = vadd.f32 %v795, %v1568
  %1570 = vst.msk [vmem:[%s2] sm:$0x1] %vm793, %v1569
  // Predicated region
  $region10: #{a_call__.29} parent=0 // pred_check
    _
  $region11: #{a_call__.29} parent=0 // pred_check_branch
    %1572 = sbr.rel (0) target = $region13
  $region12: #{a_call__.29} parent=0 // pred_region
    _
  $region13: #{a_call__.29} parent=0 // pred_fallthru
    _
  // Predicated region
  $region14: #{a_call__.29} parent=0 // pred_check
    _
  $region15: #{a_call__.29} parent=0 // pred_check_branch
    %1574 = sbr.rel (0) target = $region17
  $region16: #{a_call__.29} parent=0 // pred_region
    _
  $region17: #{a_call__.29} parent=0 // pred_fallthru
    _
  // Predicated region
  $region18: #{a_call__.29} parent=0 // pred_check
    _
  $region19: #{a_call__.29} parent=0 // pred_check_branch
    %1576 = sbr.rel (0) target = $region21
  $region20: #{a_call__.29} parent=0 // pred_region
    _
  $region21: #{a_call__.29} parent=0 // pred_fallthru
    _
  // Predicated region
  $region22: #{a_call__.29} parent=0 // pred_check
    _
  $region23: #{a_call__.29} parent=0 // pred_check_branch
    %1578 = sbr.rel (0) target = $region25
  $region24: #{a_call__.29} parent=0 // pred_region
    _
  $region25: #{a_call__.29} parent=0 // pred_fallthru
    _

// kernel: a_call__.30
$region0: #{a_call__.30}
  #allocation0 [shape = 'u32[]', space=smem, size = 0x4, offset = 0x4, fixed_abs, tag = 'smem constant byte address 0x4 - core index']
  #allocation1 [shape = 'u32[144,128]{1,0:T(1,128)}', space=vmem, size = 0x12000, scoped, tag = 'internal scratch']
  %s0 = inlined_call_operand.vmem [shape: f32[2048,8], index: 0, kind: input, shape index: {}]
  %s1 = inlined_call_operand.vmem [shape: f32[1,8], index: 1, kind: input, shape index: {}]
  %s2 = inlined_call_operand.vmem [shape: f32[1,8], index: 2, kind: input, shape index: {}]
  %s3 = inlined_call_operand.vmem [shape: bf16[2048,8], index: 3, kind: output, shape index: {}]
  %s4 = sld [smem:[#allocation0]]
  $region22: #{a_call__.30} parent=0
    _
  %s6 = ssub.s32 1, %s4
  %s7 = scalar_select 0, %s6, %s4
  // Predicated region
  $region2: #{a_call__.30} parent=0 // pred_check
    _
  $region3: #{a_call__.30} parent=0 // pred_check_branch
    %9 = sbr.rel (0) target = $region5
  $region4: #{a_call__.30} parent=0 // pred_region
    _
  $region5: #{a_call__.30} parent=0 // pred_fallthru
    _
  // Predicated region
  $region6: #{a_call__.30} parent=0 // pred_check
    _
  $region7: #{a_call__.30} parent=0 // pred_check_branch
    %11 = sbr.rel (0) target = $region9
  $region8: #{a_call__.30} parent=0 // pred_region
    _
  $region9: #{a_call__.30} parent=0 // pred_fallthru
    _
  // Predicated region
  $region10: #{a_call__.30} parent=0 // pred_check
    _
  $region11: #{a_call__.30} parent=0 // pred_check_branch
    %13 = sbr.rel (0) target = $region13
  $region12: #{a_call__.30} parent=0 // pred_region
    _
  $region13: #{a_call__.30} parent=0 // pred_fallthru
    _
  %v14 = vld [vmem:[%s0] sm:$0xff]
  %v15 = vld [vmem:[%s0 + $0x8] sm:$0xff]
  %v16 = vld [vmem:[%s0 + $0x10] sm:$0xff]
  %v17 = vld [vmem:[%s0 + $0x18] sm:$0xff]
  %v18 = vld [vmem:[%s0 + $0x20] sm:$0xff]
  %v19 = vld [vmem:[%s0 + $0x28] sm:$0xff]
  %v20 = vld [vmem:[%s0 + $0x30] sm:$0xff]
  %v21 = vld [vmem:[%s0 + $0x38] sm:$0xff]
  %v22 = vld [vmem:[%s0 + $0x40] sm:$0xff]
  %v23 = vld [vmem:[%s0 + $0x48] sm:$0xff]
  %v24 = vld [vmem:[%s0 + $0x50] sm:$0xff]
  %v25 = vld [vmem:[%s0 + $0x58] sm:$0xff]
  %v26 = vld [vmem:[%s0 + $0x60] sm:$0xff]
  %v27 = vld [vmem:[%s0 + $0x68] sm:$0xff]
  %v28 = vld [vmem:[%s0 + $0x70] sm:$0xff]
  %v29 = vld [vmem:[%s0 + $0x78] sm:$0xff]
  %v30 = vld [vmem:[%s0 + $0x80] sm:$0xff]
  %v31 = vld [vmem:[%s0 + $0x88] sm:$0xff]
  %v32 = vld [vmem:[%s0 + $0x90] sm:$0xff]
  %v33 = vld [vmem:[%s0 + $0x98] sm:$0xff]
  %v34 = vld [vmem:[%s0 + $0xa0] sm:$0xff]
  %v35 = vld [vmem:[%s0 + $0xa8] sm:$0xff]
  %v36 = vld [vmem:[%s0 + $0xb0] sm:$0xff]
  %v37 = vld [vmem:[%s0 + $0xb8] sm:$0xff]
  %v38 = vld [vmem:[%s0 + $0xc0] sm:$0xff]
  %v39 = vld [vmem:[%s0 + $0xc8] sm:$0xff]
  %v40 = vld [vmem:[%s0 + $0xd0] sm:$0xff]
  %v41 = vld [vmem:[%s0 + $0xd8] sm:$0xff]
  %v42 = vld [vmem:[%s0 + $0xe0] sm:$0xff]
  %v43 = vld [vmem:[%s0 + $0xe8] sm:$0xff]
  %v44 = vld [vmem:[%s0 + $0xf0] sm:$0xff]
  %v45 = vld [vmem:[%s0 + $0xf8] sm:$0xff]
  %v46 = vld [vmem:[%s0 + $0x100] sm:$0xff]
  %v47 = vld [vmem:[%s0 + $0x108] sm:$0xff]
  %v48 = vld [vmem:[%s0 + $0x110] sm:$0xff]
  %v49 = vld [vmem:[%s0 + $0x118] sm:$0xff]
  %v50 = vld [vmem:[%s0 + $0x120] sm:$0xff]
  %v51 = vld [vmem:[%s0 + $0x128] sm:$0xff]
  %v52 = vld [vmem:[%s0 + $0x130] sm:$0xff]
  %v53 = vld [vmem:[%s0 + $0x138] sm:$0xff]
  %v54 = vld [vmem:[%s0 + $0x140] sm:$0xff]
  %v55 = vld [vmem:[%s0 + $0x148] sm:$0xff]
  %v56 = vld [vmem:[%s0 + $0x150] sm:$0xff]
  %v57 = vld [vmem:[%s0 + $0x158] sm:$0xff]
  %v58 = vld [vmem:[%s0 + $0x160] sm:$0xff]
  %v59 = vld [vmem:[%s0 + $0x168] sm:$0xff]
  %v60 = vld [vmem:[%s0 + $0x170] sm:$0xff]
  %v61 = vld [vmem:[%s0 + $0x178] sm:$0xff]
  %v62 = vld [vmem:[%s0 + $0x180] sm:$0xff]
  %v63 = vld [vmem:[%s0 + $0x188] sm:$0xff]
  %v64 = vld [vmem:[%s0 + $0x190] sm:$0xff]
  %v65 = vld [vmem:[%s0 + $0x198] sm:$0xff]
  %v66 = vld [vmem:[%s0 + $0x1a0] sm:$0xff]
  %v67 = vld [vmem:[%s0 + $0x1a8] sm:$0xff]
  %v68 = vld [vmem:[%s0 + $0x1b0] sm:$0xff]
  %v69 = vld [vmem:[%s0 + $0x1b8] sm:$0xff]
  %v70 = vld [vmem:[%s0 + $0x1c0] sm:$0xff]
  %v71 = vld [vmem:[%s0 + $0x1c8] sm:$0xff]
  %v72 = vld [vmem:[%s0 + $0x1d0] sm:$0xff]
  %v73 = vld [vmem:[%s0 + $0x1d8] sm:$0xff]
  %v74 = vld [vmem:[%s0 + $0x1e0] sm:$0xff]
  %v75 = vld [vmem:[%s0 + $0x1e8] sm:$0xff]
  %v76 = vld [vmem:[%s0 + $0x1f0] sm:$0xff]
  %v77 = vld [vmem:[%s0 + $0x1f8] sm:$0xff]
  %v78 = vld [vmem:[%s0 + $0x200] sm:$0xff]
  %v79 = vld [vmem:[%s0 + $0x208] sm:$0xff]
  %v80 = vld [vmem:[%s0 + $0x210] sm:$0xff]
  %v81 = vld [vmem:[%s0 + $0x218] sm:$0xff]
  %v82 = vld [vmem:[%s0 + $0x220] sm:$0xff]
  %v83 = vld [vmem:[%s0 + $0x228] sm:$0xff]
  %v84 = vld [vmem:[%s0 + $0x230] sm:$0xff]
  %v85 = vld [vmem:[%s0 + $0x238] sm:$0xff]
  %v86 = vld [vmem:[%s0 + $0x240] sm:$0xff]
  %v87 = vld [vmem:[%s0 + $0x248] sm:$0xff]
  %v88 = vld [vmem:[%s0 + $0x250] sm:$0xff]
  %v89 = vld [vmem:[%s0 + $0x258] sm:$0xff]
  %v90 = vld [vmem:[%s0 + $0x260] sm:$0xff]
  %v91 = vld [vmem:[%s0 + $0x268] sm:$0xff]
  %v92 = vld [vmem:[%s0 + $0x270] sm:$0xff]
  %v93 = vld [vmem:[%s0 + $0x278] sm:$0xff]
  %v94 = vld [vmem:[%s0 + $0x280] sm:$0xff]
  %v95 = vld [vmem:[%s0 + $0x288] sm:$0xff]
  %v96 = vld [vmem:[%s0 + $0x290] sm:$0xff]
  %v97 = vld [vmem:[%s0 + $0x298] sm:$0xff]
  %v98 = vld [vmem:[%s0 + $0x2a0] sm:$0xff]
  %v99 = vld [vmem:[%s0 + $0x2a8] sm:$0xff]
  %v100 = vld [vmem:[%s0 + $0x2b0] sm:$0xff]
  %v101 = vld [vmem:[%s0 + $0x2b8] sm:$0xff]
  %v102 = vld [vmem:[%s0 + $0x2c0] sm:$0xff]
  %v103 = vld [vmem:[%s0 + $0x2c8] sm:$0xff]
  %v104 = vld [vmem:[%s0 + $0x2d0] sm:$0xff]
  %v105 = vld [vmem:[%s0 + $0x2d8] sm:$0xff]
  %v106 = vld [vmem:[%s0 + $0x2e0] sm:$0xff]
  %v107 = vld [vmem:[%s0 + $0x2e8] sm:$0xff]
  %v108 = vld [vmem:[%s0 + $0x2f0] sm:$0xff]
  %v109 = vld [vmem:[%s0 + $0x2f8] sm:$0xff]
  %v110 = vld [vmem:[%s0 + $0x300] sm:$0xff]
  %v111 = vld [vmem:[%s0 + $0x308] sm:$0xff]
  %v112 = vld [vmem:[%s0 + $0x310] sm:$0xff]
  %v113 = vld [vmem:[%s0 + $0x318] sm:$0xff]
  %v114 = vld [vmem:[%s0 + $0x320] sm:$0xff]
  %v115 = vld [vmem:[%s0 + $0x328] sm:$0xff]
  %v116 = vld [vmem:[%s0 + $0x330] sm:$0xff]
  %v117 = vld [vmem:[%s0 + $0x338] sm:$0xff]
  %v118 = vld [vmem:[%s0 + $0x340] sm:$0xff]
  %v119 = vld [vmem:[%s0 + $0x348] sm:$0xff]
  %v120 = vld [vmem:[%s0 + $0x350] sm:$0xff]
  %v121 = vld [vmem:[%s0 + $0x358] sm:$0xff]
  %v122 = vld [vmem:[%s0 + $0x360] sm:$0xff]
  %v123 = vld [vmem:[%s0 + $0x368] sm:$0xff]
  %v124 = vld [vmem:[%s0 + $0x370] sm:$0xff]
  %v125 = vld [vmem:[%s0 + $0x378] sm:$0xff]
  %v126 = vld [vmem:[%s0 + $0x380] sm:$0xff]
  %v127 = vld [vmem:[%s0 + $0x388] sm:$0xff]
  %v128 = vld [vmem:[%s0 + $0x390] sm:$0xff]
  %v129 = vld [vmem:[%s0 + $0x398] sm:$0xff]
  %v130 = vld [vmem:[%s0 + $0x3a0] sm:$0xff]
  %v131 = vld [vmem:[%s0 + $0x3a8] sm:$0xff]
  %v132 = vld [vmem:[%s0 + $0x3b0] sm:$0xff]
  %v133 = vld [vmem:[%s0 + $0x3b8] sm:$0xff]
  %v134 = vld [vmem:[%s0 + $0x3c0] sm:$0xff]
  %v135 = vld [vmem:[%s0 + $0x3c8] sm:$0xff]
  %v136 = vld [vmem:[%s0 + $0x3d0] sm:$0xff]
  %v137 = vld [vmem:[%s0 + $0x3d8] sm:$0xff]
  %v138 = vld [vmem:[%s0 + $0x3e0] sm:$0xff]
  %v139 = vld [vmem:[%s0 + $0x3e8] sm:$0xff]
  %v140 = vld [vmem:[%s0 + $0x3f0] sm:$0xff]
  %v141 = vld [vmem:[%s0 + $0x3f8] sm:$0xff]
  %v142 = vld [vmem:[%s0 + $0x400] sm:$0xff]
  %v143 = vld [vmem:[%s0 + $0x408] sm:$0xff]
  %v144 = vld [vmem:[%s0 + $0x410] sm:$0xff]
  %v145 = vld [vmem:[%s0 + $0x418] sm:$0xff]
  %v146 = vld [vmem:[%s0 + $0x420] sm:$0xff]
  %v147 = vld [vmem:[%s0 + $0x428] sm:$0xff]
  %v148 = vld [vmem:[%s0 + $0x430] sm:$0xff]
  %v149 = vld [vmem:[%s0 + $0x438] sm:$0xff]
  %v150 = vld [vmem:[%s0 + $0x440] sm:$0xff]
  %v151 = vld [vmem:[%s0 + $0x448] sm:$0xff]
  %v152 = vld [vmem:[%s0 + $0x450] sm:$0xff]
  %v153 = vld [vmem:[%s0 + $0x458] sm:$0xff]
  %v154 = vld [vmem:[%s0 + $0x460] sm:$0xff]
  %v155 = vld [vmem:[%s0 + $0x468] sm:$0xff]
  %v156 = vld [vmem:[%s0 + $0x470] sm:$0xff]
  %v157 = vld [vmem:[%s0 + $0x478] sm:$0xff]
  %v158 = vld [vmem:[%s0 + $0x480] sm:$0xff]
  %v159 = vld [vmem:[%s0 + $0x488] sm:$0xff]
  %v160 = vld [vmem:[%s0 + $0x490] sm:$0xff]
  %v161 = vld [vmem:[%s0 + $0x498] sm:$0xff]
  %v162 = vld [vmem:[%s0 + $0x4a0] sm:$0xff]
  %v163 = vld [vmem:[%s0 + $0x4a8] sm:$0xff]
  %v164 = vld [vmem:[%s0 + $0x4b0] sm:$0xff]
  %v165 = vld [vmem:[%s0 + $0x4b8] sm:$0xff]
  %v166 = vld [vmem:[%s0 + $0x4c0] sm:$0xff]
  %v167 = vld [vmem:[%s0 + $0x4c8] sm:$0xff]
  %v168 = vld [vmem:[%s0 + $0x4d0] sm:$0xff]
  %v169 = vld [vmem:[%s0 + $0x4d8] sm:$0xff]
  %v170 = vld [vmem:[%s0 + $0x4e0] sm:$0xff]
  %v171 = vld [vmem:[%s0 + $0x4e8] sm:$0xff]
  %v172 = vld [vmem:[%s0 + $0x4f0] sm:$0xff]
  %v173 = vld [vmem:[%s0 + $0x4f8] sm:$0xff]
  %v174 = vld [vmem:[%s0 + $0x500] sm:$0xff]
  %v175 = vld [vmem:[%s0 + $0x508] sm:$0xff]
  %v176 = vld [vmem:[%s0 + $0x510] sm:$0xff]
  %v177 = vld [vmem:[%s0 + $0x518] sm:$0xff]
  %v178 = vld [vmem:[%s0 + $0x520] sm:$0xff]
  %v179 = vld [vmem:[%s0 + $0x528] sm:$0xff]
  %v180 = vld [vmem:[%s0 + $0x530] sm:$0xff]
  %v181 = vld [vmem:[%s0 + $0x538] sm:$0xff]
  %v182 = vld [vmem:[%s0 + $0x540] sm:$0xff]
  %v183 = vld [vmem:[%s0 + $0x548] sm:$0xff]
  %v184 = vld [vmem:[%s0 + $0x550] sm:$0xff]
  %v185 = vld [vmem:[%s0 + $0x558] sm:$0xff]
  %v186 = vld [vmem:[%s0 + $0x560] sm:$0xff]
  %v187 = vld [vmem:[%s0 + $0x568] sm:$0xff]
  %v188 = vld [vmem:[%s0 + $0x570] sm:$0xff]
  %v189 = vld [vmem:[%s0 + $0x578] sm:$0xff]
  %v190 = vld [vmem:[%s0 + $0x580] sm:$0xff]
  %v191 = vld [vmem:[%s0 + $0x588] sm:$0xff]
  %v192 = vld [vmem:[%s0 + $0x590] sm:$0xff]
  %v193 = vld [vmem:[%s0 + $0x598] sm:$0xff]
  %v194 = vld [vmem:[%s0 + $0x5a0] sm:$0xff]
  %v195 = vld [vmem:[%s0 + $0x5a8] sm:$0xff]
  %v196 = vld [vmem:[%s0 + $0x5b0] sm:$0xff]
  %v197 = vld [vmem:[%s0 + $0x5b8] sm:$0xff]
  %v198 = vld [vmem:[%s0 + $0x5c0] sm:$0xff]
  %v199 = vld [vmem:[%s0 + $0x5c8] sm:$0xff]
  %v200 = vld [vmem:[%s0 + $0x5d0] sm:$0xff]
  %v201 = vld [vmem:[%s0 + $0x5d8] sm:$0xff]
  %v202 = vld [vmem:[%s0 + $0x5e0] sm:$0xff]
  %v203 = vld [vmem:[%s0 + $0x5e8] sm:$0xff]
  %v204 = vld [vmem:[%s0 + $0x5f0] sm:$0xff]
  %v205 = vld [vmem:[%s0 + $0x5f8] sm:$0xff]
  %v206 = vld [vmem:[%s0 + $0x600] sm:$0xff]
  %v207 = vld [vmem:[%s0 + $0x608] sm:$0xff]
  %v208 = vld [vmem:[%s0 + $0x610] sm:$0xff]
  %v209 = vld [vmem:[%s0 + $0x618] sm:$0xff]
  %v210 = vld [vmem:[%s0 + $0x620] sm:$0xff]
  %v211 = vld [vmem:[%s0 + $0x628] sm:$0xff]
  %v212 = vld [vmem:[%s0 + $0x630] sm:$0xff]
  %v213 = vld [vmem:[%s0 + $0x638] sm:$0xff]
  %v214 = vld [vmem:[%s0 + $0x640] sm:$0xff]
  %v215 = vld [vmem:[%s0 + $0x648] sm:$0xff]
  %v216 = vld [vmem:[%s0 + $0x650] sm:$0xff]
  %v217 = vld [vmem:[%s0 + $0x658] sm:$0xff]
  %v218 = vld [vmem:[%s0 + $0x660] sm:$0xff]
  %v219 = vld [vmem:[%s0 + $0x668] sm:$0xff]
  %v220 = vld [vmem:[%s0 + $0x670] sm:$0xff]
  %v221 = vld [vmem:[%s0 + $0x678] sm:$0xff]
  %v222 = vld [vmem:[%s0 + $0x680] sm:$0xff]
  %v223 = vld [vmem:[%s0 + $0x688] sm:$0xff]
  %v224 = vld [vmem:[%s0 + $0x690] sm:$0xff]
  %v225 = vld [vmem:[%s0 + $0x698] sm:$0xff]
  %v226 = vld [vmem:[%s0 + $0x6a0] sm:$0xff]
  %v227 = vld [vmem:[%s0 + $0x6a8] sm:$0xff]
  %v228 = vld [vmem:[%s0 + $0x6b0] sm:$0xff]
  %v229 = vld [vmem:[%s0 + $0x6b8] sm:$0xff]
  %v230 = vld [vmem:[%s0 + $0x6c0] sm:$0xff]
  %v231 = vld [vmem:[%s0 + $0x6c8] sm:$0xff]
  %v232 = vld [vmem:[%s0 + $0x6d0] sm:$0xff]
  %v233 = vld [vmem:[%s0 + $0x6d8] sm:$0xff]
  %v234 = vld [vmem:[%s0 + $0x6e0] sm:$0xff]
  %v235 = vld [vmem:[%s0 + $0x6e8] sm:$0xff]
  %v236 = vld [vmem:[%s0 + $0x6f0] sm:$0xff]
  %v237 = vld [vmem:[%s0 + $0x6f8] sm:$0xff]
  %v238 = vld [vmem:[%s0 + $0x700] sm:$0xff]
  %v239 = vld [vmem:[%s0 + $0x708] sm:$0xff]
  %v240 = vld [vmem:[%s0 + $0x710] sm:$0xff]
  %v241 = vld [vmem:[%s0 + $0x718] sm:$0xff]
  %v242 = vld [vmem:[%s0 + $0x720] sm:$0xff]
  %v243 = vld [vmem:[%s0 + $0x728] sm:$0xff]
  %v244 = vld [vmem:[%s0 + $0x730] sm:$0xff]
  %v245 = vld [vmem:[%s0 + $0x738] sm:$0xff]
  %v246 = vld [vmem:[%s0 + $0x740] sm:$0xff]
  %v247 = vld [vmem:[%s0 + $0x748] sm:$0xff]
  %v248 = vld [vmem:[%s0 + $0x750] sm:$0xff]
  %v249 = vld [vmem:[%s0 + $0x758] sm:$0xff]
  %v250 = vld [vmem:[%s0 + $0x760] sm:$0xff]
  %v251 = vld [vmem:[%s0 + $0x768] sm:$0xff]
  %v252 = vld [vmem:[%s0 + $0x770] sm:$0xff]
  %v253 = vld [vmem:[%s0 + $0x778] sm:$0xff]
  %v254 = vld [vmem:[%s0 + $0x780] sm:$0xff]
  %v255 = vld [vmem:[%s0 + $0x788] sm:$0xff]
  %v256 = vld [vmem:[%s0 + $0x790] sm:$0xff]
  %v257 = vld [vmem:[%s0 + $0x798] sm:$0xff]
  %v258 = vld [vmem:[%s0 + $0x7a0] sm:$0xff]
  %v259 = vld [vmem:[%s0 + $0x7a8] sm:$0xff]
  %v260 = vld [vmem:[%s0 + $0x7b0] sm:$0xff]
  %v261 = vld [vmem:[%s0 + $0x7b8] sm:$0xff]
  %v262 = vld [vmem:[%s0 + $0x7c0] sm:$0xff]
  %v263 = vld [vmem:[%s0 + $0x7c8] sm:$0xff]
  %v264 = vld [vmem:[%s0 + $0x7d0] sm:$0xff]
  %v265 = vld [vmem:[%s0 + $0x7d8] sm:$0xff]
  %v266 = vld [vmem:[%s0 + $0x7e0] sm:$0xff]
  %v267 = vld [vmem:[%s0 + $0x7e8] sm:$0xff]
  %v268 = vld [vmem:[%s0 + $0x7f0] sm:$0xff]
  %v269 = vld [vmem:[%s0 + $0x7f8] sm:$0xff]
  %v270 = vld [vmem:[%s1] sm:$0x1]
  %v272 = vlaneseq
  %v273 = vshrl.u32 %v272, 7
  %v274 = vsub.s32 0, %v273
  %v275 = vrot.slane %v270, %v274
  %v277 = vmul.f32 %v14, %v275
  %v278 = vmul.f32 %v15, %v275
  %v279 = vmul.f32 %v16, %v275
  %v280 = vmul.f32 %v17, %v275
  %v281 = vmul.f32 %v18, %v275
  %v282 = vmul.f32 %v19, %v275
  %v283 = vmul.f32 %v20, %v275
  %v284 = vmul.f32 %v21, %v275
  %v285 = vmul.f32 %v22, %v275
  %v286 = vmul.f32 %v23, %v275
  %v287 = vmul.f32 %v24, %v275
  %v288 = vmul.f32 %v25, %v275
  %v289 = vmul.f32 %v26, %v275
  %v290 = vmul.f32 %v27, %v275
  %v291 = vmul.f32 %v28, %v275
  %v292 = vmul.f32 %v29, %v275
  %v293 = vmul.f32 %v30, %v275
  %v294 = vmul.f32 %v31, %v275
  %v295 = vmul.f32 %v32, %v275
  %v296 = vmul.f32 %v33, %v275
  %v297 = vmul.f32 %v34, %v275
  %v298 = vmul.f32 %v35, %v275
  %v299 = vmul.f32 %v36, %v275
  %v300 = vmul.f32 %v37, %v275
  %v301 = vmul.f32 %v38, %v275
  %v302 = vmul.f32 %v39, %v275
  %v303 = vmul.f32 %v40, %v275
  %v304 = vmul.f32 %v41, %v275
  %v305 = vmul.f32 %v42, %v275
  %v306 = vmul.f32 %v43, %v275
  %v307 = vmul.f32 %v44, %v275
  %v308 = vmul.f32 %v45, %v275
  %v309 = vmul.f32 %v46, %v275
  %v310 = vmul.f32 %v47, %v275
  %v311 = vmul.f32 %v48, %v275
  %v312 = vmul.f32 %v49, %v275
  %v313 = vmul.f32 %v50, %v275
  %v314 = vmul.f32 %v51, %v275
  %v315 = vmul.f32 %v52, %v275
  %v316 = vmul.f32 %v53, %v275
  %v317 = vmul.f32 %v54, %v275
  %v318 = vmul.f32 %v55, %v275
  %v319 = vmul.f32 %v56, %v275
  %v320 = vmul.f32 %v57, %v275
  %v321 = vmul.f32 %v58, %v275
  %v322 = vmul.f32 %v59, %v275
  %v323 = vmul.f32 %v60, %v275
  %v324 = vmul.f32 %v61, %v275
  %v325 = vmul.f32 %v62, %v275
  %v326 = vmul.f32 %v63, %v275
  %v327 = vmul.f32 %v64, %v275
  %v328 = vmul.f32 %v65, %v275
  %v329 = vmul.f32 %v66, %v275
  %v330 = vmul.f32 %v67, %v275
  %v331 = vmul.f32 %v68, %v275
  %v332 = vmul.f32 %v69, %v275
  %v333 = vmul.f32 %v70, %v275
  %v334 = vmul.f32 %v71, %v275
  %v335 = vmul.f32 %v72, %v275
  %v336 = vmul.f32 %v73, %v275
  %v337 = vmul.f32 %v74, %v275
  %v338 = vmul.f32 %v75, %v275
  %v339 = vmul.f32 %v76, %v275
  %v340 = vmul.f32 %v77, %v275
  %v341 = vmul.f32 %v78, %v275
  %v342 = vmul.f32 %v79, %v275
  %v343 = vmul.f32 %v80, %v275
  %v344 = vmul.f32 %v81, %v275
  %v345 = vmul.f32 %v82, %v275
  %v346 = vmul.f32 %v83, %v275
  %v347 = vmul.f32 %v84, %v275
  %v348 = vmul.f32 %v85, %v275
  %v349 = vmul.f32 %v86, %v275
  %v350 = vmul.f32 %v87, %v275
  %v351 = vmul.f32 %v88, %v275
  %v352 = vmul.f32 %v89, %v275
  %v353 = vmul.f32 %v90, %v275
  %v354 = vmul.f32 %v91, %v275
  %v355 = vmul.f32 %v92, %v275
  %v356 = vmul.f32 %v93, %v275
  %v357 = vmul.f32 %v94, %v275
  %v358 = vmul.f32 %v95, %v275
  %v359 = vmul.f32 %v96, %v275
  %v360 = vmul.f32 %v97, %v275
  %v361 = vmul.f32 %v98, %v275
  %v362 = vmul.f32 %v99, %v275
  %v363 = vmul.f32 %v100, %v275
  %v364 = vmul.f32 %v101, %v275
  %v365 = vmul.f32 %v102, %v275
  %v366 = vmul.f32 %v103, %v275
  %v367 = vmul.f32 %v104, %v275
  %v368 = vmul.f32 %v105, %v275
  %v369 = vmul.f32 %v106, %v275
  %v370 = vmul.f32 %v107, %v275
  %v371 = vmul.f32 %v108, %v275
  %v372 = vmul.f32 %v109, %v275
  %v373 = vmul.f32 %v110, %v275
  %v374 = vmul.f32 %v111, %v275
  %v375 = vmul.f32 %v112, %v275
  %v376 = vmul.f32 %v113, %v275
  %v377 = vmul.f32 %v114, %v275
  %v378 = vmul.f32 %v115, %v275
  %v379 = vmul.f32 %v116, %v275
  %v380 = vmul.f32 %v117, %v275
  %v381 = vmul.f32 %v118, %v275
  %v382 = vmul.f32 %v119, %v275
  %v383 = vmul.f32 %v120, %v275
  %v384 = vmul.f32 %v121, %v275
  %v385 = vmul.f32 %v122, %v275
  %v386 = vmul.f32 %v123, %v275
  %v387 = vmul.f32 %v124, %v275
  %v388 = vmul.f32 %v125, %v275
  %v389 = vmul.f32 %v126, %v275
  %v390 = vmul.f32 %v127, %v275
  %v391 = vmul.f32 %v128, %v275
  %v392 = vmul.f32 %v129, %v275
  %v393 = vmul.f32 %v130, %v275
  %v394 = vmul.f32 %v131, %v275
  %v395 = vmul.f32 %v132, %v275
  %v396 = vmul.f32 %v133, %v275
  %v397 = vmul.f32 %v134, %v275
  %v398 = vmul.f32 %v135, %v275
  %v399 = vmul.f32 %v136, %v275
  %v400 = vmul.f32 %v137, %v275
  %v401 = vmul.f32 %v138, %v275
  %v402 = vmul.f32 %v139, %v275
  %v403 = vmul.f32 %v140, %v275
  %v404 = vmul.f32 %v141, %v275
  %v405 = vmul.f32 %v142, %v275
  %v406 = vmul.f32 %v143, %v275
  %v407 = vmul.f32 %v144, %v275
  %v408 = vmul.f32 %v145, %v275
  %v409 = vmul.f32 %v146, %v275
  %v410 = vmul.f32 %v147, %v275
  %v411 = vmul.f32 %v148, %v275
  %v412 = vmul.f32 %v149, %v275
  %v413 = vmul.f32 %v150, %v275
  %v414 = vmul.f32 %v151, %v275
  %v415 = vmul.f32 %v152, %v275
  %v416 = vmul.f32 %v153, %v275
  %v417 = vmul.f32 %v154, %v275
  %v418 = vmul.f32 %v155, %v275
  %v419 = vmul.f32 %v156, %v275
  %v420 = vmul.f32 %v157, %v275
  %v421 = vmul.f32 %v158, %v275
  %v422 = vmul.f32 %v159, %v275
  %v423 = vmul.f32 %v160, %v275
  %v424 = vmul.f32 %v161, %v275
  %v425 = vmul.f32 %v162, %v275
  %v426 = vmul.f32 %v163, %v275
  %v427 = vmul.f32 %v164, %v275
  %v428 = vmul.f32 %v165, %v275
  %v429 = vmul.f32 %v166, %v275
  %v430 = vmul.f32 %v167, %v275
  %v431 = vmul.f32 %v168, %v275
  %v432 = vmul.f32 %v169, %v275
  %v433 = vmul.f32 %v170, %v275
  %v434 = vmul.f32 %v171, %v275
  %v435 = vmul.f32 %v172, %v275
  %v436 = vmul.f32 %v173, %v275
  %v437 = vmul.f32 %v174, %v275
  %v438 = vmul.f32 %v175, %v275
  %v439 = vmul.f32 %v176, %v275
  %v440 = vmul.f32 %v177, %v275
  %v441 = vmul.f32 %v178, %v275
  %v442 = vmul.f32 %v179, %v275
  %v443 = vmul.f32 %v180, %v275
  %v444 = vmul.f32 %v181, %v275
  %v445 = vmul.f32 %v182, %v275
  %v446 = vmul.f32 %v183, %v275
  %v447 = vmul.f32 %v184, %v275
  %v448 = vmul.f32 %v185, %v275
  %v449 = vmul.f32 %v186, %v275
  %v450 = vmul.f32 %v187, %v275
  %v451 = vmul.f32 %v188, %v275
  %v452 = vmul.f32 %v189, %v275
  %v453 = vmul.f32 %v190, %v275
  %v454 = vmul.f32 %v191, %v275
  %v455 = vmul.f32 %v192, %v275
  %v456 = vmul.f32 %v193, %v275
  %v457 = vmul.f32 %v194, %v275
  %v458 = vmul.f32 %v195, %v275
  %v459 = vmul.f32 %v196, %v275
  %v460 = vmul.f32 %v197, %v275
  %v461 = vmul.f32 %v198, %v275
  %v462 = vmul.f32 %v199, %v275
  %v463 = vmul.f32 %v200, %v275
  %v464 = vmul.f32 %v201, %v275
  %v465 = vmul.f32 %v202, %v275
  %v466 = vmul.f32 %v203, %v275
  %v467 = vmul.f32 %v204, %v275
  %v468 = vmul.f32 %v205, %v275
  %v469 = vmul.f32 %v206, %v275
  %v470 = vmul.f32 %v207, %v275
  %v471 = vmul.f32 %v208, %v275
  %v472 = vmul.f32 %v209, %v275
  %v473 = vmul.f32 %v210, %v275
  %v474 = vmul.f32 %v211, %v275
  %v475 = vmul.f32 %v212, %v275
  %v476 = vmul.f32 %v213, %v275
  %v477 = vmul.f32 %v214, %v275
  %v478 = vmul.f32 %v215, %v275
  %v479 = vmul.f32 %v216, %v275
  %v480 = vmul.f32 %v217, %v275
  %v481 = vmul.f32 %v218, %v275
  %v482 = vmul.f32 %v219, %v275
  %v483 = vmul.f32 %v220, %v275
  %v484 = vmul.f32 %v221, %v275
  %v485 = vmul.f32 %v222, %v275
  %v486 = vmul.f32 %v223, %v275
  %v487 = vmul.f32 %v224, %v275
  %v488 = vmul.f32 %v225, %v275
  %v489 = vmul.f32 %v226, %v275
  %v490 = vmul.f32 %v227, %v275
  %v491 = vmul.f32 %v228, %v275
  %v492 = vmul.f32 %v229, %v275
  %v493 = vmul.f32 %v230, %v275
  %v494 = vmul.f32 %v231, %v275
  %v495 = vmul.f32 %v232, %v275
  %v496 = vmul.f32 %v233, %v275
  %v497 = vmul.f32 %v234, %v275
  %v498 = vmul.f32 %v235, %v275
  %v499 = vmul.f32 %v236, %v275
  %v500 = vmul.f32 %v237, %v275
  %v501 = vmul.f32 %v238, %v275
  %v502 = vmul.f32 %v239, %v275
  %v503 = vmul.f32 %v240, %v275
  %v504 = vmul.f32 %v241, %v275
  %v505 = vmul.f32 %v242, %v275
  %v506 = vmul.f32 %v243, %v275
  %v507 = vmul.f32 %v244, %v275
  %v508 = vmul.f32 %v245, %v275
  %v509 = vmul.f32 %v246, %v275
  %v510 = vmul.f32 %v247, %v275
  %v511 = vmul.f32 %v248, %v275
  %v512 = vmul.f32 %v249, %v275
  %v513 = vmul.f32 %v250, %v275
  %v514 = vmul.f32 %v251, %v275
  %v515 = vmul.f32 %v252, %v275
  %v516 = vmul.f32 %v253, %v275
  %v517 = vmul.f32 %v254, %v275
  %v518 = vmul.f32 %v255, %v275
  %v519 = vmul.f32 %v256, %v275
  %v520 = vmul.f32 %v257, %v275
  %v521 = vmul.f32 %v258, %v275
  %v522 = vmul.f32 %v259, %v275
  %v523 = vmul.f32 %v260, %v275
  %v524 = vmul.f32 %v261, %v275
  %v525 = vmul.f32 %v262, %v275
  %v526 = vmul.f32 %v263, %v275
  %v527 = vmul.f32 %v264, %v275
  %v528 = vmul.f32 %v265, %v275
  %v529 = vmul.f32 %v266, %v275
  %v530 = vmul.f32 %v267, %v275
  %v531 = vmul.f32 %v268, %v275
  %v532 = vmul.f32 %v269, %v275
  %v533 = vld [vmem:[%s2] sm:$0x1]
  %v535 = vlaneseq
  %v536 = vshrl.u32 %v535, 7
  %v537 = vsub.s32 0, %v536
  %v538 = vrot.slane %v533, %v537
  %v540 = vadd.f32 %v277, %v538
  %v541 = vadd.f32 %v278, %v538
  %v542 = vadd.f32 %v279, %v538
  %v543 = vadd.f32 %v280, %v538
  %v544 = vadd.f32 %v281, %v538
  %v545 = vadd.f32 %v282, %v538
  %v546 = vadd.f32 %v283, %v538
  %v547 = vadd.f32 %v284, %v538
  %v548 = vadd.f32 %v285, %v538
  %v549 = vadd.f32 %v286, %v538
  %v550 = vadd.f32 %v287, %v538
  %v551 = vadd.f32 %v288, %v538
  %v552 = vadd.f32 %v289, %v538
  %v553 = vadd.f32 %v290, %v538
  %v554 = vadd.f32 %v291, %v538
  %v555 = vadd.f32 %v292, %v538
  %v556 = vadd.f32 %v293, %v538
  %v557 = vadd.f32 %v294, %v538
  %v558 = vadd.f32 %v295, %v538
  %v559 = vadd.f32 %v296, %v538
  %v560 = vadd.f32 %v297, %v538
  %v561 = vadd.f32 %v298, %v538
  %v562 = vadd.f32 %v299, %v538
  %v563 = vadd.f32 %v300, %v538
  %v564 = vadd.f32 %v301, %v538
  %v565 = vadd.f32 %v302, %v538
  %v566 = vadd.f32 %v303, %v538
  %v567 = vadd.f32 %v304, %v538
  %v568 = vadd.f32 %v305, %v538
  %v569 = vadd.f32 %v306, %v538
  %v570 = vadd.f32 %v307, %v538
  %v571 = vadd.f32 %v308, %v538
  %v572 = vadd.f32 %v309, %v538
  %v573 = vadd.f32 %v310, %v538
  %v574 = vadd.f32 %v311, %v538
  %v575 = vadd.f32 %v312, %v538
  %v576 = vadd.f32 %v313, %v538
  %v577 = vadd.f32 %v314, %v538
  %v578 = vadd.f32 %v315, %v538
  %v579 = vadd.f32 %v316, %v538
  %v580 = vadd.f32 %v317, %v538
  %v581 = vadd.f32 %v318, %v538
  %v582 = vadd.f32 %v319, %v538
  %v583 = vadd.f32 %v320, %v538
  %v584 = vadd.f32 %v321, %v538
  %v585 = vadd.f32 %v322, %v538
  %v586 = vadd.f32 %v323, %v538
  %v587 = vadd.f32 %v324, %v538
  %v588 = vadd.f32 %v325, %v538
  %v589 = vadd.f32 %v326, %v538
  %v590 = vadd.f32 %v327, %v538
  %v591 = vadd.f32 %v328, %v538
  %v592 = vadd.f32 %v329, %v538
  %v593 = vadd.f32 %v330, %v538
  %v594 = vadd.f32 %v331, %v538
  %v595 = vadd.f32 %v332, %v538
  %v596 = vadd.f32 %v333, %v538
  %v597 = vadd.f32 %v334, %v538
  %v598 = vadd.f32 %v335, %v538
  %v599 = vadd.f32 %v336, %v538
  %v600 = vadd.f32 %v337, %v538
  %v601 = vadd.f32 %v338, %v538
  %v602 = vadd.f32 %v339, %v538
  %v603 = vadd.f32 %v340, %v538
  %v604 = vadd.f32 %v341, %v538
  %v605 = vadd.f32 %v342, %v538
  %v606 = vadd.f32 %v343, %v538
  %v607 = vadd.f32 %v344, %v538
  %v608 = vadd.f32 %v345, %v538
  %v609 = vadd.f32 %v346, %v538
  %v610 = vadd.f32 %v347, %v538
  %v611 = vadd.f32 %v348, %v538
  %v612 = vadd.f32 %v349, %v538
  %v613 = vadd.f32 %v350, %v538
  %v614 = vadd.f32 %v351, %v538
  %v615 = vadd.f32 %v352, %v538
  %v616 = vadd.f32 %v353, %v538
  %v617 = vadd.f32 %v354, %v538
  %v618 = vadd.f32 %v355, %v538
  %v619 = vadd.f32 %v356, %v538
  %v620 = vadd.f32 %v357, %v538
  %v621 = vadd.f32 %v358, %v538
  %v622 = vadd.f32 %v359, %v538
  %v623 = vadd.f32 %v360, %v538
  %v624 = vadd.f32 %v361, %v538
  %v625 = vadd.f32 %v362, %v538
  %v626 = vadd.f32 %v363, %v538
  %v627 = vadd.f32 %v364, %v538
  %v628 = vadd.f32 %v365, %v538
  %v629 = vadd.f32 %v366, %v538
  %v630 = vadd.f32 %v367, %v538
  %v631 = vadd.f32 %v368, %v538
  %v632 = vadd.f32 %v369, %v538
  %v633 = vadd.f32 %v370, %v538
  %v634 = vadd.f32 %v371, %v538
  %v635 = vadd.f32 %v372, %v538
  %v636 = vadd.f32 %v373, %v538
  %v637 = vadd.f32 %v374, %v538
  %v638 = vadd.f32 %v375, %v538
  %v639 = vadd.f32 %v376, %v538
  %v640 = vadd.f32 %v377, %v538
  %v641 = vadd.f32 %v378, %v538
  %v642 = vadd.f32 %v379, %v538
  %v643 = vadd.f32 %v380, %v538
  %v644 = vadd.f32 %v381, %v538
  %v645 = vadd.f32 %v382, %v538
  %v646 = vadd.f32 %v383, %v538
  %v647 = vadd.f32 %v384, %v538
  %v648 = vadd.f32 %v385, %v538
  %v649 = vadd.f32 %v386, %v538
  %v650 = vadd.f32 %v387, %v538
  %v651 = vadd.f32 %v388, %v538
  %v652 = vadd.f32 %v389, %v538
  %v653 = vadd.f32 %v390, %v538
  %v654 = vadd.f32 %v391, %v538
  %v655 = vadd.f32 %v392, %v538
  %v656 = vadd.f32 %v393, %v538
  %v657 = vadd.f32 %v394, %v538
  %v658 = vadd.f32 %v395, %v538
  %v659 = vadd.f32 %v396, %v538
  %v660 = vadd.f32 %v397, %v538
  %v661 = vadd.f32 %v398, %v538
  %v662 = vadd.f32 %v399, %v538
  %v663 = vadd.f32 %v400, %v538
  %v664 = vadd.f32 %v401, %v538
  %v665 = vadd.f32 %v402, %v538
  %v666 = vadd.f32 %v403, %v538
  %v667 = vadd.f32 %v404, %v538
  %v668 = vadd.f32 %v405, %v538
  %v669 = vadd.f32 %v406, %v538
  %v670 = vadd.f32 %v407, %v538
  %v671 = vadd.f32 %v408, %v538
  %v672 = vadd.f32 %v409, %v538
  %v673 = vadd.f32 %v410, %v538
  %v674 = vadd.f32 %v411, %v538
  %v675 = vadd.f32 %v412, %v538
  %v676 = vadd.f32 %v413, %v538
  %v677 = vadd.f32 %v414, %v538
  %v678 = vadd.f32 %v415, %v538
  %v679 = vadd.f32 %v416, %v538
  %v680 = vadd.f32 %v417, %v538
  %v681 = vadd.f32 %v418, %v538
  %v682 = vadd.f32 %v419, %v538
  %v683 = vadd.f32 %v420, %v538
  %v684 = vadd.f32 %v421, %v538
  %v685 = vadd.f32 %v422, %v538
  %v686 = vadd.f32 %v423, %v538
  %v687 = vadd.f32 %v424, %v538
  %v688 = vadd.f32 %v425, %v538
  %v689 = vadd.f32 %v426, %v538
  %v690 = vadd.f32 %v427, %v538
  %v691 = vadd.f32 %v428, %v538
  %v692 = vadd.f32 %v429, %v538
  %v693 = vadd.f32 %v430, %v538
  %v694 = vadd.f32 %v431, %v538
  %v695 = vadd.f32 %v432, %v538
  %v696 = vadd.f32 %v433, %v538
  %v697 = vadd.f32 %v434, %v538
  %v698 = vadd.f32 %v435, %v538
  %v699 = vadd.f32 %v436, %v538
  %v700 = vadd.f32 %v437, %v538
  %v701 = vadd.f32 %v438, %v538
  %v702 = vadd.f32 %v439, %v538
  %v703 = vadd.f32 %v440, %v538
  %v704 = vadd.f32 %v441, %v538
  %v705 = vadd.f32 %v442, %v538
  %v706 = vadd.f32 %v443, %v538
  %v707 = vadd.f32 %v444, %v538
  %v708 = vadd.f32 %v445, %v538
  %v709 = vadd.f32 %v446, %v538
  %v710 = vadd.f32 %v447, %v538
  %v711 = vadd.f32 %v448, %v538
  %v712 = vadd.f32 %v449, %v538
  %v713 = vadd.f32 %v450, %v538
  %v714 = vadd.f32 %v451, %v538
  %v715 = vadd.f32 %v452, %v538
  %v716 = vadd.f32 %v453, %v538
  %v717 = vadd.f32 %v454, %v538
  %v718 = vadd.f32 %v455, %v538
  %v719 = vadd.f32 %v456, %v538
  %v720 = vadd.f32 %v457, %v538
  %v721 = vadd.f32 %v458, %v538
  %v722 = vadd.f32 %v459, %v538
  %v723 = vadd.f32 %v460, %v538
  %v724 = vadd.f32 %v461, %v538
  %v725 = vadd.f32 %v462, %v538
  %v726 = vadd.f32 %v463, %v538
  %v727 = vadd.f32 %v464, %v538
  %v728 = vadd.f32 %v465, %v538
  %v729 = vadd.f32 %v466, %v538
  %v730 = vadd.f32 %v467, %v538
  %v731 = vadd.f32 %v468, %v538
  %v732 = vadd.f32 %v469, %v538
  %v733 = vadd.f32 %v470, %v538
  %v734 = vadd.f32 %v471, %v538
  %v735 = vadd.f32 %v472, %v538
  %v736 = vadd.f32 %v473, %v538
  %v737 = vadd.f32 %v474, %v538
  %v738 = vadd.f32 %v475, %v538
  %v739 = vadd.f32 %v476, %v538
  %v740 = vadd.f32 %v477, %v538
  %v741 = vadd.f32 %v478, %v538
  %v742 = vadd.f32 %v479, %v538
  %v743 = vadd.f32 %v480, %v538
  %v744 = vadd.f32 %v481, %v538
  %v745 = vadd.f32 %v482, %v538
  %v746 = vadd.f32 %v483, %v538
  %v747 = vadd.f32 %v484, %v538
  %v748 = vadd.f32 %v485, %v538
  %v749 = vadd.f32 %v486, %v538
  %v750 = vadd.f32 %v487, %v538
  %v751 = vadd.f32 %v488, %v538
  %v752 = vadd.f32 %v489, %v538
  %v753 = vadd.f32 %v490, %v538
  %v754 = vadd.f32 %v491, %v538
  %v755 = vadd.f32 %v492, %v538
  %v756 = vadd.f32 %v493, %v538
  %v757 = vadd.f32 %v494, %v538
  %v758 = vadd.f32 %v495, %v538
  %v759 = vadd.f32 %v496, %v538
  %v760 = vadd.f32 %v497, %v538
  %v761 = vadd.f32 %v498, %v538
  %v762 = vadd.f32 %v499, %v538
  %v763 = vadd.f32 %v500, %v538
  %v764 = vadd.f32 %v501, %v538
  %v765 = vadd.f32 %v502, %v538
  %v766 = vadd.f32 %v503, %v538
  %v767 = vadd.f32 %v504, %v538
  %v768 = vadd.f32 %v505, %v538
  %v769 = vadd.f32 %v506, %v538
  %v770 = vadd.f32 %v507, %v538
  %v771 = vadd.f32 %v508, %v538
  %v772 = vadd.f32 %v509, %v538
  %v773 = vadd.f32 %v510, %v538
  %v774 = vadd.f32 %v511, %v538
  %v775 = vadd.f32 %v512, %v538
  %v776 = vadd.f32 %v513, %v538
  %v777 = vadd.f32 %v514, %v538
  %v778 = vadd.f32 %v515, %v538
  %v779 = vadd.f32 %v516, %v538
  %v780 = vadd.f32 %v517, %v538
  %v781 = vadd.f32 %v518, %v538
  %v782 = vadd.f32 %v519, %v538
  %v783 = vadd.f32 %v520, %v538
  %v784 = vadd.f32 %v521, %v538
  %v785 = vadd.f32 %v522, %v538
  %v786 = vadd.f32 %v523, %v538
  %v787 = vadd.f32 %v524, %v538
  %v788 = vadd.f32 %v525, %v538
  %v789 = vadd.f32 %v526, %v538
  %v790 = vadd.f32 %v527, %v538
  %v791 = vadd.f32 %v528, %v538
  %v792 = vadd.f32 %v529, %v538
  %v793 = vadd.f32 %v530, %v538
  %v794 = vadd.f32 %v531, %v538
  %v795 = vadd.f32 %v532, %v538
  %vm796 = vcmp.ge.f32.partialorder %v540, 0.0
  %vm797 = vcmp.ge.f32.partialorder %v541, 0.0
  %vm798 = vcmp.ge.f32.partialorder %v542, 0.0
  %vm799 = vcmp.ge.f32.partialorder %v543, 0.0
  %vm800 = vcmp.ge.f32.partialorder %v544, 0.0
  %vm801 = vcmp.ge.f32.partialorder %v545, 0.0
  %vm802 = vcmp.ge.f32.partialorder %v546, 0.0
  %vm803 = vcmp.ge.f32.partialorder %v547, 0.0
  %vm804 = vcmp.ge.f32.partialorder %v548, 0.0
  %vm805 = vcmp.ge.f32.partialorder %v549, 0.0
  %vm806 = vcmp.ge.f32.partialorder %v550, 0.0
  %vm807 = vcmp.ge.f32.partialorder %v551, 0.0
  %vm808 = vcmp.ge.f32.partialorder %v552, 0.0
  %vm809 = vcmp.ge.f32.partialorder %v553, 0.0
  %vm810 = vcmp.ge.f32.partialorder %v554, 0.0
  %vm811 = vcmp.ge.f32.partialorder %v555, 0.0
  %vm812 = vcmp.ge.f32.partialorder %v556, 0.0
  %vm813 = vcmp.ge.f32.partialorder %v557, 0.0
  %vm814 = vcmp.ge.f32.partialorder %v558, 0.0
  %vm815 = vcmp.ge.f32.partialorder %v559, 0.0
  %vm816 = vcmp.ge.f32.partialorder %v560, 0.0
  %vm817 = vcmp.ge.f32.partialorder %v561, 0.0
  %vm818 = vcmp.ge.f32.partialorder %v562, 0.0
  %vm819 = vcmp.ge.f32.partialorder %v563, 0.0
  %vm820 = vcmp.ge.f32.partialorder %v564, 0.0
  %vm821 = vcmp.ge.f32.partialorder %v565, 0.0
  %vm822 = vcmp.ge.f32.partialorder %v566, 0.0
  %vm823 = vcmp.ge.f32.partialorder %v567, 0.0
  %vm824 = vcmp.ge.f32.partialorder %v568, 0.0
  %vm825 = vcmp.ge.f32.partialorder %v569, 0.0
  %vm826 = vcmp.ge.f32.partialorder %v570, 0.0
  %vm827 = vcmp.ge.f32.partialorder %v571, 0.0
  %vm828 = vcmp.ge.f32.partialorder %v572, 0.0
  %vm829 = vcmp.ge.f32.partialorder %v573, 0.0
  %vm830 = vcmp.ge.f32.partialorder %v574, 0.0
  %vm831 = vcmp.ge.f32.partialorder %v575, 0.0
  %vm832 = vcmp.ge.f32.partialorder %v576, 0.0
  %vm833 = vcmp.ge.f32.partialorder %v577, 0.0
  %vm834 = vcmp.ge.f32.partialorder %v578, 0.0
  %vm835 = vcmp.ge.f32.partialorder %v579, 0.0
  %vm836 = vcmp.ge.f32.partialorder %v580, 0.0
  %vm837 = vcmp.ge.f32.partialorder %v581, 0.0
  %vm838 = vcmp.ge.f32.partialorder %v582, 0.0
  %vm839 = vcmp.ge.f32.partialorder %v583, 0.0
  %vm840 = vcmp.ge.f32.partialorder %v584, 0.0
  %vm841 = vcmp.ge.f32.partialorder %v585, 0.0
  %vm842 = vcmp.ge.f32.partialorder %v586, 0.0
  %vm843 = vcmp.ge.f32.partialorder %v587, 0.0
  %vm844 = vcmp.ge.f32.partialorder %v588, 0.0
  %vm845 = vcmp.ge.f32.partialorder %v589, 0.0
  %vm846 = vcmp.ge.f32.partialorder %v590, 0.0
  %vm847 = vcmp.ge.f32.partialorder %v591, 0.0
  %vm848 = vcmp.ge.f32.partialorder %v592, 0.0
  %vm849 = vcmp.ge.f32.partialorder %v593, 0.0
  %vm850 = vcmp.ge.f32.partialorder %v594, 0.0
  %vm851 = vcmp.ge.f32.partialorder %v595, 0.0
  %vm852 = vcmp.ge.f32.partialorder %v596, 0.0
  %vm853 = vcmp.ge.f32.partialorder %v597, 0.0
  %vm854 = vcmp.ge.f32.partialorder %v598, 0.0
  %vm855 = vcmp.ge.f32.partialorder %v599, 0.0
  %vm856 = vcmp.ge.f32.partialorder %v600, 0.0
  %vm857 = vcmp.ge.f32.partialorder %v601, 0.0
  %vm858 = vcmp.ge.f32.partialorder %v602, 0.0
  %vm859 = vcmp.ge.f32.partialorder %v603, 0.0
  %vm860 = vcmp.ge.f32.partialorder %v604, 0.0
  %vm861 = vcmp.ge.f32.partialorder %v605, 0.0
  %vm862 = vcmp.ge.f32.partialorder %v606, 0.0
  %vm863 = vcmp.ge.f32.partialorder %v607, 0.0
  %vm864 = vcmp.ge.f32.partialorder %v608, 0.0
  %vm865 = vcmp.ge.f32.partialorder %v609, 0.0
  %vm866 = vcmp.ge.f32.partialorder %v610, 0.0
  %vm867 = vcmp.ge.f32.partialorder %v611, 0.0
  %vm868 = vcmp.ge.f32.partialorder %v612, 0.0
  %vm869 = vcmp.ge.f32.partialorder %v613, 0.0
  %vm870 = vcmp.ge.f32.partialorder %v614, 0.0
  %vm871 = vcmp.ge.f32.partialorder %v615, 0.0
  %vm872 = vcmp.ge.f32.partialorder %v616, 0.0
  %vm873 = vcmp.ge.f32.partialorder %v617, 0.0
  %vm874 = vcmp.ge.f32.partialorder %v618, 0.0
  %vm875 = vcmp.ge.f32.partialorder %v619, 0.0
  %vm876 = vcmp.ge.f32.partialorder %v620, 0.0
  %vm877 = vcmp.ge.f32.partialorder %v621, 0.0
  %vm878 = vcmp.ge.f32.partialorder %v622, 0.0
  %vm879 = vcmp.ge.f32.partialorder %v623, 0.0
  %vm880 = vcmp.ge.f32.partialorder %v624, 0.0
  %vm881 = vcmp.ge.f32.partialorder %v625, 0.0
  %vm882 = vcmp.ge.f32.partialorder %v626, 0.0
  %vm883 = vcmp.ge.f32.partialorder %v627, 0.0
  %vm884 = vcmp.ge.f32.partialorder %v628, 0.0
  %vm885 = vcmp.ge.f32.partialorder %v629, 0.0
  %vm886 = vcmp.ge.f32.partialorder %v630, 0.0
  %vm887 = vcmp.ge.f32.partialorder %v631, 0.0
  %vm888 = vcmp.ge.f32.partialorder %v632, 0.0
  %vm889 = vcmp.ge.f32.partialorder %v633, 0.0
  %vm890 = vcmp.ge.f32.partialorder %v634, 0.0
  %vm891 = vcmp.ge.f32.partialorder %v635, 0.0
  %vm892 = vcmp.ge.f32.partialorder %v636, 0.0
  %vm893 = vcmp.ge.f32.partialorder %v637, 0.0
  %vm894 = vcmp.ge.f32.partialorder %v638, 0.0
  %vm895 = vcmp.ge.f32.partialorder %v639, 0.0
  %vm896 = vcmp.ge.f32.partialorder %v640, 0.0
  %vm897 = vcmp.ge.f32.partialorder %v641, 0.0
  %vm898 = vcmp.ge.f32.partialorder %v642, 0.0
  %vm899 = vcmp.ge.f32.partialorder %v643, 0.0
  %vm900 = vcmp.ge.f32.partialorder %v644, 0.0
  %vm901 = vcmp.ge.f32.partialorder %v645, 0.0
  %vm902 = vcmp.ge.f32.partialorder %v646, 0.0
  %vm903 = vcmp.ge.f32.partialorder %v647, 0.0
  %vm904 = vcmp.ge.f32.partialorder %v648, 0.0
  %vm905 = vcmp.ge.f32.partialorder %v649, 0.0
  %vm906 = vcmp.ge.f32.partialorder %v650, 0.0
  %vm907 = vcmp.ge.f32.partialorder %v651, 0.0
  %vm908 = vcmp.ge.f32.partialorder %v652, 0.0
  %vm909 = vcmp.ge.f32.partialorder %v653, 0.0
  %vm910 = vcmp.ge.f32.partialorder %v654, 0.0
  %vm911 = vcmp.ge.f32.partialorder %v655, 0.0
  %vm912 = vcmp.ge.f32.partialorder %v656, 0.0
  %vm913 = vcmp.ge.f32.partialorder %v657, 0.0
  %vm914 = vcmp.ge.f32.partialorder %v658, 0.0
  %vm915 = vcmp.ge.f32.partialorder %v659, 0.0
  %vm916 = vcmp.ge.f32.partialorder %v660, 0.0
  %vm917 = vcmp.ge.f32.partialorder %v661, 0.0
  %vm918 = vcmp.ge.f32.partialorder %v662, 0.0
  %vm919 = vcmp.ge.f32.partialorder %v663, 0.0
  %vm920 = vcmp.ge.f32.partialorder %v664, 0.0
  %vm921 = vcmp.ge.f32.partialorder %v665, 0.0
  %vm922 = vcmp.ge.f32.partialorder %v666, 0.0
  %vm923 = vcmp.ge.f32.partialorder %v667, 0.0
  %vm924 = vcmp.ge.f32.partialorder %v668, 0.0
  %vm925 = vcmp.ge.f32.partialorder %v669, 0.0
  %vm926 = vcmp.ge.f32.partialorder %v670, 0.0
  %vm927 = vcmp.ge.f32.partialorder %v671, 0.0
  %vm928 = vcmp.ge.f32.partialorder %v672, 0.0
  %vm929 = vcmp.ge.f32.partialorder %v673, 0.0
  %vm930 = vcmp.ge.f32.partialorder %v674, 0.0
  %vm931 = vcmp.ge.f32.partialorder %v675, 0.0
  %vm932 = vcmp.ge.f32.partialorder %v676, 0.0
  %vm933 = vcmp.ge.f32.partialorder %v677, 0.0
  %vm934 = vcmp.ge.f32.partialorder %v678, 0.0
  %vm935 = vcmp.ge.f32.partialorder %v679, 0.0
  %vm936 = vcmp.ge.f32.partialorder %v680, 0.0
  %vm937 = vcmp.ge.f32.partialorder %v681, 0.0
  %vm938 = vcmp.ge.f32.partialorder %v682, 0.0
  %vm939 = vcmp.ge.f32.partialorder %v683, 0.0
  %vm940 = vcmp.ge.f32.partialorder %v684, 0.0
  %vm941 = vcmp.ge.f32.partialorder %v685, 0.0
  %vm942 = vcmp.ge.f32.partialorder %v686, 0.0
  %vm943 = vcmp.ge.f32.partialorder %v687, 0.0
  %vm944 = vcmp.ge.f32.partialorder %v688, 0.0
  %vm945 = vcmp.ge.f32.partialorder %v689, 0.0
  %vm946 = vcmp.ge.f32.partialorder %v690, 0.0
  %vm947 = vcmp.ge.f32.partialorder %v691, 0.0
  %vm948 = vcmp.ge.f32.partialorder %v692, 0.0
  %vm949 = vcmp.ge.f32.partialorder %v693, 0.0
  %vm950 = vcmp.ge.f32.partialorder %v694, 0.0
  %vm951 = vcmp.ge.f32.partialorder %v695, 0.0
  %vm952 = vcmp.ge.f32.partialorder %v696, 0.0
  %vm953 = vcmp.ge.f32.partialorder %v697, 0.0
  %vm954 = vcmp.ge.f32.partialorder %v698, 0.0
  %vm955 = vcmp.ge.f32.partialorder %v699, 0.0
  %vm956 = vcmp.ge.f32.partialorder %v700, 0.0
  %vm957 = vcmp.ge.f32.partialorder %v701, 0.0
  %vm958 = vcmp.ge.f32.partialorder %v702, 0.0
  %vm959 = vcmp.ge.f32.partialorder %v703, 0.0
  %vm960 = vcmp.ge.f32.partialorder %v704, 0.0
  %vm961 = vcmp.ge.f32.partialorder %v705, 0.0
  %vm962 = vcmp.ge.f32.partialorder %v706, 0.0
  %vm963 = vcmp.ge.f32.partialorder %v707, 0.0
  %vm964 = vcmp.ge.f32.partialorder %v708, 0.0
  %vm965 = vcmp.ge.f32.partialorder %v709, 0.0
  %vm966 = vcmp.ge.f32.partialorder %v710, 0.0
  %vm967 = vcmp.ge.f32.partialorder %v711, 0.0
  %vm968 = vcmp.ge.f32.partialorder %v712, 0.0
  %vm969 = vcmp.ge.f32.partialorder %v713, 0.0
  %vm970 = vcmp.ge.f32.partialorder %v714, 0.0
  %vm971 = vcmp.ge.f32.partialorder %v715, 0.0
  %vm972 = vcmp.ge.f32.partialorder %v716, 0.0
  %vm973 = vcmp.ge.f32.partialorder %v717, 0.0
  %vm974 = vcmp.ge.f32.partialorder %v718, 0.0
  %vm975 = vcmp.ge.f32.partialorder %v719, 0.0
  %vm976 = vcmp.ge.f32.partialorder %v720, 0.0
  %vm977 = vcmp.ge.f32.partialorder %v721, 0.0
  %vm978 = vcmp.ge.f32.partialorder %v722, 0.0
  %vm979 = vcmp.ge.f32.partialorder %v723, 0.0
  %vm980 = vcmp.ge.f32.partialorder %v724, 0.0
  %vm981 = vcmp.ge.f32.partialorder %v725, 0.0
  %vm982 = vcmp.ge.f32.partialorder %v726, 0.0
  %vm983 = vcmp.ge.f32.partialorder %v727, 0.0
  %vm984 = vcmp.ge.f32.partialorder %v728, 0.0
  %vm985 = vcmp.ge.f32.partialorder %v729, 0.0
  %vm986 = vcmp.ge.f32.partialorder %v730, 0.0
  %vm987 = vcmp.ge.f32.partialorder %v731, 0.0
  %vm988 = vcmp.ge.f32.partialorder %v732, 0.0
  %vm989 = vcmp.ge.f32.partialorder %v733, 0.0
  %vm990 = vcmp.ge.f32.partialorder %v734, 0.0
  %vm991 = vcmp.ge.f32.partialorder %v735, 0.0
  %vm992 = vcmp.ge.f32.partialorder %v736, 0.0
  %vm993 = vcmp.ge.f32.partialorder %v737, 0.0
  %vm994 = vcmp.ge.f32.partialorder %v738, 0.0
  %vm995 = vcmp.ge.f32.partialorder %v739, 0.0
  %vm996 = vcmp.ge.f32.partialorder %v740, 0.0
  %vm997 = vcmp.ge.f32.partialorder %v741, 0.0
  %vm998 = vcmp.ge.f32.partialorder %v742, 0.0
  %vm999 = vcmp.ge.f32.partialorder %v743, 0.0
  %vm1000 = vcmp.ge.f32.partialorder %v744, 0.0
  %vm1001 = vcmp.ge.f32.partialorder %v745, 0.0
  %vm1002 = vcmp.ge.f32.partialorder %v746, 0.0
  %vm1003 = vcmp.ge.f32.partialorder %v747, 0.0
  %vm1004 = vcmp.ge.f32.partialorder %v748, 0.0
  %vm1005 = vcmp.ge.f32.partialorder %v749, 0.0
  %vm1006 = vcmp.ge.f32.partialorder %v750, 0.0
  %vm1007 = vcmp.ge.f32.partialorder %v751, 0.0
  %vm1008 = vcmp.ge.f32.partialorder %v752, 0.0
  %vm1009 = vcmp.ge.f32.partialorder %v753, 0.0
  %vm1010 = vcmp.ge.f32.partialorder %v754, 0.0
  %vm1011 = vcmp.ge.f32.partialorder %v755, 0.0
  %vm1012 = vcmp.ge.f32.partialorder %v756, 0.0
  %vm1013 = vcmp.ge.f32.partialorder %v757, 0.0
  %vm1014 = vcmp.ge.f32.partialorder %v758, 0.0
  %vm1015 = vcmp.ge.f32.partialorder %v759, 0.0
  %vm1016 = vcmp.ge.f32.partialorder %v760, 0.0
  %vm1017 = vcmp.ge.f32.partialorder %v761, 0.0
  %vm1018 = vcmp.ge.f32.partialorder %v762, 0.0
  %vm1019 = vcmp.ge.f32.partialorder %v763, 0.0
  %vm1020 = vcmp.ge.f32.partialorder %v764, 0.0
  %vm1021 = vcmp.ge.f32.partialorder %v765, 0.0
  %vm1022 = vcmp.ge.f32.partialorder %v766, 0.0
  %vm1023 = vcmp.ge.f32.partialorder %v767, 0.0
  %vm1024 = vcmp.ge.f32.partialorder %v768, 0.0
  %vm1025 = vcmp.ge.f32.partialorder %v769, 0.0
  %vm1026 = vcmp.ge.f32.partialorder %v770, 0.0
  %vm1027 = vcmp.ge.f32.partialorder %v771, 0.0
  %vm1028 = vcmp.ge.f32.partialorder %v772, 0.0
  %vm1029 = vcmp.ge.f32.partialorder %v773, 0.0
  %vm1030 = vcmp.ge.f32.partialorder %v774, 0.0
  %vm1031 = vcmp.ge.f32.partialorder %v775, 0.0
  %vm1032 = vcmp.ge.f32.partialorder %v776, 0.0
  %vm1033 = vcmp.ge.f32.partialorder %v777, 0.0
  %vm1034 = vcmp.ge.f32.partialorder %v778, 0.0
  %vm1035 = vcmp.ge.f32.partialorder %v779, 0.0
  %vm1036 = vcmp.ge.f32.partialorder %v780, 0.0
  %vm1037 = vcmp.ge.f32.partialorder %v781, 0.0
  %vm1038 = vcmp.ge.f32.partialorder %v782, 0.0
  %vm1039 = vcmp.ge.f32.partialorder %v783, 0.0
  %vm1040 = vcmp.ge.f32.partialorder %v784, 0.0
  %vm1041 = vcmp.ge.f32.partialorder %v785, 0.0
  %vm1042 = vcmp.ge.f32.partialorder %v786, 0.0
  %vm1043 = vcmp.ge.f32.partialorder %v787, 0.0
  %vm1044 = vcmp.ge.f32.partialorder %v788, 0.0
  %vm1045 = vcmp.ge.f32.partialorder %v789, 0.0
  %vm1046 = vcmp.ge.f32.partialorder %v790, 0.0
  %vm1047 = vcmp.ge.f32.partialorder %v791, 0.0
  %vm1048 = vcmp.ge.f32.partialorder %v792, 0.0
  %vm1049 = vcmp.ge.f32.partialorder %v793, 0.0
  %vm1050 = vcmp.ge.f32.partialorder %v794, 0.0
  %vm1051 = vcmp.ge.f32.partialorder %v795, 0.0
  %v1052 = vmul.f32 %v540, 0.2
  %v1053 = vmul.f32 %v541, 0.2
  %v1054 = vmul.f32 %v542, 0.2
  %v1055 = vmul.f32 %v543, 0.2
  %v1056 = vmul.f32 %v544, 0.2
  %v1057 = vmul.f32 %v545, 0.2
  %v1058 = vmul.f32 %v546, 0.2
  %v1059 = vmul.f32 %v547, 0.2
  %v1060 = vmul.f32 %v548, 0.2
  %v1061 = vmul.f32 %v549, 0.2
  %v1062 = vmul.f32 %v550, 0.2
  %v1063 = vmul.f32 %v551, 0.2
  %v1064 = vmul.f32 %v552, 0.2
  %v1065 = vmul.f32 %v553, 0.2
  %v1066 = vmul.f32 %v554, 0.2
  %v1067 = vmul.f32 %v555, 0.2
  %v1068 = vmul.f32 %v556, 0.2
  %v1069 = vmul.f32 %v557, 0.2
  %v1070 = vmul.f32 %v558, 0.2
  %v1071 = vmul.f32 %v559, 0.2
  %v1072 = vmul.f32 %v560, 0.2
  %v1073 = vmul.f32 %v561, 0.2
  %v1074 = vmul.f32 %v562, 0.2
  %v1075 = vmul.f32 %v563, 0.2
  %v1076 = vmul.f32 %v564, 0.2
  %v1077 = vmul.f32 %v565, 0.2
  %v1078 = vmul.f32 %v566, 0.2
  %v1079 = vmul.f32 %v567, 0.2
  %v1080 = vmul.f32 %v568, 0.2
  %v1081 = vmul.f32 %v569, 0.2
  %v1082 = vmul.f32 %v570, 0.2
  %v1083 = vmul.f32 %v571, 0.2
  %v1084 = vmul.f32 %v572, 0.2
  %v1085 = vmul.f32 %v573, 0.2
  %v1086 = vmul.f32 %v574, 0.2
  %v1087 = vmul.f32 %v575, 0.2
  %v1088 = vmul.f32 %v576, 0.2
  %v1089 = vmul.f32 %v577, 0.2
  %v1090 = vmul.f32 %v578, 0.2
  %v1091 = vmul.f32 %v579, 0.2
  %v1092 = vmul.f32 %v580, 0.2
  %v1093 = vmul.f32 %v581, 0.2
  %v1094 = vmul.f32 %v582, 0.2
  %v1095 = vmul.f32 %v583, 0.2
  %v1096 = vmul.f32 %v584, 0.2
  %v1097 = vmul.f32 %v585, 0.2
  %v1098 = vmul.f32 %v586, 0.2
  %v1099 = vmul.f32 %v587, 0.2
  %v1100 = vmul.f32 %v588, 0.2
  %v1101 = vmul.f32 %v589, 0.2
  %v1102 = vmul.f32 %v590, 0.2
  %v1103 = vmul.f32 %v591, 0.2
  %v1104 = vmul.f32 %v592, 0.2
  %v1105 = vmul.f32 %v593, 0.2
  %v1106 = vmul.f32 %v594, 0.2
  %v1107 = vmul.f32 %v595, 0.2
  %v1108 = vmul.f32 %v596, 0.2
  %v1109 = vmul.f32 %v597, 0.2
  %v1110 = vmul.f32 %v598, 0.2
  %v1111 = vmul.f32 %v599, 0.2
  %v1112 = vmul.f32 %v600, 0.2
  %v1113 = vmul.f32 %v601, 0.2
  %v1114 = vmul.f32 %v602, 0.2
  %v1115 = vmul.f32 %v603, 0.2
  %v1116 = vmul.f32 %v604, 0.2
  %v1117 = vmul.f32 %v605, 0.2
  %v1118 = vmul.f32 %v606, 0.2
  %v1119 = vmul.f32 %v607, 0.2
  %v1120 = vmul.f32 %v608, 0.2
  %v1121 = vmul.f32 %v609, 0.2
  %v1122 = vmul.f32 %v610, 0.2
  %v1123 = vmul.f32 %v611, 0.2
  %v1124 = vmul.f32 %v612, 0.2
  %v1125 = vmul.f32 %v613, 0.2
  %v1126 = vmul.f32 %v614, 0.2
  %v1127 = vmul.f32 %v615, 0.2
  %v1128 = vmul.f32 %v616, 0.2
  %v1129 = vmul.f32 %v617, 0.2
  %v1130 = vmul.f32 %v618, 0.2
  %v1131 = vmul.f32 %v619, 0.2
  %v1132 = vmul.f32 %v620, 0.2
  %v1133 = vmul.f32 %v621, 0.2
  %v1134 = vmul.f32 %v622, 0.2
  %v1135 = vmul.f32 %v623, 0.2
  %v1136 = vmul.f32 %v624, 0.2
  %v1137 = vmul.f32 %v625, 0.2
  %v1138 = vmul.f32 %v626, 0.2
  %v1139 = vmul.f32 %v627, 0.2
  %v1140 = vmul.f32 %v628, 0.2
  %v1141 = vmul.f32 %v629, 0.2
  %v1142 = vmul.f32 %v630, 0.2
  %v1143 = vmul.f32 %v631, 0.2
  %v1144 = vmul.f32 %v632, 0.2
  %v1145 = vmul.f32 %v633, 0.2
  %v1146 = vmul.f32 %v634, 0.2
  %v1147 = vmul.f32 %v635, 0.2
  %v1148 = vmul.f32 %v636, 0.2
  %v1149 = vmul.f32 %v637, 0.2
  %v1150 = vmul.f32 %v638, 0.2
  %v1151 = vmul.f32 %v639, 0.2
  %v1152 = vmul.f32 %v640, 0.2
  %v1153 = vmul.f32 %v641, 0.2
  %v1154 = vmul.f32 %v642, 0.2
  %v1155 = vmul.f32 %v643, 0.2
  %v1156 = vmul.f32 %v644, 0.2
  %v1157 = vmul.f32 %v645, 0.2
  %v1158 = vmul.f32 %v646, 0.2
  %v1159 = vmul.f32 %v647, 0.2
  %v1160 = vmul.f32 %v648, 0.2
  %v1161 = vmul.f32 %v649, 0.2
  %v1162 = vmul.f32 %v650, 0.2
  %v1163 = vmul.f32 %v651, 0.2
  %v1164 = vmul.f32 %v652, 0.2
  %v1165 = vmul.f32 %v653, 0.2
  %v1166 = vmul.f32 %v654, 0.2
  %v1167 = vmul.f32 %v655, 0.2
  %v1168 = vmul.f32 %v656, 0.2
  %v1169 = vmul.f32 %v657, 0.2
  %v1170 = vmul.f32 %v658, 0.2
  %v1171 = vmul.f32 %v659, 0.2
  %v1172 = vmul.f32 %v660, 0.2
  %v1173 = vmul.f32 %v661, 0.2
  %v1174 = vmul.f32 %v662, 0.2
  %v1175 = vmul.f32 %v663, 0.2
  %v1176 = vmul.f32 %v664, 0.2
  %v1177 = vmul.f32 %v665, 0.2
  %v1178 = vmul.f32 %v666, 0.2
  %v1179 = vmul.f32 %v667, 0.2
  %v1180 = vmul.f32 %v668, 0.2
  %v1181 = vmul.f32 %v669, 0.2
  %v1182 = vmul.f32 %v670, 0.2
  %v1183 = vmul.f32 %v671, 0.2
  %v1184 = vmul.f32 %v672, 0.2
  %v1185 = vmul.f32 %v673, 0.2
  %v1186 = vmul.f32 %v674, 0.2
  %v1187 = vmul.f32 %v675, 0.2
  %v1188 = vmul.f32 %v676, 0.2
  %v1189 = vmul.f32 %v677, 0.2
  %v1190 = vmul.f32 %v678, 0.2
  %v1191 = vmul.f32 %v679, 0.2
  %v1192 = vmul.f32 %v680, 0.2
  %v1193 = vmul.f32 %v681, 0.2
  %v1194 = vmul.f32 %v682, 0.2
  %v1195 = vmul.f32 %v683, 0.2
  %v1196 = vmul.f32 %v684, 0.2
  %v1197 = vmul.f32 %v685, 0.2
  %v1198 = vmul.f32 %v686, 0.2
  %v1199 = vmul.f32 %v687, 0.2
  %v1200 = vmul.f32 %v688, 0.2
  %v1201 = vmul.f32 %v689, 0.2
  %v1202 = vmul.f32 %v690, 0.2
  %v1203 = vmul.f32 %v691, 0.2
  %v1204 = vmul.f32 %v692, 0.2
  %v1205 = vmul.f32 %v693, 0.2
  %v1206 = vmul.f32 %v694, 0.2
  %v1207 = vmul.f32 %v695, 0.2
  %v1208 = vmul.f32 %v696, 0.2
  %v1209 = vmul.f32 %v697, 0.2
  %v1210 = vmul.f32 %v698, 0.2
  %v1211 = vmul.f32 %v699, 0.2
  %v1212 = vmul.f32 %v700, 0.2
  %v1213 = vmul.f32 %v701, 0.2
  %v1214 = vmul.f32 %v702, 0.2
  %v1215 = vmul.f32 %v703, 0.2
  %v1216 = vmul.f32 %v704, 0.2
  %v1217 = vmul.f32 %v705, 0.2
  %v1218 = vmul.f32 %v706, 0.2
  %v1219 = vmul.f32 %v707, 0.2
  %v1220 = vmul.f32 %v708, 0.2
  %v1221 = vmul.f32 %v709, 0.2
  %v1222 = vmul.f32 %v710, 0.2
  %v1223 = vmul.f32 %v711, 0.2
  %v1224 = vmul.f32 %v712, 0.2
  %v1225 = vmul.f32 %v713, 0.2
  %v1226 = vmul.f32 %v714, 0.2
  %v1227 = vmul.f32 %v715, 0.2
  %v1228 = vmul.f32 %v716, 0.2
  %v1229 = vmul.f32 %v717, 0.2
  %v1230 = vmul.f32 %v718, 0.2
  %v1231 = vmul.f32 %v719, 0.2
  %v1232 = vmul.f32 %v720, 0.2
  %v1233 = vmul.f32 %v721, 0.2
  %v1234 = vmul.f32 %v722, 0.2
  %v1235 = vmul.f32 %v723, 0.2
  %v1236 = vmul.f32 %v724, 0.2
  %v1237 = vmul.f32 %v725, 0.2
  %v1238 = vmul.f32 %v726, 0.2
  %v1239 = vmul.f32 %v727, 0.2
  %v1240 = vmul.f32 %v728, 0.2
  %v1241 = vmul.f32 %v729, 0.2
  %v1242 = vmul.f32 %v730, 0.2
  %v1243 = vmul.f32 %v731, 0.2
  %v1244 = vmul.f32 %v732, 0.2
  %v1245 = vmul.f32 %v733, 0.2
  %v1246 = vmul.f32 %v734, 0.2
  %v1247 = vmul.f32 %v735, 0.2
  %v1248 = vmul.f32 %v736, 0.2
  %v1249 = vmul.f32 %v737, 0.2
  %v1250 = vmul.f32 %v738, 0.2
  %v1251 = vmul.f32 %v739, 0.2
  %v1252 = vmul.f32 %v740, 0.2
  %v1253 = vmul.f32 %v741, 0.2
  %v1254 = vmul.f32 %v742, 0.2
  %v1255 = vmul.f32 %v743, 0.2
  %v1256 = vmul.f32 %v744, 0.2
  %v1257 = vmul.f32 %v745, 0.2
  %v1258 = vmul.f32 %v746, 0.2
  %v1259 = vmul.f32 %v747, 0.2
  %v1260 = vmul.f32 %v748, 0.2
  %v1261 = vmul.f32 %v749, 0.2
  %v1262 = vmul.f32 %v750, 0.2
  %v1263 = vmul.f32 %v751, 0.2
  %v1264 = vmul.f32 %v752, 0.2
  %v1265 = vmul.f32 %v753, 0.2
  %v1266 = vmul.f32 %v754, 0.2
  %v1267 = vmul.f32 %v755, 0.2
  %v1268 = vmul.f32 %v756, 0.2
  %v1269 = vmul.f32 %v757, 0.2
  %v1270 = vmul.f32 %v758, 0.2
  %v1271 = vmul.f32 %v759, 0.2
  %v1272 = vmul.f32 %v760, 0.2
  %v1273 = vmul.f32 %v761, 0.2
  %v1274 = vmul.f32 %v762, 0.2
  %v1275 = vmul.f32 %v763, 0.2
  %v1276 = vmul.f32 %v764, 0.2
  %v1277 = vmul.f32 %v765, 0.2
  %v1278 = vmul.f32 %v766, 0.2
  %v1279 = vmul.f32 %v767, 0.2
  %v1280 = vmul.f32 %v768, 0.2
  %v1281 = vmul.f32 %v769, 0.2
  %v1282 = vmul.f32 %v770, 0.2
  %v1283 = vmul.f32 %v771, 0.2
  %v1284 = vmul.f32 %v772, 0.2
  %v1285 = vmul.f32 %v773, 0.2
  %v1286 = vmul.f32 %v774, 0.2
  %v1287 = vmul.f32 %v775, 0.2
  %v1288 = vmul.f32 %v776, 0.2
  %v1289 = vmul.f32 %v777, 0.2
  %v1290 = vmul.f32 %v778, 0.2
  %v1291 = vmul.f32 %v779, 0.2
  %v1292 = vmul.f32 %v780, 0.2
  %v1293 = vmul.f32 %v781, 0.2
  %v1294 = vmul.f32 %v782, 0.2
  %v1295 = vmul.f32 %v783, 0.2
  %v1296 = vmul.f32 %v784, 0.2
  %v1297 = vmul.f32 %v785, 0.2
  %v1298 = vmul.f32 %v786, 0.2
  %v1299 = vmul.f32 %v787, 0.2
  %v1300 = vmul.f32 %v788, 0.2
  %v1301 = vmul.f32 %v789, 0.2
  %v1302 = vmul.f32 %v790, 0.2
  %v1303 = vmul.f32 %v791, 0.2
  %v1304 = vmul.f32 %v792, 0.2
  %v1305 = vmul.f32 %v793, 0.2
  %v1306 = vmul.f32 %v794, 0.2
  %v1307 = vmul.f32 %v795, 0.2
  %v1308 = vsel %vm796, %v540, %v1052
  %v1309 = vsel %vm797, %v541, %v1053
  %v1310 = vsel %vm798, %v542, %v1054
  %v1311 = vsel %vm799, %v543, %v1055
  %v1312 = vsel %vm800, %v544, %v1056
  %v1313 = vsel %vm801, %v545, %v1057
  %v1314 = vsel %vm802, %v546, %v1058
  %v1315 = vsel %vm803, %v547, %v1059
  %v1316 = vsel %vm804, %v548, %v1060
  %v1317 = vsel %vm805, %v549, %v1061
  %v1318 = vsel %vm806, %v550, %v1062
  %v1319 = vsel %vm807, %v551, %v1063
  %v1320 = vsel %vm808, %v552, %v1064
  %v1321 = vsel %vm809, %v553, %v1065
  %v1322 = vsel %vm810, %v554, %v1066
  %v1323 = vsel %vm811, %v555, %v1067
  %v1324 = vsel %vm812, %v556, %v1068
  %v1325 = vsel %vm813, %v557, %v1069
  %v1326 = vsel %vm814, %v558, %v1070
  %v1327 = vsel %vm815, %v559, %v1071
  %v1328 = vsel %vm816, %v560, %v1072
  %v1329 = vsel %vm817, %v561, %v1073
  %v1330 = vsel %vm818, %v562, %v1074
  %v1331 = vsel %vm819, %v563, %v1075
  %v1332 = vsel %vm820, %v564, %v1076
  %v1333 = vsel %vm821, %v565, %v1077
  %v1334 = vsel %vm822, %v566, %v1078
  %v1335 = vsel %vm823, %v567, %v1079
  %v1336 = vsel %vm824, %v568, %v1080
  %v1337 = vsel %vm825, %v569, %v1081
  %v1338 = vsel %vm826, %v570, %v1082
  %v1339 = vsel %vm827, %v571, %v1083
  %v1340 = vsel %vm828, %v572, %v1084
  %v1341 = vsel %vm829, %v573, %v1085
  %v1342 = vsel %vm830, %v574, %v1086
  %v1343 = vsel %vm831, %v575, %v1087
  %v1344 = vsel %vm832, %v576, %v1088
  %v1345 = vsel %vm833, %v577, %v1089
  %v1346 = vsel %vm834, %v578, %v1090
  %v1347 = vsel %vm835, %v579, %v1091
  %v1348 = vsel %vm836, %v580, %v1092
  %v1349 = vsel %vm837, %v581, %v1093
  %v1350 = vsel %vm838, %v582, %v1094
  %v1351 = vsel %vm839, %v583, %v1095
  %v1352 = vsel %vm840, %v584, %v1096
  %v1353 = vsel %vm841, %v585, %v1097
  %v1354 = vsel %vm842, %v586, %v1098
  %v1355 = vsel %vm843, %v587, %v1099
  %v1356 = vsel %vm844, %v588, %v1100
  %v1357 = vsel %vm845, %v589, %v1101
  %v1358 = vsel %vm846, %v590, %v1102
  %v1359 = vsel %vm847, %v591, %v1103
  %v1360 = vsel %vm848, %v592, %v1104
  %v1361 = vsel %vm849, %v593, %v1105
  %v1362 = vsel %vm850, %v594, %v1106
  %v1363 = vsel %vm851, %v595, %v1107
  %v1364 = vsel %vm852, %v596, %v1108
  %v1365 = vsel %vm853, %v597, %v1109
  %v1366 = vsel %vm854, %v598, %v1110
  %v1367 = vsel %vm855, %v599, %v1111
  %v1368 = vsel %vm856, %v600, %v1112
  %v1369 = vsel %vm857, %v601, %v1113
  %v1370 = vsel %vm858, %v602, %v1114
  %v1371 = vsel %vm859, %v603, %v1115
  %v1372 = vsel %vm860, %v604, %v1116
  %v1373 = vsel %vm861, %v605, %v1117
  %v1374 = vsel %vm862, %v606, %v1118
  %v1375 = vsel %vm863, %v607, %v1119
  %v1376 = vsel %vm864, %v608, %v1120
  %v1377 = vsel %vm865, %v609, %v1121
  %v1378 = vsel %vm866, %v610, %v1122
  %v1379 = vsel %vm867, %v611, %v1123
  %v1380 = vsel %vm868, %v612, %v1124
  %v1381 = vsel %vm869, %v613, %v1125
  %v1382 = vsel %vm870, %v614, %v1126
  %v1383 = vsel %vm871, %v615, %v1127
  %v1384 = vsel %vm872, %v616, %v1128
  %v1385 = vsel %vm873, %v617, %v1129
  %v1386 = vsel %vm874, %v618, %v1130
  %v1387 = vsel %vm875, %v619, %v1131
  %v1388 = vsel %vm876, %v620, %v1132
  %v1389 = vsel %vm877, %v621, %v1133
  %v1390 = vsel %vm878, %v622, %v1134
  %v1391 = vsel %vm879, %v623, %v1135
  %v1392 = vsel %vm880, %v624, %v1136
  %v1393 = vsel %vm881, %v625, %v1137
  %v1394 = vsel %vm882, %v626, %v1138
  %v1395 = vsel %vm883, %v627, %v1139
  %v1396 = vsel %vm884, %v628, %v1140
  %v1397 = vsel %vm885, %v629, %v1141
  %v1398 = vsel %vm886, %v630, %v1142
  %v1399 = vsel %vm887, %v631, %v1143
  %v1400 = vsel %vm888, %v632, %v1144
  %v1401 = vsel %vm889, %v633, %v1145
  %v1402 = vsel %vm890, %v634, %v1146
  %v1403 = vsel %vm891, %v635, %v1147
  %v1404 = vsel %vm892, %v636, %v1148
  %v1405 = vsel %vm893, %v637, %v1149
  %v1406 = vsel %vm894, %v638, %v1150
  %v1407 = vsel %vm895, %v639, %v1151
  %v1408 = vsel %vm896, %v640, %v1152
  %v1409 = vsel %vm897, %v641, %v1153
  %v1410 = vsel %vm898, %v642, %v1154
  %v1411 = vsel %vm899, %v643, %v1155
  %v1412 = vsel %vm900, %v644, %v1156
  %v1413 = vsel %vm901, %v645, %v1157
  %v1414 = vsel %vm902, %v646, %v1158
  %v1415 = vsel %vm903, %v647, %v1159
  %v1416 = vsel %vm904, %v648, %v1160
  %v1417 = vsel %vm905, %v649, %v1161
  %v1418 = vsel %vm906, %v650, %v1162
  %v1419 = vsel %vm907, %v651, %v1163
  %v1420 = vsel %vm908, %v652, %v1164
  %v1421 = vsel %vm909, %v653, %v1165
  %v1422 = vsel %vm910, %v654, %v1166
  %v1423 = vsel %vm911, %v655, %v1167
  %v1424 = vsel %vm912, %v656, %v1168
  %v1425 = vsel %vm913, %v657, %v1169
  %v1426 = vsel %vm914, %v658, %v1170
  %v1427 = vsel %vm915, %v659, %v1171
  %v1428 = vsel %vm916, %v660, %v1172
  %v1429 = vsel %vm917, %v661, %v1173
  %v1430 = vsel %vm918, %v662, %v1174
  %v1431 = vsel %vm919, %v663, %v1175
  %v1432 = vsel %vm920, %v664, %v1176
  %v1433 = vsel %vm921, %v665, %v1177
  %v1434 = vsel %vm922, %v666, %v1178
  %v1435 = vsel %vm923, %v667, %v1179
  %v1436 = vsel %vm924, %v668, %v1180
  %v1437 = vsel %vm925, %v669, %v1181
  %v1438 = vsel %vm926, %v670, %v1182
  %v1439 = vsel %vm927, %v671, %v1183
  %v1440 = vsel %vm928, %v672, %v1184
  %v1441 = vsel %vm929, %v673, %v1185
  %v1442 = vsel %vm930, %v674, %v1186
  %v1443 = vsel %vm931, %v675, %v1187
  %v1444 = vsel %vm932, %v676, %v1188
  %v1445 = vsel %vm933, %v677, %v1189
  %v1446 = vsel %vm934, %v678, %v1190
  %v1447 = vsel %vm935, %v679, %v1191
  %v1448 = vsel %vm936, %v680, %v1192
  %v1449 = vsel %vm937, %v681, %v1193
  %v1450 = vsel %vm938, %v682, %v1194
  %v1451 = vsel %vm939, %v683, %v1195
  %v1452 = vsel %vm940, %v684, %v1196
  %v1453 = vsel %vm941, %v685, %v1197
  %v1454 = vsel %vm942, %v686, %v1198
  %v1455 = vsel %vm943, %v687, %v1199
  %v1456 = vsel %vm944, %v688, %v1200
  %v1457 = vsel %vm945, %v689, %v1201
  %v1458 = vsel %vm946, %v690, %v1202
  %v1459 = vsel %vm947, %v691, %v1203
  %v1460 = vsel %vm948, %v692, %v1204
  %v1461 = vsel %vm949, %v693, %v1205
  %v1462 = vsel %vm950, %v694, %v1206
  %v1463 = vsel %vm951, %v695, %v1207
  %v1464 = vsel %vm952, %v696, %v1208
  %v1465 = vsel %vm953, %v697, %v1209
  %v1466 = vsel %vm954, %v698, %v1210
  %v1467 = vsel %vm955, %v699, %v1211
  %v1468 = vsel %vm956, %v700, %v1212
  %v1469 = vsel %vm957, %v701, %v1213
  %v1470 = vsel %vm958, %v702, %v1214
  %v1471 = vsel %vm959, %v703, %v1215
  %v1472 = vsel %vm960, %v704, %v1216
  %v1473 = vsel %vm961, %v705, %v1217
  %v1474 = vsel %vm962, %v706, %v1218
  %v1475 = vsel %vm963, %v707, %v1219
  %v1476 = vsel %vm964, %v708, %v1220
  %v1477 = vsel %vm965, %v709, %v1221
  %v1478 = vsel %vm966, %v710, %v1222
  %v1479 = vsel %vm967, %v711, %v1223
  %v1480 = vsel %vm968, %v712, %v1224
  %v1481 = vsel %vm969, %v713, %v1225
  %v1482 = vsel %vm970, %v714, %v1226
  %v1483 = vsel %vm971, %v715, %v1227
  %v1484 = vsel %vm972, %v716, %v1228
  %v1485 = vsel %vm973, %v717, %v1229
  %v1486 = vsel %vm974, %v718, %v1230
  %v1487 = vsel %vm975, %v719, %v1231
  %v1488 = vsel %vm976, %v720, %v1232
  %v1489 = vsel %vm977, %v721, %v1233
  %v1490 = vsel %vm978, %v722, %v1234
  %v1491 = vsel %vm979, %v723, %v1235
  %v1492 = vsel %vm980, %v724, %v1236
  %v1493 = vsel %vm981, %v725, %v1237
  %v1494 = vsel %vm982, %v726, %v1238
  %v1495 = vsel %vm983, %v727, %v1239
  %v1496 = vsel %vm984, %v728, %v1240
  %v1497 = vsel %vm985, %v729, %v1241
  %v1498 = vsel %vm986, %v730, %v1242
  %v1499 = vsel %vm987, %v731, %v1243
  %v1500 = vsel %vm988, %v732, %v1244
  %v1501 = vsel %vm989, %v733, %v1245
  %v1502 = vsel %vm990, %v734, %v1246
  %v1503 = vsel %vm991, %v735, %v1247
  %v1504 = vsel %vm992, %v736, %v1248
  %v1505 = vsel %vm993, %v737, %v1249
  %v1506 = vsel %vm994, %v738, %v1250
  %v1507 = vsel %vm995, %v739, %v1251
  %v1508 = vsel %vm996, %v740, %v1252
  %v1509 = vsel %vm997, %v741, %v1253
  %v1510 = vsel %vm998, %v742, %v1254
  %v1511 = vsel %vm999, %v743, %v1255
  %v1512 = vsel %vm1000, %v744, %v1256
  %v1513 = vsel %vm1001, %v745, %v1257
  %v1514 = vsel %vm1002, %v746, %v1258
  %v1515 = vsel %vm1003, %v747, %v1259
  %v1516 = vsel %vm1004, %v748, %v1260
  %v1517 = vsel %vm1005, %v749, %v1261
  %v1518 = vsel %vm1006, %v750, %v1262
  %v1519 = vsel %vm1007, %v751, %v1263
  %v1520 = vsel %vm1008, %v752, %v1264
  %v1521 = vsel %vm1009, %v753, %v1265
  %v1522 = vsel %vm1010, %v754, %v1266
  %v1523 = vsel %vm1011, %v755, %v1267
  %v1524 = vsel %vm1012, %v756, %v1268
  %v1525 = vsel %vm1013, %v757, %v1269
  %v1526 = vsel %vm1014, %v758, %v1270
  %v1527 = vsel %vm1015, %v759, %v1271
  %v1528 = vsel %vm1016, %v760, %v1272
  %v1529 = vsel %vm1017, %v761, %v1273
  %v1530 = vsel %vm1018, %v762, %v1274
  %v1531 = vsel %vm1019, %v763, %v1275
  %v1532 = vsel %vm1020, %v764, %v1276
  %v1533 = vsel %vm1021, %v765, %v1277
  %v1534 = vsel %vm1022, %v766, %v1278
  %v1535 = vsel %vm1023, %v767, %v1279
  %v1536 = vsel %vm1024, %v768, %v1280
  %v1537 = vsel %vm1025, %v769, %v1281
  %v1538 = vsel %vm1026, %v770, %v1282
  %v1539 = vsel %vm1027, %v771, %v1283
  %v1540 = vsel %vm1028, %v772, %v1284
  %v1541 = vsel %vm1029, %v773, %v1285
  %v1542 = vsel %vm1030, %v774, %v1286
  %v1543 = vsel %vm1031, %v775, %v1287
  %v1544 = vsel %vm1032, %v776, %v1288
  %v1545 = vsel %vm1033, %v777, %v1289
  %v1546 = vsel %vm1034, %v778, %v1290
  %v1547 = vsel %vm1035, %v779, %v1291
  %v1548 = vsel %vm1036, %v780, %v1292
  %v1549 = vsel %vm1037, %v781, %v1293
  %v1550 = vsel %vm1038, %v782, %v1294
  %v1551 = vsel %vm1039, %v783, %v1295
  %v1552 = vsel %vm1040, %v784, %v1296
  %v1553 = vsel %vm1041, %v785, %v1297
  %v1554 = vsel %vm1042, %v786, %v1298
  %v1555 = vsel %vm1043, %v787, %v1299
  %v1556 = vsel %vm1044, %v788, %v1300
  %v1557 = vsel %vm1045, %v789, %v1301
  %v1558 = vsel %vm1046, %v790, %v1302
  %v1559 = vsel %vm1047, %v791, %v1303
  %v1560 = vsel %vm1048, %v792, %v1304
  %v1561 = vsel %vm1049, %v793, %v1305
  %v1562 = vsel %vm1050, %v794, %v1306
  %v1563 = vsel %vm1051, %v795, %v1307
  %v1564 = vpack.c.bf16 %v1309, %v1308
  %v1565 = vpack.c.bf16 %v1311, %v1310
  %v1566 = vpack.c.bf16 %v1313, %v1312
  %v1567 = vpack.c.bf16 %v1315, %v1314
  %v1568 = vpack.c.bf16 %v1317, %v1316
  %v1569 = vpack.c.bf16 %v1319, %v1318
  %v1570 = vpack.c.bf16 %v1321, %v1320
  %v1571 = vpack.c.bf16 %v1323, %v1322
  %v1572 = vpack.c.bf16 %v1325, %v1324
  %v1573 = vpack.c.bf16 %v1327, %v1326
  %v1574 = vpack.c.bf16 %v1329, %v1328
  %v1575 = vpack.c.bf16 %v1331, %v1330
  %v1576 = vpack.c.bf16 %v1333, %v1332
  %v1577 = vpack.c.bf16 %v1335, %v1334
  %v1578 = vpack.c.bf16 %v1337, %v1336
  %v1579 = vpack.c.bf16 %v1339, %v1338
  %v1580 = vpack.c.bf16 %v1341, %v1340
  %v1581 = vpack.c.bf16 %v1343, %v1342
  %v1582 = vpack.c.bf16 %v1345, %v1344
  %v1583 = vpack.c.bf16 %v1347, %v1346
  %v1584 = vpack.c.bf16 %v1349, %v1348
  %v1585 = vpack.c.bf16 %v1351, %v1350
  %v1586 = vpack.c.bf16 %v1353, %v1352
  %v1587 = vpack.c.bf16 %v1355, %v1354
  %v1588 = vpack.c.bf16 %v1357, %v1356
  %v1589 = vpack.c.bf16 %v1359, %v1358
  %v1590 = vpack.c.bf16 %v1361, %v1360
  %v1591 = vpack.c.bf16 %v1363, %v1362
  %v1592 = vpack.c.bf16 %v1365, %v1364
  %v1593 = vpack.c.bf16 %v1367, %v1366
  %v1594 = vpack.c.bf16 %v1369, %v1368
  %v1595 = vpack.c.bf16 %v1371, %v1370
  %v1596 = vpack.c.bf16 %v1373, %v1372
  %v1597 = vpack.c.bf16 %v1375, %v1374
  %v1598 = vpack.c.bf16 %v1377, %v1376
  %v1599 = vpack.c.bf16 %v1379, %v1378
  %v1600 = vpack.c.bf16 %v1381, %v1380
  %v1601 = vpack.c.bf16 %v1383, %v1382
  %v1602 = vpack.c.bf16 %v1385, %v1384
  %v1603 = vpack.c.bf16 %v1387, %v1386
  %v1604 = vpack.c.bf16 %v1389, %v1388
  %v1605 = vpack.c.bf16 %v1391, %v1390
  %v1606 = vpack.c.bf16 %v1393, %v1392
  %v1607 = vpack.c.bf16 %v1395, %v1394
  %v1608 = vpack.c.bf16 %v1397, %v1396
  %v1609 = vpack.c.bf16 %v1399, %v1398
  %v1610 = vpack.c.bf16 %v1401, %v1400
  %v1611 = vpack.c.bf16 %v1403, %v1402
  %v1612 = vpack.c.bf16 %v1405, %v1404
  %v1613 = vpack.c.bf16 %v1407, %v1406
  %v1614 = vpack.c.bf16 %v1409, %v1408
  %v1615 = vpack.c.bf16 %v1411, %v1410
  %v1616 = vpack.c.bf16 %v1413, %v1412
  %v1617 = vpack.c.bf16 %v1415, %v1414
  %v1618 = vpack.c.bf16 %v1417, %v1416
  %v1619 = vpack.c.bf16 %v1419, %v1418
  %v1620 = vpack.c.bf16 %v1421, %v1420
  %v1621 = vpack.c.bf16 %v1423, %v1422
  %v1622 = vpack.c.bf16 %v1425, %v1424
  %v1623 = vpack.c.bf16 %v1427, %v1426
  %v1624 = vpack.c.bf16 %v1429, %v1428
  %v1625 = vpack.c.bf16 %v1431, %v1430
  %v1626 = vpack.c.bf16 %v1433, %v1432
  %v1627 = vpack.c.bf16 %v1435, %v1434
  %v1628 = vpack.c.bf16 %v1437, %v1436
  %v1629 = vpack.c.bf16 %v1439, %v1438
  %v1630 = vpack.c.bf16 %v1441, %v1440
  %v1631 = vpack.c.bf16 %v1443, %v1442
  %v1632 = vpack.c.bf16 %v1445, %v1444
  %v1633 = vpack.c.bf16 %v1447, %v1446
  %v1634 = vpack.c.bf16 %v1449, %v1448
  %v1635 = vpack.c.bf16 %v1451, %v1450
  %v1636 = vpack.c.bf16 %v1453, %v1452
  %v1637 = vpack.c.bf16 %v1455, %v1454
  %v1638 = vpack.c.bf16 %v1457, %v1456
  %v1639 = vpack.c.bf16 %v1459, %v1458
  %v1640 = vpack.c.bf16 %v1461, %v1460
  %v1641 = vpack.c.bf16 %v1463, %v1462
  %v1642 = vpack.c.bf16 %v1465, %v1464
  %v1643 = vpack.c.bf16 %v1467, %v1466
  %v1644 = vpack.c.bf16 %v1469, %v1468
  %v1645 = vpack.c.bf16 %v1471, %v1470
  %v1646 = vpack.c.bf16 %v1473, %v1472
  %v1647 = vpack.c.bf16 %v1475, %v1474
  %v1648 = vpack.c.bf16 %v1477, %v1476
  %v1649 = vpack.c.bf16 %v1479, %v1478
  %v1650 = vpack.c.bf16 %v1481, %v1480
  %v1651 = vpack.c.bf16 %v1483, %v1482
  %v1652 = vpack.c.bf16 %v1485, %v1484
  %v1653 = vpack.c.bf16 %v1487, %v1486
  %v1654 = vpack.c.bf16 %v1489, %v1488
  %v1655 = vpack.c.bf16 %v1491, %v1490
  %v1656 = vpack.c.bf16 %v1493, %v1492
  %v1657 = vpack.c.bf16 %v1495, %v1494
  %v1658 = vpack.c.bf16 %v1497, %v1496
  %v1659 = vpack.c.bf16 %v1499, %v1498
  %v1660 = vpack.c.bf16 %v1501, %v1500
  %v1661 = vpack.c.bf16 %v1503, %v1502
  %v1662 = vpack.c.bf16 %v1505, %v1504
  %v1663 = vpack.c.bf16 %v1507, %v1506
  %v1664 = vpack.c.bf16 %v1509, %v1508
  %v1665 = vpack.c.bf16 %v1511, %v1510
  %v1666 = vpack.c.bf16 %v1513, %v1512
  %v1667 = vpack.c.bf16 %v1515, %v1514
  %v1668 = vpack.c.bf16 %v1517, %v1516
  %v1669 = vpack.c.bf16 %v1519, %v1518
  %v1670 = vpack.c.bf16 %v1521, %v1520
  %v1671 = vpack.c.bf16 %v1523, %v1522
  %v1672 = vpack.c.bf16 %v1525, %v1524
  %v1673 = vpack.c.bf16 %v1527, %v1526
  %v1674 = vpack.c.bf16 %v1529, %v1528
  %v1675 = vpack.c.bf16 %v1531, %v1530
  %v1676 = vpack.c.bf16 %v1533, %v1532
  %v1677 = vpack.c.bf16 %v1535, %v1534
  %v1678 = vpack.c.bf16 %v1537, %v1536
  %v1679 = vpack.c.bf16 %v1539, %v1538
  %v1680 = vpack.c.bf16 %v1541, %v1540
  %v1681 = vpack.c.bf16 %v1543, %v1542
  %v1682 = vpack.c.bf16 %v1545, %v1544
  %v1683 = vpack.c.bf16 %v1547, %v1546
  %v1684 = vpack.c.bf16 %v1549, %v1548
  %v1685 = vpack.c.bf16 %v1551, %v1550
  %v1686 = vpack.c.bf16 %v1553, %v1552
  %v1687 = vpack.c.bf16 %v1555, %v1554
  %v1688 = vpack.c.bf16 %v1557, %v1556
  %v1689 = vpack.c.bf16 %v1559, %v1558
  %v1690 = vpack.c.bf16 %v1561, %v1560
  %v1691 = vpack.c.bf16 %v1563, %v1562
  %v1820 = vunpack.c.l.b16 %v1564
  %v1821 = vunpack.c.h.b16 %v1564
  %v1822 = vunpack.c.l.b16 %v1565
  %v1823 = vunpack.c.h.b16 %v1565
  %v1824 = vunpack.c.l.b16 %v1566
  %v1825 = vunpack.c.h.b16 %v1566
  %v1826 = vunpack.c.l.b16 %v1567
  %v1827 = vunpack.c.h.b16 %v1567
  %v1828 = vunpack.c.l.b16 %v1568
  %v1829 = vunpack.c.h.b16 %v1568
  %v1830 = vunpack.c.l.b16 %v1569
  %v1831 = vunpack.c.h.b16 %v1569
  %v1832 = vunpack.c.l.b16 %v1570
  %v1833 = vunpack.c.h.b16 %v1570
  %v1834 = vunpack.c.l.b16 %v1571
  %v1835 = vunpack.c.h.b16 %v1571
  %v1836 = vunpack.c.l.b16 %v1572
  %v1837 = vunpack.c.h.b16 %v1572
  %v1838 = vunpack.c.l.b16 %v1573
  %v1839 = vunpack.c.h.b16 %v1573
  %v1840 = vunpack.c.l.b16 %v1574
  %v1841 = vunpack.c.h.b16 %v1574
  %v1842 = vunpack.c.l.b16 %v1575
  %v1843 = vunpack.c.h.b16 %v1575
  %v1844 = vunpack.c.l.b16 %v1576
  %v1845 = vunpack.c.h.b16 %v1576
  %v1846 = vunpack.c.l.b16 %v1577
  %v1847 = vunpack.c.h.b16 %v1577
  %v1848 = vunpack.c.l.b16 %v1578
  %v1849 = vunpack.c.h.b16 %v1578
  %v1850 = vunpack.c.l.b16 %v1579
  %v1851 = vunpack.c.h.b16 %v1579
  %v1852 = vunpack.c.l.b16 %v1580
  %v1853 = vunpack.c.h.b16 %v1580
  %v1854 = vunpack.c.l.b16 %v1581
  %v1855 = vunpack.c.h.b16 %v1581
  %v1856 = vunpack.c.l.b16 %v1582
  %v1857 = vunpack.c.h.b16 %v1582
  %v1858 = vunpack.c.l.b16 %v1583
  %v1859 = vunpack.c.h.b16 %v1583
  %v1860 = vunpack.c.l.b16 %v1584
  %v1861 = vunpack.c.h.b16 %v1584
  %v1862 = vunpack.c.l.b16 %v1585
  %v1863 = vunpack.c.h.b16 %v1585
  %v1864 = vunpack.c.l.b16 %v1586
  %v1865 = vunpack.c.h.b16 %v1586
  %v1866 = vunpack.c.l.b16 %v1587
  %v1867 = vunpack.c.h.b16 %v1587
  %v1868 = vunpack.c.l.b16 %v1588
  %v1869 = vunpack.c.h.b16 %v1588
  %v1870 = vunpack.c.l.b16 %v1589
  %v1871 = vunpack.c.h.b16 %v1589
  %v1872 = vunpack.c.l.b16 %v1590
  %v1873 = vunpack.c.h.b16 %v1590
  %v1874 = vunpack.c.l.b16 %v1591
  %v1875 = vunpack.c.h.b16 %v1591
  %v1876 = vunpack.c.l.b16 %v1592
  %v1877 = vunpack.c.h.b16 %v1592
  %v1878 = vunpack.c.l.b16 %v1593
  %v1879 = vunpack.c.h.b16 %v1593
  %v1880 = vunpack.c.l.b16 %v1594
  %v1881 = vunpack.c.h.b16 %v1594
  %v1882 = vunpack.c.l.b16 %v1595
  %v1883 = vunpack.c.h.b16 %v1595
  %v1884 = vunpack.c.l.b16 %v1596
  %v1885 = vunpack.c.h.b16 %v1596
  %v1886 = vunpack.c.l.b16 %v1597
  %v1887 = vunpack.c.h.b16 %v1597
  %v1888 = vunpack.c.l.b16 %v1598
  %v1889 = vunpack.c.h.b16 %v1598
  %v1890 = vunpack.c.l.b16 %v1599
  %v1891 = vunpack.c.h.b16 %v1599
  %v1892 = vunpack.c.l.b16 %v1600
  %v1893 = vunpack.c.h.b16 %v1600
  %v1894 = vunpack.c.l.b16 %v1601
  %v1895 = vunpack.c.h.b16 %v1601
  %v1896 = vunpack.c.l.b16 %v1602
  %v1897 = vunpack.c.h.b16 %v1602
  %v1898 = vunpack.c.l.b16 %v1603
  %v1899 = vunpack.c.h.b16 %v1603
  %v1900 = vunpack.c.l.b16 %v1604
  %v1901 = vunpack.c.h.b16 %v1604
  %v1902 = vunpack.c.l.b16 %v1605
  %v1903 = vunpack.c.h.b16 %v1605
  %v1904 = vunpack.c.l.b16 %v1606
  %v1905 = vunpack.c.h.b16 %v1606
  %v1906 = vunpack.c.l.b16 %v1607
  %v1907 = vunpack.c.h.b16 %v1607
  %v1908 = vunpack.c.l.b16 %v1608
  %v1909 = vunpack.c.h.b16 %v1608
  %v1910 = vunpack.c.l.b16 %v1609
  %v1911 = vunpack.c.h.b16 %v1609
  %v1912 = vunpack.c.l.b16 %v1610
  %v1913 = vunpack.c.h.b16 %v1610
  %v1914 = vunpack.c.l.b16 %v1611
  %v1915 = vunpack.c.h.b16 %v1611
  %v1916 = vunpack.c.l.b16 %v1612
  %v1917 = vunpack.c.h.b16 %v1612
  %v1918 = vunpack.c.l.b16 %v1613
  %v1919 = vunpack.c.h.b16 %v1613
  %v1920 = vunpack.c.l.b16 %v1614
  %v1921 = vunpack.c.h.b16 %v1614
  %v1922 = vunpack.c.l.b16 %v1615
  %v1923 = vunpack.c.h.b16 %v1615
  %v1924 = vunpack.c.l.b16 %v1616
  %v1925 = vunpack.c.h.b16 %v1616
  %v1926 = vunpack.c.l.b16 %v1617
  %v1927 = vunpack.c.h.b16 %v1617
  %v1928 = vunpack.c.l.b16 %v1618
  %v1929 = vunpack.c.h.b16 %v1618
  %v1930 = vunpack.c.l.b16 %v1619
  %v1931 = vunpack.c.h.b16 %v1619
  %v1932 = vunpack.c.l.b16 %v1620
  %v1933 = vunpack.c.h.b16 %v1620
  %v1934 = vunpack.c.l.b16 %v1621
  %v1935 = vunpack.c.h.b16 %v1621
  %v1936 = vunpack.c.l.b16 %v1622
  %v1937 = vunpack.c.h.b16 %v1622
  %v1938 = vunpack.c.l.b16 %v1623
  %v1939 = vunpack.c.h.b16 %v1623
  %v1940 = vunpack.c.l.b16 %v1624
  %v1941 = vunpack.c.h.b16 %v1624
  %v1942 = vunpack.c.l.b16 %v1625
  %v1943 = vunpack.c.h.b16 %v1625
  %v1944 = vunpack.c.l.b16 %v1626
  %v1945 = vunpack.c.h.b16 %v1626
  %v1946 = vunpack.c.l.b16 %v1627
  %v1947 = vunpack.c.h.b16 %v1627
  %v1948 = vunpack.c.l.b16 %v1628
  %v1949 = vunpack.c.h.b16 %v1628
  %v1950 = vunpack.c.l.b16 %v1629
  %v1951 = vunpack.c.h.b16 %v1629
  %v1952 = vunpack.c.l.b16 %v1630
  %v1953 = vunpack.c.h.b16 %v1630
  %v1954 = vunpack.c.l.b16 %v1631
  %v1955 = vunpack.c.h.b16 %v1631
  %v1956 = vunpack.c.l.b16 %v1632
  %v1957 = vunpack.c.h.b16 %v1632
  %v1958 = vunpack.c.l.b16 %v1633
  %v1959 = vunpack.c.h.b16 %v1633
  %v1960 = vunpack.c.l.b16 %v1634
  %v1961 = vunpack.c.h.b16 %v1634
  %v1962 = vunpack.c.l.b16 %v1635
  %v1963 = vunpack.c.h.b16 %v1635
  %v1964 = vunpack.c.l.b16 %v1636
  %v1965 = vunpack.c.h.b16 %v1636
  %v1966 = vunpack.c.l.b16 %v1637
  %v1967 = vunpack.c.h.b16 %v1637
  %v1968 = vunpack.c.l.b16 %v1638
  %v1969 = vunpack.c.h.b16 %v1638
  %v1970 = vunpack.c.l.b16 %v1639
  %v1971 = vunpack.c.h.b16 %v1639
  %v1972 = vunpack.c.l.b16 %v1640
  %v1973 = vunpack.c.h.b16 %v1640
  %v1974 = vunpack.c.l.b16 %v1641
  %v1975 = vunpack.c.h.b16 %v1641
  %v1976 = vunpack.c.l.b16 %v1642
  %v1977 = vunpack.c.h.b16 %v1642
  %v1978 = vunpack.c.l.b16 %v1643
  %v1979 = vunpack.c.h.b16 %v1643
  %v1980 = vunpack.c.l.b16 %v1644
  %v1981 = vunpack.c.h.b16 %v1644
  %v1982 = vunpack.c.l.b16 %v1645
  %v1983 = vunpack.c.h.b16 %v1645
  %v1984 = vunpack.c.l.b16 %v1646
  %v1985 = vunpack.c.h.b16 %v1646
  %v1986 = vunpack.c.l.b16 %v1647
  %v1987 = vunpack.c.h.b16 %v1647
  %v1988 = vunpack.c.l.b16 %v1648
  %v1989 = vunpack.c.h.b16 %v1648
  %v1990 = vunpack.c.l.b16 %v1649
  %v1991 = vunpack.c.h.b16 %v1649
  %v1992 = vunpack.c.l.b16 %v1650
  %v1993 = vunpack.c.h.b16 %v1650
  %v1994 = vunpack.c.l.b16 %v1651
  %v1995 = vunpack.c.h.b16 %v1651
  %v1996 = vunpack.c.l.b16 %v1652
  %v1997 = vunpack.c.h.b16 %v1652
  %v1998 = vunpack.c.l.b16 %v1653
  %v1999 = vunpack.c.h.b16 %v1653
  %v2000 = vunpack.c.l.b16 %v1654
  %v2001 = vunpack.c.h.b16 %v1654
  %v2002 = vunpack.c.l.b16 %v1655
  %v2003 = vunpack.c.h.b16 %v1655
  %v2004 = vunpack.c.l.b16 %v1656
  %v2005 = vunpack.c.h.b16 %v1656
  %v2006 = vunpack.c.l.b16 %v1657
  %v2007 = vunpack.c.h.b16 %v1657
  %v2008 = vunpack.c.l.b16 %v1658
  %v2009 = vunpack.c.h.b16 %v1658
  %v2010 = vunpack.c.l.b16 %v1659
  %v2011 = vunpack.c.h.b16 %v1659
  %v2012 = vunpack.c.l.b16 %v1660
  %v2013 = vunpack.c.h.b16 %v1660
  %v2014 = vunpack.c.l.b16 %v1661
  %v2015 = vunpack.c.h.b16 %v1661
  %v2016 = vunpack.c.l.b16 %v1662
  %v2017 = vunpack.c.h.b16 %v1662
  %v2018 = vunpack.c.l.b16 %v1663
  %v2019 = vunpack.c.h.b16 %v1663
  %v2020 = vunpack.c.l.b16 %v1664
  %v2021 = vunpack.c.h.b16 %v1664
  %v2022 = vunpack.c.l.b16 %v1665
  %v2023 = vunpack.c.h.b16 %v1665
  %v2024 = vunpack.c.l.b16 %v1666
  %v2025 = vunpack.c.h.b16 %v1666
  %v2026 = vunpack.c.l.b16 %v1667
  %v2027 = vunpack.c.h.b16 %v1667
  %v2028 = vunpack.c.l.b16 %v1668
  %v2029 = vunpack.c.h.b16 %v1668
  %v2030 = vunpack.c.l.b16 %v1669
  %v2031 = vunpack.c.h.b16 %v1669
  %v2032 = vunpack.c.l.b16 %v1670
  %v2033 = vunpack.c.h.b16 %v1670
  %v2034 = vunpack.c.l.b16 %v1671
  %v2035 = vunpack.c.h.b16 %v1671
  %v2036 = vunpack.c.l.b16 %v1672
  %v2037 = vunpack.c.h.b16 %v1672
  %v2038 = vunpack.c.l.b16 %v1673
  %v2039 = vunpack.c.h.b16 %v1673
  %v2040 = vunpack.c.l.b16 %v1674
  %v2041 = vunpack.c.h.b16 %v1674
  %v2042 = vunpack.c.l.b16 %v1675
  %v2043 = vunpack.c.h.b16 %v1675
  %v2044 = vunpack.c.l.b16 %v1676
  %v2045 = vunpack.c.h.b16 %v1676
  %v2046 = vunpack.c.l.b16 %v1677
  %v2047 = vunpack.c.h.b16 %v1677
  %v2048 = vunpack.c.l.b16 %v1678
  %v2049 = vunpack.c.h.b16 %v1678
  %v2050 = vunpack.c.l.b16 %v1679
  %v2051 = vunpack.c.h.b16 %v1679
  %v2052 = vunpack.c.l.b16 %v1680
  %v2053 = vunpack.c.h.b16 %v1680
  %v2054 = vunpack.c.l.b16 %v1681
  %v2055 = vunpack.c.h.b16 %v1681
  %v2056 = vunpack.c.l.b16 %v1682
  %v2057 = vunpack.c.h.b16 %v1682
  %v2058 = vunpack.c.l.b16 %v1683
  %v2059 = vunpack.c.h.b16 %v1683
  %v2060 = vunpack.c.l.b16 %v1684
  %v2061 = vunpack.c.h.b16 %v1684
  %v2062 = vunpack.c.l.b16 %v1685
  %v2063 = vunpack.c.h.b16 %v1685
  %v2064 = vunpack.c.l.b16 %v1686
  %v2065 = vunpack.c.h.b16 %v1686
  %v2066 = vunpack.c.l.b16 %v1687
  %v2067 = vunpack.c.h.b16 %v1687
  %v2068 = vunpack.c.l.b16 %v1688
  %v2069 = vunpack.c.h.b16 %v1688
  %v2070 = vunpack.c.l.b16 %v1689
  %v2071 = vunpack.c.h.b16 %v1689
  %v2072 = vunpack.c.l.b16 %v1690
  %v2073 = vunpack.c.h.b16 %v1690
  %v2074 = vunpack.c.l.b16 %v1691
  %v2075 = vunpack.c.h.b16 %v1691
  %v2076 = vpack.c.b16 %v1820, %v1820
  %v2077 = vpack.c.b16 %v1821, %v1821
  %v2078 = vpack.c.b16 %v1822, %v1822
  %v2079 = vpack.c.b16 %v1823, %v1823
  %v2080 = vpack.c.b16 %v1824, %v1824
  %v2081 = vpack.c.b16 %v1825, %v1825
  %v2082 = vpack.c.b16 %v1826, %v1826
  %v2083 = vpack.c.b16 %v1827, %v1827
  %v2084 = vpack.c.b16 %v1828, %v1828
  %v2085 = vpack.c.b16 %v1829, %v1829
  %v2086 = vpack.c.b16 %v1830, %v1830
  %v2087 = vpack.c.b16 %v1831, %v1831
  %v2088 = vpack.c.b16 %v1832, %v1832
  %v2089 = vpack.c.b16 %v1833, %v1833
  %v2090 = vpack.c.b16 %v1834, %v1834
  %v2091 = vpack.c.b16 %v1835, %v1835
  %v2092 = vpack.c.b16 %v1836, %v1836
  %v2093 = vpack.c.b16 %v1837, %v1837
  %v2094 = vpack.c.b16 %v1838, %v1838
  %v2095 = vpack.c.b16 %v1839, %v1839
  %v2096 = vpack.c.b16 %v1840, %v1840
  %v2097 = vpack.c.b16 %v1841, %v1841
  %v2098 = vpack.c.b16 %v1842, %v1842
  %v2099 = vpack.c.b16 %v1843, %v1843
  %v2100 = vpack.c.b16 %v1844, %v1844
  %v2101 = vpack.c.b16 %v1845, %v1845
  %v2102 = vpack.c.b16 %v1846, %v1846
  %v2103 = vpack.c.b16 %v1847, %v1847
  %v2104 = vpack.c.b16 %v1848, %v1848
  %v2105 = vpack.c.b16 %v1849, %v1849
  %v2106 = vpack.c.b16 %v1850, %v1850
  %v2107 = vpack.c.b16 %v1851, %v1851
  %v2108 = vpack.c.b16 %v1852, %v1852
  %v2109 = vpack.c.b16 %v1853, %v1853
  %v2110 = vpack.c.b16 %v1854, %v1854
  %v2111 = vpack.c.b16 %v1855, %v1855
  %v2112 = vpack.c.b16 %v1856, %v1856
  %v2113 = vpack.c.b16 %v1857, %v1857
  %v2114 = vpack.c.b16 %v1858, %v1858
  %v2115 = vpack.c.b16 %v1859, %v1859
  %v2116 = vpack.c.b16 %v1860, %v1860
  %v2117 = vpack.c.b16 %v1861, %v1861
  %v2118 = vpack.c.b16 %v1862, %v1862
  %v2119 = vpack.c.b16 %v1863, %v1863
  %v2120 = vpack.c.b16 %v1864, %v1864
  %v2121 = vpack.c.b16 %v1865, %v1865
  %v2122 = vpack.c.b16 %v1866, %v1866
  %v2123 = vpack.c.b16 %v1867, %v1867
  %v2124 = vpack.c.b16 %v1868, %v1868
  %v2125 = vpack.c.b16 %v1869, %v1869
  %v2126 = vpack.c.b16 %v1870, %v1870
  %v2127 = vpack.c.b16 %v1871, %v1871
  %v2128 = vpack.c.b16 %v1872, %v1872
  %v2129 = vpack.c.b16 %v1873, %v1873
  %v2130 = vpack.c.b16 %v1874, %v1874
  %v2131 = vpack.c.b16 %v1875, %v1875
  %v2132 = vpack.c.b16 %v1876, %v1876
  %v2133 = vpack.c.b16 %v1877, %v1877
  %v2134 = vpack.c.b16 %v1878, %v1878
  %v2135 = vpack.c.b16 %v1879, %v1879
  %v2136 = vpack.c.b16 %v1880, %v1880
  %v2137 = vpack.c.b16 %v1881, %v1881
  %v2138 = vpack.c.b16 %v1882, %v1882
  %v2139 = vpack.c.b16 %v1883, %v1883
  %v2140 = vpack.c.b16 %v1884, %v1884
  %v2141 = vpack.c.b16 %v1885, %v1885
  %v2142 = vpack.c.b16 %v1886, %v1886
  %v2143 = vpack.c.b16 %v1887, %v1887
  %v2144 = vpack.c.b16 %v1888, %v1888
  %v2145 = vpack.c.b16 %v1889, %v1889
  %v2146 = vpack.c.b16 %v1890, %v1890
  %v2147 = vpack.c.b16 %v1891, %v1891
  %v2148 = vpack.c.b16 %v1892, %v1892
  %v2149 = vpack.c.b16 %v1893, %v1893
  %v2150 = vpack.c.b16 %v1894, %v1894
  %v2151 = vpack.c.b16 %v1895, %v1895
  %v2152 = vpack.c.b16 %v1896, %v1896
  %v2153 = vpack.c.b16 %v1897, %v1897
  %v2154 = vpack.c.b16 %v1898, %v1898
  %v2155 = vpack.c.b16 %v1899, %v1899
  %v2156 = vpack.c.b16 %v1900, %v1900
  %v2157 = vpack.c.b16 %v1901, %v1901
  %v2158 = vpack.c.b16 %v1902, %v1902
  %v2159 = vpack.c.b16 %v1903, %v1903
  %v2160 = vpack.c.b16 %v1904, %v1904
  %v2161 = vpack.c.b16 %v1905, %v1905
  %v2162 = vpack.c.b16 %v1906, %v1906
  %v2163 = vpack.c.b16 %v1907, %v1907
  %v2164 = vpack.c.b16 %v1908, %v1908
  %v2165 = vpack.c.b16 %v1909, %v1909
  %v2166 = vpack.c.b16 %v1910, %v1910
  %v2167 = vpack.c.b16 %v1911, %v1911
  %v2168 = vpack.c.b16 %v1912, %v1912
  %v2169 = vpack.c.b16 %v1913, %v1913
  %v2170 = vpack.c.b16 %v1914, %v1914
  %v2171 = vpack.c.b16 %v1915, %v1915
  %v2172 = vpack.c.b16 %v1916, %v1916
  %v2173 = vpack.c.b16 %v1917, %v1917
  %v2174 = vpack.c.b16 %v1918, %v1918
  %v2175 = vpack.c.b16 %v1919, %v1919
  %v2176 = vpack.c.b16 %v1920, %v1920
  %v2177 = vpack.c.b16 %v1921, %v1921
  %v2178 = vpack.c.b16 %v1922, %v1922
  %v2179 = vpack.c.b16 %v1923, %v1923
  %v2180 = vpack.c.b16 %v1924, %v1924
  %v2181 = vpack.c.b16 %v1925, %v1925
  %v2182 = vpack.c.b16 %v1926, %v1926
  %v2183 = vpack.c.b16 %v1927, %v1927
  %v2184 = vpack.c.b16 %v1928, %v1928
  %v2185 = vpack.c.b16 %v1929, %v1929
  %v2186 = vpack.c.b16 %v1930, %v1930
  %v2187 = vpack.c.b16 %v1931, %v1931
  %v2188 = vpack.c.b16 %v1932, %v1932
  %v2189 = vpack.c.b16 %v1933, %v1933
  %v2190 = vpack.c.b16 %v1934, %v1934
  %v2191 = vpack.c.b16 %v1935, %v1935
  %v2192 = vpack.c.b16 %v1936, %v1936
  %v2193 = vpack.c.b16 %v1937, %v1937
  %v2194 = vpack.c.b16 %v1938, %v1938
  %v2195 = vpack.c.b16 %v1939, %v1939
  %v2196 = vpack.c.b16 %v1940, %v1940
  %v2197 = vpack.c.b16 %v1941, %v1941
  %v2198 = vpack.c.b16 %v1942, %v1942
  %v2199 = vpack.c.b16 %v1943, %v1943
  %v2200 = vpack.c.b16 %v1944, %v1944
  %v2201 = vpack.c.b16 %v1945, %v1945
  %v2202 = vpack.c.b16 %v1946, %v1946
  %v2203 = vpack.c.b16 %v1947, %v1947
  %v2204 = vpack.c.b16 %v1948, %v1948
  %v2205 = vpack.c.b16 %v1949, %v1949
  %v2206 = vpack.c.b16 %v1950, %v1950
  %v2207 = vpack.c.b16 %v1951, %v1951
  %v2208 = vpack.c.b16 %v1952, %v1952
  %v2209 = vpack.c.b16 %v1953, %v1953
  %v2210 = vpack.c.b16 %v1954, %v1954
  %v2211 = vpack.c.b16 %v1955, %v1955
  %v2212 = vpack.c.b16 %v1956, %v1956
  %v2213 = vpack.c.b16 %v1957, %v1957
  %v2214 = vpack.c.b16 %v1958, %v1958
  %v2215 = vpack.c.b16 %v1959, %v1959
  %v2216 = vpack.c.b16 %v1960, %v1960
  %v2217 = vpack.c.b16 %v1961, %v1961
  %v2218 = vpack.c.b16 %v1962, %v1962
  %v2219 = vpack.c.b16 %v1963, %v1963
  %v2220 = vpack.c.b16 %v1964, %v1964
  %v2221 = vpack.c.b16 %v1965, %v1965
  %v2222 = vpack.c.b16 %v1966, %v1966
  %v2223 = vpack.c.b16 %v1967, %v1967
  %v2224 = vpack.c.b16 %v1968, %v1968
  %v2225 = vpack.c.b16 %v1969, %v1969
  %v2226 = vpack.c.b16 %v1970, %v1970
  %v2227 = vpack.c.b16 %v1971, %v1971
  %v2228 = vpack.c.b16 %v1972, %v1972
  %v2229 = vpack.c.b16 %v1973, %v1973
  %v2230 = vpack.c.b16 %v1974, %v1974
  %v2231 = vpack.c.b16 %v1975, %v1975
  %v2232 = vpack.c.b16 %v1976, %v1976
  %v2233 = vpack.c.b16 %v1977, %v1977
  %v2234 = vpack.c.b16 %v1978, %v1978
  %v2235 = vpack.c.b16 %v1979, %v1979
  %v2236 = vpack.c.b16 %v1980, %v1980
  %v2237 = vpack.c.b16 %v1981, %v1981
  %v2238 = vpack.c.b16 %v1982, %v1982
  %v2239 = vpack.c.b16 %v1983, %v1983
  %v2240 = vpack.c.b16 %v1984, %v1984
  %v2241 = vpack.c.b16 %v1985, %v1985
  %v2242 = vpack.c.b16 %v1986, %v1986
  %v2243 = vpack.c.b16 %v1987, %v1987
  %v2244 = vpack.c.b16 %v1988, %v1988
  %v2245 = vpack.c.b16 %v1989, %v1989
  %v2246 = vpack.c.b16 %v1990, %v1990
  %v2247 = vpack.c.b16 %v1991, %v1991
  %v2248 = vpack.c.b16 %v1992, %v1992
  %v2249 = vpack.c.b16 %v1993, %v1993
  %v2250 = vpack.c.b16 %v1994, %v1994
  %v2251 = vpack.c.b16 %v1995, %v1995
  %v2252 = vpack.c.b16 %v1996, %v1996
  %v2253 = vpack.c.b16 %v1997, %v1997
  %v2254 = vpack.c.b16 %v1998, %v1998
  %v2255 = vpack.c.b16 %v1999, %v1999
  %v2256 = vpack.c.b16 %v2000, %v2000
  %v2257 = vpack.c.b16 %v2001, %v2001
  %v2258 = vpack.c.b16 %v2002, %v2002
  %v2259 = vpack.c.b16 %v2003, %v2003
  %v2260 = vpack.c.b16 %v2004, %v2004
  %v2261 = vpack.c.b16 %v2005, %v2005
  %v2262 = vpack.c.b16 %v2006, %v2006
  %v2263 = vpack.c.b16 %v2007, %v2007
  %v2264 = vpack.c.b16 %v2008, %v2008
  %v2265 = vpack.c.b16 %v2009, %v2009
  %v2266 = vpack.c.b16 %v2010, %v2010
  %v2267 = vpack.c.b16 %v2011, %v2011
  %v2268 = vpack.c.b16 %v2012, %v2012
  %v2269 = vpack.c.b16 %v2013, %v2013
  %v2270 = vpack.c.b16 %v2014, %v2014
  %v2271 = vpack.c.b16 %v2015, %v2015
  %v2272 = vpack.c.b16 %v2016, %v2016
  %v2273 = vpack.c.b16 %v2017, %v2017
  %v2274 = vpack.c.b16 %v2018, %v2018
  %v2275 = vpack.c.b16 %v2019, %v2019
  %v2276 = vpack.c.b16 %v2020, %v2020
  %v2277 = vpack.c.b16 %v2021, %v2021
  %v2278 = vpack.c.b16 %v2022, %v2022
  %v2279 = vpack.c.b16 %v2023, %v2023
  %v2280 = vpack.c.b16 %v2024, %v2024
  %v2281 = vpack.c.b16 %v2025, %v2025
  %v2282 = vpack.c.b16 %v2026, %v2026
  %v2283 = vpack.c.b16 %v2027, %v2027
  %v2284 = vpack.c.b16 %v2028, %v2028
  %v2285 = vpack.c.b16 %v2029, %v2029
  %v2286 = vpack.c.b16 %v2030, %v2030
  %v2287 = vpack.c.b16 %v2031, %v2031
  %v2288 = vpack.c.b16 %v2032, %v2032
  %v2289 = vpack.c.b16 %v2033, %v2033
  %v2290 = vpack.c.b16 %v2034, %v2034
  %v2291 = vpack.c.b16 %v2035, %v2035
  %v2292 = vpack.c.b16 %v2036, %v2036
  %v2293 = vpack.c.b16 %v2037, %v2037
  %v2294 = vpack.c.b16 %v2038, %v2038
  %v2295 = vpack.c.b16 %v2039, %v2039
  %v2296 = vpack.c.b16 %v2040, %v2040
  %v2297 = vpack.c.b16 %v2041, %v2041
  %v2298 = vpack.c.b16 %v2042, %v2042
  %v2299 = vpack.c.b16 %v2043, %v2043
  %v2300 = vpack.c.b16 %v2044, %v2044
  %v2301 = vpack.c.b16 %v2045, %v2045
  %v2302 = vpack.c.b16 %v2046, %v2046
  %v2303 = vpack.c.b16 %v2047, %v2047
  %v2304 = vpack.c.b16 %v2048, %v2048
  %v2305 = vpack.c.b16 %v2049, %v2049
  %v2306 = vpack.c.b16 %v2050, %v2050
  %v2307 = vpack.c.b16 %v2051, %v2051
  %v2308 = vpack.c.b16 %v2052, %v2052
  %v2309 = vpack.c.b16 %v2053, %v2053
  %v2310 = vpack.c.b16 %v2054, %v2054
  %v2311 = vpack.c.b16 %v2055, %v2055
  %v2312 = vpack.c.b16 %v2056, %v2056
  %v2313 = vpack.c.b16 %v2057, %v2057
  %v2314 = vpack.c.b16 %v2058, %v2058
  %v2315 = vpack.c.b16 %v2059, %v2059
  %v2316 = vpack.c.b16 %v2060, %v2060
  %v2317 = vpack.c.b16 %v2061, %v2061
  %v2318 = vpack.c.b16 %v2062, %v2062
  %v2319 = vpack.c.b16 %v2063, %v2063
  %v2320 = vpack.c.b16 %v2064, %v2064
  %v2321 = vpack.c.b16 %v2065, %v2065
  %v2322 = vpack.c.b16 %v2066, %v2066
  %v2323 = vpack.c.b16 %v2067, %v2067
  %v2324 = vpack.c.b16 %v2068, %v2068
  %v2325 = vpack.c.b16 %v2069, %v2069
  %v2326 = vpack.c.b16 %v2070, %v2070
  %v2327 = vpack.c.b16 %v2071, %v2071
  %v2328 = vpack.c.b16 %v2072, %v2072
  %v2329 = vpack.c.b16 %v2073, %v2073
  %v2330 = vpack.c.b16 %v2074, %v2074
  %v2331 = vpack.c.b16 %v2075, %v2075
  %vm2588 = vcmask 60416
  %2589 = vst.msk [vmem:[%s3] sm:$0xf] %vm2588, %v2076
  %2590 = vst.msk [vmem:[%s3 + $0x4] sm:$0xf] %vm2588, %v2077
  %2591 = vst.msk [vmem:[%s3 + $0x8] sm:$0xf] %vm2588, %v2078
  %2592 = vst.msk [vmem:[%s3 + $0xc] sm:$0xf] %vm2588, %v2079
  %2593 = vst.msk [vmem:[%s3 + $0x10] sm:$0xf] %vm2588, %v2080
  %2594 = vst.msk [vmem:[%s3 + $0x14] sm:$0xf] %vm2588, %v2081
  %2595 = vst.msk [vmem:[%s3 + $0x18] sm:$0xf] %vm2588, %v2082
  %2596 = vst.msk [vmem:[%s3 + $0x1c] sm:$0xf] %vm2588, %v2083
  %2597 = vst.msk [vmem:[%s3 + $0x20] sm:$0xf] %vm2588, %v2084
  %2598 = vst.msk [vmem:[%s3 + $0x24] sm:$0xf] %vm2588, %v2085
  %2599 = vst.msk [vmem:[%s3 + $0x28] sm:$0xf] %vm2588, %v2086
  %2600 = vst.msk [vmem:[%s3 + $0x2c] sm:$0xf] %vm2588, %v2087
  %2601 = vst.msk [vmem:[%s3 + $0x30] sm:$0xf] %vm2588, %v2088
  %2602 = vst.msk [vmem:[%s3 + $0x34] sm:$0xf] %vm2588, %v2089
  %2603 = vst.msk [vmem:[%s3 + $0x38] sm:$0xf] %vm2588, %v2090
  %2604 = vst.msk [vmem:[%s3 + $0x3c] sm:$0xf] %vm2588, %v2091
  %2605 = vst.msk [vmem:[%s3 + $0x40] sm:$0xf] %vm2588, %v2092
  %2606 = vst.msk [vmem:[%s3 + $0x44] sm:$0xf] %vm2588, %v2093
  %2607 = vst.msk [vmem:[%s3 + $0x48] sm:$0xf] %vm2588, %v2094
  %2608 = vst.msk [vmem:[%s3 + $0x4c] sm:$0xf] %vm2588, %v2095
  %2609 = vst.msk [vmem:[%s3 + $0x50] sm:$0xf] %vm2588, %v2096
  %2610 = vst.msk [vmem:[%s3 + $0x54] sm:$0xf] %vm2588, %v2097
  %2611 = vst.msk [vmem:[%s3 + $0x58] sm:$0xf] %vm2588, %v2098
  %2612 = vst.msk [vmem:[%s3 + $0x5c] sm:$0xf] %vm2588, %v2099
  %2613 = vst.msk [vmem:[%s3 + $0x60] sm:$0xf] %vm2588, %v2100
  %2614 = vst.msk [vmem:[%s3 + $0x64] sm:$0xf] %vm2588, %v2101
  %2615 = vst.msk [vmem:[%s3 + $0x68] sm:$0xf] %vm2588, %v2102
  %2616 = vst.msk [vmem:[%s3 + $0x6c] sm:$0xf] %vm2588, %v2103
  %2617 = vst.msk [vmem:[%s3 + $0x70] sm:$0xf] %vm2588, %v2104
  %2618 = vst.msk [vmem:[%s3 + $0x74] sm:$0xf] %vm2588, %v2105
  %2619 = vst.msk [vmem:[%s3 + $0x78] sm:$0xf] %vm2588, %v2106
  %2620 = vst.msk [vmem:[%s3 + $0x7c] sm:$0xf] %vm2588, %v2107
  %2621 = vst.msk [vmem:[%s3 + $0x80] sm:$0xf] %vm2588, %v2108
  %2622 = vst.msk [vmem:[%s3 + $0x84] sm:$0xf] %vm2588, %v2109
  %2623 = vst.msk [vmem:[%s3 + $0x88] sm:$0xf] %vm2588, %v2110
  %2624 = vst.msk [vmem:[%s3 + $0x8c] sm:$0xf] %vm2588, %v2111
  %2625 = vst.msk [vmem:[%s3 + $0x90] sm:$0xf] %vm2588, %v2112
  %2626 = vst.msk [vmem:[%s3 + $0x94] sm:$0xf] %vm2588, %v2113
  %2627 = vst.msk [vmem:[%s3 + $0x98] sm:$0xf] %vm2588, %v2114
  %2628 = vst.msk [vmem:[%s3 + $0x9c] sm:$0xf] %vm2588, %v2115
  %2629 = vst.msk [vmem:[%s3 + $0xa0] sm:$0xf] %vm2588, %v2116
  %2630 = vst.msk [vmem:[%s3 + $0xa4] sm:$0xf] %vm2588, %v2117
  %2631 = vst.msk [vmem:[%s3 + $0xa8] sm:$0xf] %vm2588, %v2118
  %2632 = vst.msk [vmem:[%s3 + $0xac] sm:$0xf] %vm2588, %v2119
  %2633 = vst.msk [vmem:[%s3 + $0xb0] sm:$0xf] %vm2588, %v2120
  %2634 = vst.msk [vmem:[%s3 + $0xb4] sm:$0xf] %vm2588, %v2121
  %2635 = vst.msk [vmem:[%s3 + $0xb8] sm:$0xf] %vm2588, %v2122
  %2636 = vst.msk [vmem:[%s3 + $0xbc] sm:$0xf] %vm2588, %v2123
  %2637 = vst.msk [vmem:[%s3 + $0xc0] sm:$0xf] %vm2588, %v2124
  %2638 = vst.msk [vmem:[%s3 + $0xc4] sm:$0xf] %vm2588, %v2125
  %2639 = vst.msk [vmem:[%s3 + $0xc8] sm:$0xf] %vm2588, %v2126
  %2640 = vst.msk [vmem:[%s3 + $0xcc] sm:$0xf] %vm2588, %v2127
  %2641 = vst.msk [vmem:[%s3 + $0xd0] sm:$0xf] %vm2588, %v2128
  %2642 = vst.msk [vmem:[%s3 + $0xd4] sm:$0xf] %vm2588, %v2129
  %2643 = vst.msk [vmem:[%s3 + $0xd8] sm:$0xf] %vm2588, %v2130
  %2644 = vst.msk [vmem:[%s3 + $0xdc] sm:$0xf] %vm2588, %v2131
  %2645 = vst.msk [vmem:[%s3 + $0xe0] sm:$0xf] %vm2588, %v2132
  %2646 = vst.msk [vmem:[%s3 + $0xe4] sm:$0xf] %vm2588, %v2133
  %2647 = vst.msk [vmem:[%s3 + $0xe8] sm:$0xf] %vm2588, %v2134
  %2648 = vst.msk [vmem:[%s3 + $0xec] sm:$0xf] %vm2588, %v2135
  %2649 = vst.msk [vmem:[%s3 + $0xf0] sm:$0xf] %vm2588, %v2136
  %2650 = vst.msk [vmem:[%s3 + $0xf4] sm:$0xf] %vm2588, %v2137
  %2651 = vst.msk [vmem:[%s3 + $0xf8] sm:$0xf] %vm2588, %v2138
  %2652 = vst.msk [vmem:[%s3 + $0xfc] sm:$0xf] %vm2588, %v2139
  %2653 = vst.msk [vmem:[%s3 + $0x100] sm:$0xf] %vm2588, %v2140
  %2654 = vst.msk [vmem:[%s3 + $0x104] sm:$0xf] %vm2588, %v2141
  %2655 = vst.msk [vmem:[%s3 + $0x108] sm:$0xf] %vm2588, %v2142
  %2656 = vst.msk [vmem:[%s3 + $0x10c] sm:$0xf] %vm2588, %v2143
  %2657 = vst.msk [vmem:[%s3 + $0x110] sm:$0xf] %vm2588, %v2144
  %2658 = vst.msk [vmem:[%s3 + $0x114] sm:$0xf] %vm2588, %v2145
  %2659 = vst.msk [vmem:[%s3 + $0x118] sm:$0xf] %vm2588, %v2146
  %2660 = vst.msk [vmem:[%s3 + $0x11c] sm:$0xf] %vm2588, %v2147
  %2661 = vst.msk [vmem:[%s3 + $0x120] sm:$0xf] %vm2588, %v2148
  %2662 = vst.msk [vmem:[%s3 + $0x124] sm:$0xf] %vm2588, %v2149
  %2663 = vst.msk [vmem:[%s3 + $0x128] sm:$0xf] %vm2588, %v2150
  %2664 = vst.msk [vmem:[%s3 + $0x12c] sm:$0xf] %vm2588, %v2151
  %2665 = vst.msk [vmem:[%s3 + $0x130] sm:$0xf] %vm2588, %v2152
  %2666 = vst.msk [vmem:[%s3 + $0x134] sm:$0xf] %vm2588, %v2153
  %2667 = vst.msk [vmem:[%s3 + $0x138] sm:$0xf] %vm2588, %v2154
  %2668 = vst.msk [vmem:[%s3 + $0x13c] sm:$0xf] %vm2588, %v2155
  %2669 = vst.msk [vmem:[%s3 + $0x140] sm:$0xf] %vm2588, %v2156
  %2670 = vst.msk [vmem:[%s3 + $0x144] sm:$0xf] %vm2588, %v2157
  %2671 = vst.msk [vmem:[%s3 + $0x148] sm:$0xf] %vm2588, %v2158
  %2672 = vst.msk [vmem:[%s3 + $0x14c] sm:$0xf] %vm2588, %v2159
  %2673 = vst.msk [vmem:[%s3 + $0x150] sm:$0xf] %vm2588, %v2160
  %2674 = vst.msk [vmem:[%s3 + $0x154] sm:$0xf] %vm2588, %v2161
  %2675 = vst.msk [vmem:[%s3 + $0x158] sm:$0xf] %vm2588, %v2162
  %2676 = vst.msk [vmem:[%s3 + $0x15c] sm:$0xf] %vm2588, %v2163
  %2677 = vst.msk [vmem:[%s3 + $0x160] sm:$0xf] %vm2588, %v2164
  %2678 = vst.msk [vmem:[%s3 + $0x164] sm:$0xf] %vm2588, %v2165
  %2679 = vst.msk [vmem:[%s3 + $0x168] sm:$0xf] %vm2588, %v2166
  %2680 = vst.msk [vmem:[%s3 + $0x16c] sm:$0xf] %vm2588, %v2167
  %2681 = vst.msk [vmem:[%s3 + $0x170] sm:$0xf] %vm2588, %v2168
  %2682 = vst.msk [vmem:[%s3 + $0x174] sm:$0xf] %vm2588, %v2169
  %2683 = vst.msk [vmem:[%s3 + $0x178] sm:$0xf] %vm2588, %v2170
  %2684 = vst.msk [vmem:[%s3 + $0x17c] sm:$0xf] %vm2588, %v2171
  %2685 = vst.msk [vmem:[%s3 + $0x180] sm:$0xf] %vm2588, %v2172
  %2686 = vst.msk [vmem:[%s3 + $0x184] sm:$0xf] %vm2588, %v2173
  %2687 = vst.msk [vmem:[%s3 + $0x188] sm:$0xf] %vm2588, %v2174
  %2688 = vst.msk [vmem:[%s3 + $0x18c] sm:$0xf] %vm2588, %v2175
  %2689 = vst.msk [vmem:[%s3 + $0x190] sm:$0xf] %vm2588, %v2176
  %2690 = vst.msk [vmem:[%s3 + $0x194] sm:$0xf] %vm2588, %v2177
  %2691 = vst.msk [vmem:[%s3 + $0x198] sm:$0xf] %vm2588, %v2178
  %2692 = vst.msk [vmem:[%s3 + $0x19c] sm:$0xf] %vm2588, %v2179
  %2693 = vst.msk [vmem:[%s3 + $0x1a0] sm:$0xf] %vm2588, %v2180
  %2694 = vst.msk [vmem:[%s3 + $0x1a4] sm:$0xf] %vm2588, %v2181
  %2695 = vst.msk [vmem:[%s3 + $0x1a8] sm:$0xf] %vm2588, %v2182
  %2696 = vst.msk [vmem:[%s3 + $0x1ac] sm:$0xf] %vm2588, %v2183
  %2697 = vst.msk [vmem:[%s3 + $0x1b0] sm:$0xf] %vm2588, %v2184
  %2698 = vst.msk [vmem:[%s3 + $0x1b4] sm:$0xf] %vm2588, %v2185
  %2699 = vst.msk [vmem:[%s3 + $0x1b8] sm:$0xf] %vm2588, %v2186
  %2700 = vst.msk [vmem:[%s3 + $0x1bc] sm:$0xf] %vm2588, %v2187
  %2701 = vst.msk [vmem:[%s3 + $0x1c0] sm:$0xf] %vm2588, %v2188
  %2702 = vst.msk [vmem:[%s3 + $0x1c4] sm:$0xf] %vm2588, %v2189
  %2703 = vst.msk [vmem:[%s3 + $0x1c8] sm:$0xf] %vm2588, %v2190
  %2704 = vst.msk [vmem:[%s3 + $0x1cc] sm:$0xf] %vm2588, %v2191
  %2705 = vst.msk [vmem:[%s3 + $0x1d0] sm:$0xf] %vm2588, %v2192
  %2706 = vst.msk [vmem:[%s3 + $0x1d4] sm:$0xf] %vm2588, %v2193
  %2707 = vst.msk [vmem:[%s3 + $0x1d8] sm:$0xf] %vm2588, %v2194
  %2708 = vst.msk [vmem:[%s3 + $0x1dc] sm:$0xf] %vm2588, %v2195
  %2709 = vst.msk [vmem:[%s3 + $0x1e0] sm:$0xf] %vm2588, %v2196
  %2710 = vst.msk [vmem:[%s3 + $0x1e4] sm:$0xf] %vm2588, %v2197
  %2711 = vst.msk [vmem:[%s3 + $0x1e8] sm:$0xf] %vm2588, %v2198
  %2712 = vst.msk [vmem:[%s3 + $0x1ec] sm:$0xf] %vm2588, %v2199
  %2713 = vst.msk [vmem:[%s3 + $0x1f0] sm:$0xf] %vm2588, %v2200
  %2714 = vst.msk [vmem:[%s3 + $0x1f4] sm:$0xf] %vm2588, %v2201
  %2715 = vst.msk [vmem:[%s3 + $0x1f8] sm:$0xf] %vm2588, %v2202
  %2716 = vst.msk [vmem:[%s3 + $0x1fc] sm:$0xf] %vm2588, %v2203
  %2717 = vst.msk [vmem:[%s3 + $0x200] sm:$0xf] %vm2588, %v2204
  %2718 = vst.msk [vmem:[%s3 + $0x204] sm:$0xf] %vm2588, %v2205
  %2719 = vst.msk [vmem:[%s3 + $0x208] sm:$0xf] %vm2588, %v2206
  %2720 = vst.msk [vmem:[%s3 + $0x20c] sm:$0xf] %vm2588, %v2207
  %2721 = vst.msk [vmem:[%s3 + $0x210] sm:$0xf] %vm2588, %v2208
  %2722 = vst.msk [vmem:[%s3 + $0x214] sm:$0xf] %vm2588, %v2209
  %2723 = vst.msk [vmem:[%s3 + $0x218] sm:$0xf] %vm2588, %v2210
  %2724 = vst.msk [vmem:[%s3 + $0x21c] sm:$0xf] %vm2588, %v2211
  %2725 = vst.msk [vmem:[%s3 + $0x220] sm:$0xf] %vm2588, %v2212
  %2726 = vst.msk [vmem:[%s3 + $0x224] sm:$0xf] %vm2588, %v2213
  %2727 = vst.msk [vmem:[%s3 + $0x228] sm:$0xf] %vm2588, %v2214
  %2728 = vst.msk [vmem:[%s3 + $0x22c] sm:$0xf] %vm2588, %v2215
  %2729 = vst.msk [vmem:[%s3 + $0x230] sm:$0xf] %vm2588, %v2216
  %2730 = vst.msk [vmem:[%s3 + $0x234] sm:$0xf] %vm2588, %v2217
  %2731 = vst.msk [vmem:[%s3 + $0x238] sm:$0xf] %vm2588, %v2218
  %2732 = vst.msk [vmem:[%s3 + $0x23c] sm:$0xf] %vm2588, %v2219
  %2733 = vst.msk [vmem:[%s3 + $0x240] sm:$0xf] %vm2588, %v2220
  %2734 = vst.msk [vmem:[%s3 + $0x244] sm:$0xf] %vm2588, %v2221
  %2735 = vst.msk [vmem:[%s3 + $0x248] sm:$0xf] %vm2588, %v2222
  %2736 = vst.msk [vmem:[%s3 + $0x24c] sm:$0xf] %vm2588, %v2223
  %2737 = vst.msk [vmem:[%s3 + $0x250] sm:$0xf] %vm2588, %v2224
  %2738 = vst.msk [vmem:[%s3 + $0x254] sm:$0xf] %vm2588, %v2225
  %2739 = vst.msk [vmem:[%s3 + $0x258] sm:$0xf] %vm2588, %v2226
  %2740 = vst.msk [vmem:[%s3 + $0x25c] sm:$0xf] %vm2588, %v2227
  %2741 = vst.msk [vmem:[%s3 + $0x260] sm:$0xf] %vm2588, %v2228
  %2742 = vst.msk [vmem:[%s3 + $0x264] sm:$0xf] %vm2588, %v2229
  %2743 = vst.msk [vmem:[%s3 + $0x268] sm:$0xf] %vm2588, %v2230
  %2744 = vst.msk [vmem:[%s3 + $0x26c] sm:$0xf] %vm2588, %v2231
  %2745 = vst.msk [vmem:[%s3 + $0x270] sm:$0xf] %vm2588, %v2232
  %2746 = vst.msk [vmem:[%s3 + $0x274] sm:$0xf] %vm2588, %v2233
  %2747 = vst.msk [vmem:[%s3 + $0x278] sm:$0xf] %vm2588, %v2234
  %2748 = vst.msk [vmem:[%s3 + $0x27c] sm:$0xf] %vm2588, %v2235
  %2749 = vst.msk [vmem:[%s3 + $0x280] sm:$0xf] %vm2588, %v2236
  %2750 = vst.msk [vmem:[%s3 + $0x284] sm:$0xf] %vm2588, %v2237
  %2751 = vst.msk [vmem:[%s3 + $0x288] sm:$0xf] %vm2588, %v2238
  %2752 = vst.msk [vmem:[%s3 + $0x28c] sm:$0xf] %vm2588, %v2239
  %2753 = vst.msk [vmem:[%s3 + $0x290] sm:$0xf] %vm2588, %v2240
  %2754 = vst.msk [vmem:[%s3 + $0x294] sm:$0xf] %vm2588, %v2241
  %2755 = vst.msk [vmem:[%s3 + $0x298] sm:$0xf] %vm2588, %v2242
  %2756 = vst.msk [vmem:[%s3 + $0x29c] sm:$0xf] %vm2588, %v2243
  %2757 = vst.msk [vmem:[%s3 + $0x2a0] sm:$0xf] %vm2588, %v2244
  %2758 = vst.msk [vmem:[%s3 + $0x2a4] sm:$0xf] %vm2588, %v2245
  %2759 = vst.msk [vmem:[%s3 + $0x2a8] sm:$0xf] %vm2588, %v2246
  %2760 = vst.msk [vmem:[%s3 + $0x2ac] sm:$0xf] %vm2588, %v2247
  %2761 = vst.msk [vmem:[%s3 + $0x2b0] sm:$0xf] %vm2588, %v2248
  %2762 = vst.msk [vmem:[%s3 + $0x2b4] sm:$0xf] %vm2588, %v2249
  %2763 = vst.msk [vmem:[%s3 + $0x2b8] sm:$0xf] %vm2588, %v2250
  %2764 = vst.msk [vmem:[%s3 + $0x2bc] sm:$0xf] %vm2588, %v2251
  %2765 = vst.msk [vmem:[%s3 + $0x2c0] sm:$0xf] %vm2588, %v2252
  %2766 = vst.msk [vmem:[%s3 + $0x2c4] sm:$0xf] %vm2588, %v2253
  %2767 = vst.msk [vmem:[%s3 + $0x2c8] sm:$0xf] %vm2588, %v2254
  %2768 = vst.msk [vmem:[%s3 + $0x2cc] sm:$0xf] %vm2588, %v2255
  %2769 = vst.msk [vmem:[%s3 + $0x2d0] sm:$0xf] %vm2588, %v2256
  %2770 = vst.msk [vmem:[%s3 + $0x2d4] sm:$0xf] %vm2588, %v2257
  %2771 = vst.msk [vmem:[%s3 + $0x2d8] sm:$0xf] %vm2588, %v2258
  %2772 = vst.msk [vmem:[%s3 + $0x2dc] sm:$0xf] %vm2588, %v2259
  %2773 = vst.msk [vmem:[%s3 + $0x2e0] sm:$0xf] %vm2588, %v2260
  %2774 = vst.msk [vmem:[%s3 + $0x2e4] sm:$0xf] %vm2588, %v2261
  %2775 = vst.msk [vmem:[%s3 + $0x2e8] sm:$0xf] %vm2588, %v2262
  %2776 = vst.msk [vmem:[%s3 + $0x2ec] sm:$0xf] %vm2588, %v2263
  %2777 = vst.msk [vmem:[%s3 + $0x2f0] sm:$0xf] %vm2588, %v2264
  %2778 = vst.msk [vmem:[%s3 + $0x2f4] sm:$0xf] %vm2588, %v2265
  %2779 = vst.msk [vmem:[%s3 + $0x2f8] sm:$0xf] %vm2588, %v2266
  %2780 = vst.msk [vmem:[%s3 + $0x2fc] sm:$0xf] %vm2588, %v2267
  %2781 = vst.msk [vmem:[%s3 + $0x300] sm:$0xf] %vm2588, %v2268
  %2782 = vst.msk [vmem:[%s3 + $0x304] sm:$0xf] %vm2588, %v2269
  %2783 = vst.msk [vmem:[%s3 + $0x308] sm:$0xf] %vm2588, %v2270
  %2784 = vst.msk [vmem:[%s3 + $0x30c] sm:$0xf] %vm2588, %v2271
  %2785 = vst.msk [vmem:[%s3 + $0x310] sm:$0xf] %vm2588, %v2272
  %2786 = vst.msk [vmem:[%s3 + $0x314] sm:$0xf] %vm2588, %v2273
  %2787 = vst.msk [vmem:[%s3 + $0x318] sm:$0xf] %vm2588, %v2274
  %2788 = vst.msk [vmem:[%s3 + $0x31c] sm:$0xf] %vm2588, %v2275
  %2789 = vst.msk [vmem:[%s3 + $0x320] sm:$0xf] %vm2588, %v2276
  %2790 = vst.msk [vmem:[%s3 + $0x324] sm:$0xf] %vm2588, %v2277
  %2791 = vst.msk [vmem:[%s3 + $0x328] sm:$0xf] %vm2588, %v2278
  %2792 = vst.msk [vmem:[%s3 + $0x32c] sm:$0xf] %vm2588, %v2279
  %2793 = vst.msk [vmem:[%s3 + $0x330] sm:$0xf] %vm2588, %v2280
  %2794 = vst.msk [vmem:[%s3 + $0x334] sm:$0xf] %vm2588, %v2281
  %2795 = vst.msk [vmem:[%s3 + $0x338] sm:$0xf] %vm2588, %v2282
  %2796 = vst.msk [vmem:[%s3 + $0x33c] sm:$0xf] %vm2588, %v2283
  %2797 = vst.msk [vmem:[%s3 + $0x340] sm:$0xf] %vm2588, %v2284
  %2798 = vst.msk [vmem:[%s3 + $0x344] sm:$0xf] %vm2588, %v2285
  %2799 = vst.msk [vmem:[%s3 + $0x348] sm:$0xf] %vm2588, %v2286
  %2800 = vst.msk [vmem:[%s3 + $0x34c] sm:$0xf] %vm2588, %v2287
  %2801 = vst.msk [vmem:[%s3 + $0x350] sm:$0xf] %vm2588, %v2288
  %2802 = vst.msk [vmem:[%s3 + $0x354] sm:$0xf] %vm2588, %v2289
  %2803 = vst.msk [vmem:[%s3 + $0x358] sm:$0xf] %vm2588, %v2290
  %2804 = vst.msk [vmem:[%s3 + $0x35c] sm:$0xf] %vm2588, %v2291
  %2805 = vst.msk [vmem:[%s3 + $0x360] sm:$0xf] %vm2588, %v2292
  %2806 = vst.msk [vmem:[%s3 + $0x364] sm:$0xf] %vm2588, %v2293
  %2807 = vst.msk [vmem:[%s3 + $0x368] sm:$0xf] %vm2588, %v2294
  %2808 = vst.msk [vmem:[%s3 + $0x36c] sm:$0xf] %vm2588, %v2295
  %2809 = vst.msk [vmem:[%s3 + $0x370] sm:$0xf] %vm2588, %v2296
  %2810 = vst.msk [vmem:[%s3 + $0x374] sm:$0xf] %vm2588, %v2297
  %2811 = vst.msk [vmem:[%s3 + $0x378] sm:$0xf] %vm2588, %v2298
  %2812 = vst.msk [vmem:[%s3 + $0x37c] sm:$0xf] %vm2588, %v2299
  %2813 = vst.msk [vmem:[%s3 + $0x380] sm:$0xf] %vm2588, %v2300
  %2814 = vst.msk [vmem:[%s3 + $0x384] sm:$0xf] %vm2588, %v2301
  %2815 = vst.msk [vmem:[%s3 + $0x388] sm:$0xf] %vm2588, %v2302
  %2816 = vst.msk [vmem:[%s3 + $0x38c] sm:$0xf] %vm2588, %v2303
  %2817 = vst.msk [vmem:[%s3 + $0x390] sm:$0xf] %vm2588, %v2304
  %2818 = vst.msk [vmem:[%s3 + $0x394] sm:$0xf] %vm2588, %v2305
  %2819 = vst.msk [vmem:[%s3 + $0x398] sm:$0xf] %vm2588, %v2306
  %2820 = vst.msk [vmem:[%s3 + $0x39c] sm:$0xf] %vm2588, %v2307
  %2821 = vst.msk [vmem:[%s3 + $0x3a0] sm:$0xf] %vm2588, %v2308
  %2822 = vst.msk [vmem:[%s3 + $0x3a4] sm:$0xf] %vm2588, %v2309
  %2823 = vst.msk [vmem:[%s3 + $0x3a8] sm:$0xf] %vm2588, %v2310
  %2824 = vst.msk [vmem:[%s3 + $0x3ac] sm:$0xf] %vm2588, %v2311
  %2825 = vst.msk [vmem:[%s3 + $0x3b0] sm:$0xf] %vm2588, %v2312
  %2826 = vst.msk [vmem:[%s3 + $0x3b4] sm:$0xf] %vm2588, %v2313
  %2827 = vst.msk [vmem:[%s3 + $0x3b8] sm:$0xf] %vm2588, %v2314
  %2828 = vst.msk [vmem:[%s3 + $0x3bc] sm:$0xf] %vm2588, %v2315
  %2829 = vst.msk [vmem:[%s3 + $0x3c0] sm:$0xf] %vm2588, %v2316
  %2830 = vst.msk [vmem:[%s3 + $0x3c4] sm:$0xf] %vm2588, %v2317
  %2831 = vst.msk [vmem:[%s3 + $0x3c8] sm:$0xf] %vm2588, %v2318
  %2832 = vst.msk [vmem:[%s3 + $0x3cc] sm:$0xf] %vm2588, %v2319
  %2833 = vst.msk [vmem:[%s3 + $0x3d0] sm:$0xf] %vm2588, %v2320
  %2834 = vst.msk [vmem:[%s3 + $0x3d4] sm:$0xf] %vm2588, %v2321
  %2835 = vst.msk [vmem:[%s3 + $0x3d8] sm:$0xf] %vm2588, %v2322
  %2836 = vst.msk [vmem:[%s3 + $0x3dc] sm:$0xf] %vm2588, %v2323
  %2837 = vst.msk [vmem:[%s3 + $0x3e0] sm:$0xf] %vm2588, %v2324
  %2838 = vst.msk [vmem:[%s3 + $0x3e4] sm:$0xf] %vm2588, %v2325
  %2839 = vst.msk [vmem:[%s3 + $0x3e8] sm:$0xf] %vm2588, %v2326
  %2840 = vst.msk [vmem:[%s3 + $0x3ec] sm:$0xf] %vm2588, %v2327
  %2841 = vst.msk [vmem:[%s3 + $0x3f0] sm:$0xf] %vm2588, %v2328
  %2842 = vst.msk [vmem:[%s3 + $0x3f4] sm:$0xf] %vm2588, %v2329
  %2843 = vst.msk [vmem:[%s3 + $0x3f8] sm:$0xf] %vm2588, %v2330
  %2844 = vst.msk [vmem:[%s3 + $0x3fc] sm:$0xf] %vm2588, %v2331
  // Predicated region
  $region14: #{a_call__.30} parent=0 // pred_check
    _
  $region15: #{a_call__.30} parent=0 // pred_check_branch
    %2846 = sbr.rel (0) target = $region17
  $region16: #{a_call__.30} parent=0 // pred_region
    _
  $region17: #{a_call__.30} parent=0 // pred_fallthru
    _
  // Predicated region
  $region18: #{a_call__.30} parent=0 // pred_check
    _
  $region19: #{a_call__.30} parent=0 // pred_check_branch
    %2848 = sbr.rel (0) target = $region21
  $region20: #{a_call__.30} parent=0 // pred_region
    _
  $region21: #{a_call__.30} parent=0 // pred_fallthru
    _

// kernel: a_call__.31
$region0: #{a_call__.31}
  #allocation0 [shape = 'u32[]', space=smem, size = 0x4, offset = 0x4, fixed_abs, tag = 'smem constant byte address 0x4 - core index']
  #allocation1 [shape = 'u32[144,128]{1,0:T(1,128)}', space=vmem, size = 0x12000, scoped, tag = 'internal scratch']
  %s0 = inlined_call_operand.vmem [shape: bf16[2048,72], index: 0, kind: input, shape index: {}]
  %s1 = inlined_call_operand.vmem [shape: bf16[72,3], index: 1, kind: input, shape index: {}]
  %s2 = inlined_call_operand.vmem [shape: f32[1,3], index: 2, kind: input, shape index: {}]
  %s3 = inlined_call_operand.vmem [shape: f32[2048,3], index: 3, kind: output, shape index: {}]
  %s4 = sld [smem:[#allocation0]]
  $region45: #{a_call__.31} parent=0
    _
  %s6 = ssub.s32 1, %s4
  %s7 = scalar_select 0, %s6, %s4
  loop: start=0, step=1, limit=4
  $region2: #{a_call__.31} parent=0 // loop_pre_header
    _
  $region3: #{a_call__.31} parent=0 // loop_header
    %s9 = sphi 0, %s13
    %p10 = scmp.ge.s32.totalorder %s9, 4
    %s19 = sphi 0, %s21
    %s22 = sphi 0, %s19
    %s23 = sphi 0, %s22
    %s39 = sphi 0, %s23
    %s43 = sphi 0, %s43
    %s45 = sphi 0, %s43
    %s46 = sphi 0, %s45
    %s60 = sphi 0, %s46
    %s64 = sphi 0, %s64
    %s66 = sphi 0, %s64
    %s67 = sphi 0, %s66
    %s81 = sphi 0, %s67
    %s87 = sphi 0, %s89
    %s90 = sphi 0, %s87
    %s91 = sphi 0, %s90
    %s107 = sphi 0, %s91
  $region4: #{a_call__.31} parent=0 // loop_header_branch
    %12 = sbr.rel (%p10) target = $region8
  $region5: #{a_call__.31} parent=0 // loop_body
    %s14 = ssub.s32 %s9, 1
    %s15 = ssub.s32 %s9, 2
    %s16 = sadd.s32 %s9, 1
    %s17 = ssub.s32 %s9, %s16
    %p18 = scmp.eq.s32.totalorder %s17, 0
    %s20 = sadd.s32 %s19, 1
    %s21 = scalar_select %p18, %s19, %s20
    %p24 = pneg %p18
    %p25 = scmp.eq.s32.totalorder %s9, 1
    %p26 = por %p24, %p25
    %p27 = scmp.ne.s32.totalorder %s19, %s22
    %p28 = scmp.eq.s32.totalorder %s9, 0
    %p29 = por %p27, %p28
    %p30 = scmp.ne.s32.totalorder %s19, %s22
    %p31 = scmp.eq.s32.totalorder %s14, 1
    %p32 = por %p30, %p31
    %p33 = scmp.ne.s32.totalorder %s22, %s23
    %p34 = scmp.eq.s32.totalorder %s14, 0
    %p35 = por %p33, %p34
    %p36 = scmp.ne.s32.totalorder %s22, %s23
    %p37 = scmp.eq.s32.totalorder %s15, 1
    %p38 = por %p36, %p37
    %p40 = scmp.ne.s32.totalorder %s23, %s39
    %p41 = scmp.eq.s32.totalorder %s15, 0
    %p42 = por %p40, %p41
    %s44 = sadd.s32 %s43, 1
    %p47 = scmp.eq.s32.totalorder %s9, 1
    %p48 = scmp.ne.s32.totalorder %s43, %s45
    %p49 = scmp.eq.s32.totalorder %s9, 0
    %p50 = por %p48, %p49
    %p51 = scmp.ne.s32.totalorder %s43, %s45
    %p52 = scmp.eq.s32.totalorder %s14, 1
    %p53 = por %p51, %p52
    %p54 = scmp.ne.s32.totalorder %s45, %s46
    %p55 = scmp.eq.s32.totalorder %s14, 0
    %p56 = por %p54, %p55
    %p57 = scmp.ne.s32.totalorder %s45, %s46
    %p58 = scmp.eq.s32.totalorder %s15, 1
    %p59 = por %p57, %p58
    %p61 = scmp.ne.s32.totalorder %s46, %s60
    %p62 = scmp.eq.s32.totalorder %s15, 0
    %p63 = por %p61, %p62
    %s65 = sadd.s32 %s64, 1
    %p68 = scmp.eq.s32.totalorder %s9, 1
    %p69 = scmp.ne.s32.totalorder %s64, %s66
    %p70 = scmp.eq.s32.totalorder %s9, 0
    %p71 = por %p69, %p70
    %p72 = scmp.ne.s32.totalorder %s64, %s66
    %p73 = scmp.eq.s32.totalorder %s14, 1
    %p74 = por %p72, %p73
    %p75 = scmp.ne.s32.totalorder %s66, %s67
    %p76 = scmp.eq.s32.totalorder %s14, 0
    %p77 = por %p75, %p76
    %p78 = scmp.ne.s32.totalorder %s66, %s67
    %p79 = scmp.eq.s32.totalorder %s15, 1
    %p80 = por %p78, %p79
    %p82 = scmp.ne.s32.totalorder %s67, %s81
    %p83 = scmp.eq.s32.totalorder %s15, 0
    %p84 = por %p82, %p83
    %s85 = ssub.s32 %s9, %s16
    %p86 = scmp.eq.s32.totalorder %s85, 0
    %s88 = sadd.s32 %s87, 1
    %s89 = scalar_select %p86, %s87, %s88
    %p92 = pneg %p86
    %p93 = scmp.eq.s32.totalorder %s9, 1
    %p94 = por %p92, %p93
    %p95 = scmp.ne.s32.totalorder %s87, %s90
    %p96 = scmp.eq.s32.totalorder %s9, 0
    %p97 = por %p95, %p96
    %p98 = scmp.ne.s32.totalorder %s87, %s90
    %p99 = scmp.eq.s32.totalorder %s14, 1
    %p100 = por %p98, %p99
    %p101 = scmp.ne.s32.totalorder %s90, %s91
    %p102 = scmp.eq.s32.totalorder %s14, 0
    %p103 = por %p101, %p102
    %p104 = scmp.ne.s32.totalorder %s90, %s91
    %p105 = scmp.eq.s32.totalorder %s15, 1
    %p106 = por %p104, %p105
    %p108 = scmp.ne.s32.totalorder %s91, %s107
    %p109 = scmp.eq.s32.totalorder %s15, 0
    %p110 = por %p108, %p109
    %p111 = scmp.le.s32.totalorder 1, %s9
    %p112 = scmp.lt.s32.totalorder %s9, 3
    %p113 = pnand %p111, %p112
    %p114 = pneg %p113
    // Predicated region
    $region9: #{a_call__.31} parent=5 // pred_check
      _
    $region10: #{a_call__.31} parent=5 // pred_check_branch
      %116 = sbr.rel (%p113) target = $region12
    $region11: #{a_call__.31} parent=5 // pred_region
      %s117 = ssub.s32 %s9, 1
      // Predicated region
      $region13: #{a_call__.31} parent=11 // pred_check
        %p118 = pneg %p56
      $region14: #{a_call__.31} parent=11 // pred_check_branch
        %120 = sbr.rel (%p118) target = $region16
      $region15: #{a_call__.31} parent=11 // pred_region
        _
      $region16: #{a_call__.31} parent=11 // pred_fallthru
        _
      // Predicated region
      $region17: #{a_call__.31} parent=11 // pred_check
        %p121 = pneg %p77
      $region18: #{a_call__.31} parent=11 // pred_check_branch
        %123 = sbr.rel (%p121) target = $region20
      $region19: #{a_call__.31} parent=11 // pred_region
        _
      $region20: #{a_call__.31} parent=11 // pred_fallthru
        _
    $region12: #{a_call__.31} parent=5 // pred_fallthru
      _
    %p124 = scmp.lt.s32.totalorder %s9, 2
    // Predicated region
    $region21: #{a_call__.31} parent=5 // pred_check
      %p125 = pneg %p124
    $region22: #{a_call__.31} parent=5 // pred_check_branch
      %127 = sbr.rel (%p125) target = $region24
    $region23: #{a_call__.31} parent=5 // pred_region
      // Predicated region
      $region25: #{a_call__.31} parent=23 // pred_check
        %p128 = pneg %p29
      $region26: #{a_call__.31} parent=23 // pred_check_branch
        %130 = sbr.rel (%p128) target = $region28
      $region27: #{a_call__.31} parent=23 // pred_region
        %s131 = smul.u32 128, %s9
        %p132 = scmp.lt.s32.totalorder %s131, 255
        %s133 = scalar_select %p132, %s131, 255
        %s134 = smul.addr %s133, 4
        %s135 = scalar_lea.vmem %s0, %s134
        %s136 = smul.u32 128, %s9
      $region28: #{a_call__.31} parent=23 // pred_fallthru
        _
    $region24: #{a_call__.31} parent=5 // pred_fallthru
      _
    %p137 = scmp.le.s32.totalorder 1, %s9
    %p138 = scmp.lt.s32.totalorder %s9, 3
    %p139 = pnand %p137, %p138
    %p140 = pneg %p139
    // Predicated region
    $region29: #{a_call__.31} parent=5 // pred_check
      _
    $region30: #{a_call__.31} parent=5 // pred_check_branch
      %142 = sbr.rel (%p139) target = $region32
    $region31: #{a_call__.31} parent=5 // pred_region
      %s143 = ssub.s32 %s9, 1
      %s144 = smul.u32 128, %s14
      %p145 = scmp.lt.s32.totalorder %s144, 255
      %s146 = scalar_select %p145, %s144, 255
      %s147 = smul.addr %s146, 4
      %s148 = scalar_lea.vmem %s0, %s147
      %p149 = pneg %p35
      %p150 = pneg %p32
      %p151 = pneg %p56
      %p152 = pneg %p53
      %p153 = pneg %p77
      %p154 = pneg %p74
      %p155 = pneg %p103
      %p156 = pneg %p100
      %s157 = smul.u32 128, %s14
      %p158 = scmp.lt.s32.totalorder %s157, 255
      %s159 = scalar_select %p158, %s157, 255
      %s160 = smul.addr %s159, 8
      %s161 = scalar_lea.vmem %s3, %s160
      %s162 = smul.u32 128, %s14
      %p163 = scmp.lt.s32.totalorder %s162, 255
      %s164 = scalar_select %p163, %s162, 255
      %s165 = smul.addr %s164, 4
      %s166 = scalar_lea.vmem %s0, %s165
      %s167 = smul.u32 128, %s14
      %s168 = smul.u32 128, %s14
      %p169 = scmp.lt.s32.totalorder %s168, 255
      %s170 = scalar_select %p169, %s168, 255
      %s171 = smul.addr %s170, 8
      %s172 = scalar_lea.vmem %s3, %s171
      %s173 = smul.u32 128, %s14
      %v175 = vld [vmem:[%s166] sm:$0xf]
      %v176 = vld [vmem:[%s166 + $0x4] sm:$0xf]
      %v177 = vld [vmem:[%s166 + $0x8] sm:$0xf]
      %v178 = vld [vmem:[%s166 + $0xc] sm:$0xf]
      %v179 = vld [vmem:[%s166 + $0x10] sm:$0xf]
      %v180 = vld [vmem:[%s166 + $0x14] sm:$0xf]
      %v181 = vld [vmem:[%s166 + $0x18] sm:$0xf]
      %v182 = vld [vmem:[%s166 + $0x1c] sm:$0xf]
      %v183 = vld [vmem:[%s166 + $0x20] sm:$0xf]
      %v184 = vld [vmem:[%s166 + $0x24] sm:$0xf]
      %v185 = vld [vmem:[%s166 + $0x28] sm:$0xf]
      %v186 = vld [vmem:[%s166 + $0x2c] sm:$0xf]
      %v187 = vld [vmem:[%s166 + $0x30] sm:$0xf]
      %v188 = vld [vmem:[%s166 + $0x34] sm:$0xf]
      %v189 = vld [vmem:[%s166 + $0x38] sm:$0xf]
      %v190 = vld [vmem:[%s166 + $0x3c] sm:$0xf]
      %v191 = vld [vmem:[%s166 + $0x40] sm:$0xf]
      %v192 = vld [vmem:[%s166 + $0x44] sm:$0xf]
      %v193 = vld [vmem:[%s166 + $0x48] sm:$0xf]
      %v194 = vld [vmem:[%s166 + $0x4c] sm:$0xf]
      %v195 = vld [vmem:[%s166 + $0x50] sm:$0xf]
      %v196 = vld [vmem:[%s166 + $0x54] sm:$0xf]
      %v197 = vld [vmem:[%s166 + $0x58] sm:$0xf]
      %v198 = vld [vmem:[%s166 + $0x5c] sm:$0xf]
      %v199 = vld [vmem:[%s166 + $0x60] sm:$0xf]
      %v200 = vld [vmem:[%s166 + $0x64] sm:$0xf]
      %v201 = vld [vmem:[%s166 + $0x68] sm:$0xf]
      %v202 = vld [vmem:[%s166 + $0x6c] sm:$0xf]
      %v203 = vld [vmem:[%s166 + $0x70] sm:$0xf]
      %v204 = vld [vmem:[%s166 + $0x74] sm:$0xf]
      %v205 = vld [vmem:[%s166 + $0x78] sm:$0xf]
      %v206 = vld [vmem:[%s166 + $0x7c] sm:$0xf]
      %v207 = vld [vmem:[%s166 + $0x80] sm:$0xf]
      %v208 = vld [vmem:[%s166 + $0x84] sm:$0xf]
      %v209 = vld [vmem:[%s166 + $0x88] sm:$0xf]
      %v210 = vld [vmem:[%s166 + $0x8c] sm:$0xf]
      %v211 = vld [vmem:[%s166 + $0x90] sm:$0xf]
      %v212 = vld [vmem:[%s166 + $0x94] sm:$0xf]
      %v213 = vld [vmem:[%s166 + $0x98] sm:$0xf]
      %v214 = vld [vmem:[%s166 + $0x9c] sm:$0xf]
      %v215 = vld [vmem:[%s166 + $0xa0] sm:$0xf]
      %v216 = vld [vmem:[%s166 + $0xa4] sm:$0xf]
      %v217 = vld [vmem:[%s166 + $0xa8] sm:$0xf]
      %v218 = vld [vmem:[%s166 + $0xac] sm:$0xf]
      %v219 = vld [vmem:[%s166 + $0xb0] sm:$0xf]
      %v220 = vld [vmem:[%s166 + $0xb4] sm:$0xf]
      %v221 = vld [vmem:[%s166 + $0xb8] sm:$0xf]
      %v222 = vld [vmem:[%s166 + $0xbc] sm:$0xf]
      %v223 = vld [vmem:[%s166 + $0xc0] sm:$0xf]
      %v224 = vld [vmem:[%s166 + $0xc4] sm:$0xf]
      %v225 = vld [vmem:[%s166 + $0xc8] sm:$0xf]
      %v226 = vld [vmem:[%s166 + $0xcc] sm:$0xf]
      %v227 = vld [vmem:[%s166 + $0xd0] sm:$0xf]
      %v228 = vld [vmem:[%s166 + $0xd4] sm:$0xf]
      %v229 = vld [vmem:[%s166 + $0xd8] sm:$0xf]
      %v230 = vld [vmem:[%s166 + $0xdc] sm:$0xf]
      %v231 = vld [vmem:[%s166 + $0xe0] sm:$0xf]
      %v232 = vld [vmem:[%s166 + $0xe4] sm:$0xf]
      %v233 = vld [vmem:[%s166 + $0xe8] sm:$0xf]
      %v234 = vld [vmem:[%s166 + $0xec] sm:$0xf]
      %v235 = vld [vmem:[%s166 + $0xf0] sm:$0xf]
      %v236 = vld [vmem:[%s166 + $0xf4] sm:$0xf]
      %v237 = vld [vmem:[%s166 + $0xf8] sm:$0xf]
      %v238 = vld [vmem:[%s166 + $0xfc] sm:$0xf]
      %v239 = vld [vmem:[%s166 + $0x100] sm:$0xf]
      %v240 = vld [vmem:[%s166 + $0x104] sm:$0xf]
      %v241 = vld [vmem:[%s166 + $0x108] sm:$0xf]
      %v242 = vld [vmem:[%s166 + $0x10c] sm:$0xf]
      %v243 = vld [vmem:[%s166 + $0x110] sm:$0xf]
      %v244 = vld [vmem:[%s166 + $0x114] sm:$0xf]
      %v245 = vld [vmem:[%s166 + $0x118] sm:$0xf]
      %v246 = vld [vmem:[%s166 + $0x11c] sm:$0xf]
      %v247 = vld [vmem:[%s166 + $0x120] sm:$0xf]
      %v248 = vld [vmem:[%s166 + $0x124] sm:$0xf]
      %v249 = vld [vmem:[%s166 + $0x128] sm:$0xf]
      %v250 = vld [vmem:[%s166 + $0x12c] sm:$0xf]
      %v251 = vld [vmem:[%s166 + $0x130] sm:$0xf]
      %v252 = vld [vmem:[%s166 + $0x134] sm:$0xf]
      %v253 = vld [vmem:[%s166 + $0x138] sm:$0xf]
      %v254 = vld [vmem:[%s166 + $0x13c] sm:$0xf]
      %v255 = vld [vmem:[%s166 + $0x140] sm:$0xf]
      %v256 = vld [vmem:[%s166 + $0x144] sm:$0xf]
      %v257 = vld [vmem:[%s166 + $0x148] sm:$0xf]
      %v258 = vld [vmem:[%s166 + $0x14c] sm:$0xf]
      %v259 = vld [vmem:[%s166 + $0x150] sm:$0xf]
      %v260 = vld [vmem:[%s166 + $0x154] sm:$0xf]
      %v261 = vld [vmem:[%s166 + $0x158] sm:$0xf]
      %v262 = vld [vmem:[%s166 + $0x15c] sm:$0xf]
      %v263 = vld [vmem:[%s166 + $0x160] sm:$0xf]
      %v264 = vld [vmem:[%s166 + $0x164] sm:$0xf]
      %v265 = vld [vmem:[%s166 + $0x168] sm:$0xf]
      %v266 = vld [vmem:[%s166 + $0x16c] sm:$0xf]
      %v267 = vld [vmem:[%s166 + $0x170] sm:$0xf]
      %v268 = vld [vmem:[%s166 + $0x174] sm:$0xf]
      %v269 = vld [vmem:[%s166 + $0x178] sm:$0xf]
      %v270 = vld [vmem:[%s166 + $0x17c] sm:$0xf]
      %v271 = vld [vmem:[%s166 + $0x180] sm:$0xf]
      %v272 = vld [vmem:[%s166 + $0x184] sm:$0xf]
      %v273 = vld [vmem:[%s166 + $0x188] sm:$0xf]
      %v274 = vld [vmem:[%s166 + $0x18c] sm:$0xf]
      %v275 = vld [vmem:[%s166 + $0x190] sm:$0xf]
      %v276 = vld [vmem:[%s166 + $0x194] sm:$0xf]
      %v277 = vld [vmem:[%s166 + $0x198] sm:$0xf]
      %v278 = vld [vmem:[%s166 + $0x19c] sm:$0xf]
      %v279 = vld [vmem:[%s166 + $0x1a0] sm:$0xf]
      %v280 = vld [vmem:[%s166 + $0x1a4] sm:$0xf]
      %v281 = vld [vmem:[%s166 + $0x1a8] sm:$0xf]
      %v282 = vld [vmem:[%s166 + $0x1ac] sm:$0xf]
      %v283 = vld [vmem:[%s166 + $0x1b0] sm:$0xf]
      %v284 = vld [vmem:[%s166 + $0x1b4] sm:$0xf]
      %v285 = vld [vmem:[%s166 + $0x1b8] sm:$0xf]
      %v286 = vld [vmem:[%s166 + $0x1bc] sm:$0xf]
      %v287 = vld [vmem:[%s166 + $0x1c0] sm:$0xf]
      %v288 = vld [vmem:[%s166 + $0x1c4] sm:$0xf]
      %v289 = vld [vmem:[%s166 + $0x1c8] sm:$0xf]
      %v290 = vld [vmem:[%s166 + $0x1cc] sm:$0xf]
      %v291 = vld [vmem:[%s166 + $0x1d0] sm:$0xf]
      %v292 = vld [vmem:[%s166 + $0x1d4] sm:$0xf]
      %v293 = vld [vmem:[%s166 + $0x1d8] sm:$0xf]
      %v294 = vld [vmem:[%s166 + $0x1dc] sm:$0xf]
      %v295 = vld [vmem:[%s166 + $0x1e0] sm:$0xf]
      %v296 = vld [vmem:[%s166 + $0x1e4] sm:$0xf]
      %v297 = vld [vmem:[%s166 + $0x1e8] sm:$0xf]
      %v298 = vld [vmem:[%s166 + $0x1ec] sm:$0xf]
      %v299 = vld [vmem:[%s166 + $0x1f0] sm:$0xf]
      %v300 = vld [vmem:[%s166 + $0x1f4] sm:$0xf]
      %v301 = vld [vmem:[%s166 + $0x1f8] sm:$0xf]
      %v302 = vld [vmem:[%s166 + $0x1fc] sm:$0xf]
      %v303 = vld [vmem:[%s1] sm:$0xf]
      %v304 = vld [vmem:[%s1 + $0x4] sm:$0xf]
      %v305 = vld [vmem:[%s1 + $0x8] sm:$0xf]
      %v306 = vld [vmem:[%s1 + $0xc] sm:$0xf]
      %v307 = vld [vmem:[%s1 + $0x10] sm:$0xf]
      %v308 = vld [vmem:[%s1 + $0x14] sm:$0xf]
      %v309 = vld [vmem:[%s1 + $0x18] sm:$0xf]
      %v310 = vld [vmem:[%s1 + $0x1c] sm:$0xf]
      %v311 = vld [vmem:[%s1 + $0x20] sm:$0xf]
      %v312 = vld [vmem:[%s2] sm:$0x1]
      %v314 = vlaneseq
      %v315 = vshrl.u32 %v314, 7
      %v316 = vsub.s32 0, %v315
      %v317 = vrot.slane %v312, %v316
      %v447 = vunpack.c.l.b16 %v175
      %v448 = vunpack.c.l.b16 %v176
      %v449 = vunpack.c.l.b16 %v177
      %v450 = vunpack.c.l.b16 %v178
      %v451 = vunpack.c.l.b16 %v179
      %v452 = vunpack.c.l.b16 %v180
      %v453 = vunpack.c.l.b16 %v181
      %v454 = vunpack.c.l.b16 %v182
      %v455 = vunpack.c.l.b16 %v183
      %v456 = vunpack.c.l.b16 %v184
      %v457 = vunpack.c.l.b16 %v185
      %v458 = vunpack.c.l.b16 %v186
      %v459 = vunpack.c.l.b16 %v187
      %v460 = vunpack.c.l.b16 %v188
      %v461 = vunpack.c.l.b16 %v189
      %v462 = vunpack.c.l.b16 %v190
      %v463 = vunpack.c.l.b16 %v191
      %v464 = vunpack.c.l.b16 %v192
      %v465 = vunpack.c.l.b16 %v193
      %v466 = vunpack.c.l.b16 %v194
      %v467 = vunpack.c.l.b16 %v195
      %v468 = vunpack.c.l.b16 %v196
      %v469 = vunpack.c.l.b16 %v197
      %v470 = vunpack.c.l.b16 %v198
      %v471 = vunpack.c.l.b16 %v199
      %v472 = vunpack.c.l.b16 %v200
      %v473 = vunpack.c.l.b16 %v201
      %v474 = vunpack.c.l.b16 %v202
      %v475 = vunpack.c.l.b16 %v203
      %v476 = vunpack.c.l.b16 %v204
      %v477 = vunpack.c.l.b16 %v205
      %v478 = vunpack.c.l.b16 %v206
      %v479 = vunpack.c.l.b16 %v207
      %v480 = vunpack.c.l.b16 %v208
      %v481 = vunpack.c.l.b16 %v209
      %v482 = vunpack.c.l.b16 %v210
      %v483 = vunpack.c.l.b16 %v211
      %v484 = vunpack.c.l.b16 %v212
      %v485 = vunpack.c.l.b16 %v213
      %v486 = vunpack.c.l.b16 %v214
      %v487 = vunpack.c.l.b16 %v215
      %v488 = vunpack.c.l.b16 %v216
      %v489 = vunpack.c.l.b16 %v217
      %v490 = vunpack.c.l.b16 %v218
      %v491 = vunpack.c.l.b16 %v219
      %v492 = vunpack.c.l.b16 %v220
      %v493 = vunpack.c.l.b16 %v221
      %v494 = vunpack.c.l.b16 %v222
      %v495 = vunpack.c.l.b16 %v223
      %v496 = vunpack.c.l.b16 %v224
      %v497 = vunpack.c.l.b16 %v225
      %v498 = vunpack.c.l.b16 %v226
      %v499 = vunpack.c.l.b16 %v227
      %v500 = vunpack.c.l.b16 %v228
      %v501 = vunpack.c.l.b16 %v229
      %v502 = vunpack.c.l.b16 %v230
      %v503 = vunpack.c.l.b16 %v231
      %v504 = vunpack.c.l.b16 %v232
      %v505 = vunpack.c.l.b16 %v233
      %v506 = vunpack.c.l.b16 %v234
      %v507 = vunpack.c.l.b16 %v235
      %v508 = vunpack.c.l.b16 %v236
      %v509 = vunpack.c.l.b16 %v237
      %v510 = vunpack.c.l.b16 %v238
      %v511 = vunpack.c.l.b16 %v239
      %v512 = vunpack.c.l.b16 %v240
      %v513 = vunpack.c.l.b16 %v241
      %v514 = vunpack.c.l.b16 %v242
      %v515 = vunpack.c.l.b16 %v243
      %v516 = vunpack.c.l.b16 %v244
      %v517 = vunpack.c.l.b16 %v245
      %v518 = vunpack.c.l.b16 %v246
      %v519 = vunpack.c.l.b16 %v247
      %v520 = vunpack.c.l.b16 %v248
      %v521 = vunpack.c.l.b16 %v249
      %v522 = vunpack.c.l.b16 %v250
      %v523 = vunpack.c.l.b16 %v251
      %v524 = vunpack.c.l.b16 %v252
      %v525 = vunpack.c.l.b16 %v253
      %v526 = vunpack.c.l.b16 %v254
      %v527 = vunpack.c.l.b16 %v255
      %v528 = vunpack.c.l.b16 %v256
      %v529 = vunpack.c.l.b16 %v257
      %v530 = vunpack.c.l.b16 %v258
      %v531 = vunpack.c.l.b16 %v259
      %v532 = vunpack.c.l.b16 %v260
      %v533 = vunpack.c.l.b16 %v261
      %v534 = vunpack.c.l.b16 %v262
      %v535 = vunpack.c.l.b16 %v263
      %v536 = vunpack.c.l.b16 %v264
      %v537 = vunpack.c.l.b16 %v265
      %v538 = vunpack.c.l.b16 %v266
      %v539 = vunpack.c.l.b16 %v267
      %v540 = vunpack.c.l.b16 %v268
      %v541 = vunpack.c.l.b16 %v269
      %v542 = vunpack.c.l.b16 %v270
      %v543 = vunpack.c.l.b16 %v271
      %v544 = vunpack.c.l.b16 %v272
      %v545 = vunpack.c.l.b16 %v273
      %v546 = vunpack.c.l.b16 %v274
      %v547 = vunpack.c.l.b16 %v275
      %v548 = vunpack.c.l.b16 %v276
      %v549 = vunpack.c.l.b16 %v277
      %v550 = vunpack.c.l.b16 %v278
      %v551 = vunpack.c.l.b16 %v279
      %v552 = vunpack.c.l.b16 %v280
      %v553 = vunpack.c.l.b16 %v281
      %v554 = vunpack.c.l.b16 %v282
      %v555 = vunpack.c.l.b16 %v283
      %v556 = vunpack.c.l.b16 %v284
      %v557 = vunpack.c.l.b16 %v285
      %v558 = vunpack.c.l.b16 %v286
      %v559 = vunpack.c.l.b16 %v287
      %v560 = vunpack.c.l.b16 %v288
      %v561 = vunpack.c.l.b16 %v289
      %v562 = vunpack.c.l.b16 %v290
      %v563 = vunpack.c.l.b16 %v291
      %v564 = vunpack.c.l.b16 %v292
      %v565 = vunpack.c.l.b16 %v293
      %v566 = vunpack.c.l.b16 %v294
      %v567 = vunpack.c.l.b16 %v295
      %v568 = vunpack.c.l.b16 %v296
      %v569 = vunpack.c.l.b16 %v297
      %v570 = vunpack.c.l.b16 %v298
      %v571 = vunpack.c.l.b16 %v299
      %v572 = vunpack.c.l.b16 %v300
      %v573 = vunpack.c.l.b16 %v301
      %v574 = vunpack.c.l.b16 %v302
      %v575 = vpack.c.b16 %v448, %v447
      %v576 = vpack.c.b16 %v450, %v449
      %v577 = vpack.c.b16 %v452, %v451
      %v578 = vpack.c.b16 %v454, %v453
      %v579 = vpack.c.b16 %v456, %v455
      %v580 = vpack.c.b16 %v458, %v457
      %v581 = vpack.c.b16 %v460, %v459
      %v582 = vpack.c.b16 %v462, %v461
      %v583 = vpack.c.b16 %v464, %v463
      %v584 = vpack.c.b16 %v466, %v465
      %v585 = vpack.c.b16 %v468, %v467
      %v586 = vpack.c.b16 %v470, %v469
      %v587 = vpack.c.b16 %v472, %v471
      %v588 = vpack.c.b16 %v474, %v473
      %v589 = vpack.c.b16 %v476, %v475
      %v590 = vpack.c.b16 %v478, %v477
      %v591 = vpack.c.b16 %v480, %v479
      %v592 = vpack.c.b16 %v482, %v481
      %v593 = vpack.c.b16 %v484, %v483
      %v594 = vpack.c.b16 %v486, %v485
      %v595 = vpack.c.b16 %v488, %v487
      %v596 = vpack.c.b16 %v490, %v489
      %v597 = vpack.c.b16 %v492, %v491
      %v598 = vpack.c.b16 %v494, %v493
      %v599 = vpack.c.b16 %v496, %v495
      %v600 = vpack.c.b16 %v498, %v497
      %v601 = vpack.c.b16 %v500, %v499
      %v602 = vpack.c.b16 %v502, %v501
      %v603 = vpack.c.b16 %v504, %v503
      %v604 = vpack.c.b16 %v506, %v505
      %v605 = vpack.c.b16 %v508, %v507
      %v606 = vpack.c.b16 %v510, %v509
      %v607 = vpack.c.b16 %v512, %v511
      %v608 = vpack.c.b16 %v514, %v513
      %v609 = vpack.c.b16 %v516, %v515
      %v610 = vpack.c.b16 %v518, %v517
      %v611 = vpack.c.b16 %v520, %v519
      %v612 = vpack.c.b16 %v522, %v521
      %v613 = vpack.c.b16 %v524, %v523
      %v614 = vpack.c.b16 %v526, %v525
      %v615 = vpack.c.b16 %v528, %v527
      %v616 = vpack.c.b16 %v530, %v529
      %v617 = vpack.c.b16 %v532, %v531
      %v618 = vpack.c.b16 %v534, %v533
      %v619 = vpack.c.b16 %v536, %v535
      %v620 = vpack.c.b16 %v538, %v537
      %v621 = vpack.c.b16 %v540, %v539
      %v622 = vpack.c.b16 %v542, %v541
      %v623 = vpack.c.b16 %v544, %v543
      %v624 = vpack.c.b16 %v546, %v545
      %v625 = vpack.c.b16 %v548, %v547
      %v626 = vpack.c.b16 %v550, %v549
      %v627 = vpack.c.b16 %v552, %v551
      %v628 = vpack.c.b16 %v554, %v553
      %v629 = vpack.c.b16 %v556, %v555
      %v630 = vpack.c.b16 %v558, %v557
      %v631 = vpack.c.b16 %v560, %v559
      %v632 = vpack.c.b16 %v562, %v561
      %v633 = vpack.c.b16 %v564, %v563
      %v634 = vpack.c.b16 %v566, %v565
      %v635 = vpack.c.b16 %v568, %v567
      %v636 = vpack.c.b16 %v570, %v569
      %v637 = vpack.c.b16 %v572, %v571
      %v638 = vpack.c.b16 %v574, %v573
      %v648 = vunpack.c.l.b16 %v303
      %v649 = vunpack.c.l.b16 %v304
      %v650 = vunpack.c.l.b16 %v305
      %v651 = vunpack.c.l.b16 %v306
      %v652 = vunpack.c.l.b16 %v307
      %v653 = vunpack.c.l.b16 %v308
      %v654 = vunpack.c.l.b16 %v309
      %v655 = vunpack.c.l.b16 %v310
      %v656 = vunpack.c.l.b16 %v311
      %v657 = vpack.c.b16 %v649, %v648
      %v658 = vpack.c.b16 %v651, %v650
      %v659 = vpack.c.b16 %v653, %v652
      %v660 = vpack.c.b16 %v655, %v654
      %v661 = vpack.c.b16 %v656, %v656
      %vm666 = vcmask 588800
      %v668 = vsel %vm666, %v575, 0
      %v671 = vsel %vm666, %v576, 0
      %v674 = vsel %vm666, %v577, 0
      %v677 = vsel %vm666, %v578, 0
      %v680 = vsel %vm666, %v579, 0
      %v683 = vsel %vm666, %v580, 0
      %v686 = vsel %vm666, %v581, 0
      %v689 = vsel %vm666, %v582, 0
      %v692 = vsel %vm666, %v583, 0
      %v695 = vsel %vm666, %v584, 0
      %v698 = vsel %vm666, %v585, 0
      %v701 = vsel %vm666, %v586, 0
      %v704 = vsel %vm666, %v587, 0
      %v707 = vsel %vm666, %v588, 0
      %v710 = vsel %vm666, %v589, 0
      %v713 = vsel %vm666, %v590, 0
      %v716 = vsel %vm666, %v591, 0
      %v719 = vsel %vm666, %v592, 0
      %v722 = vsel %vm666, %v593, 0
      %v725 = vsel %vm666, %v594, 0
      %v728 = vsel %vm666, %v595, 0
      %v731 = vsel %vm666, %v596, 0
      %v734 = vsel %vm666, %v597, 0
      %v737 = vsel %vm666, %v598, 0
      %v740 = vsel %vm666, %v599, 0
      %v743 = vsel %vm666, %v600, 0
      %v746 = vsel %vm666, %v601, 0
      %v749 = vsel %vm666, %v602, 0
      %v752 = vsel %vm666, %v603, 0
      %v755 = vsel %vm666, %v604, 0
      %v758 = vsel %vm666, %v605, 0
      %v761 = vsel %vm666, %v606, 0
      %v764 = vsel %vm666, %v607, 0
      %v767 = vsel %vm666, %v608, 0
      %v770 = vsel %vm666, %v609, 0
      %v773 = vsel %vm666, %v610, 0
      %v776 = vsel %vm666, %v611, 0
      %v779 = vsel %vm666, %v612, 0
      %v782 = vsel %vm666, %v613, 0
      %v785 = vsel %vm666, %v614, 0
      %v788 = vsel %vm666, %v615, 0
      %v791 = vsel %vm666, %v616, 0
      %v794 = vsel %vm666, %v617, 0
      %v797 = vsel %vm666, %v618, 0
      %v800 = vsel %vm666, %v619, 0
      %v803 = vsel %vm666, %v620, 0
      %v806 = vsel %vm666, %v621, 0
      %v809 = vsel %vm666, %v622, 0
      %v812 = vsel %vm666, %v623, 0
      %v815 = vsel %vm666, %v624, 0
      %v818 = vsel %vm666, %v625, 0
      %v821 = vsel %vm666, %v626, 0
      %v824 = vsel %vm666, %v627, 0
      %v827 = vsel %vm666, %v628, 0
      %v830 = vsel %vm666, %v629, 0
      %v833 = vsel %vm666, %v630, 0
      %v836 = vsel %vm666, %v631, 0
      %v839 = vsel %vm666, %v632, 0
      %v842 = vsel %vm666, %v633, 0
      %v845 = vsel %vm666, %v634, 0
      %v848 = vsel %vm666, %v635, 0
      %v851 = vsel %vm666, %v636, 0
      %v854 = vsel %vm666, %v637, 0
      %v857 = vsel %vm666, %v638, 0
      %vm859 = vcmask 1043456
      %v861 = vsel %vm859, %v661, 0
      %863 = vmatprep.subr.bf16.mxu0 0
      %864 = vmatpush1.bf16.msra.mxu0 %v657
      %865 = vmatprep.subr.bf16.mxu0 0
      %866 = vmatpush1.bf16.msra.mxu0 %v658
      %867 = vmatprep.subr.bf16.mxu0 0
      %868 = vmatpush1.bf16.msra.mxu0 %v659
      %869 = vmatprep.subr.bf16.mxu0 0
      %870 = vmatpush1.bf16.msra.mxu0 %v660
      %871 = vmatprep.subr.bf16.mxu0 0
      %872 = vmatpush1.bf16.msra.mxu0 %v861
      %873 = vmatprep.subr.bf16.mxu0 0
      %874 = vmatpush1.bf16.msra.mxu0 0
      %875 = vmatprep.subr.bf16.mxu0 0
      %876 = vmatpush1.bf16.msra.mxu0 0
      %877 = vmatprep.subr.bf16.mxu0 0
      %878 = vmatpush1.bf16.msra.mxu0 0
      %879 = vmatprep.subr.bf16.mxu0 0
      %880 = vmatpush1.bf16.msra.mxu0 0
      %881 = vmatprep.subr.bf16.mxu0 0
      %882 = vmatpush1.bf16.msra.mxu0 0
      %883 = vmatprep.subr.bf16.mxu0 0
      %884 = vmatpush1.bf16.msra.mxu0 0
      %885 = vmatprep.subr.bf16.mxu0 0
      %886 = vmatpush1.bf16.msra.mxu0 0
      %887 = vmatprep.subr.bf16.mxu0 0
      %888 = vmatpush1.bf16.msra.mxu0 0
      %889 = vmatprep.subr.bf16.mxu0 0
      %890 = vmatpush1.bf16.msra.mxu0 0
      %891 = vmatprep.subr.bf16.mxu0 0
      %892 = vmatpush1.bf16.msra.mxu0 0
      %893 = vmatprep.subr.bf16.mxu0 0
      %894 = vmatpush1.bf16.msra.mxu0 0
      %895 = vmatprep.mubr.bf16.mxu0 0
      %896 = vmatmul.mubr.bf16.gmra.mrb[0].mxu0 %v668
      %v897 = vpop.f32.mrb[0].mxu0
      %v898 = vadd.f32 %v317, %v897
      %v899 = vpop.f32.mrb[0].mxu0
      %v900 = vpop.f32.mrb[0].mxu0
      %v901 = vadd.f32 %v317, %v900
      %v902 = vpop.f32.mrb[0].mxu0
      %903 = vmatprep.mubr.bf16.mxu0 0
      %904 = vmatmul.mubr.bf16.gmra.mrb[0].mxu0 %v671
      %v905 = vpop.f32.mrb[0].mxu0
      %v906 = vadd.f32 %v317, %v905
      %v907 = vpop.f32.mrb[0].mxu0
      %v908 = vpop.f32.mrb[0].mxu0
      %v909 = vadd.f32 %v317, %v908
      %v910 = vpop.f32.mrb[0].mxu0
      %911 = vmatprep.mubr.bf16.mxu0 0
      %912 = vmatmul.mubr.bf16.gmra.mrb[0].mxu0 %v674
      %v913 = vpop.f32.mrb[0].mxu0
      %v914 = vadd.f32 %v317, %v913
      %v915 = vpop.f32.mrb[0].mxu0
      %v916 = vpop.f32.mrb[0].mxu0
      %v917 = vadd.f32 %v317, %v916
      %v918 = vpop.f32.mrb[0].mxu0
      %919 = vmatprep.mubr.bf16.mxu0 0
      %920 = vmatmul.mubr.bf16.gmra.mrb[0].mxu0 %v677
      %v921 = vpop.f32.mrb[0].mxu0
      %v922 = vadd.f32 %v317, %v921
      %v923 = vpop.f32.mrb[0].mxu0
      %v924 = vpop.f32.mrb[0].mxu0
      %v925 = vadd.f32 %v317, %v924
      %v926 = vpop.f32.mrb[0].mxu0
      %927 = vmatprep.mubr.bf16.mxu0 0
      %928 = vmatmul.mubr.bf16.gmra.mrb[0].mxu0 %v680
      %v929 = vpop.f32.mrb[0].mxu0
      %v930 = vadd.f32 %v317, %v929
      %v931 = vpop.f32.mrb[0].mxu0
      %v932 = vpop.f32.mrb[0].mxu0
      %v933 = vadd.f32 %v317, %v932
      %v934 = vpop.f32.mrb[0].mxu0
      %935 = vmatprep.mubr.bf16.mxu0 0
      %936 = vmatmul.mubr.bf16.gmra.mrb[0].mxu0 %v683
      %v937 = vpop.f32.mrb[0].mxu0
      %v938 = vadd.f32 %v317, %v937
      %v939 = vpop.f32.mrb[0].mxu0
      %v940 = vpop.f32.mrb[0].mxu0
      %v941 = vadd.f32 %v317, %v940
      %v942 = vpop.f32.mrb[0].mxu0
      %943 = vmatprep.mubr.bf16.mxu0 0
      %944 = vmatmul.mubr.bf16.gmra.mrb[0].mxu0 %v686
      %v945 = vpop.f32.mrb[0].mxu0
      %v946 = vadd.f32 %v317, %v945
      %v947 = vpop.f32.mrb[0].mxu0
      %v948 = vpop.f32.mrb[0].mxu0
      %v949 = vadd.f32 %v317, %v948
      %v950 = vpop.f32.mrb[0].mxu0
      %951 = vmatprep.mubr.bf16.mxu0 0
      %952 = vmatmul.mubr.bf16.gmra.mrb[0].mxu0 %v689
      %v953 = vpop.f32.mrb[0].mxu0
      %v954 = vadd.f32 %v317, %v953
      %v955 = vpop.f32.mrb[0].mxu0
      %v956 = vpop.f32.mrb[0].mxu0
      %v957 = vadd.f32 %v317, %v956
      %v958 = vpop.f32.mrb[0].mxu0
      %959 = vmatprep.mubr.bf16.mxu0 0
      %960 = vmatmul.mubr.bf16.gmra.mrb[0].mxu0 %v692
      %v961 = vpop.f32.mrb[0].mxu0
      %v962 = vadd.f32 %v317, %v961
      %v963 = vpop.f32.mrb[0].mxu0
      %v964 = vpop.f32.mrb[0].mxu0
      %v965 = vadd.f32 %v317, %v964
      %v966 = vpop.f32.mrb[0].mxu0
      %967 = vmatprep.mubr.bf16.mxu0 0
      %968 = vmatmul.mubr.bf16.gmra.mrb[0].mxu0 %v695
      %v969 = vpop.f32.mrb[0].mxu0
      %v970 = vadd.f32 %v317, %v969
      %v971 = vpop.f32.mrb[0].mxu0
      %v972 = vpop.f32.mrb[0].mxu0
      %v973 = vadd.f32 %v317, %v972
      %v974 = vpop.f32.mrb[0].mxu0
      %975 = vmatprep.mubr.bf16.mxu0 0
      %976 = vmatmul.mubr.bf16.gmra.mrb[0].mxu0 %v698
      %v977 = vpop.f32.mrb[0].mxu0
      %v978 = vadd.f32 %v317, %v977
      %v979 = vpop.f32.mrb[0].mxu0
      %v980 = vpop.f32.mrb[0].mxu0
      %v981 = vadd.f32 %v317, %v980
      %v982 = vpop.f32.mrb[0].mxu0
      %983 = vmatprep.mubr.bf16.mxu0 0
      %984 = vmatmul.mubr.bf16.gmra.mrb[0].mxu0 %v701
      %v985 = vpop.f32.mrb[0].mxu0
      %v986 = vadd.f32 %v317, %v985
      %v987 = vpop.f32.mrb[0].mxu0
      %v988 = vpop.f32.mrb[0].mxu0
      %v989 = vadd.f32 %v317, %v988
      %v990 = vpop.f32.mrb[0].mxu0
      %991 = vmatprep.mubr.bf16.mxu0 0
      %992 = vmatmul.mubr.bf16.gmra.mrb[0].mxu0 %v704
      %v993 = vpop.f32.mrb[0].mxu0
      %v994 = vadd.f32 %v317, %v993
      %v995 = vpop.f32.mrb[0].mxu0
      %v996 = vpop.f32.mrb[0].mxu0
      %v997 = vadd.f32 %v317, %v996
      %v998 = vpop.f32.mrb[0].mxu0
      %999 = vmatprep.mubr.bf16.mxu0 0
      %1000 = vmatmul.mubr.bf16.gmra.mrb[0].mxu0 %v707
      %v1001 = vpop.f32.mrb[0].mxu0
      %v1002 = vadd.f32 %v317, %v1001
      %v1003 = vpop.f32.mrb[0].mxu0
      %v1004 = vpop.f32.mrb[0].mxu0
      %v1005 = vadd.f32 %v317, %v1004
      %v1006 = vpop.f32.mrb[0].mxu0
      %1007 = vmatprep.mubr.bf16.mxu0 0
      %1008 = vmatmul.mubr.bf16.gmra.mrb[0].mxu0 %v710
      %v1009 = vpop.f32.mrb[0].mxu0
      %v1010 = vadd.f32 %v317, %v1009
      %v1011 = vpop.f32.mrb[0].mxu0
      %v1012 = vpop.f32.mrb[0].mxu0
      %v1013 = vadd.f32 %v317, %v1012
      %v1014 = vpop.f32.mrb[0].mxu0
      %1015 = vmatprep.mubr.bf16.mxu0 0
      %1016 = vmatmul.mubr.bf16.gmra.mrb[0].mxu0 %v713
      %v1017 = vpop.f32.mrb[0].mxu0
      %v1018 = vadd.f32 %v317, %v1017
      %v1019 = vpop.f32.mrb[0].mxu0
      %v1020 = vpop.f32.mrb[0].mxu0
      %v1021 = vadd.f32 %v317, %v1020
      %v1022 = vpop.f32.mrb[0].mxu0
      %1023 = vmatprep.mubr.bf16.mxu0 0
      %1024 = vmatmul.mubr.bf16.gmra.mrb[0].mxu0 %v716
      %v1025 = vpop.f32.mrb[0].mxu0
      %v1026 = vadd.f32 %v317, %v1025
      %v1027 = vpop.f32.mrb[0].mxu0
      %v1028 = vpop.f32.mrb[0].mxu0
      %v1029 = vadd.f32 %v317, %v1028
      %v1030 = vpop.f32.mrb[0].mxu0
      %1031 = vmatprep.mubr.bf16.mxu0 0
      %1032 = vmatmul.mubr.bf16.gmra.mrb[0].mxu0 %v719
      %v1033 = vpop.f32.mrb[0].mxu0
      %v1034 = vadd.f32 %v317, %v1033
      %v1035 = vpop.f32.mrb[0].mxu0
      %v1036 = vpop.f32.mrb[0].mxu0
      %v1037 = vadd.f32 %v317, %v1036
      %v1038 = vpop.f32.mrb[0].mxu0
      %1039 = vmatprep.mubr.bf16.mxu0 0
      %1040 = vmatmul.mubr.bf16.gmra.mrb[0].mxu0 %v722
      %v1041 = vpop.f32.mrb[0].mxu0
      %v1042 = vadd.f32 %v317, %v1041
      %v1043 = vpop.f32.mrb[0].mxu0
      %v1044 = vpop.f32.mrb[0].mxu0
      %v1045 = vadd.f32 %v317, %v1044
      %v1046 = vpop.f32.mrb[0].mxu0
      %1047 = vmatprep.mubr.bf16.mxu0 0
      %1048 = vmatmul.mubr.bf16.gmra.mrb[0].mxu0 %v725
      %v1049 = vpop.f32.mrb[0].mxu0
      %v1050 = vadd.f32 %v317, %v1049
      %v1051 = vpop.f32.mrb[0].mxu0
      %v1052 = vpop.f32.mrb[0].mxu0
      %v1053 = vadd.f32 %v317, %v1052
      %v1054 = vpop.f32.mrb[0].mxu0
      %1055 = vmatprep.mubr.bf16.mxu0 0
      %1056 = vmatmul.mubr.bf16.gmra.mrb[0].mxu0 %v728
      %v1057 = vpop.f32.mrb[0].mxu0
      %v1058 = vadd.f32 %v317, %v1057
      %v1059 = vpop.f32.mrb[0].mxu0
      %v1060 = vpop.f32.mrb[0].mxu0
      %v1061 = vadd.f32 %v317, %v1060
      %v1062 = vpop.f32.mrb[0].mxu0
      %1063 = vmatprep.mubr.bf16.mxu0 0
      %1064 = vmatmul.mubr.bf16.gmra.mrb[0].mxu0 %v731
      %v1065 = vpop.f32.mrb[0].mxu0
      %v1066 = vadd.f32 %v317, %v1065
      %v1067 = vpop.f32.mrb[0].mxu0
      %v1068 = vpop.f32.mrb[0].mxu0
      %v1069 = vadd.f32 %v317, %v1068
      %v1070 = vpop.f32.mrb[0].mxu0
      %1071 = vmatprep.mubr.bf16.mxu0 0
      %1072 = vmatmul.mubr.bf16.gmra.mrb[0].mxu0 %v734
      %v1073 = vpop.f32.mrb[0].mxu0
      %v1074 = vadd.f32 %v317, %v1073
      %v1075 = vpop.f32.mrb[0].mxu0
      %v1076 = vpop.f32.mrb[0].mxu0
      %v1077 = vadd.f32 %v317, %v1076
      %v1078 = vpop.f32.mrb[0].mxu0
      %1079 = vmatprep.mubr.bf16.mxu0 0
      %1080 = vmatmul.mubr.bf16.gmra.mrb[0].mxu0 %v737
      %v1081 = vpop.f32.mrb[0].mxu0
      %v1082 = vadd.f32 %v317, %v1081
      %v1083 = vpop.f32.mrb[0].mxu0
      %v1084 = vpop.f32.mrb[0].mxu0
      %v1085 = vadd.f32 %v317, %v1084
      %v1086 = vpop.f32.mrb[0].mxu0
      %1087 = vmatprep.mubr.bf16.mxu0 0
      %1088 = vmatmul.mubr.bf16.gmra.mrb[0].mxu0 %v740
      %v1089 = vpop.f32.mrb[0].mxu0
      %v1090 = vadd.f32 %v317, %v1089
      %v1091 = vpop.f32.mrb[0].mxu0
      %v1092 = vpop.f32.mrb[0].mxu0
      %v1093 = vadd.f32 %v317, %v1092
      %v1094 = vpop.f32.mrb[0].mxu0
      %1095 = vmatprep.mubr.bf16.mxu0 0
      %1096 = vmatmul.mubr.bf16.gmra.mrb[0].mxu0 %v743
      %v1097 = vpop.f32.mrb[0].mxu0
      %v1098 = vadd.f32 %v317, %v1097
      %v1099 = vpop.f32.mrb[0].mxu0
      %v1100 = vpop.f32.mrb[0].mxu0
      %v1101 = vadd.f32 %v317, %v1100
      %v1102 = vpop.f32.mrb[0].mxu0
      %1103 = vmatprep.mubr.bf16.mxu0 0
      %1104 = vmatmul.mubr.bf16.gmra.mrb[0].mxu0 %v746
      %v1105 = vpop.f32.mrb[0].mxu0
      %v1106 = vadd.f32 %v317, %v1105
      %v1107 = vpop.f32.mrb[0].mxu0
      %v1108 = vpop.f32.mrb[0].mxu0
      %v1109 = vadd.f32 %v317, %v1108
      %v1110 = vpop.f32.mrb[0].mxu0
      %1111 = vmatprep.mubr.bf16.mxu0 0
      %1112 = vmatmul.mubr.bf16.gmra.mrb[0].mxu0 %v749
      %v1113 = vpop.f32.mrb[0].mxu0
      %v1114 = vadd.f32 %v317, %v1113
      %v1115 = vpop.f32.mrb[0].mxu0
      %v1116 = vpop.f32.mrb[0].mxu0
      %v1117 = vadd.f32 %v317, %v1116
      %v1118 = vpop.f32.mrb[0].mxu0
      %1119 = vmatprep.mubr.bf16.mxu0 0
      %1120 = vmatmul.mubr.bf16.gmra.mrb[0].mxu0 %v752
      %v1121 = vpop.f32.mrb[0].mxu0
      %v1122 = vadd.f32 %v317, %v1121
      %v1123 = vpop.f32.mrb[0].mxu0
      %v1124 = vpop.f32.mrb[0].mxu0
      %v1125 = vadd.f32 %v317, %v1124
      %v1126 = vpop.f32.mrb[0].mxu0
      %1127 = vmatprep.mubr.bf16.mxu0 0
      %1128 = vmatmul.mubr.bf16.gmra.mrb[0].mxu0 %v755
      %v1129 = vpop.f32.mrb[0].mxu0
      %v1130 = vadd.f32 %v317, %v1129
      %v1131 = vpop.f32.mrb[0].mxu0
      %v1132 = vpop.f32.mrb[0].mxu0
      %v1133 = vadd.f32 %v317, %v1132
      %v1134 = vpop.f32.mrb[0].mxu0
      %1135 = vmatprep.mubr.bf16.mxu0 0
      %1136 = vmatmul.mubr.bf16.gmra.mrb[0].mxu0 %v758
      %v1137 = vpop.f32.mrb[0].mxu0
      %v1138 = vadd.f32 %v317, %v1137
      %v1139 = vpop.f32.mrb[0].mxu0
      %v1140 = vpop.f32.mrb[0].mxu0
      %v1141 = vadd.f32 %v317, %v1140
      %v1142 = vpop.f32.mrb[0].mxu0
      %1143 = vmatprep.mubr.bf16.mxu0 0
      %1144 = vmatmul.mubr.bf16.gmra.mrb[0].mxu0 %v761
      %v1145 = vpop.f32.mrb[0].mxu0
      %v1146 = vadd.f32 %v317, %v1145
      %v1147 = vpop.f32.mrb[0].mxu0
      %v1148 = vpop.f32.mrb[0].mxu0
      %v1149 = vadd.f32 %v317, %v1148
      %v1150 = vpop.f32.mrb[0].mxu0
      %1151 = vmatprep.mubr.bf16.mxu0 0
      %1152 = vmatmul.mubr.bf16.gmra.mrb[0].mxu0 %v764
      %v1153 = vpop.f32.mrb[0].mxu0
      %v1154 = vadd.f32 %v317, %v1153
      %v1155 = vpop.f32.mrb[0].mxu0
      %v1156 = vpop.f32.mrb[0].mxu0
      %v1157 = vadd.f32 %v317, %v1156
      %v1158 = vpop.f32.mrb[0].mxu0
      %1159 = vmatprep.mubr.bf16.mxu0 0
      %1160 = vmatmul.mubr.bf16.gmra.mrb[0].mxu0 %v767
      %v1161 = vpop.f32.mrb[0].mxu0
      %v1162 = vadd.f32 %v317, %v1161
      %v1163 = vpop.f32.mrb[0].mxu0
      %v1164 = vpop.f32.mrb[0].mxu0
      %v1165 = vadd.f32 %v317, %v1164
      %v1166 = vpop.f32.mrb[0].mxu0
      %1167 = vmatprep.mubr.bf16.mxu0 0
      %1168 = vmatmul.mubr.bf16.gmra.mrb[0].mxu0 %v770
      %v1169 = vpop.f32.mrb[0].mxu0
      %v1170 = vadd.f32 %v317, %v1169
      %v1171 = vpop.f32.mrb[0].mxu0
      %v1172 = vpop.f32.mrb[0].mxu0
      %v1173 = vadd.f32 %v317, %v1172
      %v1174 = vpop.f32.mrb[0].mxu0
      %1175 = vmatprep.mubr.bf16.mxu0 0
      %1176 = vmatmul.mubr.bf16.gmra.mrb[0].mxu0 %v773
      %v1177 = vpop.f32.mrb[0].mxu0
      %v1178 = vadd.f32 %v317, %v1177
      %v1179 = vpop.f32.mrb[0].mxu0
      %v1180 = vpop.f32.mrb[0].mxu0
      %v1181 = vadd.f32 %v317, %v1180
      %v1182 = vpop.f32.mrb[0].mxu0
      %1183 = vmatprep.mubr.bf16.mxu0 0
      %1184 = vmatmul.mubr.bf16.gmra.mrb[0].mxu0 %v776
      %v1185 = vpop.f32.mrb[0].mxu0
      %v1186 = vadd.f32 %v317, %v1185
      %v1187 = vpop.f32.mrb[0].mxu0
      %v1188 = vpop.f32.mrb[0].mxu0
      %v1189 = vadd.f32 %v317, %v1188
      %v1190 = vpop.f32.mrb[0].mxu0
      %1191 = vmatprep.mubr.bf16.mxu0 0
      %1192 = vmatmul.mubr.bf16.gmra.mrb[0].mxu0 %v779
      %v1193 = vpop.f32.mrb[0].mxu0
      %v1194 = vadd.f32 %v317, %v1193
      %v1195 = vpop.f32.mrb[0].mxu0
      %v1196 = vpop.f32.mrb[0].mxu0
      %v1197 = vadd.f32 %v317, %v1196
      %v1198 = vpop.f32.mrb[0].mxu0
      %1199 = vmatprep.mubr.bf16.mxu0 0
      %1200 = vmatmul.mubr.bf16.gmra.mrb[0].mxu0 %v782
      %v1201 = vpop.f32.mrb[0].mxu0
      %v1202 = vadd.f32 %v317, %v1201
      %v1203 = vpop.f32.mrb[0].mxu0
      %v1204 = vpop.f32.mrb[0].mxu0
      %v1205 = vadd.f32 %v317, %v1204
      %v1206 = vpop.f32.mrb[0].mxu0
      %1207 = vmatprep.mubr.bf16.mxu0 0
      %1208 = vmatmul.mubr.bf16.gmra.mrb[0].mxu0 %v785
      %v1209 = vpop.f32.mrb[0].mxu0
      %v1210 = vadd.f32 %v317, %v1209
      %v1211 = vpop.f32.mrb[0].mxu0
      %v1212 = vpop.f32.mrb[0].mxu0
      %v1213 = vadd.f32 %v317, %v1212
      %v1214 = vpop.f32.mrb[0].mxu0
      %1215 = vmatprep.mubr.bf16.mxu0 0
      %1216 = vmatmul.mubr.bf16.gmra.mrb[0].mxu0 %v788
      %v1217 = vpop.f32.mrb[0].mxu0
      %v1218 = vadd.f32 %v317, %v1217
      %v1219 = vpop.f32.mrb[0].mxu0
      %v1220 = vpop.f32.mrb[0].mxu0
      %v1221 = vadd.f32 %v317, %v1220
      %v1222 = vpop.f32.mrb[0].mxu0
      %1223 = vmatprep.mubr.bf16.mxu0 0
      %1224 = vmatmul.mubr.bf16.gmra.mrb[0].mxu0 %v791
      %v1225 = vpop.f32.mrb[0].mxu0
      %v1226 = vadd.f32 %v317, %v1225
      %v1227 = vpop.f32.mrb[0].mxu0
      %v1228 = vpop.f32.mrb[0].mxu0
      %v1229 = vadd.f32 %v317, %v1228
      %v1230 = vpop.f32.mrb[0].mxu0
      %1231 = vmatprep.mubr.bf16.mxu0 0
      %1232 = vmatmul.mubr.bf16.gmra.mrb[0].mxu0 %v794
      %v1233 = vpop.f32.mrb[0].mxu0
      %v1234 = vadd.f32 %v317, %v1233
      %v1235 = vpop.f32.mrb[0].mxu0
      %v1236 = vpop.f32.mrb[0].mxu0
      %v1237 = vadd.f32 %v317, %v1236
      %v1238 = vpop.f32.mrb[0].mxu0
      %1239 = vmatprep.mubr.bf16.mxu0 0
      %1240 = vmatmul.mubr.bf16.gmra.mrb[0].mxu0 %v797
      %v1241 = vpop.f32.mrb[0].mxu0
      %v1242 = vadd.f32 %v317, %v1241
      %v1243 = vpop.f32.mrb[0].mxu0
      %v1244 = vpop.f32.mrb[0].mxu0
      %v1245 = vadd.f32 %v317, %v1244
      %v1246 = vpop.f32.mrb[0].mxu0
      %1247 = vmatprep.mubr.bf16.mxu0 0
      %1248 = vmatmul.mubr.bf16.gmra.mrb[0].mxu0 %v800
      %v1249 = vpop.f32.mrb[0].mxu0
      %v1250 = vadd.f32 %v317, %v1249
      %v1251 = vpop.f32.mrb[0].mxu0
      %v1252 = vpop.f32.mrb[0].mxu0
      %v1253 = vadd.f32 %v317, %v1252
      %v1254 = vpop.f32.mrb[0].mxu0
      %1255 = vmatprep.mubr.bf16.mxu0 0
      %1256 = vmatmul.mubr.bf16.gmra.mrb[0].mxu0 %v803
      %v1257 = vpop.f32.mrb[0].mxu0
      %v1258 = vadd.f32 %v317, %v1257
      %v1259 = vpop.f32.mrb[0].mxu0
      %v1260 = vpop.f32.mrb[0].mxu0
      %v1261 = vadd.f32 %v317, %v1260
      %v1262 = vpop.f32.mrb[0].mxu0
      %1263 = vmatprep.mubr.bf16.mxu0 0
      %1264 = vmatmul.mubr.bf16.gmra.mrb[0].mxu0 %v806
      %v1265 = vpop.f32.mrb[0].mxu0
      %v1266 = vadd.f32 %v317, %v1265
      %v1267 = vpop.f32.mrb[0].mxu0
      %v1268 = vpop.f32.mrb[0].mxu0
      %v1269 = vadd.f32 %v317, %v1268
      %v1270 = vpop.f32.mrb[0].mxu0
      %1271 = vmatprep.mubr.bf16.mxu0 0
      %1272 = vmatmul.mubr.bf16.gmra.mrb[0].mxu0 %v809
      %v1273 = vpop.f32.mrb[0].mxu0
      %v1274 = vadd.f32 %v317, %v1273
      %v1275 = vpop.f32.mrb[0].mxu0
      %v1276 = vpop.f32.mrb[0].mxu0
      %v1277 = vadd.f32 %v317, %v1276
      %v1278 = vpop.f32.mrb[0].mxu0
      %1279 = vmatprep.mubr.bf16.mxu0 0
      %1280 = vmatmul.mubr.bf16.gmra.mrb[0].mxu0 %v812
      %v1281 = vpop.f32.mrb[0].mxu0
      %v1282 = vadd.f32 %v317, %v1281
      %v1283 = vpop.f32.mrb[0].mxu0
      %v1284 = vpop.f32.mrb[0].mxu0
      %v1285 = vadd.f32 %v317, %v1284
      %v1286 = vpop.f32.mrb[0].mxu0
      %1287 = vmatprep.mubr.bf16.mxu0 0
      %1288 = vmatmul.mubr.bf16.gmra.mrb[0].mxu0 %v815
      %v1289 = vpop.f32.mrb[0].mxu0
      %v1290 = vadd.f32 %v317, %v1289
      %v1291 = vpop.f32.mrb[0].mxu0
      %v1292 = vpop.f32.mrb[0].mxu0
      %v1293 = vadd.f32 %v317, %v1292
      %v1294 = vpop.f32.mrb[0].mxu0
      %1295 = vmatprep.mubr.bf16.mxu0 0
      %1296 = vmatmul.mubr.bf16.gmra.mrb[0].mxu0 %v818
      %v1297 = vpop.f32.mrb[0].mxu0
      %v1298 = vadd.f32 %v317, %v1297
      %v1299 = vpop.f32.mrb[0].mxu0
      %v1300 = vpop.f32.mrb[0].mxu0
      %v1301 = vadd.f32 %v317, %v1300
      %v1302 = vpop.f32.mrb[0].mxu0
      %1303 = vmatprep.mubr.bf16.mxu0 0
      %1304 = vmatmul.mubr.bf16.gmra.mrb[0].mxu0 %v821
      %v1305 = vpop.f32.mrb[0].mxu0
      %v1306 = vadd.f32 %v317, %v1305
      %v1307 = vpop.f32.mrb[0].mxu0
      %v1308 = vpop.f32.mrb[0].mxu0
      %v1309 = vadd.f32 %v317, %v1308
      %v1310 = vpop.f32.mrb[0].mxu0
      %1311 = vmatprep.mubr.bf16.mxu0 0
      %1312 = vmatmul.mubr.bf16.gmra.mrb[0].mxu0 %v824
      %v1313 = vpop.f32.mrb[0].mxu0
      %v1314 = vadd.f32 %v317, %v1313
      %v1315 = vpop.f32.mrb[0].mxu0
      %v1316 = vpop.f32.mrb[0].mxu0
      %v1317 = vadd.f32 %v317, %v1316
      %v1318 = vpop.f32.mrb[0].mxu0
      %1319 = vmatprep.mubr.bf16.mxu0 0
      %1320 = vmatmul.mubr.bf16.gmra.mrb[0].mxu0 %v827
      %v1321 = vpop.f32.mrb[0].mxu0
      %v1322 = vadd.f32 %v317, %v1321
      %v1323 = vpop.f32.mrb[0].mxu0
      %v1324 = vpop.f32.mrb[0].mxu0
      %v1325 = vadd.f32 %v317, %v1324
      %v1326 = vpop.f32.mrb[0].mxu0
      %1327 = vmatprep.mubr.bf16.mxu0 0
      %1328 = vmatmul.mubr.bf16.gmra.mrb[0].mxu0 %v830
      %v1329 = vpop.f32.mrb[0].mxu0
      %v1330 = vadd.f32 %v317, %v1329
      %v1331 = vpop.f32.mrb[0].mxu0
      %v1332 = vpop.f32.mrb[0].mxu0
      %v1333 = vadd.f32 %v317, %v1332
      %v1334 = vpop.f32.mrb[0].mxu0
      %1335 = vmatprep.mubr.bf16.mxu0 0
      %1336 = vmatmul.mubr.bf16.gmra.mrb[0].mxu0 %v833
      %v1337 = vpop.f32.mrb[0].mxu0
      %v1338 = vadd.f32 %v317, %v1337
      %v1339 = vpop.f32.mrb[0].mxu0
      %v1340 = vpop.f32.mrb[0].mxu0
      %v1341 = vadd.f32 %v317, %v1340
      %v1342 = vpop.f32.mrb[0].mxu0
      %1343 = vmatprep.mubr.bf16.mxu0 0
      %1344 = vmatmul.mubr.bf16.gmra.mrb[0].mxu0 %v836
      %v1345 = vpop.f32.mrb[0].mxu0
      %v1346 = vadd.f32 %v317, %v1345
      %v1347 = vpop.f32.mrb[0].mxu0
      %v1348 = vpop.f32.mrb[0].mxu0
      %v1349 = vadd.f32 %v317, %v1348
      %v1350 = vpop.f32.mrb[0].mxu0
      %1351 = vmatprep.mubr.bf16.mxu0 0
      %1352 = vmatmul.mubr.bf16.gmra.mrb[0].mxu0 %v839
      %v1353 = vpop.f32.mrb[0].mxu0
      %v1354 = vadd.f32 %v317, %v1353
      %v1355 = vpop.f32.mrb[0].mxu0
      %v1356 = vpop.f32.mrb[0].mxu0
      %v1357 = vadd.f32 %v317, %v1356
      %v1358 = vpop.f32.mrb[0].mxu0
      %1359 = vmatprep.mubr.bf16.mxu0 0
      %1360 = vmatmul.mubr.bf16.gmra.mrb[0].mxu0 %v842
      %v1361 = vpop.f32.mrb[0].mxu0
      %v1362 = vadd.f32 %v317, %v1361
      %v1363 = vpop.f32.mrb[0].mxu0
      %v1364 = vpop.f32.mrb[0].mxu0
      %v1365 = vadd.f32 %v317, %v1364
      %v1366 = vpop.f32.mrb[0].mxu0
      %1367 = vmatprep.mubr.bf16.mxu0 0
      %1368 = vmatmul.mubr.bf16.gmra.mrb[0].mxu0 %v845
      %v1369 = vpop.f32.mrb[0].mxu0
      %v1370 = vadd.f32 %v317, %v1369
      %v1371 = vpop.f32.mrb[0].mxu0
      %v1372 = vpop.f32.mrb[0].mxu0
      %v1373 = vadd.f32 %v317, %v1372
      %v1374 = vpop.f32.mrb[0].mxu0
      %1375 = vmatprep.mubr.bf16.mxu0 0
      %1376 = vmatmul.mubr.bf16.gmra.mrb[0].mxu0 %v848
      %v1377 = vpop.f32.mrb[0].mxu0
      %v1378 = vadd.f32 %v317, %v1377
      %v1379 = vpop.f32.mrb[0].mxu0
      %v1380 = vpop.f32.mrb[0].mxu0
      %v1381 = vadd.f32 %v317, %v1380
      %v1382 = vpop.f32.mrb[0].mxu0
      %1383 = vmatprep.mubr.bf16.mxu0 0
      %1384 = vmatmul.mubr.bf16.gmra.mrb[0].mxu0 %v851
      %v1385 = vpop.f32.mrb[0].mxu0
      %v1386 = vadd.f32 %v317, %v1385
      %v1387 = vpop.f32.mrb[0].mxu0
      %v1388 = vpop.f32.mrb[0].mxu0
      %v1389 = vadd.f32 %v317, %v1388
      %v1390 = vpop.f32.mrb[0].mxu0
      %1391 = vmatprep.mubr.bf16.mxu0 0
      %1392 = vmatmul.mubr.bf16.gmra.mrb[0].mxu0 %v854
      %v1393 = vpop.f32.mrb[0].mxu0
      %v1394 = vadd.f32 %v317, %v1393
      %v1395 = vpop.f32.mrb[0].mxu0
      %v1396 = vpop.f32.mrb[0].mxu0
      %v1397 = vadd.f32 %v317, %v1396
      %v1398 = vpop.f32.mrb[0].mxu0
      %1399 = vmatprep.mubr.bf16.mxu0 0
      %1400 = vmatmul.mubr.bf16.gmra.mrb[0].mxu0 %v857
      %v1401 = vpop.f32.mrb[0].mxu0
      %v1402 = vadd.f32 %v317, %v1401
      %v1403 = vpop.f32.mrb[0].mxu0
      %v1404 = vpop.f32.mrb[0].mxu0
      %v1405 = vadd.f32 %v317, %v1404
      %v1406 = vpop.f32.mrb[0].mxu0
      %1407 = vdwg.mxu0
      %v1408 = vxor.u32 %v898, 2147483648
      %v1409 = vxor.u32 %v901, 2147483648
      %v1410 = vxor.u32 %v906, 2147483648
      %v1411 = vxor.u32 %v909, 2147483648
      %v1412 = vxor.u32 %v914, 2147483648
      %v1413 = vxor.u32 %v917, 2147483648
      %v1414 = vxor.u32 %v922, 2147483648
      %v1415 = vxor.u32 %v925, 2147483648
      %v1416 = vxor.u32 %v930, 2147483648
      %v1417 = vxor.u32 %v933, 2147483648
      %v1418 = vxor.u32 %v938, 2147483648
      %v1419 = vxor.u32 %v941, 2147483648
      %v1420 = vxor.u32 %v946, 2147483648
      %v1421 = vxor.u32 %v949, 2147483648
      %v1422 = vxor.u32 %v954, 2147483648
      %v1423 = vxor.u32 %v957, 2147483648
      %v1424 = vxor.u32 %v962, 2147483648
      %v1425 = vxor.u32 %v965, 2147483648
      %v1426 = vxor.u32 %v970, 2147483648
      %v1427 = vxor.u32 %v973, 2147483648
      %v1428 = vxor.u32 %v978, 2147483648
      %v1429 = vxor.u32 %v981, 2147483648
      %v1430 = vxor.u32 %v986, 2147483648
      %v1431 = vxor.u32 %v989, 2147483648
      %v1432 = vxor.u32 %v994, 2147483648
      %v1433 = vxor.u32 %v997, 2147483648
      %v1434 = vxor.u32 %v1002, 2147483648
      %v1435 = vxor.u32 %v1005, 2147483648
      %v1436 = vxor.u32 %v1010, 2147483648
      %v1437 = vxor.u32 %v1013, 2147483648
      %v1438 = vxor.u32 %v1018, 2147483648
      %v1439 = vxor.u32 %v1021, 2147483648
      %v1440 = vxor.u32 %v1026, 2147483648
      %v1441 = vxor.u32 %v1029, 2147483648
      %v1442 = vxor.u32 %v1034, 2147483648
      %v1443 = vxor.u32 %v1037, 2147483648
      %v1444 = vxor.u32 %v1042, 2147483648
      %v1445 = vxor.u32 %v1045, 2147483648
      %v1446 = vxor.u32 %v1050, 2147483648
      %v1447 = vxor.u32 %v1053, 2147483648
      %v1448 = vxor.u32 %v1058, 2147483648
      %v1449 = vxor.u32 %v1061, 2147483648
      %v1450 = vxor.u32 %v1066, 2147483648
      %v1451 = vxor.u32 %v1069, 2147483648
      %v1452 = vxor.u32 %v1074, 2147483648
      %v1453 = vxor.u32 %v1077, 2147483648
      %v1454 = vxor.u32 %v1082, 2147483648
      %v1455 = vxor.u32 %v1085, 2147483648
      %v1456 = vxor.u32 %v1090, 2147483648
      %v1457 = vxor.u32 %v1093, 2147483648
      %v1458 = vxor.u32 %v1098, 2147483648
      %v1459 = vxor.u32 %v1101, 2147483648
      %v1460 = vxor.u32 %v1106, 2147483648
      %v1461 = vxor.u32 %v1109, 2147483648
      %v1462 = vxor.u32 %v1114, 2147483648
      %v1463 = vxor.u32 %v1117, 2147483648
      %v1464 = vxor.u32 %v1122, 2147483648
      %v1465 = vxor.u32 %v1125, 2147483648
      %v1466 = vxor.u32 %v1130, 2147483648
      %v1467 = vxor.u32 %v1133, 2147483648
      %v1468 = vxor.u32 %v1138, 2147483648
      %v1469 = vxor.u32 %v1141, 2147483648
      %v1470 = vxor.u32 %v1146, 2147483648
      %v1471 = vxor.u32 %v1149, 2147483648
      %v1472 = vxor.u32 %v1154, 2147483648
      %v1473 = vxor.u32 %v1157, 2147483648
      %v1474 = vxor.u32 %v1162, 2147483648
      %v1475 = vxor.u32 %v1165, 2147483648
      %v1476 = vxor.u32 %v1170, 2147483648
      %v1477 = vxor.u32 %v1173, 2147483648
      %v1478 = vxor.u32 %v1178, 2147483648
      %v1479 = vxor.u32 %v1181, 2147483648
      %v1480 = vxor.u32 %v1186, 2147483648
      %v1481 = vxor.u32 %v1189, 2147483648
      %v1482 = vxor.u32 %v1194, 2147483648
      %v1483 = vxor.u32 %v1197, 2147483648
      %v1484 = vxor.u32 %v1202, 2147483648
      %v1485 = vxor.u32 %v1205, 2147483648
      %v1486 = vxor.u32 %v1210, 2147483648
      %v1487 = vxor.u32 %v1213, 2147483648
      %v1488 = vxor.u32 %v1218, 2147483648
      %v1489 = vxor.u32 %v1221, 2147483648
      %v1490 = vxor.u32 %v1226, 2147483648
      %v1491 = vxor.u32 %v1229, 2147483648
      %v1492 = vxor.u32 %v1234, 2147483648
      %v1493 = vxor.u32 %v1237, 2147483648
      %v1494 = vxor.u32 %v1242, 2147483648
      %v1495 = vxor.u32 %v1245, 2147483648
      %v1496 = vxor.u32 %v1250, 2147483648
      %v1497 = vxor.u32 %v1253, 2147483648
      %v1498 = vxor.u32 %v1258, 2147483648
      %v1499 = vxor.u32 %v1261, 2147483648
      %v1500 = vxor.u32 %v1266, 2147483648
      %v1501 = vxor.u32 %v1269, 2147483648
      %v1502 = vxor.u32 %v1274, 2147483648
      %v1503 = vxor.u32 %v1277, 2147483648
      %v1504 = vxor.u32 %v1282, 2147483648
      %v1505 = vxor.u32 %v1285, 2147483648
      %v1506 = vxor.u32 %v1290, 2147483648
      %v1507 = vxor.u32 %v1293, 2147483648
      %v1508 = vxor.u32 %v1298, 2147483648
      %v1509 = vxor.u32 %v1301, 2147483648
      %v1510 = vxor.u32 %v1306, 2147483648
      %v1511 = vxor.u32 %v1309, 2147483648
      %v1512 = vxor.u32 %v1314, 2147483648
      %v1513 = vxor.u32 %v1317, 2147483648
      %v1514 = vxor.u32 %v1322, 2147483648
      %v1515 = vxor.u32 %v1325, 2147483648
      %v1516 = vxor.u32 %v1330, 2147483648
      %v1517 = vxor.u32 %v1333, 2147483648
      %v1518 = vxor.u32 %v1338, 2147483648
      %v1519 = vxor.u32 %v1341, 2147483648
      %v1520 = vxor.u32 %v1346, 2147483648
      %v1521 = vxor.u32 %v1349, 2147483648
      %v1522 = vxor.u32 %v1354, 2147483648
      %v1523 = vxor.u32 %v1357, 2147483648
      %v1524 = vxor.u32 %v1362, 2147483648
      %v1525 = vxor.u32 %v1365, 2147483648
      %v1526 = vxor.u32 %v1370, 2147483648
      %v1527 = vxor.u32 %v1373, 2147483648
      %v1528 = vxor.u32 %v1378, 2147483648
      %v1529 = vxor.u32 %v1381, 2147483648
      %v1530 = vxor.u32 %v1386, 2147483648
      %v1531 = vxor.u32 %v1389, 2147483648
      %v1532 = vxor.u32 %v1394, 2147483648
      %v1533 = vxor.u32 %v1397, 2147483648
      %v1534 = vxor.u32 %v1402, 2147483648
      %v1535 = vxor.u32 %v1405, 2147483648
      %v1536 = vmul.f32 %v1408, 1.442695
      %v1537 = vpow.pop %v1536
      %v1538 = vmul.f32 %v1409, 1.442695
      %v1539 = vpow.pop %v1538
      %v1540 = vmul.f32 %v1410, 1.442695
      %v1541 = vpow.pop %v1540
      %v1542 = vmul.f32 %v1411, 1.442695
      %v1543 = vpow.pop %v1542
      %v1544 = vmul.f32 %v1412, 1.442695
      %v1545 = vpow.pop %v1544
      %v1546 = vmul.f32 %v1413, 1.442695
      %v1547 = vpow.pop %v1546
      %v1548 = vmul.f32 %v1414, 1.442695
      %v1549 = vpow.pop %v1548
      %v1550 = vmul.f32 %v1415, 1.442695
      %v1551 = vpow.pop %v1550
      %v1552 = vmul.f32 %v1416, 1.442695
      %v1553 = vpow.pop %v1552
      %v1554 = vmul.f32 %v1417, 1.442695
      %v1555 = vpow.pop %v1554
      %v1556 = vmul.f32 %v1418, 1.442695
      %v1557 = vpow.pop %v1556
      %v1558 = vmul.f32 %v1419, 1.442695
      %v1559 = vpow.pop %v1558
      %v1560 = vmul.f32 %v1420, 1.442695
      %v1561 = vpow.pop %v1560
      %v1562 = vmul.f32 %v1421, 1.442695
      %v1563 = vpow.pop %v1562
      %v1564 = vmul.f32 %v1422, 1.442695
      %v1565 = vpow.pop %v1564
      %v1566 = vmul.f32 %v1423, 1.442695
      %v1567 = vpow.pop %v1566
      %v1568 = vmul.f32 %v1424, 1.442695
      %v1569 = vpow.pop %v1568
      %v1570 = vmul.f32 %v1425, 1.442695
      %v1571 = vpow.pop %v1570
      %v1572 = vmul.f32 %v1426, 1.442695
      %v1573 = vpow.pop %v1572
      %v1574 = vmul.f32 %v1427, 1.442695
      %v1575 = vpow.pop %v1574
      %v1576 = vmul.f32 %v1428, 1.442695
      %v1577 = vpow.pop %v1576
      %v1578 = vmul.f32 %v1429, 1.442695
      %v1579 = vpow.pop %v1578
      %v1580 = vmul.f32 %v1430, 1.442695
      %v1581 = vpow.pop %v1580
      %v1582 = vmul.f32 %v1431, 1.442695
      %v1583 = vpow.pop %v1582
      %v1584 = vmul.f32 %v1432, 1.442695
      %v1585 = vpow.pop %v1584
      %v1586 = vmul.f32 %v1433, 1.442695
      %v1587 = vpow.pop %v1586
      %v1588 = vmul.f32 %v1434, 1.442695
      %v1589 = vpow.pop %v1588
      %v1590 = vmul.f32 %v1435, 1.442695
      %v1591 = vpow.pop %v1590
      %v1592 = vmul.f32 %v1436, 1.442695
      %v1593 = vpow.pop %v1592
      %v1594 = vmul.f32 %v1437, 1.442695
      %v1595 = vpow.pop %v1594
      %v1596 = vmul.f32 %v1438, 1.442695
      %v1597 = vpow.pop %v1596
      %v1598 = vmul.f32 %v1439, 1.442695
      %v1599 = vpow.pop %v1598
      %v1600 = vmul.f32 %v1440, 1.442695
      %v1601 = vpow.pop %v1600
      %v1602 = vmul.f32 %v1441, 1.442695
      %v1603 = vpow.pop %v1602
      %v1604 = vmul.f32 %v1442, 1.442695
      %v1605 = vpow.pop %v1604
      %v1606 = vmul.f32 %v1443, 1.442695
      %v1607 = vpow.pop %v1606
      %v1608 = vmul.f32 %v1444, 1.442695
      %v1609 = vpow.pop %v1608
      %v1610 = vmul.f32 %v1445, 1.442695
      %v1611 = vpow.pop %v1610
      %v1612 = vmul.f32 %v1446, 1.442695
      %v1613 = vpow.pop %v1612
      %v1614 = vmul.f32 %v1447, 1.442695
      %v1615 = vpow.pop %v1614
      %v1616 = vmul.f32 %v1448, 1.442695
      %v1617 = vpow.pop %v1616
      %v1618 = vmul.f32 %v1449, 1.442695
      %v1619 = vpow.pop %v1618
      %v1620 = vmul.f32 %v1450, 1.442695
      %v1621 = vpow.pop %v1620
      %v1622 = vmul.f32 %v1451, 1.442695
      %v1623 = vpow.pop %v1622
      %v1624 = vmul.f32 %v1452, 1.442695
      %v1625 = vpow.pop %v1624
      %v1626 = vmul.f32 %v1453, 1.442695
      %v1627 = vpow.pop %v1626
      %v1628 = vmul.f32 %v1454, 1.442695
      %v1629 = vpow.pop %v1628
      %v1630 = vmul.f32 %v1455, 1.442695
      %v1631 = vpow.pop %v1630
      %v1632 = vmul.f32 %v1456, 1.442695
      %v1633 = vpow.pop %v1632
      %v1634 = vmul.f32 %v1457, 1.442695
      %v1635 = vpow.pop %v1634
      %v1636 = vmul.f32 %v1458, 1.442695
      %v1637 = vpow.pop %v1636
      %v1638 = vmul.f32 %v1459, 1.442695
      %v1639 = vpow.pop %v1638
      %v1640 = vmul.f32 %v1460, 1.442695
      %v1641 = vpow.pop %v1640
      %v1642 = vmul.f32 %v1461, 1.442695
      %v1643 = vpow.pop %v1642
      %v1644 = vmul.f32 %v1462, 1.442695
      %v1645 = vpow.pop %v1644
      %v1646 = vmul.f32 %v1463, 1.442695
      %v1647 = vpow.pop %v1646
      %v1648 = vmul.f32 %v1464, 1.442695
      %v1649 = vpow.pop %v1648
      %v1650 = vmul.f32 %v1465, 1.442695
      %v1651 = vpow.pop %v1650
      %v1652 = vmul.f32 %v1466, 1.442695
      %v1653 = vpow.pop %v1652
      %v1654 = vmul.f32 %v1467, 1.442695
      %v1655 = vpow.pop %v1654
      %v1656 = vmul.f32 %v1468, 1.442695
      %v1657 = vpow.pop %v1656
      %v1658 = vmul.f32 %v1469, 1.442695
      %v1659 = vpow.pop %v1658
      %v1660 = vmul.f32 %v1470, 1.442695
      %v1661 = vpow.pop %v1660
      %v1662 = vmul.f32 %v1471, 1.442695
      %v1663 = vpow.pop %v1662
      %v1664 = vmul.f32 %v1472, 1.442695
      %v1665 = vpow.pop %v1664
      %v1666 = vmul.f32 %v1473, 1.442695
      %v1667 = vpow.pop %v1666
      %v1668 = vmul.f32 %v1474, 1.442695
      %v1669 = vpow.pop %v1668
      %v1670 = vmul.f32 %v1475, 1.442695
      %v1671 = vpow.pop %v1670
      %v1672 = vmul.f32 %v1476, 1.442695
      %v1673 = vpow.pop %v1672
      %v1674 = vmul.f32 %v1477, 1.442695
      %v1675 = vpow.pop %v1674
      %v1676 = vmul.f32 %v1478, 1.442695
      %v1677 = vpow.pop %v1676
      %v1678 = vmul.f32 %v1479, 1.442695
      %v1679 = vpow.pop %v1678
      %v1680 = vmul.f32 %v1480, 1.442695
      %v1681 = vpow.pop %v1680
      %v1682 = vmul.f32 %v1481, 1.442695
      %v1683 = vpow.pop %v1682
      %v1684 = vmul.f32 %v1482, 1.442695
      %v1685 = vpow.pop %v1684
      %v1686 = vmul.f32 %v1483, 1.442695
      %v1687 = vpow.pop %v1686
      %v1688 = vmul.f32 %v1484, 1.442695
      %v1689 = vpow.pop %v1688
      %v1690 = vmul.f32 %v1485, 1.442695
      %v1691 = vpow.pop %v1690
      %v1692 = vmul.f32 %v1486, 1.442695
      %v1693 = vpow.pop %v1692
      %v1694 = vmul.f32 %v1487, 1.442695
      %v1695 = vpow.pop %v1694
      %v1696 = vmul.f32 %v1488, 1.442695
      %v1697 = vpow.pop %v1696
      %v1698 = vmul.f32 %v1489, 1.442695
      %v1699 = vpow.pop %v1698
      %v1700 = vmul.f32 %v1490, 1.442695
      %v1701 = vpow.pop %v1700
      %v1702 = vmul.f32 %v1491, 1.442695
      %v1703 = vpow.pop %v1702
      %v1704 = vmul.f32 %v1492, 1.442695
      %v1705 = vpow.pop %v1704
      %v1706 = vmul.f32 %v1493, 1.442695
      %v1707 = vpow.pop %v1706
      %v1708 = vmul.f32 %v1494, 1.442695
      %v1709 = vpow.pop %v1708
      %v1710 = vmul.f32 %v1495, 1.442695
      %v1711 = vpow.pop %v1710
      %v1712 = vmul.f32 %v1496, 1.442695
      %v1713 = vpow.pop %v1712
      %v1714 = vmul.f32 %v1497, 1.442695
      %v1715 = vpow.pop %v1714
      %v1716 = vmul.f32 %v1498, 1.442695
      %v1717 = vpow.pop %v1716
      %v1718 = vmul.f32 %v1499, 1.442695
      %v1719 = vpow.pop %v1718
      %v1720 = vmul.f32 %v1500, 1.442695
      %v1721 = vpow.pop %v1720
      %v1722 = vmul.f32 %v1501, 1.442695
      %v1723 = vpow.pop %v1722
      %v1724 = vmul.f32 %v1502, 1.442695
      %v1725 = vpow.pop %v1724
      %v1726 = vmul.f32 %v1503, 1.442695
      %v1727 = vpow.pop %v1726
      %v1728 = vmul.f32 %v1504, 1.442695
      %v1729 = vpow.pop %v1728
      %v1730 = vmul.f32 %v1505, 1.442695
      %v1731 = vpow.pop %v1730
      %v1732 = vmul.f32 %v1506, 1.442695
      %v1733 = vpow.pop %v1732
      %v1734 = vmul.f32 %v1507, 1.442695
      %v1735 = vpow.pop %v1734
      %v1736 = vmul.f32 %v1508, 1.442695
      %v1737 = vpow.pop %v1736
      %v1738 = vmul.f32 %v1509, 1.442695
      %v1739 = vpow.pop %v1738
      %v1740 = vmul.f32 %v1510, 1.442695
      %v1741 = vpow.pop %v1740
      %v1742 = vmul.f32 %v1511, 1.442695
      %v1743 = vpow.pop %v1742
      %v1744 = vmul.f32 %v1512, 1.442695
      %v1745 = vpow.pop %v1744
      %v1746 = vmul.f32 %v1513, 1.442695
      %v1747 = vpow.pop %v1746
      %v1748 = vmul.f32 %v1514, 1.442695
      %v1749 = vpow.pop %v1748
      %v1750 = vmul.f32 %v1515, 1.442695
      %v1751 = vpow.pop %v1750
      %v1752 = vmul.f32 %v1516, 1.442695
      %v1753 = vpow.pop %v1752
      %v1754 = vmul.f32 %v1517, 1.442695
      %v1755 = vpow.pop %v1754
      %v1756 = vmul.f32 %v1518, 1.442695
      %v1757 = vpow.pop %v1756
      %v1758 = vmul.f32 %v1519, 1.442695
      %v1759 = vpow.pop %v1758
      %v1760 = vmul.f32 %v1520, 1.442695
      %v1761 = vpow.pop %v1760
      %v1762 = vmul.f32 %v1521, 1.442695
      %v1763 = vpow.pop %v1762
      %v1764 = vmul.f32 %v1522, 1.442695
      %v1765 = vpow.pop %v1764
      %v1766 = vmul.f32 %v1523, 1.442695
      %v1767 = vpow.pop %v1766
      %v1768 = vmul.f32 %v1524, 1.442695
      %v1769 = vpow.pop %v1768
      %v1770 = vmul.f32 %v1525, 1.442695
      %v1771 = vpow.pop %v1770
      %v1772 = vmul.f32 %v1526, 1.442695
      %v1773 = vpow.pop %v1772
      %v1774 = vmul.f32 %v1527, 1.442695
      %v1775 = vpow.pop %v1774
      %v1776 = vmul.f32 %v1528, 1.442695
      %v1777 = vpow.pop %v1776
      %v1778 = vmul.f32 %v1529, 1.442695
      %v1779 = vpow.pop %v1778
      %v1780 = vmul.f32 %v1530, 1.442695
      %v1781 = vpow.pop %v1780
      %v1782 = vmul.f32 %v1531, 1.442695
      %v1783 = vpow.pop %v1782
      %v1784 = vmul.f32 %v1532, 1.442695
      %v1785 = vpow.pop %v1784
      %v1786 = vmul.f32 %v1533, 1.442695
      %v1787 = vpow.pop %v1786
      %v1788 = vmul.f32 %v1534, 1.442695
      %v1789 = vpow.pop %v1788
      %v1790 = vmul.f32 %v1535, 1.442695
      %v1791 = vpow.pop %v1790
      %v1792 = vadd.f32 %v1537, 1.0
      %v1793 = vadd.f32 %v1539, 1.0
      %v1794 = vadd.f32 %v1541, 1.0
      %v1795 = vadd.f32 %v1543, 1.0
      %v1796 = vadd.f32 %v1545, 1.0
      %v1797 = vadd.f32 %v1547, 1.0
      %v1798 = vadd.f32 %v1549, 1.0
      %v1799 = vadd.f32 %v1551, 1.0
      %v1800 = vadd.f32 %v1553, 1.0
      %v1801 = vadd.f32 %v1555, 1.0
      %v1802 = vadd.f32 %v1557, 1.0
      %v1803 = vadd.f32 %v1559, 1.0
      %v1804 = vadd.f32 %v1561, 1.0
      %v1805 = vadd.f32 %v1563, 1.0
      %v1806 = vadd.f32 %v1565, 1.0
      %v1807 = vadd.f32 %v1567, 1.0
      %v1808 = vadd.f32 %v1569, 1.0
      %v1809 = vadd.f32 %v1571, 1.0
      %v1810 = vadd.f32 %v1573, 1.0
      %v1811 = vadd.f32 %v1575, 1.0
      %v1812 = vadd.f32 %v1577, 1.0
      %v1813 = vadd.f32 %v1579, 1.0
      %v1814 = vadd.f32 %v1581, 1.0
      %v1815 = vadd.f32 %v1583, 1.0
      %v1816 = vadd.f32 %v1585, 1.0
      %v1817 = vadd.f32 %v1587, 1.0
      %v1818 = vadd.f32 %v1589, 1.0
      %v1819 = vadd.f32 %v1591, 1.0
      %v1820 = vadd.f32 %v1593, 1.0
      %v1821 = vadd.f32 %v1595, 1.0
      %v1822 = vadd.f32 %v1597, 1.0
      %v1823 = vadd.f32 %v1599, 1.0
      %v1824 = vadd.f32 %v1601, 1.0
      %v1825 = vadd.f32 %v1603, 1.0
      %v1826 = vadd.f32 %v1605, 1.0
      %v1827 = vadd.f32 %v1607, 1.0
      %v1828 = vadd.f32 %v1609, 1.0
      %v1829 = vadd.f32 %v1611, 1.0
      %v1830 = vadd.f32 %v1613, 1.0
      %v1831 = vadd.f32 %v1615, 1.0
      %v1832 = vadd.f32 %v1617, 1.0
      %v1833 = vadd.f32 %v1619, 1.0
      %v1834 = vadd.f32 %v1621, 1.0
      %v1835 = vadd.f32 %v1623, 1.0
      %v1836 = vadd.f32 %v1625, 1.0
      %v1837 = vadd.f32 %v1627, 1.0
      %v1838 = vadd.f32 %v1629, 1.0
      %v1839 = vadd.f32 %v1631, 1.0
      %v1840 = vadd.f32 %v1633, 1.0
      %v1841 = vadd.f32 %v1635, 1.0
      %v1842 = vadd.f32 %v1637, 1.0
      %v1843 = vadd.f32 %v1639, 1.0
      %v1844 = vadd.f32 %v1641, 1.0
      %v1845 = vadd.f32 %v1643, 1.0
      %v1846 = vadd.f32 %v1645, 1.0
      %v1847 = vadd.f32 %v1647, 1.0
      %v1848 = vadd.f32 %v1649, 1.0
      %v1849 = vadd.f32 %v1651, 1.0
      %v1850 = vadd.f32 %v1653, 1.0
      %v1851 = vadd.f32 %v1655, 1.0
      %v1852 = vadd.f32 %v1657, 1.0
      %v1853 = vadd.f32 %v1659, 1.0
      %v1854 = vadd.f32 %v1661, 1.0
      %v1855 = vadd.f32 %v1663, 1.0
      %v1856 = vadd.f32 %v1665, 1.0
      %v1857 = vadd.f32 %v1667, 1.0
      %v1858 = vadd.f32 %v1669, 1.0
      %v1859 = vadd.f32 %v1671, 1.0
      %v1860 = vadd.f32 %v1673, 1.0
      %v1861 = vadd.f32 %v1675, 1.0
      %v1862 = vadd.f32 %v1677, 1.0
      %v1863 = vadd.f32 %v1679, 1.0
      %v1864 = vadd.f32 %v1681, 1.0
      %v1865 = vadd.f32 %v1683, 1.0
      %v1866 = vadd.f32 %v1685, 1.0
      %v1867 = vadd.f32 %v1687, 1.0
      %v1868 = vadd.f32 %v1689, 1.0
      %v1869 = vadd.f32 %v1691, 1.0
      %v1870 = vadd.f32 %v1693, 1.0
      %v1871 = vadd.f32 %v1695, 1.0
      %v1872 = vadd.f32 %v1697, 1.0
      %v1873 = vadd.f32 %v1699, 1.0
      %v1874 = vadd.f32 %v1701, 1.0
      %v1875 = vadd.f32 %v1703, 1.0
      %v1876 = vadd.f32 %v1705, 1.0
      %v1877 = vadd.f32 %v1707, 1.0
      %v1878 = vadd.f32 %v1709, 1.0
      %v1879 = vadd.f32 %v1711, 1.0
      %v1880 = vadd.f32 %v1713, 1.0
      %v1881 = vadd.f32 %v1715, 1.0
      %v1882 = vadd.f32 %v1717, 1.0
      %v1883 = vadd.f32 %v1719, 1.0
      %v1884 = vadd.f32 %v1721, 1.0
      %v1885 = vadd.f32 %v1723, 1.0
      %v1886 = vadd.f32 %v1725, 1.0
      %v1887 = vadd.f32 %v1727, 1.0
      %v1888 = vadd.f32 %v1729, 1.0
      %v1889 = vadd.f32 %v1731, 1.0
      %v1890 = vadd.f32 %v1733, 1.0
      %v1891 = vadd.f32 %v1735, 1.0
      %v1892 = vadd.f32 %v1737, 1.0
      %v1893 = vadd.f32 %v1739, 1.0
      %v1894 = vadd.f32 %v1741, 1.0
      %v1895 = vadd.f32 %v1743, 1.0
      %v1896 = vadd.f32 %v1745, 1.0
      %v1897 = vadd.f32 %v1747, 1.0
      %v1898 = vadd.f32 %v1749, 1.0
      %v1899 = vadd.f32 %v1751, 1.0
      %v1900 = vadd.f32 %v1753, 1.0
      %v1901 = vadd.f32 %v1755, 1.0
      %v1902 = vadd.f32 %v1757, 1.0
      %v1903 = vadd.f32 %v1759, 1.0
      %v1904 = vadd.f32 %v1761, 1.0
      %v1905 = vadd.f32 %v1763, 1.0
      %v1906 = vadd.f32 %v1765, 1.0
      %v1907 = vadd.f32 %v1767, 1.0
      %v1908 = vadd.f32 %v1769, 1.0
      %v1909 = vadd.f32 %v1771, 1.0
      %v1910 = vadd.f32 %v1773, 1.0
      %v1911 = vadd.f32 %v1775, 1.0
      %v1912 = vadd.f32 %v1777, 1.0
      %v1913 = vadd.f32 %v1779, 1.0
      %v1914 = vadd.f32 %v1781, 1.0
      %v1915 = vadd.f32 %v1783, 1.0
      %v1916 = vadd.f32 %v1785, 1.0
      %v1917 = vadd.f32 %v1787, 1.0
      %v1918 = vadd.f32 %v1789, 1.0
      %v1919 = vadd.f32 %v1791, 1.0
      %v1920 = vrcp.pop %v1792
      %v1921 = vmul.f32 1.0, %v1920
      %v1922 = vrcp.pop %v1793
      %v1923 = vmul.f32 1.0, %v1922
      %v1924 = vrcp.pop %v1794
      %v1925 = vmul.f32 1.0, %v1924
      %v1926 = vrcp.pop %v1795
      %v1927 = vmul.f32 1.0, %v1926
      %v1928 = vrcp.pop %v1796
      %v1929 = vmul.f32 1.0, %v1928
      %v1930 = vrcp.pop %v1797
      %v1931 = vmul.f32 1.0, %v1930
      %v1932 = vrcp.pop %v1798
      %v1933 = vmul.f32 1.0, %v1932
      %v1934 = vrcp.pop %v1799
      %v1935 = vmul.f32 1.0, %v1934
      %v1936 = vrcp.pop %v1800
      %v1937 = vmul.f32 1.0, %v1936
      %v1938 = vrcp.pop %v1801
      %v1939 = vmul.f32 1.0, %v1938
      %v1940 = vrcp.pop %v1802
      %v1941 = vmul.f32 1.0, %v1940
      %v1942 = vrcp.pop %v1803
      %v1943 = vmul.f32 1.0, %v1942
      %v1944 = vrcp.pop %v1804
      %v1945 = vmul.f32 1.0, %v1944
      %v1946 = vrcp.pop %v1805
      %v1947 = vmul.f32 1.0, %v1946
      %v1948 = vrcp.pop %v1806
      %v1949 = vmul.f32 1.0, %v1948
      %v1950 = vrcp.pop %v1807
      %v1951 = vmul.f32 1.0, %v1950
      %v1952 = vrcp.pop %v1808
      %v1953 = vmul.f32 1.0, %v1952
      %v1954 = vrcp.pop %v1809
      %v1955 = vmul.f32 1.0, %v1954
      %v1956 = vrcp.pop %v1810
      %v1957 = vmul.f32 1.0, %v1956
      %v1958 = vrcp.pop %v1811
      %v1959 = vmul.f32 1.0, %v1958
      %v1960 = vrcp.pop %v1812
      %v1961 = vmul.f32 1.0, %v1960
      %v1962 = vrcp.pop %v1813
      %v1963 = vmul.f32 1.0, %v1962
      %v1964 = vrcp.pop %v1814
      %v1965 = vmul.f32 1.0, %v1964
      %v1966 = vrcp.pop %v1815
      %v1967 = vmul.f32 1.0, %v1966
      %v1968 = vrcp.pop %v1816
      %v1969 = vmul.f32 1.0, %v1968
      %v1970 = vrcp.pop %v1817
      %v1971 = vmul.f32 1.0, %v1970
      %v1972 = vrcp.pop %v1818
      %v1973 = vmul.f32 1.0, %v1972
      %v1974 = vrcp.pop %v1819
      %v1975 = vmul.f32 1.0, %v1974
      %v1976 = vrcp.pop %v1820
      %v1977 = vmul.f32 1.0, %v1976
      %v1978 = vrcp.pop %v1821
      %v1979 = vmul.f32 1.0, %v1978
      %v1980 = vrcp.pop %v1822
      %v1981 = vmul.f32 1.0, %v1980
      %v1982 = vrcp.pop %v1823
      %v1983 = vmul.f32 1.0, %v1982
      %v1984 = vrcp.pop %v1824
      %v1985 = vmul.f32 1.0, %v1984
      %v1986 = vrcp.pop %v1825
      %v1987 = vmul.f32 1.0, %v1986
      %v1988 = vrcp.pop %v1826
      %v1989 = vmul.f32 1.0, %v1988
      %v1990 = vrcp.pop %v1827
      %v1991 = vmul.f32 1.0, %v1990
      %v1992 = vrcp.pop %v1828
      %v1993 = vmul.f32 1.0, %v1992
      %v1994 = vrcp.pop %v1829
      %v1995 = vmul.f32 1.0, %v1994
      %v1996 = vrcp.pop %v1830
      %v1997 = vmul.f32 1.0, %v1996
      %v1998 = vrcp.pop %v1831
      %v1999 = vmul.f32 1.0, %v1998
      %v2000 = vrcp.pop %v1832
      %v2001 = vmul.f32 1.0, %v2000
      %v2002 = vrcp.pop %v1833
      %v2003 = vmul.f32 1.0, %v2002
      %v2004 = vrcp.pop %v1834
      %v2005 = vmul.f32 1.0, %v2004
      %v2006 = vrcp.pop %v1835
      %v2007 = vmul.f32 1.0, %v2006
      %v2008 = vrcp.pop %v1836
      %v2009 = vmul.f32 1.0, %v2008
      %v2010 = vrcp.pop %v1837
      %v2011 = vmul.f32 1.0, %v2010
      %v2012 = vrcp.pop %v1838
      %v2013 = vmul.f32 1.0, %v2012
      %v2014 = vrcp.pop %v1839
      %v2015 = vmul.f32 1.0, %v2014
      %v2016 = vrcp.pop %v1840
      %v2017 = vmul.f32 1.0, %v2016
      %v2018 = vrcp.pop %v1841
      %v2019 = vmul.f32 1.0, %v2018
      %v2020 = vrcp.pop %v1842
      %v2021 = vmul.f32 1.0, %v2020
      %v2022 = vrcp.pop %v1843
      %v2023 = vmul.f32 1.0, %v2022
      %v2024 = vrcp.pop %v1844
      %v2025 = vmul.f32 1.0, %v2024
      %v2026 = vrcp.pop %v1845
      %v2027 = vmul.f32 1.0, %v2026
      %v2028 = vrcp.pop %v1846
      %v2029 = vmul.f32 1.0, %v2028
      %v2030 = vrcp.pop %v1847
      %v2031 = vmul.f32 1.0, %v2030
      %v2032 = vrcp.pop %v1848
      %v2033 = vmul.f32 1.0, %v2032
      %v2034 = vrcp.pop %v1849
      %v2035 = vmul.f32 1.0, %v2034
      %v2036 = vrcp.pop %v1850
      %v2037 = vmul.f32 1.0, %v2036
      %v2038 = vrcp.pop %v1851
      %v2039 = vmul.f32 1.0, %v2038
      %v2040 = vrcp.pop %v1852
      %v2041 = vmul.f32 1.0, %v2040
      %v2042 = vrcp.pop %v1853
      %v2043 = vmul.f32 1.0, %v2042
      %v2044 = vrcp.pop %v1854
      %v2045 = vmul.f32 1.0, %v2044
      %v2046 = vrcp.pop %v1855
      %v2047 = vmul.f32 1.0, %v2046
      %v2048 = vrcp.pop %v1856
      %v2049 = vmul.f32 1.0, %v2048
      %v2050 = vrcp.pop %v1857
      %v2051 = vmul.f32 1.0, %v2050
      %v2052 = vrcp.pop %v1858
      %v2053 = vmul.f32 1.0, %v2052
      %v2054 = vrcp.pop %v1859
      %v2055 = vmul.f32 1.0, %v2054
      %v2056 = vrcp.pop %v1860
      %v2057 = vmul.f32 1.0, %v2056
      %v2058 = vrcp.pop %v1861
      %v2059 = vmul.f32 1.0, %v2058
      %v2060 = vrcp.pop %v1862
      %v2061 = vmul.f32 1.0, %v2060
      %v2062 = vrcp.pop %v1863
      %v2063 = vmul.f32 1.0, %v2062
      %v2064 = vrcp.pop %v1864
      %v2065 = vmul.f32 1.0, %v2064
      %v2066 = vrcp.pop %v1865
      %v2067 = vmul.f32 1.0, %v2066
      %v2068 = vrcp.pop %v1866
      %v2069 = vmul.f32 1.0, %v2068
      %v2070 = vrcp.pop %v1867
      %v2071 = vmul.f32 1.0, %v2070
      %v2072 = vrcp.pop %v1868
      %v2073 = vmul.f32 1.0, %v2072
      %v2074 = vrcp.pop %v1869
      %v2075 = vmul.f32 1.0, %v2074
      %v2076 = vrcp.pop %v1870
      %v2077 = vmul.f32 1.0, %v2076
      %v2078 = vrcp.pop %v1871
      %v2079 = vmul.f32 1.0, %v2078
      %v2080 = vrcp.pop %v1872
      %v2081 = vmul.f32 1.0, %v2080
      %v2082 = vrcp.pop %v1873
      %v2083 = vmul.f32 1.0, %v2082
      %v2084 = vrcp.pop %v1874
      %v2085 = vmul.f32 1.0, %v2084
      %v2086 = vrcp.pop %v1875
      %v2087 = vmul.f32 1.0, %v2086
      %v2088 = vrcp.pop %v1876
      %v2089 = vmul.f32 1.0, %v2088
      %v2090 = vrcp.pop %v1877
      %v2091 = vmul.f32 1.0, %v2090
      %v2092 = vrcp.pop %v1878
      %v2093 = vmul.f32 1.0, %v2092
      %v2094 = vrcp.pop %v1879
      %v2095 = vmul.f32 1.0, %v2094
      %v2096 = vrcp.pop %v1880
      %v2097 = vmul.f32 1.0, %v2096
      %v2098 = vrcp.pop %v1881
      %v2099 = vmul.f32 1.0, %v2098
      %v2100 = vrcp.pop %v1882
      %v2101 = vmul.f32 1.0, %v2100
      %v2102 = vrcp.pop %v1883
      %v2103 = vmul.f32 1.0, %v2102
      %v2104 = vrcp.pop %v1884
      %v2105 = vmul.f32 1.0, %v2104
      %v2106 = vrcp.pop %v1885
      %v2107 = vmul.f32 1.0, %v2106
      %v2108 = vrcp.pop %v1886
      %v2109 = vmul.f32 1.0, %v2108
      %v2110 = vrcp.pop %v1887
      %v2111 = vmul.f32 1.0, %v2110
      %v2112 = vrcp.pop %v1888
      %v2113 = vmul.f32 1.0, %v2112
      %v2114 = vrcp.pop %v1889
      %v2115 = vmul.f32 1.0, %v2114
      %v2116 = vrcp.pop %v1890
      %v2117 = vmul.f32 1.0, %v2116
      %v2118 = vrcp.pop %v1891
      %v2119 = vmul.f32 1.0, %v2118
      %v2120 = vrcp.pop %v1892
      %v2121 = vmul.f32 1.0, %v2120
      %v2122 = vrcp.pop %v1893
      %v2123 = vmul.f32 1.0, %v2122
      %v2124 = vrcp.pop %v1894
      %v2125 = vmul.f32 1.0, %v2124
      %v2126 = vrcp.pop %v1895
      %v2127 = vmul.f32 1.0, %v2126
      %v2128 = vrcp.pop %v1896
      %v2129 = vmul.f32 1.0, %v2128
      %v2130 = vrcp.pop %v1897
      %v2131 = vmul.f32 1.0, %v2130
      %v2132 = vrcp.pop %v1898
      %v2133 = vmul.f32 1.0, %v2132
      %v2134 = vrcp.pop %v1899
      %v2135 = vmul.f32 1.0, %v2134
      %v2136 = vrcp.pop %v1900
      %v2137 = vmul.f32 1.0, %v2136
      %v2138 = vrcp.pop %v1901
      %v2139 = vmul.f32 1.0, %v2138
      %v2140 = vrcp.pop %v1902
      %v2141 = vmul.f32 1.0, %v2140
      %v2142 = vrcp.pop %v1903
      %v2143 = vmul.f32 1.0, %v2142
      %v2144 = vrcp.pop %v1904
      %v2145 = vmul.f32 1.0, %v2144
      %v2146 = vrcp.pop %v1905
      %v2147 = vmul.f32 1.0, %v2146
      %v2148 = vrcp.pop %v1906
      %v2149 = vmul.f32 1.0, %v2148
      %v2150 = vrcp.pop %v1907
      %v2151 = vmul.f32 1.0, %v2150
      %v2152 = vrcp.pop %v1908
      %v2153 = vmul.f32 1.0, %v2152
      %v2154 = vrcp.pop %v1909
      %v2155 = vmul.f32 1.0, %v2154
      %v2156 = vrcp.pop %v1910
      %v2157 = vmul.f32 1.0, %v2156
      %v2158 = vrcp.pop %v1911
      %v2159 = vmul.f32 1.0, %v2158
      %v2160 = vrcp.pop %v1912
      %v2161 = vmul.f32 1.0, %v2160
      %v2162 = vrcp.pop %v1913
      %v2163 = vmul.f32 1.0, %v2162
      %v2164 = vrcp.pop %v1914
      %v2165 = vmul.f32 1.0, %v2164
      %v2166 = vrcp.pop %v1915
      %v2167 = vmul.f32 1.0, %v2166
      %v2168 = vrcp.pop %v1916
      %v2169 = vmul.f32 1.0, %v2168
      %v2170 = vrcp.pop %v1917
      %v2171 = vmul.f32 1.0, %v2170
      %v2172 = vrcp.pop %v1918
      %v2173 = vmul.f32 1.0, %v2172
      %v2174 = vrcp.pop %v1919
      %v2175 = vmul.f32 1.0, %v2174
      %vm2176 = vcmask 23552
      %2177 = vst.msk [vmem:[%s172] sm:$0xff] %vm2176, %v1921
      %2178 = vst.msk [vmem:[%s172 + $0x8] sm:$0xff] %vm2176, %v1923
      %2179 = vst.msk [vmem:[%s172 + $0x10] sm:$0xff] %vm2176, %v1925
      %2180 = vst.msk [vmem:[%s172 + $0x18] sm:$0xff] %vm2176, %v1927
      %2181 = vst.msk [vmem:[%s172 + $0x20] sm:$0xff] %vm2176, %v1929
      %2182 = vst.msk [vmem:[%s172 + $0x28] sm:$0xff] %vm2176, %v1931
      %2183 = vst.msk [vmem:[%s172 + $0x30] sm:$0xff] %vm2176, %v1933
      %2184 = vst.msk [vmem:[%s172 + $0x38] sm:$0xff] %vm2176, %v1935
      %2185 = vst.msk [vmem:[%s172 + $0x40] sm:$0xff] %vm2176, %v1937
      %2186 = vst.msk [vmem:[%s172 + $0x48] sm:$0xff] %vm2176, %v1939
      %2187 = vst.msk [vmem:[%s172 + $0x50] sm:$0xff] %vm2176, %v1941
      %2188 = vst.msk [vmem:[%s172 + $0x58] sm:$0xff] %vm2176, %v1943
      %2189 = vst.msk [vmem:[%s172 + $0x60] sm:$0xff] %vm2176, %v1945
      %2190 = vst.msk [vmem:[%s172 + $0x68] sm:$0xff] %vm2176, %v1947
      %2191 = vst.msk [vmem:[%s172 + $0x70] sm:$0xff] %vm2176, %v1949
      %2192 = vst.msk [vmem:[%s172 + $0x78] sm:$0xff] %vm2176, %v1951
      %2193 = vst.msk [vmem:[%s172 + $0x80] sm:$0xff] %vm2176, %v1953
      %2194 = vst.msk [vmem:[%s172 + $0x88] sm:$0xff] %vm2176, %v1955
      %2195 = vst.msk [vmem:[%s172 + $0x90] sm:$0xff] %vm2176, %v1957
      %2196 = vst.msk [vmem:[%s172 + $0x98] sm:$0xff] %vm2176, %v1959
      %2197 = vst.msk [vmem:[%s172 + $0xa0] sm:$0xff] %vm2176, %v1961
      %2198 = vst.msk [vmem:[%s172 + $0xa8] sm:$0xff] %vm2176, %v1963
      %2199 = vst.msk [vmem:[%s172 + $0xb0] sm:$0xff] %vm2176, %v1965
      %2200 = vst.msk [vmem:[%s172 + $0xb8] sm:$0xff] %vm2176, %v1967
      %2201 = vst.msk [vmem:[%s172 + $0xc0] sm:$0xff] %vm2176, %v1969
      %2202 = vst.msk [vmem:[%s172 + $0xc8] sm:$0xff] %vm2176, %v1971
      %2203 = vst.msk [vmem:[%s172 + $0xd0] sm:$0xff] %vm2176, %v1973
      %2204 = vst.msk [vmem:[%s172 + $0xd8] sm:$0xff] %vm2176, %v1975
      %2205 = vst.msk [vmem:[%s172 + $0xe0] sm:$0xff] %vm2176, %v1977
      %2206 = vst.msk [vmem:[%s172 + $0xe8] sm:$0xff] %vm2176, %v1979
      %2207 = vst.msk [vmem:[%s172 + $0xf0] sm:$0xff] %vm2176, %v1981
      %2208 = vst.msk [vmem:[%s172 + $0xf8] sm:$0xff] %vm2176, %v1983
      %2209 = vst.msk [vmem:[%s172 + $0x100] sm:$0xff] %vm2176, %v1985
      %2210 = vst.msk [vmem:[%s172 + $0x108] sm:$0xff] %vm2176, %v1987
      %2211 = vst.msk [vmem:[%s172 + $0x110] sm:$0xff] %vm2176, %v1989
      %2212 = vst.msk [vmem:[%s172 + $0x118] sm:$0xff] %vm2176, %v1991
      %2213 = vst.msk [vmem:[%s172 + $0x120] sm:$0xff] %vm2176, %v1993
      %2214 = vst.msk [vmem:[%s172 + $0x128] sm:$0xff] %vm2176, %v1995
      %2215 = vst.msk [vmem:[%s172 + $0x130] sm:$0xff] %vm2176, %v1997
      %2216 = vst.msk [vmem:[%s172 + $0x138] sm:$0xff] %vm2176, %v1999
      %2217 = vst.msk [vmem:[%s172 + $0x140] sm:$0xff] %vm2176, %v2001
      %2218 = vst.msk [vmem:[%s172 + $0x148] sm:$0xff] %vm2176, %v2003
      %2219 = vst.msk [vmem:[%s172 + $0x150] sm:$0xff] %vm2176, %v2005
      %2220 = vst.msk [vmem:[%s172 + $0x158] sm:$0xff] %vm2176, %v2007
      %2221 = vst.msk [vmem:[%s172 + $0x160] sm:$0xff] %vm2176, %v2009
      %2222 = vst.msk [vmem:[%s172 + $0x168] sm:$0xff] %vm2176, %v2011
      %2223 = vst.msk [vmem:[%s172 + $0x170] sm:$0xff] %vm2176, %v2013
      %2224 = vst.msk [vmem:[%s172 + $0x178] sm:$0xff] %vm2176, %v2015
      %2225 = vst.msk [vmem:[%s172 + $0x180] sm:$0xff] %vm2176, %v2017
      %2226 = vst.msk [vmem:[%s172 + $0x188] sm:$0xff] %vm2176, %v2019
      %2227 = vst.msk [vmem:[%s172 + $0x190] sm:$0xff] %vm2176, %v2021
      %2228 = vst.msk [vmem:[%s172 + $0x198] sm:$0xff] %vm2176, %v2023
      %2229 = vst.msk [vmem:[%s172 + $0x1a0] sm:$0xff] %vm2176, %v2025
      %2230 = vst.msk [vmem:[%s172 + $0x1a8] sm:$0xff] %vm2176, %v2027
      %2231 = vst.msk [vmem:[%s172 + $0x1b0] sm:$0xff] %vm2176, %v2029
      %2232 = vst.msk [vmem:[%s172 + $0x1b8] sm:$0xff] %vm2176, %v2031
      %2233 = vst.msk [vmem:[%s172 + $0x1c0] sm:$0xff] %vm2176, %v2033
      %2234 = vst.msk [vmem:[%s172 + $0x1c8] sm:$0xff] %vm2176, %v2035
      %2235 = vst.msk [vmem:[%s172 + $0x1d0] sm:$0xff] %vm2176, %v2037
      %2236 = vst.msk [vmem:[%s172 + $0x1d8] sm:$0xff] %vm2176, %v2039
      %2237 = vst.msk [vmem:[%s172 + $0x1e0] sm:$0xff] %vm2176, %v2041
      %2238 = vst.msk [vmem:[%s172 + $0x1e8] sm:$0xff] %vm2176, %v2043
      %2239 = vst.msk [vmem:[%s172 + $0x1f0] sm:$0xff] %vm2176, %v2045
      %2240 = vst.msk [vmem:[%s172 + $0x1f8] sm:$0xff] %vm2176, %v2047
      %2241 = vst.msk [vmem:[%s172 + $0x200] sm:$0xff] %vm2176, %v2049
      %2242 = vst.msk [vmem:[%s172 + $0x208] sm:$0xff] %vm2176, %v2051
      %2243 = vst.msk [vmem:[%s172 + $0x210] sm:$0xff] %vm2176, %v2053
      %2244 = vst.msk [vmem:[%s172 + $0x218] sm:$0xff] %vm2176, %v2055
      %2245 = vst.msk [vmem:[%s172 + $0x220] sm:$0xff] %vm2176, %v2057
      %2246 = vst.msk [vmem:[%s172 + $0x228] sm:$0xff] %vm2176, %v2059
      %2247 = vst.msk [vmem:[%s172 + $0x230] sm:$0xff] %vm2176, %v2061
      %2248 = vst.msk [vmem:[%s172 + $0x238] sm:$0xff] %vm2176, %v2063
      %2249 = vst.msk [vmem:[%s172 + $0x240] sm:$0xff] %vm2176, %v2065
      %2250 = vst.msk [vmem:[%s172 + $0x248] sm:$0xff] %vm2176, %v2067
      %2251 = vst.msk [vmem:[%s172 + $0x250] sm:$0xff] %vm2176, %v2069
      %2252 = vst.msk [vmem:[%s172 + $0x258] sm:$0xff] %vm2176, %v2071
      %2253 = vst.msk [vmem:[%s172 + $0x260] sm:$0xff] %vm2176, %v2073
      %2254 = vst.msk [vmem:[%s172 + $0x268] sm:$0xff] %vm2176, %v2075
      %2255 = vst.msk [vmem:[%s172 + $0x270] sm:$0xff] %vm2176, %v2077
      %2256 = vst.msk [vmem:[%s172 + $0x278] sm:$0xff] %vm2176, %v2079
      %2257 = vst.msk [vmem:[%s172 + $0x280] sm:$0xff] %vm2176, %v2081
      %2258 = vst.msk [vmem:[%s172 + $0x288] sm:$0xff] %vm2176, %v2083
      %2259 = vst.msk [vmem:[%s172 + $0x290] sm:$0xff] %vm2176, %v2085
      %2260 = vst.msk [vmem:[%s172 + $0x298] sm:$0xff] %vm2176, %v2087
      %2261 = vst.msk [vmem:[%s172 + $0x2a0] sm:$0xff] %vm2176, %v2089
      %2262 = vst.msk [vmem:[%s172 + $0x2a8] sm:$0xff] %vm2176, %v2091
      %2263 = vst.msk [vmem:[%s172 + $0x2b0] sm:$0xff] %vm2176, %v2093
      %2264 = vst.msk [vmem:[%s172 + $0x2b8] sm:$0xff] %vm2176, %v2095
      %2265 = vst.msk [vmem:[%s172 + $0x2c0] sm:$0xff] %vm2176, %v2097
      %2266 = vst.msk [vmem:[%s172 + $0x2c8] sm:$0xff] %vm2176, %v2099
      %2267 = vst.msk [vmem:[%s172 + $0x2d0] sm:$0xff] %vm2176, %v2101
      %2268 = vst.msk [vmem:[%s172 + $0x2d8] sm:$0xff] %vm2176, %v2103
      %2269 = vst.msk [vmem:[%s172 + $0x2e0] sm:$0xff] %vm2176, %v2105
      %2270 = vst.msk [vmem:[%s172 + $0x2e8] sm:$0xff] %vm2176, %v2107
      %2271 = vst.msk [vmem:[%s172 + $0x2f0] sm:$0xff] %vm2176, %v2109
      %2272 = vst.msk [vmem:[%s172 + $0x2f8] sm:$0xff] %vm2176, %v2111
      %2273 = vst.msk [vmem:[%s172 + $0x300] sm:$0xff] %vm2176, %v2113
      %2274 = vst.msk [vmem:[%s172 + $0x308] sm:$0xff] %vm2176, %v2115
      %2275 = vst.msk [vmem:[%s172 + $0x310] sm:$0xff] %vm2176, %v2117
      %2276 = vst.msk [vmem:[%s172 + $0x318] sm:$0xff] %vm2176, %v2119
      %2277 = vst.msk [vmem:[%s172 + $0x320] sm:$0xff] %vm2176, %v2121
      %2278 = vst.msk [vmem:[%s172 + $0x328] sm:$0xff] %vm2176, %v2123
      %2279 = vst.msk [vmem:[%s172 + $0x330] sm:$0xff] %vm2176, %v2125
      %2280 = vst.msk [vmem:[%s172 + $0x338] sm:$0xff] %vm2176, %v2127
      %2281 = vst.msk [vmem:[%s172 + $0x340] sm:$0xff] %vm2176, %v2129
      %2282 = vst.msk [vmem:[%s172 + $0x348] sm:$0xff] %vm2176, %v2131
      %2283 = vst.msk [vmem:[%s172 + $0x350] sm:$0xff] %vm2176, %v2133
      %2284 = vst.msk [vmem:[%s172 + $0x358] sm:$0xff] %vm2176, %v2135
      %2285 = vst.msk [vmem:[%s172 + $0x360] sm:$0xff] %vm2176, %v2137
      %2286 = vst.msk [vmem:[%s172 + $0x368] sm:$0xff] %vm2176, %v2139
      %2287 = vst.msk [vmem:[%s172 + $0x370] sm:$0xff] %vm2176, %v2141
      %2288 = vst.msk [vmem:[%s172 + $0x378] sm:$0xff] %vm2176, %v2143
      %2289 = vst.msk [vmem:[%s172 + $0x380] sm:$0xff] %vm2176, %v2145
      %2290 = vst.msk [vmem:[%s172 + $0x388] sm:$0xff] %vm2176, %v2147
      %2291 = vst.msk [vmem:[%s172 + $0x390] sm:$0xff] %vm2176, %v2149
      %2292 = vst.msk [vmem:[%s172 + $0x398] sm:$0xff] %vm2176, %v2151
      %2293 = vst.msk [vmem:[%s172 + $0x3a0] sm:$0xff] %vm2176, %v2153
      %2294 = vst.msk [vmem:[%s172 + $0x3a8] sm:$0xff] %vm2176, %v2155
      %2295 = vst.msk [vmem:[%s172 + $0x3b0] sm:$0xff] %vm2176, %v2157
      %2296 = vst.msk [vmem:[%s172 + $0x3b8] sm:$0xff] %vm2176, %v2159
      %2297 = vst.msk [vmem:[%s172 + $0x3c0] sm:$0xff] %vm2176, %v2161
      %2298 = vst.msk [vmem:[%s172 + $0x3c8] sm:$0xff] %vm2176, %v2163
      %2299 = vst.msk [vmem:[%s172 + $0x3d0] sm:$0xff] %vm2176, %v2165
      %2300 = vst.msk [vmem:[%s172 + $0x3d8] sm:$0xff] %vm2176, %v2167
      %2301 = vst.msk [vmem:[%s172 + $0x3e0] sm:$0xff] %vm2176, %v2169
      %2302 = vst.msk [vmem:[%s172 + $0x3e8] sm:$0xff] %vm2176, %v2171
      %2303 = vst.msk [vmem:[%s172 + $0x3f0] sm:$0xff] %vm2176, %v2173
      %2304 = vst.msk [vmem:[%s172 + $0x3f8] sm:$0xff] %vm2176, %v2175
      %s2305 = smul.u32 128, %s14
      %p2306 = scmp.lt.s32.totalorder %s2305, 255
      %s2307 = scalar_select %p2306, %s2305, 255
      %s2308 = smul.addr %s2307, 8
      %s2309 = scalar_lea.vmem %s3, %s2308
      // Predicated region
      $region33: #{a_call__.31} parent=31 // pred_check
        %p2310 = pneg %p100
      $region34: #{a_call__.31} parent=31 // pred_check_branch
        %2312 = sbr.rel (%p2310) target = $region36
      $region35: #{a_call__.31} parent=31 // pred_region
        %s2313 = smul.u32 128, %s14
      $region36: #{a_call__.31} parent=31 // pred_fallthru
        _
    $region32: #{a_call__.31} parent=5 // pred_fallthru
      _
    %p2314 = scmp.le.s32.totalorder 2, %s9
    // Predicated region
    $region37: #{a_call__.31} parent=5 // pred_check
      %p2315 = pneg %p2314
    $region38: #{a_call__.31} parent=5 // pred_check_branch
      %2317 = sbr.rel (%p2315) target = $region40
    $region39: #{a_call__.31} parent=5 // pred_region
      %s2318 = ssub.s32 %s9, 2
      // Predicated region
      $region41: #{a_call__.31} parent=39 // pred_check
        %p2319 = pneg %p106
      $region42: #{a_call__.31} parent=39 // pred_check_branch
        %2321 = sbr.rel (%p2319) target = $region44
      $region43: #{a_call__.31} parent=39 // pred_region
        %s2322 = smul.u32 128, %s15
        %p2323 = scmp.lt.s32.totalorder %s2322, 255
        %s2324 = scalar_select %p2323, %s2322, 255
        %s2325 = smul.addr %s2324, 8
        %s2326 = scalar_lea.vmem %s3, %s2325
      $region44: #{a_call__.31} parent=39 // pred_fallthru
        _
    $region40: #{a_call__.31} parent=5 // pred_fallthru
      _
  $region6: #{a_call__.31} parent=0 // loop_footer
    %s13 = sadd.s32 1, %s9
  $region7: #{a_call__.31} parent=0 // loop_footer_branch
    %8 = sbr.rel target = $region3
  $region8: #{a_call__.31} parent=0 // loop_exit
    _

</llo_original>
